<compile_context>
chip_gen: v6e
topology: v6e:2x2x1
jax: 0.10.0
libtpu: 0.0.40
codegen_flags: <defaults>
</compile_context>

<pallas_src>
import functools
import math

import jax
import jax.numpy as jnp
import numpy as np
from jax.experimental import pallas as pl
from jax.experimental.pallas import tpu as pltpu


def _layernorm(x, g, b, eps=1e-6):
    # Two-pass variance in f32: matches torch.nn.LayerNorm (biased var,
    # eps inside sqrt) and avoids E[x^2]-mu^2 cancellation.
    mu = jnp.mean(x, axis=-1, keepdims=True)
    xc = x - mu
    var = jnp.mean(xc * xc, axis=-1, keepdims=True)
    return xc * jax.lax.rsqrt(var + eps) * g + b


def _decoder_layer_kernel(
    # activation tiles
    dec_ref, enc_ref,
    # attention params (Wq has 1/sqrt(d_k) folded in; wkv = [Wk1|Wv1|Wk2|Wv2];
    # Wo pre-split per head as (H, d_v, D))
    wq1_ref, wq2_ref, wkv_ref, wo1_ref, wo2_ref,
    g1_ref, bln1_ref, g2_ref, bln2_ref,
    # ffn params
    w1_ref, b1_ref, w2_ref, b2_ref, g3_ref, bln3_ref,
    # output
    out_ref,
    *, n_head, d_k, d_v, ff_block,
):
    f32, bf16 = jnp.float32, jnp.bfloat16
    bt, lq, d = dec_ref.shape
    lk = enc_ref.shape[1]
    m = bt * lq
    nk, nv = n_head * d_k, n_head * d_v

    # Fold batch into matmul rows; residual / LN math stays f32.
    x2d = dec_ref[...].reshape(m, d).astype(f32)
    enc_bf = enc_ref[...].reshape(bt * lk, d).astype(bf16)

    # Fused enc-side K/V projections for BOTH attention layers: one wide-N
    # matmul keeps the MXU output width full instead of 4*H narrow N=d_k dots.
    kv_all = jnp.dot(enc_bf, wkv_ref[...], preferred_element_type=f32)

    def mha(x_f32, wq_ref, wo_ref, g_ref, bln_ref, k_off, v_off):
        # Single wide Q projection (scale already folded into Wq).
        q_all = jnp.dot(x_f32.astype(bf16), wq_ref[...],
                        preferred_element_type=f32)          # (m, H*d_k)
        acc = x_f32   # residual; per-head output-proj contributions add here
        for h in range(n_head):                              # static unroll
            qh = q_all[:, h * d_k:(h + 1) * d_k].reshape(bt, lq, d_k).astype(bf16)
            kh = kv_all[:, k_off + h * d_k:k_off + (h + 1) * d_k] \
                .reshape(bt, lk, d_k).astype(bf16)
            vh = kv_all[:, v_off + h * d_v:v_off + (h + 1) * d_v] \
                .reshape(bt, lk, d_v).astype(bf16)
            # Batched (over bt) score / context matmuls.
            s = jnp.einsum("bqd,bkd->bqk", qh, kh, preferred_element_type=f32)
            s = s - jnp.max(s, axis=-1, keepdims=True)
            p = jnp.exp(s)
            # EUP approx reciprocal (free slot; ~1e-3 rel err — see tolerance).
            p = p * pl.reciprocal(jnp.sum(p, axis=-1, keepdims=True),
                                  approx=True)
            oh = jnp.einsum("bqk,bkd->bqd", p.astype(bf16), vh,
                            preferred_element_type=f32)      # (bt, lq, d_v)
            # Accumulate output projection per head: no lane concat, no H
            # live f32 o_parts (vreg/store pressure bounded per head).
            acc = acc + jnp.dot(oh.reshape(m, d_v).astype(bf16), wo_ref[h],
                                preferred_element_type=f32)
        return _layernorm(acc, g_ref[...], bln_ref[...])

    # --- enc_attn1: Q from dec_input, K/V from enc_input ---
    x2d = mha(x2d, wq1_ref, wo1_ref, g1_ref, bln1_ref, 0, nk)
    # --- enc_attn2: Q from previous output, K/V from enc_input ---
    x2d = mha(x2d, wq2_ref, wo2_ref, g2_ref, bln2_ref, nk + nv, 2 * nk + nv)

    # --- positionwise feed-forward, tiled over d_inner ---
    residual = x2d
    x_bf = x2d.astype(bf16)
    d_inner = w1_ref.shape[1]
    y = residual + b2_ref[...]
    for c0 in range(0, d_inner, ff_block):                   # static unroll
        c1 = min(d_inner, c0 + ff_block)
        h1 = jnp.dot(x_bf, w1_ref[:, c0:c1],
                     preferred_element_type=f32) + b1_ref[:, c0:c1]
        h1 = jnp.maximum(h1, 0.0)
        y = y + jnp.dot(h1.astype(bf16), w2_ref[c0:c1, :],
                        preferred_element_type=f32)
    x2d = _layernorm(y, g3_ref[...], bln3_ref[...])

    # Single store at the end of the tile.
    out_ref[...] = x2d.reshape(bt, lq, d).astype(out_ref.dtype)


def decoder_layer_style(dec_input, enc_input, params, *, n_head, d_k, d_v,
                        batch_block=None, ff_block=None,
                        out_dtype=jnp.float32):
    B, Lq, D = dec_input.shape
    _, Lk, _ = enc_input.shape
    d_inner = params["w1"].shape[1]
    nk, nv = n_head * d_k, n_head * d_v
    bf16, f32 = jnp.bfloat16, jnp.float32

    if ff_block is None:
        ff_block = 1024
    ff_block = min(ff_block, d_inner)

    scale = 1.0 / math.sqrt(d_k)

    prepared = [
        (jnp.asarray(params["wq1"], f32) * scale).astype(bf16),     # wq1 (D, H*d_k)
        (jnp.asarray(params["wq2"], f32) * scale).astype(bf16),     # wq2
        jnp.concatenate([params["wk1"], params["wv1"],
                         params["wk2"], params["wv2"]],
                        axis=1).astype(bf16),                        # wkv (D, 2H(dk+dv))
        jnp.asarray(params["wo1"], f32).reshape(n_head, d_v, D).astype(bf16),
        jnp.asarray(params["wo2"], f32).reshape(n_head, d_v, D).astype(bf16),
        params["g1"].astype(f32), params["bln1"].astype(f32),
        params["g2"].astype(f32), params["bln2"].astype(f32),
        params["w1"].astype(bf16), params["b1"].astype(f32),
        params["w2"].astype(bf16), params["b2"].astype(f32),
        params["g3"].astype(f32), params["bln3"].astype(f32),
    ]
    weight_bytes = sum(int(w.size) * w.dtype.itemsize for w in prepared)

    # Generation awareness: VMEM capacity + TensorCore count.
    kind = jax.devices()[0].device_kind.lower()
    two_tc = "v7" in kind                       # v7x: 2 TensorCores / chip
    try:
        vmem_cap = int(pltpu.get_tpu_info().vmem_capacity_bytes)
    except Exception:
        vmem_cap = (64 if two_tc else 128) * 2 ** 20
    budget = max(vmem_cap - 8 * 2 ** 20, 16 * 2 ** 20)   # headroom for scratch

    def est_vmem(bb):
        # Weights (single-buffered) + double-buffered I/O tiles + in-kernel
        # intermediates (fused KV slab, Q, live scores, FFN chunk, f32 slabs).
        m_rows, mk_rows = bb * Lq, bb * Lk
        io = 2 * bb * (2 * Lq + Lk) * D * 4
        kv = mk_rows * 2 * (nk + nv) * 4
        qp = m_rows * nk * 4
        scores = 4 * bb * Lq * Lk * 4
        ffn = 2 * m_rows * ff_block * 4
        slabs = 8 * m_rows * D * 4
        return weight_bytes + io + kv + qp + scores + ffn + slabs

    if batch_block is None:
        # v7x: keep >= 2 grid steps so both TCs stay busy; v5e/v6e: the grid
        # is a serial loop on one TC, so take the largest tile that fits VMEM.
        min_steps = 2 if (two_tc and B >= 2) else 1
        batch_block = 1
        for bb in range(1, B + 1):
            if (B % bb == 0 and B // bb >= min_steps
                    and est_vmem(bb) + (16 << 20) <= budget):
                batch_block = bb
    assert B % batch_block == 0, "batch_block must divide batch size"

    vmem_limit = int(min(budget,
                         max(32 * 2 ** 20, est_vmem(batch_block) + 16 * 2 ** 20)))

    kernel = functools.partial(_decoder_layer_kernel, n_head=n_head,
                               d_k=d_k, d_v=d_v, ff_block=ff_block)

    def build(single_buffer_weights):
        if single_buffer_weights:
            def wspec(w):
                # Constant-index weights: single-buffer to halve resident VMEM.
                return pl.BlockSpec(w.shape, lambda i, nd=w.ndim: (0,) * nd,
                                    pipeline_mode=pl.Buffered(1))
        else:
            def wspec(w):
                return pl.BlockSpec(w.shape, lambda i, nd=w.ndim: (0,) * nd)

        grid_spec = pltpu.PrefetchScalarGridSpec(
            num_scalar_prefetch=0,
            grid=(B // batch_block,),
            in_specs=[
                pl.BlockSpec((batch_block, Lq, D), lambda i: (i, 0, 0)),
                pl.BlockSpec((batch_block, Lk, D), lambda i: (i, 0, 0)),
            ] + [wspec(w) for w in prepared],
            out_specs=pl.BlockSpec((batch_block, Lq, D), lambda i: (i, 0, 0)),
        )
        return pl.pallas_call(
            kernel,
            out_shape=jax.ShapeDtypeStruct((B, Lq, D), out_dtype),
            grid_spec=grid_spec,
            compiler_params=pltpu.CompilerParams(
                dimension_semantics=("parallel",),
                vmem_limit_bytes=vmem_limit),
        )

    try:
        return build(True)(dec_input, enc_input, *prepared)
    except Exception:
        # Fallback if this jax version rejects pipeline_mode=pl.Buffered(1).
        return build(False)(dec_input, enc_input, *prepared)


def make_params(key, d_model, d_inner, n_head, d_k, d_v):
    ks = jax.random.split(key, 12)
    s = 0.02
    return {
        "wq1": jax.random.normal(ks[0], (d_model, n_head * d_k), jnp.float32) * s,
        "wk1": jax.random.normal(ks[1], (d_model, n_head * d_k), jnp.float32) * s,
        "wv1": jax.random.normal(ks[2], (d_model, n_head * d_v), jnp.float32) * s,
        "wo1": jax.random.normal(ks[3], (n_head * d_v, d_model), jnp.float32) * s,
        "g1": jnp.ones((1, d_model), jnp.float32),
        "bln1": jnp.zeros((1, d_model), jnp.float32),
        "wq2": jax.random.normal(ks[4], (d_model, n_head * d_k), jnp.float32) * s,
        "wk2": jax.random.normal(ks[5], (d_model, n_head * d_k), jnp.float32) * s,
        "wv2": jax.random.normal(ks[6], (d_model, n_head * d_v), jnp.float32) * s,
        "wo2": jax.random.normal(ks[7], (n_head * d_v, d_model), jnp.float32) * s,
        "g2": jnp.ones((1, d_model), jnp.float32),
        "bln2": jnp.zeros((1, d_model), jnp.float32),
        "w1": jax.random.normal(ks[8], (d_model, d_inner), jnp.float32) * s,
        "b1": jax.random.normal(ks[9], (1, d_inner), jnp.float32) * s,
        "w2": jax.random.normal(ks[10], (d_inner, d_model), jnp.float32) * s,
        "b2": jax.random.normal(ks[11], (1, d_model), jnp.float32) * s,
        "g3": jnp.ones((1, d_model), jnp.float32),
        "bln3": jnp.zeros((1, d_model), jnp.float32),
    }


def reference(dec, enc, p, *, n_head, d_k, d_v):
    """Pure-JAX f32 reference of the same forward pass (for verification)."""
    def ln(x, g, b):
        mu = jnp.mean(x, -1, keepdims=True)
        var = jnp.mean((x - mu) ** 2, -1, keepdims=True)
        return (x - mu) / jnp.sqrt(var + 1e-6) * g + b

    def mha(qx, kvx, wq, wk, wv, wo, g, b):
        B, Lq, D = qx.shape
        Lk = kvx.shape[1]
        res = qx
        q = (qx @ wq).reshape(B, Lq, n_head, d_k).transpose(0, 2, 1, 3)
        k = (kvx @ wk).reshape(B, Lk, n_head, d_k).transpose(0, 2, 1, 3)
        v = (kvx @ wv).reshape(B, Lk, n_head, d_v).transpose(0, 2, 1, 3)
        s = jnp.einsum("bhqd,bhkd->bhqk", q, k) / jnp.sqrt(jnp.float32(d_k))
        a = jax.nn.softmax(s, axis=-1)
        o = jnp.einsum("bhqk,bhkd->bhqd", a, v).transpose(0, 2, 1, 3)
        o = o.reshape(B, Lq, n_head * d_v) @ wo
        return ln(o + res, g, b)

    x = mha(dec, enc, p["wq1"], p["wk1"], p["wv1"], p["wo1"], p["g1"], p["bln1"])
    x = mha(x, enc, p["wq2"], p["wk2"], p["wv2"], p["wo2"], p["g2"], p["bln2"])
    res = x
    h = jnp.maximum(x @ p["w1"] + p["b1"], 0.0)
    y = h @ p["w2"] + p["b2"]
    return ln(y + res, p["g3"], p["bln3"])


if __name__ == "__main__":
    # Small shapes: batch=4, seq=8, d_model=32, d_inner=64, n_head=4, d_k=d_v=8.
    B, Lq, Lk = 4, 8, 8
    d_model, d_inner, n_head, d_k, d_v = 32, 64, 4, 8, 8

    key = jax.random.PRNGKey(0)
    k_dec, k_enc, k_par = jax.random.split(key, 3)
    dec_input = jax.random.normal(k_dec, (B, Lq, d_model), jnp.float32)
    enc_input = jax.random.normal(k_enc, (B, Lk, d_model), jnp.float32)
    params = make_params(k_par, d_model, d_inner, n_head, d_k, d_v)

    out = decoder_layer_style(dec_input, enc_input, params,
                              n_head=n_head, d_k=d_k, d_v=d_v)
    out = jax.block_until_ready(out)

    ref = jax.block_until_ready(
        reference(dec_input, enc_input, params, n_head=n_head, d_k=d_k, d_v=d_v))
    # bf16 MXU operands (f32 accumulation) + approx softmax reciprocal ->
    # relaxed tolerances vs. the pure-f32 reference.
    np.testing.assert_allclose(np.asarray(out), np.asarray(ref),
                               rtol=2e-2, atol=2e-2)
    print("KERNEL_OK")
</pallas_src>

<mosaic_0001>
module attributes {stable_mosaic.version = 11 : i64} {
  func.func @_decoder_layer_kernel(%arg0: i32, %arg1: memref<4x8x32xf32, #tpu.memory_space<vmem>>, %arg2: memref<4x8x32xf32, #tpu.memory_space<vmem>>, %arg3: memref<32x32xbf16, #tpu.memory_space<vmem>>, %arg4: memref<32x32xbf16, #tpu.memory_space<vmem>>, %arg5: memref<32x128xbf16, #tpu.memory_space<vmem>>, %arg6: memref<4x8x32xbf16, #tpu.memory_space<vmem>>, %arg7: memref<4x8x32xbf16, #tpu.memory_space<vmem>>, %arg8: memref<1x32xf32, #tpu.memory_space<vmem>>, %arg9: memref<1x32xf32, #tpu.memory_space<vmem>>, %arg10: memref<1x32xf32, #tpu.memory_space<vmem>>, %arg11: memref<1x32xf32, #tpu.memory_space<vmem>>, %arg12: memref<32x64xbf16, #tpu.memory_space<vmem>>, %arg13: memref<1x64xf32, #tpu.memory_space<vmem>>, %arg14: memref<64x32xbf16, #tpu.memory_space<vmem>>, %arg15: memref<1x32xf32, #tpu.memory_space<vmem>>, %arg16: memref<1x32xf32, #tpu.memory_space<vmem>>, %arg17: memref<1x32xf32, #tpu.memory_space<vmem>>, %arg18: memref<4x8x32xf32, #tpu.memory_space<vmem>>) attributes {dimension_semantics = [#tpu.dimension_semantics<parallel>], iteration_bounds = array<i64: 1>, scalar_prefetch = 0 : i64, scratch_operands = 0 : i64, tpu.core_type = #tpu.core_type<tc>, window_params = [{transform_indices = @transform_0, window_bounds = array<i64: 4, 8, 32>}, {transform_indices = @transform_1, window_bounds = array<i64: 4, 8, 32>}, {pipeline_mode = #tpu.pipeline_mode<synchronous>, transform_indices = @transform_2, window_bounds = array<i64: 32, 32>}, {pipeline_mode = #tpu.pipeline_mode<synchronous>, transform_indices = @transform_3, window_bounds = array<i64: 32, 32>}, {pipeline_mode = #tpu.pipeline_mode<synchronous>, transform_indices = @transform_4, window_bounds = array<i64: 32, 128>}, {pipeline_mode = #tpu.pipeline_mode<synchronous>, transform_indices = @transform_5, window_bounds = array<i64: 4, 8, 32>}, {pipeline_mode = #tpu.pipeline_mode<synchronous>, transform_indices = @transform_6, window_bounds = array<i64: 4, 8, 32>}, {pipeline_mode = #tpu.pipeline_mode<synchronous>, transform_indices = @transform_7, window_bounds = array<i64: 1, 32>}, {pipeline_mode = #tpu.pipeline_mode<synchronous>, transform_indices = @transform_8, window_bounds = array<i64: 1, 32>}, {pipeline_mode = #tpu.pipeline_mode<synchronous>, transform_indices = @transform_9, window_bounds = array<i64: 1, 32>}, {pipeline_mode = #tpu.pipeline_mode<synchronous>, transform_indices = @transform_10, window_bounds = array<i64: 1, 32>}, {pipeline_mode = #tpu.pipeline_mode<synchronous>, transform_indices = @transform_11, window_bounds = array<i64: 32, 64>}, {pipeline_mode = #tpu.pipeline_mode<synchronous>, transform_indices = @transform_12, window_bounds = array<i64: 1, 64>}, {pipeline_mode = #tpu.pipeline_mode<synchronous>, transform_indices = @transform_13, window_bounds = array<i64: 64, 32>}, {pipeline_mode = #tpu.pipeline_mode<synchronous>, transform_indices = @transform_14, window_bounds = array<i64: 1, 32>}, {pipeline_mode = #tpu.pipeline_mode<synchronous>, transform_indices = @transform_15, window_bounds = array<i64: 1, 32>}, {pipeline_mode = #tpu.pipeline_mode<synchronous>, transform_indices = @transform_16, window_bounds = array<i64: 1, 32>}, {transform_indices = @transform_17, window_bounds = array<i64: 4, 8, 32>}]} {
    %c0 = arith.constant 0 : index
    %c0_0 = arith.constant 0 : index
    %c0_1 = arith.constant 0 : index
    %0 = vector.load %arg1[%c0, %c0_0, %c0_1] : memref<4x8x32xf32, #tpu.memory_space<vmem>>, vector<4x8x32xf32>
    %1 = vector.shape_cast %0 : vector<4x8x32xf32> to vector<32x32xf32>
    %c0_2 = arith.constant 0 : index
    %c0_3 = arith.constant 0 : index
    %c0_4 = arith.constant 0 : index
    %2 = vector.load %arg2[%c0_2, %c0_3, %c0_4] : memref<4x8x32xf32, #tpu.memory_space<vmem>>, vector<4x8x32xf32>
    %3 = vector.shape_cast %2 : vector<4x8x32xf32> to vector<32x32xf32>
    %4 = arith.truncf %3 : vector<32x32xf32> to vector<32x32xbf16>
    %c0_5 = arith.constant 0 : index
    %c0_6 = arith.constant 0 : index
    %5 = vector.load %arg5[%c0_5, %c0_6] : memref<32x128xbf16, #tpu.memory_space<vmem>>, vector<32x128xbf16>
    %cst = arith.constant dense<0.000000e+00> : vector<32x128xf32>
    %6 = tpu.matmul %4, %5, %cst {dimension_numbers = #tpu.dot_dimension_numbers<[1], [0], [0], [1], [0, 0, 1, 1], [], []>} : vector<32x32xbf16>, vector<32x128xbf16>, vector<32x128xf32> -> vector<32x128xf32>
    %7 = arith.truncf %1 : vector<32x32xf32> to vector<32x32xbf16>
    %c0_7 = arith.constant 0 : index
    %c0_8 = arith.constant 0 : index
    %8 = vector.load %arg3[%c0_7, %c0_8] : memref<32x32xbf16, #tpu.memory_space<vmem>>, vector<32x32xbf16>
    %cst_9 = arith.constant dense<0.000000e+00> : vector<32x32xf32>
    %9 = tpu.matmul %7, %8, %cst_9 {dimension_numbers = #tpu.dot_dimension_numbers<[1], [0], [0], [1], [0, 0, 1, 1], [], []>} : vector<32x32xbf16>, vector<32x32xbf16>, vector<32x32xf32> -> vector<32x32xf32>
    %10 = vector.extract_strided_slice %9 {offsets = [0, 0], sizes = [32, 8], strides = [1, 1]} : vector<32x32xf32> to vector<32x8xf32>
    %11 = vector.shape_cast %10 : vector<32x8xf32> to vector<4x8x8xf32>
    %12 = arith.truncf %11 : vector<4x8x8xf32> to vector<4x8x8xbf16>
    %13 = vector.extract_strided_slice %6 {offsets = [0, 0], sizes = [32, 8], strides = [1, 1]} : vector<32x128xf32> to vector<32x8xf32>
    %14 = vector.shape_cast %13 : vector<32x8xf32> to vector<4x8x8xf32>
    %15 = arith.truncf %14 : vector<4x8x8xf32> to vector<4x8x8xbf16>
    %16 = vector.extract_strided_slice %6 {offsets = [0, 32], sizes = [32, 8], strides = [1, 1]} : vector<32x128xf32> to vector<32x8xf32>
    %17 = vector.shape_cast %16 : vector<32x8xf32> to vector<4x8x8xf32>
    %18 = arith.truncf %17 : vector<4x8x8xf32> to vector<4x8x8xbf16>
    "tpu.trace_start"() <{level = 10 : i32, message = "bqd,bkd->bqk"}> : () -> ()
    %cst_10 = arith.constant dense<0.000000e+00> : vector<4x8x8xf32>
    %19 = tpu.matmul %12, %15, %cst_10 {dimension_numbers = #tpu.dot_dimension_numbers<[2], [2], [1], [1], [0, 0, 0, 1, 1, 1], [0], [0]>} : vector<4x8x8xbf16>, vector<4x8x8xbf16>, vector<4x8x8xf32> -> vector<4x8x8xf32>
    "tpu.trace_stop"() : () -> ()
    %cst_11 = arith.constant dense<0xFF800000> : vector<4x8xf32>
    %20 = vector.multi_reduction <maximumf>, %19, %cst_11 [2] : vector<4x8x8xf32> to vector<4x8xf32>
    %21 = vector.shape_cast %20 : vector<4x8xf32> to vector<4x8x1xf32>
    %22 = vector.broadcast %21 : vector<4x8x1xf32> to vector<4x8x8xf32>
    %23 = arith.subf %19, %22 : vector<4x8x8xf32>
    %24 = math.exp %23 : vector<4x8x8xf32>
    %cst_12 = arith.constant dense<0.000000e+00> : vector<4x8xf32>
    %25 = vector.multi_reduction <add>, %24, %cst_12 [2] : vector<4x8x8xf32> to vector<4x8xf32>
    %26 = vector.shape_cast %25 : vector<4x8xf32> to vector<4x8x1xf32>
    %27 = tpu.reciprocal %26 {approx = true} : vector<4x8x1xf32> -> vector<4x8x1xf32>
    %28 = vector.broadcast %27 : vector<4x8x1xf32> to vector<4x8x8xf32>
    %29 = arith.mulf %24, %28 : vector<4x8x8xf32>
    %30 = arith.truncf %29 : vector<4x8x8xf32> to vector<4x8x8xbf16>
    "tpu.trace_start"() <{level = 10 : i32, message = "bqk,bkd->bqd"}> : () -> ()
    %cst_13 = arith.constant dense<0.000000e+00> : vector<4x8x8xf32>
    %31 = tpu.matmul %30, %18, %cst_13 {dimension_numbers = #tpu.dot_dimension_numbers<[2], [1], [1], [2], [0, 0, 0, 1, 1, 2], [0], [0]>} : vector<4x8x8xbf16>, vector<4x8x8xbf16>, vector<4x8x8xf32> -> vector<4x8x8xf32>
    "tpu.trace_stop"() : () -> ()
    %32 = vector.shape_cast %31 : vector<4x8x8xf32> to vector<32x8xf32>
    %33 = arith.truncf %32 : vector<32x8xf32> to vector<32x8xbf16>
    %c0_14 = arith.constant 0 : index
    %c0_15 = arith.constant 0 : index
    %c0_16 = arith.constant 0 : index
    %34 = vector.load %arg6[%c0_14, %c0_15, %c0_16] : memref<4x8x32xbf16, #tpu.memory_space<vmem>>, vector<1x8x32xbf16>
    %35 = vector.shape_cast %34 : vector<1x8x32xbf16> to vector<8x32xbf16>
    %cst_17 = arith.constant dense<0.000000e+00> : vector<32x32xf32>
    %36 = tpu.matmul %33, %35, %cst_17 {dimension_numbers = #tpu.dot_dimension_numbers<[1], [0], [0], [1], [0, 0, 1, 1], [], []>} : vector<32x8xbf16>, vector<8x32xbf16>, vector<32x32xf32> -> vector<32x32xf32>
    %37 = arith.addf %1, %36 : vector<32x32xf32>
    %38 = vector.extract_strided_slice %9 {offsets = [0, 8], sizes = [32, 8], strides = [1, 1]} : vector<32x32xf32> to vector<32x8xf32>
    %39 = vector.shape_cast %38 : vector<32x8xf32> to vector<4x8x8xf32>
    %40 = arith.truncf %39 : vector<4x8x8xf32> to vector<4x8x8xbf16>
    %41 = vector.extract_strided_slice %6 {offsets = [0, 8], sizes = [32, 8], strides = [1, 1]} : vector<32x128xf32> to vector<32x8xf32>
    %42 = vector.shape_cast %41 : vector<32x8xf32> to vector<4x8x8xf32>
    %43 = arith.truncf %42 : vector<4x8x8xf32> to vector<4x8x8xbf16>
    %44 = vector.extract_strided_slice %6 {offsets = [0, 40], sizes = [32, 8], strides = [1, 1]} : vector<32x128xf32> to vector<32x8xf32>
    %45 = vector.shape_cast %44 : vector<32x8xf32> to vector<4x8x8xf32>
    %46 = arith.truncf %45 : vector<4x8x8xf32> to vector<4x8x8xbf16>
    "tpu.trace_start"() <{level = 10 : i32, message = "bqd,bkd->bqk"}> : () -> ()
    %cst_18 = arith.constant dense<0.000000e+00> : vector<4x8x8xf32>
    %47 = tpu.matmul %40, %43, %cst_18 {dimension_numbers = #tpu.dot_dimension_numbers<[2], [2], [1], [1], [0, 0, 0, 1, 1, 1], [0], [0]>} : vector<4x8x8xbf16>, vector<4x8x8xbf16>, vector<4x8x8xf32> -> vector<4x8x8xf32>
    "tpu.trace_stop"() : () -> ()
    %cst_19 = arith.constant dense<0xFF800000> : vector<4x8xf32>
    %48 = vector.multi_reduction <maximumf>, %47, %cst_19 [2] : vector<4x8x8xf32> to vector<4x8xf32>
    %49 = vector.shape_cast %48 : vector<4x8xf32> to vector<4x8x1xf32>
    %50 = vector.broadcast %49 : vector<4x8x1xf32> to vector<4x8x8xf32>
    %51 = arith.subf %47, %50 : vector<4x8x8xf32>
    %52 = math.exp %51 : vector<4x8x8xf32>
    %cst_20 = arith.constant dense<0.000000e+00> : vector<4x8xf32>
    %53 = vector.multi_reduction <add>, %52, %cst_20 [2] : vector<4x8x8xf32> to vector<4x8xf32>
    %54 = vector.shape_cast %53 : vector<4x8xf32> to vector<4x8x1xf32>
    %55 = tpu.reciprocal %54 {approx = true} : vector<4x8x1xf32> -> vector<4x8x1xf32>
    %56 = vector.broadcast %55 : vector<4x8x1xf32> to vector<4x8x8xf32>
    %57 = arith.mulf %52, %56 : vector<4x8x8xf32>
    %58 = arith.truncf %57 : vector<4x8x8xf32> to vector<4x8x8xbf16>
    "tpu.trace_start"() <{level = 10 : i32, message = "bqk,bkd->bqd"}> : () -> ()
    %cst_21 = arith.constant dense<0.000000e+00> : vector<4x8x8xf32>
    %59 = tpu.matmul %58, %46, %cst_21 {dimension_numbers = #tpu.dot_dimension_numbers<[2], [1], [1], [2], [0, 0, 0, 1, 1, 2], [0], [0]>} : vector<4x8x8xbf16>, vector<4x8x8xbf16>, vector<4x8x8xf32> -> vector<4x8x8xf32>
    "tpu.trace_stop"() : () -> ()
    %60 = vector.shape_cast %59 : vector<4x8x8xf32> to vector<32x8xf32>
    %61 = arith.truncf %60 : vector<32x8xf32> to vector<32x8xbf16>
    %c1 = arith.constant 1 : index
    %c0_22 = arith.constant 0 : index
    %c0_23 = arith.constant 0 : index
    %62 = vector.load %arg6[%c1, %c0_22, %c0_23] : memref<4x8x32xbf16, #tpu.memory_space<vmem>>, vector<1x8x32xbf16>
    %63 = vector.shape_cast %62 : vector<1x8x32xbf16> to vector<8x32xbf16>
    %cst_24 = arith.constant dense<0.000000e+00> : vector<32x32xf32>
    %64 = tpu.matmul %61, %63, %cst_24 {dimension_numbers = #tpu.dot_dimension_numbers<[1], [0], [0], [1], [0, 0, 1, 1], [], []>} : vector<32x8xbf16>, vector<8x32xbf16>, vector<32x32xf32> -> vector<32x32xf32>
    %65 = arith.addf %37, %64 : vector<32x32xf32>
    %66 = vector.extract_strided_slice %9 {offsets = [0, 16], sizes = [32, 8], strides = [1, 1]} : vector<32x32xf32> to vector<32x8xf32>
    %67 = vector.shape_cast %66 : vector<32x8xf32> to vector<4x8x8xf32>
    %68 = arith.truncf %67 : vector<4x8x8xf32> to vector<4x8x8xbf16>
    %69 = vector.extract_strided_slice %6 {offsets = [0, 16], sizes = [32, 8], strides = [1, 1]} : vector<32x128xf32> to vector<32x8xf32>
    %70 = vector.shape_cast %69 : vector<32x8xf32> to vector<4x8x8xf32>
    %71 = arith.truncf %70 : vector<4x8x8xf32> to vector<4x8x8xbf16>
    %72 = vector.extract_strided_slice %6 {offsets = [0, 48], sizes = [32, 8], strides = [1, 1]} : vector<32x128xf32> to vector<32x8xf32>
    %73 = vector.shape_cast %72 : vector<32x8xf32> to vector<4x8x8xf32>
    %74 = arith.truncf %73 : vector<4x8x8xf32> to vector<4x8x8xbf16>
    "tpu.trace_start"() <{level = 10 : i32, message = "bqd,bkd->bqk"}> : () -> ()
    %cst_25 = arith.constant dense<0.000000e+00> : vector<4x8x8xf32>
    %75 = tpu.matmul %68, %71, %cst_25 {dimension_numbers = #tpu.dot_dimension_numbers<[2], [2], [1], [1], [0, 0, 0, 1, 1, 1], [0], [0]>} : vector<4x8x8xbf16>, vector<4x8x8xbf16>, vector<4x8x8xf32> -> vector<4x8x8xf32>
    "tpu.trace_stop"() : () -> ()
    %cst_26 = arith.constant dense<0xFF800000> : vector<4x8xf32>
    %76 = vector.multi_reduction <maximumf>, %75, %cst_26 [2] : vector<4x8x8xf32> to vector<4x8xf32>
    %77 = vector.shape_cast %76 : vector<4x8xf32> to vector<4x8x1xf32>
    %78 = vector.broadcast %77 : vector<4x8x1xf32> to vector<4x8x8xf32>
    %79 = arith.subf %75, %78 : vector<4x8x8xf32>
    %80 = math.exp %79 : vector<4x8x8xf32>
    %cst_27 = arith.constant dense<0.000000e+00> : vector<4x8xf32>
    %81 = vector.multi_reduction <add>, %80, %cst_27 [2] : vector<4x8x8xf32> to vector<4x8xf32>
    %82 = vector.shape_cast %81 : vector<4x8xf32> to vector<4x8x1xf32>
    %83 = tpu.reciprocal %82 {approx = true} : vector<4x8x1xf32> -> vector<4x8x1xf32>
    %84 = vector.broadcast %83 : vector<4x8x1xf32> to vector<4x8x8xf32>
    %85 = arith.mulf %80, %84 : vector<4x8x8xf32>
    %86 = arith.truncf %85 : vector<4x8x8xf32> to vector<4x8x8xbf16>
    "tpu.trace_start"() <{level = 10 : i32, message = "bqk,bkd->bqd"}> : () -> ()
    %cst_28 = arith.constant dense<0.000000e+00> : vector<4x8x8xf32>
    %87 = tpu.matmul %86, %74, %cst_28 {dimension_numbers = #tpu.dot_dimension_numbers<[2], [1], [1], [2], [0, 0, 0, 1, 1, 2], [0], [0]>} : vector<4x8x8xbf16>, vector<4x8x8xbf16>, vector<4x8x8xf32> -> vector<4x8x8xf32>
    "tpu.trace_stop"() : () -> ()
    %88 = vector.shape_cast %87 : vector<4x8x8xf32> to vector<32x8xf32>
    %89 = arith.truncf %88 : vector<32x8xf32> to vector<32x8xbf16>
    %c2 = arith.constant 2 : index
    %c0_29 = arith.constant 0 : index
    %c0_30 = arith.constant 0 : index
    %90 = vector.load %arg6[%c2, %c0_29, %c0_30] : memref<4x8x32xbf16, #tpu.memory_space<vmem>>, vector<1x8x32xbf16>
    %91 = vector.shape_cast %90 : vector<1x8x32xbf16> to vector<8x32xbf16>
    %cst_31 = arith.constant dense<0.000000e+00> : vector<32x32xf32>
    %92 = tpu.matmul %89, %91, %cst_31 {dimension_numbers = #tpu.dot_dimension_numbers<[1], [0], [0], [1], [0, 0, 1, 1], [], []>} : vector<32x8xbf16>, vector<8x32xbf16>, vector<32x32xf32> -> vector<32x32xf32>
    %93 = arith.addf %65, %92 : vector<32x32xf32>
    %94 = vector.extract_strided_slice %9 {offsets = [0, 24], sizes = [32, 8], strides = [1, 1]} : vector<32x32xf32> to vector<32x8xf32>
    %95 = vector.shape_cast %94 : vector<32x8xf32> to vector<4x8x8xf32>
    %96 = arith.truncf %95 : vector<4x8x8xf32> to vector<4x8x8xbf16>
    %97 = vector.extract_strided_slice %6 {offsets = [0, 24], sizes = [32, 8], strides = [1, 1]} : vector<32x128xf32> to vector<32x8xf32>
    %98 = vector.shape_cast %97 : vector<32x8xf32> to vector<4x8x8xf32>
    %99 = arith.truncf %98 : vector<4x8x8xf32> to vector<4x8x8xbf16>
    %100 = vector.extract_strided_slice %6 {offsets = [0, 56], sizes = [32, 8], strides = [1, 1]} : vector<32x128xf32> to vector<32x8xf32>
    %101 = vector.shape_cast %100 : vector<32x8xf32> to vector<4x8x8xf32>
    %102 = arith.truncf %101 : vector<4x8x8xf32> to vector<4x8x8xbf16>
    "tpu.trace_start"() <{level = 10 : i32, message = "bqd,bkd->bqk"}> : () -> ()
    %cst_32 = arith.constant dense<0.000000e+00> : vector<4x8x8xf32>
    %103 = tpu.matmul %96, %99, %cst_32 {dimension_numbers = #tpu.dot_dimension_numbers<[2], [2], [1], [1], [0, 0, 0, 1, 1, 1], [0], [0]>} : vector<4x8x8xbf16>, vector<4x8x8xbf16>, vector<4x8x8xf32> -> vector<4x8x8xf32>
    "tpu.trace_stop"() : () -> ()
    %cst_33 = arith.constant dense<0xFF800000> : vector<4x8xf32>
    %104 = vector.multi_reduction <maximumf>, %103, %cst_33 [2] : vector<4x8x8xf32> to vector<4x8xf32>
    %105 = vector.shape_cast %104 : vector<4x8xf32> to vector<4x8x1xf32>
    %106 = vector.broadcast %105 : vector<4x8x1xf32> to vector<4x8x8xf32>
    %107 = arith.subf %103, %106 : vector<4x8x8xf32>
    %108 = math.exp %107 : vector<4x8x8xf32>
    %cst_34 = arith.constant dense<0.000000e+00> : vector<4x8xf32>
    %109 = vector.multi_reduction <add>, %108, %cst_34 [2] : vector<4x8x8xf32> to vector<4x8xf32>
    %110 = vector.shape_cast %109 : vector<4x8xf32> to vector<4x8x1xf32>
    %111 = tpu.reciprocal %110 {approx = true} : vector<4x8x1xf32> -> vector<4x8x1xf32>
    %112 = vector.broadcast %111 : vector<4x8x1xf32> to vector<4x8x8xf32>
    %113 = arith.mulf %108, %112 : vector<4x8x8xf32>
    %114 = arith.truncf %113 : vector<4x8x8xf32> to vector<4x8x8xbf16>
    "tpu.trace_start"() <{level = 10 : i32, message = "bqk,bkd->bqd"}> : () -> ()
    %cst_35 = arith.constant dense<0.000000e+00> : vector<4x8x8xf32>
    %115 = tpu.matmul %114, %102, %cst_35 {dimension_numbers = #tpu.dot_dimension_numbers<[2], [1], [1], [2], [0, 0, 0, 1, 1, 2], [0], [0]>} : vector<4x8x8xbf16>, vector<4x8x8xbf16>, vector<4x8x8xf32> -> vector<4x8x8xf32>
    "tpu.trace_stop"() : () -> ()
    %116 = vector.shape_cast %115 : vector<4x8x8xf32> to vector<32x8xf32>
    %117 = arith.truncf %116 : vector<32x8xf32> to vector<32x8xbf16>
    %c3 = arith.constant 3 : index
    %c0_36 = arith.constant 0 : index
    %c0_37 = arith.constant 0 : index
    %118 = vector.load %arg6[%c3, %c0_36, %c0_37] : memref<4x8x32xbf16, #tpu.memory_space<vmem>>, vector<1x8x32xbf16>
    %119 = vector.shape_cast %118 : vector<1x8x32xbf16> to vector<8x32xbf16>
    %cst_38 = arith.constant dense<0.000000e+00> : vector<32x32xf32>
    %120 = tpu.matmul %117, %119, %cst_38 {dimension_numbers = #tpu.dot_dimension_numbers<[1], [0], [0], [1], [0, 0, 1, 1], [], []>} : vector<32x8xbf16>, vector<8x32xbf16>, vector<32x32xf32> -> vector<32x32xf32>
    %121 = arith.addf %93, %120 : vector<32x32xf32>
    %c0_39 = arith.constant 0 : index
    %c0_40 = arith.constant 0 : index
    %122 = vector.load %arg8[%c0_39, %c0_40] : memref<1x32xf32, #tpu.memory_space<vmem>>, vector<1x32xf32>
    %c0_41 = arith.constant 0 : index
    %c0_42 = arith.constant 0 : index
    %123 = vector.load %arg9[%c0_41, %c0_42] : memref<1x32xf32, #tpu.memory_space<vmem>>, vector<1x32xf32>
    %cst_43 = arith.constant dense<0.000000e+00> : vector<32xf32>
    %124 = vector.multi_reduction <add>, %121, %cst_43 [1] : vector<32x32xf32> to vector<32xf32>
    %125 = vector.shape_cast %124 : vector<32xf32> to vector<32x1xf32>
    %cst_44 = arith.constant 3.200000e+01 : f32
    %126 = vector.broadcast %cst_44 : f32 to vector<32x1xf32>
    %127 = arith.divf %125, %126 : vector<32x1xf32>
    %128 = vector.broadcast %127 : vector<32x1xf32> to vector<32x32xf32>
    %129 = arith.subf %121, %128 : vector<32x32xf32>
    %130 = arith.mulf %129, %129 : vector<32x32xf32>
    %cst_45 = arith.constant dense<0.000000e+00> : vector<32xf32>
    %131 = vector.multi_reduction <add>, %130, %cst_45 [1] : vector<32x32xf32> to vector<32xf32>
    %132 = vector.shape_cast %131 : vector<32xf32> to vector<32x1xf32>
    %cst_46 = arith.constant 3.200000e+01 : f32
    %133 = vector.broadcast %cst_46 : f32 to vector<32x1xf32>
    %134 = arith.divf %132, %133 : vector<32x1xf32>
    %cst_47 = arith.constant 9.99999997E-7 : f32
    %135 = vector.broadcast %cst_47 : f32 to vector<32x1xf32>
    %136 = arith.addf %134, %135 : vector<32x1xf32>
    %137 = math.rsqrt %136 : vector<32x1xf32>
    %138 = vector.broadcast %137 : vector<32x1xf32> to vector<32x32xf32>
    %139 = arith.mulf %129, %138 : vector<32x32xf32>
    %140 = vector.broadcast %122 : vector<1x32xf32> to vector<32x32xf32>
    %141 = arith.mulf %139, %140 : vector<32x32xf32>
    %142 = vector.broadcast %123 : vector<1x32xf32> to vector<32x32xf32>
    %143 = arith.addf %141, %142 : vector<32x32xf32>
    %144 = arith.truncf %143 : vector<32x32xf32> to vector<32x32xbf16>
    %c0_48 = arith.constant 0 : index
    %c0_49 = arith.constant 0 : index
    %145 = vector.load %arg4[%c0_48, %c0_49] : memref<32x32xbf16, #tpu.memory_space<vmem>>, vector<32x32xbf16>
    %cst_50 = arith.constant dense<0.000000e+00> : vector<32x32xf32>
    %146 = tpu.matmul %144, %145, %cst_50 {dimension_numbers = #tpu.dot_dimension_numbers<[1], [0], [0], [1], [0, 0, 1, 1], [], []>} : vector<32x32xbf16>, vector<32x32xbf16>, vector<32x32xf32> -> vector<32x32xf32>
    %147 = vector.extract_strided_slice %146 {offsets = [0, 0], sizes = [32, 8], strides = [1, 1]} : vector<32x32xf32> to vector<32x8xf32>
    %148 = vector.shape_cast %147 : vector<32x8xf32> to vector<4x8x8xf32>
    %149 = arith.truncf %148 : vector<4x8x8xf32> to vector<4x8x8xbf16>
    %150 = vector.extract_strided_slice %6 {offsets = [0, 64], sizes = [32, 8], strides = [1, 1]} : vector<32x128xf32> to vector<32x8xf32>
    %151 = vector.shape_cast %150 : vector<32x8xf32> to vector<4x8x8xf32>
    %152 = arith.truncf %151 : vector<4x8x8xf32> to vector<4x8x8xbf16>
    %153 = vector.extract_strided_slice %6 {offsets = [0, 96], sizes = [32, 8], strides = [1, 1]} : vector<32x128xf32> to vector<32x8xf32>
    %154 = vector.shape_cast %153 : vector<32x8xf32> to vector<4x8x8xf32>
    %155 = arith.truncf %154 : vector<4x8x8xf32> to vector<4x8x8xbf16>
    "tpu.trace_start"() <{level = 10 : i32, message = "bqd,bkd->bqk"}> : () -> ()
    %cst_51 = arith.constant dense<0.000000e+00> : vector<4x8x8xf32>
    %156 = tpu.matmul %149, %152, %cst_51 {dimension_numbers = #tpu.dot_dimension_numbers<[2], [2], [1], [1], [0, 0, 0, 1, 1, 1], [0], [0]>} : vector<4x8x8xbf16>, vector<4x8x8xbf16>, vector<4x8x8xf32> -> vector<4x8x8xf32>
    "tpu.trace_stop"() : () -> ()
    %cst_52 = arith.constant dense<0xFF800000> : vector<4x8xf32>
    %157 = vector.multi_reduction <maximumf>, %156, %cst_52 [2] : vector<4x8x8xf32> to vector<4x8xf32>
    %158 = vector.shape_cast %157 : vector<4x8xf32> to vector<4x8x1xf32>
    %159 = vector.broadcast %158 : vector<4x8x1xf32> to vector<4x8x8xf32>
    %160 = arith.subf %156, %159 : vector<4x8x8xf32>
    %161 = math.exp %160 : vector<4x8x8xf32>
    %cst_53 = arith.constant dense<0.000000e+00> : vector<4x8xf32>
    %162 = vector.multi_reduction <add>, %161, %cst_53 [2] : vector<4x8x8xf32> to vector<4x8xf32>
    %163 = vector.shape_cast %162 : vector<4x8xf32> to vector<4x8x1xf32>
    %164 = tpu.reciprocal %163 {approx = true} : vector<4x8x1xf32> -> vector<4x8x1xf32>
    %165 = vector.broadcast %164 : vector<4x8x1xf32> to vector<4x8x8xf32>
    %166 = arith.mulf %161, %165 : vector<4x8x8xf32>
    %167 = arith.truncf %166 : vector<4x8x8xf32> to vector<4x8x8xbf16>
    "tpu.trace_start"() <{level = 10 : i32, message = "bqk,bkd->bqd"}> : () -> ()
    %cst_54 = arith.constant dense<0.000000e+00> : vector<4x8x8xf32>
    %168 = tpu.matmul %167, %155, %cst_54 {dimension_numbers = #tpu.dot_dimension_numbers<[2], [1], [1], [2], [0, 0, 0, 1, 1, 2], [0], [0]>} : vector<4x8x8xbf16>, vector<4x8x8xbf16>, vector<4x8x8xf32> -> vector<4x8x8xf32>
    "tpu.trace_stop"() : () -> ()
    %169 = vector.shape_cast %168 : vector<4x8x8xf32> to vector<32x8xf32>
    %170 = arith.truncf %169 : vector<32x8xf32> to vector<32x8xbf16>
    %c0_55 = arith.constant 0 : index
    %c0_56 = arith.constant 0 : index
    %c0_57 = arith.constant 0 : index
    %171 = vector.load %arg7[%c0_55, %c0_56, %c0_57] : memref<4x8x32xbf16, #tpu.memory_space<vmem>>, vector<1x8x32xbf16>
    %172 = vector.shape_cast %171 : vector<1x8x32xbf16> to vector<8x32xbf16>
    %cst_58 = arith.constant dense<0.000000e+00> : vector<32x32xf32>
    %173 = tpu.matmul %170, %172, %cst_58 {dimension_numbers = #tpu.dot_dimension_numbers<[1], [0], [0], [1], [0, 0, 1, 1], [], []>} : vector<32x8xbf16>, vector<8x32xbf16>, vector<32x32xf32> -> vector<32x32xf32>
    %174 = arith.addf %143, %173 : vector<32x32xf32>
    %175 = vector.extract_strided_slice %146 {offsets = [0, 8], sizes = [32, 8], strides = [1, 1]} : vector<32x32xf32> to vector<32x8xf32>
    %176 = vector.shape_cast %175 : vector<32x8xf32> to vector<4x8x8xf32>
    %177 = arith.truncf %176 : vector<4x8x8xf32> to vector<4x8x8xbf16>
    %178 = vector.extract_strided_slice %6 {offsets = [0, 72], sizes = [32, 8], strides = [1, 1]} : vector<32x128xf32> to vector<32x8xf32>
    %179 = vector.shape_cast %178 : vector<32x8xf32> to vector<4x8x8xf32>
    %180 = arith.truncf %179 : vector<4x8x8xf32> to vector<4x8x8xbf16>
    %181 = vector.extract_strided_slice %6 {offsets = [0, 104], sizes = [32, 8], strides = [1, 1]} : vector<32x128xf32> to vector<32x8xf32>
    %182 = vector.shape_cast %181 : vector<32x8xf32> to vector<4x8x8xf32>
    %183 = arith.truncf %182 : vector<4x8x8xf32> to vector<4x8x8xbf16>
    "tpu.trace_start"() <{level = 10 : i32, message = "bqd,bkd->bqk"}> : () -> ()
    %cst_59 = arith.constant dense<0.000000e+00> : vector<4x8x8xf32>
    %184 = tpu.matmul %177, %180, %cst_59 {dimension_numbers = #tpu.dot_dimension_numbers<[2], [2], [1], [1], [0, 0, 0, 1, 1, 1], [0], [0]>} : vector<4x8x8xbf16>, vector<4x8x8xbf16>, vector<4x8x8xf32> -> vector<4x8x8xf32>
    "tpu.trace_stop"() : () -> ()
    %cst_60 = arith.constant dense<0xFF800000> : vector<4x8xf32>
    %185 = vector.multi_reduction <maximumf>, %184, %cst_60 [2] : vector<4x8x8xf32> to vector<4x8xf32>
    %186 = vector.shape_cast %185 : vector<4x8xf32> to vector<4x8x1xf32>
    %187 = vector.broadcast %186 : vector<4x8x1xf32> to vector<4x8x8xf32>
    %188 = arith.subf %184, %187 : vector<4x8x8xf32>
    %189 = math.exp %188 : vector<4x8x8xf32>
    %cst_61 = arith.constant dense<0.000000e+00> : vector<4x8xf32>
    %190 = vector.multi_reduction <add>, %189, %cst_61 [2] : vector<4x8x8xf32> to vector<4x8xf32>
    %191 = vector.shape_cast %190 : vector<4x8xf32> to vector<4x8x1xf32>
    %192 = tpu.reciprocal %191 {approx = true} : vector<4x8x1xf32> -> vector<4x8x1xf32>
    %193 = vector.broadcast %192 : vector<4x8x1xf32> to vector<4x8x8xf32>
    %194 = arith.mulf %189, %193 : vector<4x8x8xf32>
    %195 = arith.truncf %194 : vector<4x8x8xf32> to vector<4x8x8xbf16>
    "tpu.trace_start"() <{level = 10 : i32, message = "bqk,bkd->bqd"}> : () -> ()
    %cst_62 = arith.constant dense<0.000000e+00> : vector<4x8x8xf32>
    %196 = tpu.matmul %195, %183, %cst_62 {dimension_numbers = #tpu.dot_dimension_numbers<[2], [1], [1], [2], [0, 0, 0, 1, 1, 2], [0], [0]>} : vector<4x8x8xbf16>, vector<4x8x8xbf16>, vector<4x8x8xf32> -> vector<4x8x8xf32>
    "tpu.trace_stop"() : () -> ()
    %197 = vector.shape_cast %196 : vector<4x8x8xf32> to vector<32x8xf32>
    %198 = arith.truncf %197 : vector<32x8xf32> to vector<32x8xbf16>
    %c1_63 = arith.constant 1 : index
    %c0_64 = arith.constant 0 : index
    %c0_65 = arith.constant 0 : index
    %199 = vector.load %arg7[%c1_63, %c0_64, %c0_65] : memref<4x8x32xbf16, #tpu.memory_space<vmem>>, vector<1x8x32xbf16>
    %200 = vector.shape_cast %199 : vector<1x8x32xbf16> to vector<8x32xbf16>
    %cst_66 = arith.constant dense<0.000000e+00> : vector<32x32xf32>
    %201 = tpu.matmul %198, %200, %cst_66 {dimension_numbers = #tpu.dot_dimension_numbers<[1], [0], [0], [1], [0, 0, 1, 1], [], []>} : vector<32x8xbf16>, vector<8x32xbf16>, vector<32x32xf32> -> vector<32x32xf32>
    %202 = arith.addf %174, %201 : vector<32x32xf32>
    %203 = vector.extract_strided_slice %146 {offsets = [0, 16], sizes = [32, 8], strides = [1, 1]} : vector<32x32xf32> to vector<32x8xf32>
    %204 = vector.shape_cast %203 : vector<32x8xf32> to vector<4x8x8xf32>
    %205 = arith.truncf %204 : vector<4x8x8xf32> to vector<4x8x8xbf16>
    %206 = vector.extract_strided_slice %6 {offsets = [0, 80], sizes = [32, 8], strides = [1, 1]} : vector<32x128xf32> to vector<32x8xf32>
    %207 = vector.shape_cast %206 : vector<32x8xf32> to vector<4x8x8xf32>
    %208 = arith.truncf %207 : vector<4x8x8xf32> to vector<4x8x8xbf16>
    %209 = vector.extract_strided_slice %6 {offsets = [0, 112], sizes = [32, 8], strides = [1, 1]} : vector<32x128xf32> to vector<32x8xf32>
    %210 = vector.shape_cast %209 : vector<32x8xf32> to vector<4x8x8xf32>
    %211 = arith.truncf %210 : vector<4x8x8xf32> to vector<4x8x8xbf16>
    "tpu.trace_start"() <{level = 10 : i32, message = "bqd,bkd->bqk"}> : () -> ()
    %cst_67 = arith.constant dense<0.000000e+00> : vector<4x8x8xf32>
    %212 = tpu.matmul %205, %208, %cst_67 {dimension_numbers = #tpu.dot_dimension_numbers<[2], [2], [1], [1], [0, 0, 0, 1, 1, 1], [0], [0]>} : vector<4x8x8xbf16>, vector<4x8x8xbf16>, vector<4x8x8xf32> -> vector<4x8x8xf32>
    "tpu.trace_stop"() : () -> ()
    %cst_68 = arith.constant dense<0xFF800000> : vector<4x8xf32>
    %213 = vector.multi_reduction <maximumf>, %212, %cst_68 [2] : vector<4x8x8xf32> to vector<4x8xf32>
    %214 = vector.shape_cast %213 : vector<4x8xf32> to vector<4x8x1xf32>
    %215 = vector.broadcast %214 : vector<4x8x1xf32> to vector<4x8x8xf32>
    %216 = arith.subf %212, %215 : vector<4x8x8xf32>
    %217 = math.exp %216 : vector<4x8x8xf32>
    %cst_69 = arith.constant dense<0.000000e+00> : vector<4x8xf32>
    %218 = vector.multi_reduction <add>, %217, %cst_69 [2] : vector<4x8x8xf32> to vector<4x8xf32>
    %219 = vector.shape_cast %218 : vector<4x8xf32> to vector<4x8x1xf32>
    %220 = tpu.reciprocal %219 {approx = true} : vector<4x8x1xf32> -> vector<4x8x1xf32>
    %221 = vector.broadcast %220 : vector<4x8x1xf32> to vector<4x8x8xf32>
    %222 = arith.mulf %217, %221 : vector<4x8x8xf32>
    %223 = arith.truncf %222 : vector<4x8x8xf32> to vector<4x8x8xbf16>
    "tpu.trace_start"() <{level = 10 : i32, message = "bqk,bkd->bqd"}> : () -> ()
    %cst_70 = arith.constant dense<0.000000e+00> : vector<4x8x8xf32>
    %224 = tpu.matmul %223, %211, %cst_70 {dimension_numbers = #tpu.dot_dimension_numbers<[2], [1], [1], [2], [0, 0, 0, 1, 1, 2], [0], [0]>} : vector<4x8x8xbf16>, vector<4x8x8xbf16>, vector<4x8x8xf32> -> vector<4x8x8xf32>
    "tpu.trace_stop"() : () -> ()
    %225 = vector.shape_cast %224 : vector<4x8x8xf32> to vector<32x8xf32>
    %226 = arith.truncf %225 : vector<32x8xf32> to vector<32x8xbf16>
    %c2_71 = arith.constant 2 : index
    %c0_72 = arith.constant 0 : index
    %c0_73 = arith.constant 0 : index
    %227 = vector.load %arg7[%c2_71, %c0_72, %c0_73] : memref<4x8x32xbf16, #tpu.memory_space<vmem>>, vector<1x8x32xbf16>
    %228 = vector.shape_cast %227 : vector<1x8x32xbf16> to vector<8x32xbf16>
    %cst_74 = arith.constant dense<0.000000e+00> : vector<32x32xf32>
    %229 = tpu.matmul %226, %228, %cst_74 {dimension_numbers = #tpu.dot_dimension_numbers<[1], [0], [0], [1], [0, 0, 1, 1], [], []>} : vector<32x8xbf16>, vector<8x32xbf16>, vector<32x32xf32> -> vector<32x32xf32>
    %230 = arith.addf %202, %229 : vector<32x32xf32>
    %231 = vector.extract_strided_slice %146 {offsets = [0, 24], sizes = [32, 8], strides = [1, 1]} : vector<32x32xf32> to vector<32x8xf32>
    %232 = vector.shape_cast %231 : vector<32x8xf32> to vector<4x8x8xf32>
    %233 = arith.truncf %232 : vector<4x8x8xf32> to vector<4x8x8xbf16>
    %234 = vector.extract_strided_slice %6 {offsets = [0, 88], sizes = [32, 8], strides = [1, 1]} : vector<32x128xf32> to vector<32x8xf32>
    %235 = vector.shape_cast %234 : vector<32x8xf32> to vector<4x8x8xf32>
    %236 = arith.truncf %235 : vector<4x8x8xf32> to vector<4x8x8xbf16>
    %237 = vector.extract_strided_slice %6 {offsets = [0, 120], sizes = [32, 8], strides = [1, 1]} : vector<32x128xf32> to vector<32x8xf32>
    %238 = vector.shape_cast %237 : vector<32x8xf32> to vector<4x8x8xf32>
    %239 = arith.truncf %238 : vector<4x8x8xf32> to vector<4x8x8xbf16>
    "tpu.trace_start"() <{level = 10 : i32, message = "bqd,bkd->bqk"}> : () -> ()
    %cst_75 = arith.constant dense<0.000000e+00> : vector<4x8x8xf32>
    %240 = tpu.matmul %233, %236, %cst_75 {dimension_numbers = #tpu.dot_dimension_numbers<[2], [2], [1], [1], [0, 0, 0, 1, 1, 1], [0], [0]>} : vector<4x8x8xbf16>, vector<4x8x8xbf16>, vector<4x8x8xf32> -> vector<4x8x8xf32>
    "tpu.trace_stop"() : () -> ()
    %cst_76 = arith.constant dense<0xFF800000> : vector<4x8xf32>
    %241 = vector.multi_reduction <maximumf>, %240, %cst_76 [2] : vector<4x8x8xf32> to vector<4x8xf32>
    %242 = vector.shape_cast %241 : vector<4x8xf32> to vector<4x8x1xf32>
    %243 = vector.broadcast %242 : vector<4x8x1xf32> to vector<4x8x8xf32>
    %244 = arith.subf %240, %243 : vector<4x8x8xf32>
    %245 = math.exp %244 : vector<4x8x8xf32>
    %cst_77 = arith.constant dense<0.000000e+00> : vector<4x8xf32>
    %246 = vector.multi_reduction <add>, %245, %cst_77 [2] : vector<4x8x8xf32> to vector<4x8xf32>
    %247 = vector.shape_cast %246 : vector<4x8xf32> to vector<4x8x1xf32>
    %248 = tpu.reciprocal %247 {approx = true} : vector<4x8x1xf32> -> vector<4x8x1xf32>
    %249 = vector.broadcast %248 : vector<4x8x1xf32> to vector<4x8x8xf32>
    %250 = arith.mulf %245, %249 : vector<4x8x8xf32>
    %251 = arith.truncf %250 : vector<4x8x8xf32> to vector<4x8x8xbf16>
    "tpu.trace_start"() <{level = 10 : i32, message = "bqk,bkd->bqd"}> : () -> ()
    %cst_78 = arith.constant dense<0.000000e+00> : vector<4x8x8xf32>
    %252 = tpu.matmul %251, %239, %cst_78 {dimension_numbers = #tpu.dot_dimension_numbers<[2], [1], [1], [2], [0, 0, 0, 1, 1, 2], [0], [0]>} : vector<4x8x8xbf16>, vector<4x8x8xbf16>, vector<4x8x8xf32> -> vector<4x8x8xf32>
    "tpu.trace_stop"() : () -> ()
    %253 = vector.shape_cast %252 : vector<4x8x8xf32> to vector<32x8xf32>
    %254 = arith.truncf %253 : vector<32x8xf32> to vector<32x8xbf16>
    %c3_79 = arith.constant 3 : index
    %c0_80 = arith.constant 0 : index
    %c0_81 = arith.constant 0 : index
    %255 = vector.load %arg7[%c3_79, %c0_80, %c0_81] : memref<4x8x32xbf16, #tpu.memory_space<vmem>>, vector<1x8x32xbf16>
    %256 = vector.shape_cast %255 : vector<1x8x32xbf16> to vector<8x32xbf16>
    %cst_82 = arith.constant dense<0.000000e+00> : vector<32x32xf32>
    %257 = tpu.matmul %254, %256, %cst_82 {dimension_numbers = #tpu.dot_dimension_numbers<[1], [0], [0], [1], [0, 0, 1, 1], [], []>} : vector<32x8xbf16>, vector<8x32xbf16>, vector<32x32xf32> -> vector<32x32xf32>
    %258 = arith.addf %230, %257 : vector<32x32xf32>
    %c0_83 = arith.constant 0 : index
    %c0_84 = arith.constant 0 : index
    %259 = vector.load %arg10[%c0_83, %c0_84] : memref<1x32xf32, #tpu.memory_space<vmem>>, vector<1x32xf32>
    %c0_85 = arith.constant 0 : index
    %c0_86 = arith.constant 0 : index
    %260 = vector.load %arg11[%c0_85, %c0_86] : memref<1x32xf32, #tpu.memory_space<vmem>>, vector<1x32xf32>
    %cst_87 = arith.constant dense<0.000000e+00> : vector<32xf32>
    %261 = vector.multi_reduction <add>, %258, %cst_87 [1] : vector<32x32xf32> to vector<32xf32>
    %262 = vector.shape_cast %261 : vector<32xf32> to vector<32x1xf32>
    %cst_88 = arith.constant 3.200000e+01 : f32
    %263 = vector.broadcast %cst_88 : f32 to vector<32x1xf32>
    %264 = arith.divf %262, %263 : vector<32x1xf32>
    %265 = vector.broadcast %264 : vector<32x1xf32> to vector<32x32xf32>
    %266 = arith.subf %258, %265 : vector<32x32xf32>
    %267 = arith.mulf %266, %266 : vector<32x32xf32>
    %cst_89 = arith.constant dense<0.000000e+00> : vector<32xf32>
    %268 = vector.multi_reduction <add>, %267, %cst_89 [1] : vector<32x32xf32> to vector<32xf32>
    %269 = vector.shape_cast %268 : vector<32xf32> to vector<32x1xf32>
    %cst_90 = arith.constant 3.200000e+01 : f32
    %270 = vector.broadcast %cst_90 : f32 to vector<32x1xf32>
    %271 = arith.divf %269, %270 : vector<32x1xf32>
    %cst_91 = arith.constant 9.99999997E-7 : f32
    %272 = vector.broadcast %cst_91 : f32 to vector<32x1xf32>
    %273 = arith.addf %271, %272 : vector<32x1xf32>
    %274 = math.rsqrt %273 : vector<32x1xf32>
    %275 = vector.broadcast %274 : vector<32x1xf32> to vector<32x32xf32>
    %276 = arith.mulf %266, %275 : vector<32x32xf32>
    %277 = vector.broadcast %259 : vector<1x32xf32> to vector<32x32xf32>
    %278 = arith.mulf %276, %277 : vector<32x32xf32>
    %279 = vector.broadcast %260 : vector<1x32xf32> to vector<32x32xf32>
    %280 = arith.addf %278, %279 : vector<32x32xf32>
    %281 = arith.truncf %280 : vector<32x32xf32> to vector<32x32xbf16>
    %c0_92 = arith.constant 0 : index
    %c0_93 = arith.constant 0 : index
    %282 = vector.load %arg15[%c0_92, %c0_93] : memref<1x32xf32, #tpu.memory_space<vmem>>, vector<1x32xf32>
    %283 = vector.broadcast %282 : vector<1x32xf32> to vector<32x32xf32>
    %284 = arith.addf %280, %283 : vector<32x32xf32>
    %c0_94 = arith.constant 0 : index
    %c0_95 = arith.constant 0 : index
    %285 = vector.load %arg12[%c0_94, %c0_95] : memref<32x64xbf16, #tpu.memory_space<vmem>>, vector<32x64xbf16>
    %cst_96 = arith.constant dense<0.000000e+00> : vector<32x64xf32>
    %286 = tpu.matmul %281, %285, %cst_96 {dimension_numbers = #tpu.dot_dimension_numbers<[1], [0], [0], [1], [0, 0, 1, 1], [], []>} : vector<32x32xbf16>, vector<32x64xbf16>, vector<32x64xf32> -> vector<32x64xf32>
    %c0_97 = arith.constant 0 : index
    %c0_98 = arith.constant 0 : index
    %287 = vector.load %arg13[%c0_97, %c0_98] : memref<1x64xf32, #tpu.memory_space<vmem>>, vector<1x64xf32>
    %288 = vector.broadcast %287 : vector<1x64xf32> to vector<32x64xf32>
    %289 = arith.addf %286, %288 : vector<32x64xf32>
    %cst_99 = arith.constant 0.000000e+00 : f32
    %290 = vector.broadcast %cst_99 : f32 to vector<32x64xf32>
    %291 = arith.maximumf %289, %290 : vector<32x64xf32>
    %292 = arith.truncf %291 : vector<32x64xf32> to vector<32x64xbf16>
    %c0_100 = arith.constant 0 : index
    %c0_101 = arith.constant 0 : index
    %293 = vector.load %arg14[%c0_100, %c0_101] : memref<64x32xbf16, #tpu.memory_space<vmem>>, vector<64x32xbf16>
    %cst_102 = arith.constant dense<0.000000e+00> : vector<32x32xf32>
    %294 = tpu.matmul %292, %293, %cst_102 {dimension_numbers = #tpu.dot_dimension_numbers<[1], [0], [0], [1], [0, 0, 1, 1], [], []>} : vector<32x64xbf16>, vector<64x32xbf16>, vector<32x32xf32> -> vector<32x32xf32>
    %295 = arith.addf %284, %294 : vector<32x32xf32>
    %c0_103 = arith.constant 0 : index
    %c0_104 = arith.constant 0 : index
    %296 = vector.load %arg16[%c0_103, %c0_104] : memref<1x32xf32, #tpu.memory_space<vmem>>, vector<1x32xf32>
    %c0_105 = arith.constant 0 : index
    %c0_106 = arith.constant 0 : index
    %297 = vector.load %arg17[%c0_105, %c0_106] : memref<1x32xf32, #tpu.memory_space<vmem>>, vector<1x32xf32>
    %cst_107 = arith.constant dense<0.000000e+00> : vector<32xf32>
    %298 = vector.multi_reduction <add>, %295, %cst_107 [1] : vector<32x32xf32> to vector<32xf32>
    %299 = vector.shape_cast %298 : vector<32xf32> to vector<32x1xf32>
    %cst_108 = arith.constant 3.200000e+01 : f32
    %300 = vector.broadcast %cst_108 : f32 to vector<32x1xf32>
    %301 = arith.divf %299, %300 : vector<32x1xf32>
    %302 = vector.broadcast %301 : vector<32x1xf32> to vector<32x32xf32>
    %303 = arith.subf %295, %302 : vector<32x32xf32>
    %304 = arith.mulf %303, %303 : vector<32x32xf32>
    %cst_109 = arith.constant dense<0.000000e+00> : vector<32xf32>
    %305 = vector.multi_reduction <add>, %304, %cst_109 [1] : vector<32x32xf32> to vector<32xf32>
    %306 = vector.shape_cast %305 : vector<32xf32> to vector<32x1xf32>
    %cst_110 = arith.constant 3.200000e+01 : f32
    %307 = vector.broadcast %cst_110 : f32 to vector<32x1xf32>
    %308 = arith.divf %306, %307 : vector<32x1xf32>
    %cst_111 = arith.constant 9.99999997E-7 : f32
    %309 = vector.broadcast %cst_111 : f32 to vector<32x1xf32>
    %310 = arith.addf %308, %309 : vector<32x1xf32>
    %311 = math.rsqrt %310 : vector<32x1xf32>
    %312 = vector.broadcast %311 : vector<32x1xf32> to vector<32x32xf32>
    %313 = arith.mulf %303, %312 : vector<32x32xf32>
    %314 = vector.broadcast %296 : vector<1x32xf32> to vector<32x32xf32>
    %315 = arith.mulf %313, %314 : vector<32x32xf32>
    %316 = vector.broadcast %297 : vector<1x32xf32> to vector<32x32xf32>
    %317 = arith.addf %315, %316 : vector<32x32xf32>
    %318 = vector.shape_cast %317 : vector<32x32xf32> to vector<4x8x32xf32>
    %c0_112 = arith.constant 0 : index
    %c0_113 = arith.constant 0 : index
    %c0_114 = arith.constant 0 : index
    %319 = vector.load %arg18[%c0_112, %c0_113, %c0_114] : memref<4x8x32xf32, #tpu.memory_space<vmem>>, vector<4x8x32xf32>
    tpu.vector_store %arg18[%c0_112, %c0_113, %c0_114], %318 {strides = array<i32>} : memref<4x8x32xf32, #tpu.memory_space<vmem>>, vector<4x8x32xf32>,
    return
  }
  func.func @transform_0(%arg0: i32) -> (i32, i32, i32) {
    %c0_i32 = arith.constant 0 : i32
    %c0_i32_0 = arith.constant 0 : i32
    %c0_i32_1 = arith.constant 0 : i32
    return %arg0, %c0_i32, %c0_i32_0 : i32, i32, i32
  }
  func.func @transform_1(%arg0: i32) -> (i32, i32, i32) {
    %c0_i32 = arith.constant 0 : i32
    %c0_i32_0 = arith.constant 0 : i32
    %c0_i32_1 = arith.constant 0 : i32
    return %arg0, %c0_i32, %c0_i32_0 : i32, i32, i32
  }
  func.func @transform_2(%arg0: i32) -> (i32, i32) {
    %c0_i32 = arith.constant 0 : i32
    %c0_i32_0 = arith.constant 0 : i32
    %c0_i32_1 = arith.constant 0 : i32
    return %c0_i32, %c0_i32_0 : i32, i32
  }
  func.func @transform_3(%arg0: i32) -> (i32, i32) {
    %c0_i32 = arith.constant 0 : i32
    %c0_i32_0 = arith.constant 0 : i32
    %c0_i32_1 = arith.constant 0 : i32
    return %c0_i32, %c0_i32_0 : i32, i32
  }
  func.func @transform_4(%arg0: i32) -> (i32, i32) {
    %c0_i32 = arith.constant 0 : i32
    %c0_i32_0 = arith.constant 0 : i32
    %c0_i32_1 = arith.constant 0 : i32
    return %c0_i32, %c0_i32_0 : i32, i32
  }
  func.func @transform_5(%arg0: i32) -> (i32, i32, i32) {
    %c0_i32 = arith.constant 0 : i32
    %c0_i32_0 = arith.constant 0 : i32
    %c0_i32_1 = arith.constant 0 : i32
    %c0_i32_2 = arith.constant 0 : i32
    return %c0_i32, %c0_i32_0, %c0_i32_1 : i32, i32, i32
  }
  func.func @transform_6(%arg0: i32) -> (i32, i32, i32) {
    %c0_i32 = arith.constant 0 : i32
    %c0_i32_0 = arith.constant 0 : i32
    %c0_i32_1 = arith.constant 0 : i32
    %c0_i32_2 = arith.constant 0 : i32
    return %c0_i32, %c0_i32_0, %c0_i32_1 : i32, i32, i32
  }
  func.func @transform_7(%arg0: i32) -> (i32, i32) {
    %c0_i32 = arith.constant 0 : i32
    %c0_i32_0 = arith.constant 0 : i32
    %c0_i32_1 = arith.constant 0 : i32
    return %c0_i32, %c0_i32_0 : i32, i32
  }
  func.func @transform_8(%arg0: i32) -> (i32, i32) {
    %c0_i32 = arith.constant 0 : i32
    %c0_i32_0 = arith.constant 0 : i32
    %c0_i32_1 = arith.constant 0 : i32
    return %c0_i32, %c0_i32_0 : i32, i32
  }
  func.func @transform_9(%arg0: i32) -> (i32, i32) {
    %c0_i32 = arith.constant 0 : i32
    %c0_i32_0 = arith.constant 0 : i32
    %c0_i32_1 = arith.constant 0 : i32
    return %c0_i32, %c0_i32_0 : i32, i32
  }
  func.func @transform_10(%arg0: i32) -> (i32, i32) {
    %c0_i32 = arith.constant 0 : i32
    %c0_i32_0 = arith.constant 0 : i32
    %c0_i32_1 = arith.constant 0 : i32
    return %c0_i32, %c0_i32_0 : i32, i32
  }
  func.func @transform_11(%arg0: i32) -> (i32, i32) {
    %c0_i32 = arith.constant 0 : i32
    %c0_i32_0 = arith.constant 0 : i32
    %c0_i32_1 = arith.constant 0 : i32
    return %c0_i32, %c0_i32_0 : i32, i32
  }
  func.func @transform_12(%arg0: i32) -> (i32, i32) {
    %c0_i32 = arith.constant 0 : i32
    %c0_i32_0 = arith.constant 0 : i32
    %c0_i32_1 = arith.constant 0 : i32
    return %c0_i32, %c0_i32_0 : i32, i32
  }
  func.func @transform_13(%arg0: i32) -> (i32, i32) {
    %c0_i32 = arith.constant 0 : i32
    %c0_i32_0 = arith.constant 0 : i32
    %c0_i32_1 = arith.constant 0 : i32
    return %c0_i32, %c0_i32_0 : i32, i32
  }
  func.func @transform_14(%arg0: i32) -> (i32, i32) {
    %c0_i32 = arith.constant 0 : i32
    %c0_i32_0 = arith.constant 0 : i32
    %c0_i32_1 = arith.constant 0 : i32
    return %c0_i32, %c0_i32_0 : i32, i32
  }
  func.func @transform_15(%arg0: i32) -> (i32, i32) {
    %c0_i32 = arith.constant 0 : i32
    %c0_i32_0 = arith.constant 0 : i32
    %c0_i32_1 = arith.constant 0 : i32
    return %c0_i32, %c0_i32_0 : i32, i32
  }
  func.func @transform_16(%arg0: i32) -> (i32, i32) {
    %c0_i32 = arith.constant 0 : i32
    %c0_i32_0 = arith.constant 0 : i32
    %c0_i32_1 = arith.constant 0 : i32
    return %c0_i32, %c0_i32_0 : i32, i32
  }
  func.func @transform_17(%arg0: i32) -> (i32, i32, i32) {
    %c0_i32 = arith.constant 0 : i32
    %c0_i32_0 = arith.constant 0 : i32
    %c0_i32_1 = arith.constant 0 : i32
    return %arg0, %c0_i32, %c0_i32_0 : i32, i32, i32
  }
}

module attributes {stable_mosaic.version = 11 : i64} {
  func.func @_decoder_layer_kernel(%arg0: i32, %arg1: memref<4x8x32xf32, #tpu.memory_space<vmem>>, %arg2: memref<4x8x32xf32, #tpu.memory_space<vmem>>, %arg3: memref<32x32xbf16, #tpu.memory_space<vmem>>, %arg4: memref<32x32xbf16, #tpu.memory_space<vmem>>, %arg5: memref<32x128xbf16, #tpu.memory_space<vmem>>, %arg6: memref<4x8x32xbf16, #tpu.memory_space<vmem>>, %arg7: memref<4x8x32xbf16, #tpu.memory_space<vmem>>, %arg8: memref<1x32xf32, #tpu.memory_space<vmem>>, %arg9: memref<1x32xf32, #tpu.memory_space<vmem>>, %arg10: memref<1x32xf32, #tpu.memory_space<vmem>>, %arg11: memref<1x32xf32, #tpu.memory_space<vmem>>, %arg12: memref<32x64xbf16, #tpu.memory_space<vmem>>, %arg13: memref<1x64xf32, #tpu.memory_space<vmem>>, %arg14: memref<64x32xbf16, #tpu.memory_space<vmem>>, %arg15: memref<1x32xf32, #tpu.memory_space<vmem>>, %arg16: memref<1x32xf32, #tpu.memory_space<vmem>>, %arg17: memref<1x32xf32, #tpu.memory_space<vmem>>, %arg18: memref<4x8x32xf32, #tpu.memory_space<vmem>>) attributes {dimension_semantics = [#tpu.dimension_semantics<parallel>], iteration_bounds = array<i64: 1>, scalar_prefetch = 0 : i64, scratch_operands = 0 : i64, tpu.core_type = #tpu.core_type<tc>, window_params = [{transform_indices = @transform_0, window_bounds = array<i64: 4, 8, 32>}, {transform_indices = @transform_1, window_bounds = array<i64: 4, 8, 32>}, {pipeline_mode = #tpu.pipeline_mode<synchronous>, transform_indices = @transform_2, window_bounds = array<i64: 32, 32>}, {pipeline_mode = #tpu.pipeline_mode<synchronous>, transform_indices = @transform_3, window_bounds = array<i64: 32, 32>}, {pipeline_mode = #tpu.pipeline_mode<synchronous>, transform_indices = @transform_4, window_bounds = array<i64: 32, 128>}, {pipeline_mode = #tpu.pipeline_mode<synchronous>, transform_indices = @transform_5, window_bounds = array<i64: 4, 8, 32>}, {pipeline_mode = #tpu.pipeline_mode<synchronous>, transform_indices = @transform_6, window_bounds = array<i64: 4, 8, 32>}, {pipeline_mode = #tpu.pipeline_mode<synchronous>, transform_indices = @transform_7, window_bounds = array<i64: 1, 32>}, {pipeline_mode = #tpu.pipeline_mode<synchronous>, transform_indices = @transform_8, window_bounds = array<i64: 1, 32>}, {pipeline_mode = #tpu.pipeline_mode<synchronous>, transform_indices = @transform_9, window_bounds = array<i64: 1, 32>}, {pipeline_mode = #tpu.pipeline_mode<synchronous>, transform_indices = @transform_10, window_bounds = array<i64: 1, 32>}, {pipeline_mode = #tpu.pipeline_mode<synchronous>, transform_indices = @transform_11, window_bounds = array<i64: 32, 64>}, {pipeline_mode = #tpu.pipeline_mode<synchronous>, transform_indices = @transform_12, window_bounds = array<i64: 1, 64>}, {pipeline_mode = #tpu.pipeline_mode<synchronous>, transform_indices = @transform_13, window_bounds = array<i64: 64, 32>}, {pipeline_mode = #tpu.pipeline_mode<synchronous>, transform_indices = @transform_14, window_bounds = array<i64: 1, 32>}, {pipeline_mode = #tpu.pipeline_mode<synchronous>, transform_indices = @transform_15, window_bounds = array<i64: 1, 32>}, {pipeline_mode = #tpu.pipeline_mode<synchronous>, transform_indices = @transform_16, window_bounds = array<i64: 1, 32>}, {transform_indices = @transform_17, window_bounds = array<i64: 4, 8, 32>}]} {
    %c0 = arith.constant 0 : index
    %c0_0 = arith.constant 0 : index
    %c0_1 = arith.constant 0 : index
    %0 = vector.load %arg1[%c0, %c0_0, %c0_1] : memref<4x8x32xf32, #tpu.memory_space<vmem>>, vector<4x8x32xf32>
    %1 = vector.shape_cast %0 : vector<4x8x32xf32> to vector<32x32xf32>
    %c0_2 = arith.constant 0 : index
    %c0_3 = arith.constant 0 : index
    %c0_4 = arith.constant 0 : index
    %2 = vector.load %arg2[%c0_2, %c0_3, %c0_4] : memref<4x8x32xf32, #tpu.memory_space<vmem>>, vector<4x8x32xf32>
    %3 = vector.shape_cast %2 : vector<4x8x32xf32> to vector<32x32xf32>
    %4 = arith.truncf %3 : vector<32x32xf32> to vector<32x32xbf16>
    %c0_5 = arith.constant 0 : index
    %c0_6 = arith.constant 0 : index
    %5 = vector.load %arg5[%c0_5, %c0_6] : memref<32x128xbf16, #tpu.memory_space<vmem>>, vector<32x128xbf16>
    %cst = arith.constant dense<0.000000e+00> : vector<32x128xf32>
    %6 = tpu.matmul %4, %5, %cst {dimension_numbers = #tpu.dot_dimension_numbers<[1], [0], [0], [1], [0, 0, 1, 1], [], []>} : vector<32x32xbf16>, vector<32x128xbf16>, vector<32x128xf32> -> vector<32x128xf32>
    %7 = arith.truncf %1 : vector<32x32xf32> to vector<32x32xbf16>
    %c0_7 = arith.constant 0 : index
    %c0_8 = arith.constant 0 : index
    %8 = vector.load %arg3[%c0_7, %c0_8] : memref<32x32xbf16, #tpu.memory_space<vmem>>, vector<32x32xbf16>
    %cst_9 = arith.constant dense<0.000000e+00> : vector<32x32xf32>
    %9 = tpu.matmul %7, %8, %cst_9 {dimension_numbers = #tpu.dot_dimension_numbers<[1], [0], [0], [1], [0, 0, 1, 1], [], []>} : vector<32x32xbf16>, vector<32x32xbf16>, vector<32x32xf32> -> vector<32x32xf32>
    %10 = vector.extract_strided_slice %9 {offsets = [0, 0], sizes = [32, 8], strides = [1, 1]} : vector<32x32xf32> to vector<32x8xf32>
    %11 = vector.shape_cast %10 : vector<32x8xf32> to vector<4x8x8xf32>
    %12 = arith.truncf %11 : vector<4x8x8xf32> to vector<4x8x8xbf16>
    %13 = vector.extract_strided_slice %6 {offsets = [0, 0], sizes = [32, 8], strides = [1, 1]} : vector<32x128xf32> to vector<32x8xf32>
    %14 = vector.shape_cast %13 : vector<32x8xf32> to vector<4x8x8xf32>
    %15 = arith.truncf %14 : vector<4x8x8xf32> to vector<4x8x8xbf16>
    %16 = vector.extract_strided_slice %6 {offsets = [0, 32], sizes = [32, 8], strides = [1, 1]} : vector<32x128xf32> to vector<32x8xf32>
    %17 = vector.shape_cast %16 : vector<32x8xf32> to vector<4x8x8xf32>
    %18 = arith.truncf %17 : vector<4x8x8xf32> to vector<4x8x8xbf16>
    "tpu.trace_start"() <{level = 10 : i32, message = "bqd,bkd->bqk"}> : () -> ()
    %cst_10 = arith.constant dense<0.000000e+00> : vector<4x8x8xf32>
    %19 = tpu.matmul %12, %15, %cst_10 {dimension_numbers = #tpu.dot_dimension_numbers<[2], [2], [1], [1], [0, 0, 0, 1, 1, 1], [0], [0]>} : vector<4x8x8xbf16>, vector<4x8x8xbf16>, vector<4x8x8xf32> -> vector<4x8x8xf32>
    "tpu.trace_stop"() : () -> ()
    %cst_11 = arith.constant dense<0xFF800000> : vector<4x8xf32>
    %20 = vector.multi_reduction <maximumf>, %19, %cst_11 [2] : vector<4x8x8xf32> to vector<4x8xf32>
    %21 = vector.shape_cast %20 : vector<4x8xf32> to vector<4x8x1xf32>
    %22 = vector.broadcast %21 : vector<4x8x1xf32> to vector<4x8x8xf32>
    %23 = arith.subf %19, %22 : vector<4x8x8xf32>
    %24 = math.exp %23 : vector<4x8x8xf32>
    %cst_12 = arith.constant dense<0.000000e+00> : vector<4x8xf32>
    %25 = vector.multi_reduction <add>, %24, %cst_12 [2] : vector<4x8x8xf32> to vector<4x8xf32>
    %26 = vector.shape_cast %25 : vector<4x8xf32> to vector<4x8x1xf32>
    %27 = tpu.reciprocal %26 {approx = true} : vector<4x8x1xf32> -> vector<4x8x1xf32>
    %28 = vector.broadcast %27 : vector<4x8x1xf32> to vector<4x8x8xf32>
    %29 = arith.mulf %24, %28 : vector<4x8x8xf32>
    %30 = arith.truncf %29 : vector<4x8x8xf32> to vector<4x8x8xbf16>
    "tpu.trace_start"() <{level = 10 : i32, message = "bqk,bkd->bqd"}> : () -> ()
    %cst_13 = arith.constant dense<0.000000e+00> : vector<4x8x8xf32>
    %31 = tpu.matmul %30, %18, %cst_13 {dimension_numbers = #tpu.dot_dimension_numbers<[2], [1], [1], [2], [0, 0, 0, 1, 1, 2], [0], [0]>} : vector<4x8x8xbf16>, vector<4x8x8xbf16>, vector<4x8x8xf32> -> vector<4x8x8xf32>
    "tpu.trace_stop"() : () -> ()
    %32 = vector.shape_cast %31 : vector<4x8x8xf32> to vector<32x8xf32>
    %33 = arith.truncf %32 : vector<32x8xf32> to vector<32x8xbf16>
    %c0_14 = arith.constant 0 : index
    %c0_15 = arith.constant 0 : index
    %c0_16 = arith.constant 0 : index
    %34 = vector.load %arg6[%c0_14, %c0_15, %c0_16] : memref<4x8x32xbf16, #tpu.memory_space<vmem>>, vector<1x8x32xbf16>
    %35 = vector.shape_cast %34 : vector<1x8x32xbf16> to vector<8x32xbf16>
    %cst_17 = arith.constant dense<0.000000e+00> : vector<32x32xf32>
    %36 = tpu.matmul %33, %35, %cst_17 {dimension_numbers = #tpu.dot_dimension_numbers<[1], [0], [0], [1], [0, 0, 1, 1], [], []>} : vector<32x8xbf16>, vector<8x32xbf16>, vector<32x32xf32> -> vector<32x32xf32>
    %37 = arith.addf %1, %36 : vector<32x32xf32>
    %38 = vector.extract_strided_slice %9 {offsets = [0, 8], sizes = [32, 8], strides = [1, 1]} : vector<32x32xf32> to vector<32x8xf32>
    %39 = vector.shape_cast %38 : vector<32x8xf32> to vector<4x8x8xf32>
    %40 = arith.truncf %39 : vector<4x8x8xf32> to vector<4x8x8xbf16>
    %41 = vector.extract_strided_slice %6 {offsets = [0, 8], sizes = [32, 8], strides = [1, 1]} : vector<32x128xf32> to vector<32x8xf32>
    %42 = vector.shape_cast %41 : vector<32x8xf32> to vector<4x8x8xf32>
    %43 = arith.truncf %42 : vector<4x8x8xf32> to vector<4x8x8xbf16>
    %44 = vector.extract_strided_slice %6 {offsets = [0, 40], sizes = [32, 8], strides = [1, 1]} : vector<32x128xf32> to vector<32x8xf32>
    %45 = vector.shape_cast %44 : vector<32x8xf32> to vector<4x8x8xf32>
    %46 = arith.truncf %45 : vector<4x8x8xf32> to vector<4x8x8xbf16>
    "tpu.trace_start"() <{level = 10 : i32, message = "bqd,bkd->bqk"}> : () -> ()
    %cst_18 = arith.constant dense<0.000000e+00> : vector<4x8x8xf32>
    %47 = tpu.matmul %40, %43, %cst_18 {dimension_numbers = #tpu.dot_dimension_numbers<[2], [2], [1], [1], [0, 0, 0, 1, 1, 1], [0], [0]>} : vector<4x8x8xbf16>, vector<4x8x8xbf16>, vector<4x8x8xf32> -> vector<4x8x8xf32>
    "tpu.trace_stop"() : () -> ()
    %cst_19 = arith.constant dense<0xFF800000> : vector<4x8xf32>
    %48 = vector.multi_reduction <maximumf>, %47, %cst_19 [2] : vector<4x8x8xf32> to vector<4x8xf32>
    %49 = vector.shape_cast %48 : vector<4x8xf32> to vector<4x8x1xf32>
    %50 = vector.broadcast %49 : vector<4x8x1xf32> to vector<4x8x8xf32>
    %51 = arith.subf %47, %50 : vector<4x8x8xf32>
    %52 = math.exp %51 : vector<4x8x8xf32>
    %cst_20 = arith.constant dense<0.000000e+00> : vector<4x8xf32>
    %53 = vector.multi_reduction <add>, %52, %cst_20 [2] : vector<4x8x8xf32> to vector<4x8xf32>
    %54 = vector.shape_cast %53 : vector<4x8xf32> to vector<4x8x1xf32>
    %55 = tpu.reciprocal %54 {approx = true} : vector<4x8x1xf32> -> vector<4x8x1xf32>
    %56 = vector.broadcast %55 : vector<4x8x1xf32> to vector<4x8x8xf32>
    %57 = arith.mulf %52, %56 : vector<4x8x8xf32>
    %58 = arith.truncf %57 : vector<4x8x8xf32> to vector<4x8x8xbf16>
    "tpu.trace_start"() <{level = 10 : i32, message = "bqk,bkd->bqd"}> : () -> ()
    %cst_21 = arith.constant dense<0.000000e+00> : vector<4x8x8xf32>
    %59 = tpu.matmul %58, %46, %cst_21 {dimension_numbers = #tpu.dot_dimension_numbers<[2], [1], [1], [2], [0, 0, 0, 1, 1, 2], [0], [0]>} : vector<4x8x8xbf16>, vector<4x8x8xbf16>, vector<4x8x8xf32> -> vector<4x8x8xf32>
    "tpu.trace_stop"() : () -> ()
    %60 = vector.shape_cast %59 : vector<4x8x8xf32> to vector<32x8xf32>
    %61 = arith.truncf %60 : vector<32x8xf32> to vector<32x8xbf16>
    %c1 = arith.constant 1 : index
    %c0_22 = arith.constant 0 : index
    %c0_23 = arith.constant 0 : index
    %62 = vector.load %arg6[%c1, %c0_22, %c0_23] : memref<4x8x32xbf16, #tpu.memory_space<vmem>>, vector<1x8x32xbf16>
    %63 = vector.shape_cast %62 : vector<1x8x32xbf16> to vector<8x32xbf16>
    %cst_24 = arith.constant dense<0.000000e+00> : vector<32x32xf32>
    %64 = tpu.matmul %61, %63, %cst_24 {dimension_numbers = #tpu.dot_dimension_numbers<[1], [0], [0], [1], [0, 0, 1, 1], [], []>} : vector<32x8xbf16>, vector<8x32xbf16>, vector<32x32xf32> -> vector<32x32xf32>
    %65 = arith.addf %37, %64 : vector<32x32xf32>
    %66 = vector.extract_strided_slice %9 {offsets = [0, 16], sizes = [32, 8], strides = [1, 1]} : vector<32x32xf32> to vector<32x8xf32>
    %67 = vector.shape_cast %66 : vector<32x8xf32> to vector<4x8x8xf32>
    %68 = arith.truncf %67 : vector<4x8x8xf32> to vector<4x8x8xbf16>
    %69 = vector.extract_strided_slice %6 {offsets = [0, 16], sizes = [32, 8], strides = [1, 1]} : vector<32x128xf32> to vector<32x8xf32>
    %70 = vector.shape_cast %69 : vector<32x8xf32> to vector<4x8x8xf32>
    %71 = arith.truncf %70 : vector<4x8x8xf32> to vector<4x8x8xbf16>
    %72 = vector.extract_strided_slice %6 {offsets = [0, 48], sizes = [32, 8], strides = [1, 1]} : vector<32x128xf32> to vector<32x8xf32>
    %73 = vector.shape_cast %72 : vector<32x8xf32> to vector<4x8x8xf32>
    %74 = arith.truncf %73 : vector<4x8x8xf32> to vector<4x8x8xbf16>
    "tpu.trace_start"() <{level = 10 : i32, message = "bqd,bkd->bqk"}> : () -> ()
    %cst_25 = arith.constant dense<0.000000e+00> : vector<4x8x8xf32>
    %75 = tpu.matmul %68, %71, %cst_25 {dimension_numbers = #tpu.dot_dimension_numbers<[2], [2], [1], [1], [0, 0, 0, 1, 1, 1], [0], [0]>} : vector<4x8x8xbf16>, vector<4x8x8xbf16>, vector<4x8x8xf32> -> vector<4x8x8xf32>
    "tpu.trace_stop"() : () -> ()
    %cst_26 = arith.constant dense<0xFF800000> : vector<4x8xf32>
    %76 = vector.multi_reduction <maximumf>, %75, %cst_26 [2] : vector<4x8x8xf32> to vector<4x8xf32>
    %77 = vector.shape_cast %76 : vector<4x8xf32> to vector<4x8x1xf32>
    %78 = vector.broadcast %77 : vector<4x8x1xf32> to vector<4x8x8xf32>
    %79 = arith.subf %75, %78 : vector<4x8x8xf32>
    %80 = math.exp %79 : vector<4x8x8xf32>
    %cst_27 = arith.constant dense<0.000000e+00> : vector<4x8xf32>
    %81 = vector.multi_reduction <add>, %80, %cst_27 [2] : vector<4x8x8xf32> to vector<4x8xf32>
    %82 = vector.shape_cast %81 : vector<4x8xf32> to vector<4x8x1xf32>
    %83 = tpu.reciprocal %82 {approx = true} : vector<4x8x1xf32> -> vector<4x8x1xf32>
    %84 = vector.broadcast %83 : vector<4x8x1xf32> to vector<4x8x8xf32>
    %85 = arith.mulf %80, %84 : vector<4x8x8xf32>
    %86 = arith.truncf %85 : vector<4x8x8xf32> to vector<4x8x8xbf16>
    "tpu.trace_start"() <{level = 10 : i32, message = "bqk,bkd->bqd"}> : () -> ()
    %cst_28 = arith.constant dense<0.000000e+00> : vector<4x8x8xf32>
    %87 = tpu.matmul %86, %74, %cst_28 {dimension_numbers = #tpu.dot_dimension_numbers<[2], [1], [1], [2], [0, 0, 0, 1, 1, 2], [0], [0]>} : vector<4x8x8xbf16>, vector<4x8x8xbf16>, vector<4x8x8xf32> -> vector<4x8x8xf32>
    "tpu.trace_stop"() : () -> ()
    %88 = vector.shape_cast %87 : vector<4x8x8xf32> to vector<32x8xf32>
    %89 = arith.truncf %88 : vector<32x8xf32> to vector<32x8xbf16>
    %c2 = arith.constant 2 : index
    %c0_29 = arith.constant 0 : index
    %c0_30 = arith.constant 0 : index
    %90 = vector.load %arg6[%c2, %c0_29, %c0_30] : memref<4x8x32xbf16, #tpu.memory_space<vmem>>, vector<1x8x32xbf16>
    %91 = vector.shape_cast %90 : vector<1x8x32xbf16> to vector<8x32xbf16>
    %cst_31 = arith.constant dense<0.000000e+00> : vector<32x32xf32>
    %92 = tpu.matmul %89, %91, %cst_31 {dimension_numbers = #tpu.dot_dimension_numbers<[1], [0], [0], [1], [0, 0, 1, 1], [], []>} : vector<32x8xbf16>, vector<8x32xbf16>, vector<32x32xf32> -> vector<32x32xf32>
    %93 = arith.addf %65, %92 : vector<32x32xf32>
    %94 = vector.extract_strided_slice %9 {offsets = [0, 24], sizes = [32, 8], strides = [1, 1]} : vector<32x32xf32> to vector<32x8xf32>
    %95 = vector.shape_cast %94 : vector<32x8xf32> to vector<4x8x8xf32>
    %96 = arith.truncf %95 : vector<4x8x8xf32> to vector<4x8x8xbf16>
    %97 = vector.extract_strided_slice %6 {offsets = [0, 24], sizes = [32, 8], strides = [1, 1]} : vector<32x128xf32> to vector<32x8xf32>
    %98 = vector.shape_cast %97 : vector<32x8xf32> to vector<4x8x8xf32>
    %99 = arith.truncf %98 : vector<4x8x8xf32> to vector<4x8x8xbf16>
    %100 = vector.extract_strided_slice %6 {offsets = [0, 56], sizes = [32, 8], strides = [1, 1]} : vector<32x128xf32> to vector<32x8xf32>
    %101 = vector.shape_cast %100 : vector<32x8xf32> to vector<4x8x8xf32>
    %102 = arith.truncf %101 : vector<4x8x8xf32> to vector<4x8x8xbf16>
    "tpu.trace_start"() <{level = 10 : i32, message = "bqd,bkd->bqk"}> : () -> ()
    %cst_32 = arith.constant dense<0.000000e+00> : vector<4x8x8xf32>
    %103 = tpu.matmul %96, %99, %cst_32 {dimension_numbers = #tpu.dot_dimension_numbers<[2], [2], [1], [1], [0, 0, 0, 1, 1, 1], [0], [0]>} : vector<4x8x8xbf16>, vector<4x8x8xbf16>, vector<4x8x8xf32> -> vector<4x8x8xf32>
    "tpu.trace_stop"() : () -> ()
    %cst_33 = arith.constant dense<0xFF800000> : vector<4x8xf32>
    %104 = vector.multi_reduction <maximumf>, %103, %cst_33 [2] : vector<4x8x8xf32> to vector<4x8xf32>
    %105 = vector.shape_cast %104 : vector<4x8xf32> to vector<4x8x1xf32>
    %106 = vector.broadcast %105 : vector<4x8x1xf32> to vector<4x8x8xf32>
    %107 = arith.subf %103, %106 : vector<4x8x8xf32>
    %108 = math.exp %107 : vector<4x8x8xf32>
    %cst_34 = arith.constant dense<0.000000e+00> : vector<4x8xf32>
    %109 = vector.multi_reduction <add>, %108, %cst_34 [2] : vector<4x8x8xf32> to vector<4x8xf32>
    %110 = vector.shape_cast %109 : vector<4x8xf32> to vector<4x8x1xf32>
    %111 = tpu.reciprocal %110 {approx = true} : vector<4x8x1xf32> -> vector<4x8x1xf32>
    %112 = vector.broadcast %111 : vector<4x8x1xf32> to vector<4x8x8xf32>
    %113 = arith.mulf %108, %112 : vector<4x8x8xf32>
    %114 = arith.truncf %113 : vector<4x8x8xf32> to vector<4x8x8xbf16>
    "tpu.trace_start"() <{level = 10 : i32, message = "bqk,bkd->bqd"}> : () -> ()
    %cst_35 = arith.constant dense<0.000000e+00> : vector<4x8x8xf32>
    %115 = tpu.matmul %114, %102, %cst_35 {dimension_numbers = #tpu.dot_dimension_numbers<[2], [1], [1], [2], [0, 0, 0, 1, 1, 2], [0], [0]>} : vector<4x8x8xbf16>, vector<4x8x8xbf16>, vector<4x8x8xf32> -> vector<4x8x8xf32>
    "tpu.trace_stop"() : () -> ()
    %116 = vector.shape_cast %115 : vector<4x8x8xf32> to vector<32x8xf32>
    %117 = arith.truncf %116 : vector<32x8xf32> to vector<32x8xbf16>
    %c3 = arith.constant 3 : index
    %c0_36 = arith.constant 0 : index
    %c0_37 = arith.constant 0 : index
    %118 = vector.load %arg6[%c3, %c0_36, %c0_37] : memref<4x8x32xbf16, #tpu.memory_space<vmem>>, vector<1x8x32xbf16>
    %119 = vector.shape_cast %118 : vector<1x8x32xbf16> to vector<8x32xbf16>
    %cst_38 = arith.constant dense<0.000000e+00> : vector<32x32xf32>
    %120 = tpu.matmul %117, %119, %cst_38 {dimension_numbers = #tpu.dot_dimension_numbers<[1], [0], [0], [1], [0, 0, 1, 1], [], []>} : vector<32x8xbf16>, vector<8x32xbf16>, vector<32x32xf32> -> vector<32x32xf32>
    %121 = arith.addf %93, %120 : vector<32x32xf32>
    %c0_39 = arith.constant 0 : index
    %c0_40 = arith.constant 0 : index
    %122 = vector.load %arg8[%c0_39, %c0_40] : memref<1x32xf32, #tpu.memory_space<vmem>>, vector<1x32xf32>
    %c0_41 = arith.constant 0 : index
    %c0_42 = arith.constant 0 : index
    %123 = vector.load %arg9[%c0_41, %c0_42] : memref<1x32xf32, #tpu.memory_space<vmem>>, vector<1x32xf32>
    %cst_43 = arith.constant dense<0.000000e+00> : vector<32xf32>
    %124 = vector.multi_reduction <add>, %121, %cst_43 [1] : vector<32x32xf32> to vector<32xf32>
    %125 = vector.shape_cast %124 : vector<32xf32> to vector<32x1xf32>
    %cst_44 = arith.constant 3.200000e+01 : f32
    %126 = vector.broadcast %cst_44 : f32 to vector<32x1xf32>
    %127 = arith.divf %125, %126 : vector<32x1xf32>
    %128 = vector.broadcast %127 : vector<32x1xf32> to vector<32x32xf32>
    %129 = arith.subf %121, %128 : vector<32x32xf32>
    %130 = arith.mulf %129, %129 : vector<32x32xf32>
    %cst_45 = arith.constant dense<0.000000e+00> : vector<32xf32>
    %131 = vector.multi_reduction <add>, %130, %cst_45 [1] : vector<32x32xf32> to vector<32xf32>
    %132 = vector.shape_cast %131 : vector<32xf32> to vector<32x1xf32>
    %cst_46 = arith.constant 3.200000e+01 : f32
    %133 = vector.broadcast %cst_46 : f32 to vector<32x1xf32>
    %134 = arith.divf %132, %133 : vector<32x1xf32>
    %cst_47 = arith.constant 9.99999997E-7 : f32
    %135 = vector.broadcast %cst_47 : f32 to vector<32x1xf32>
    %136 = arith.addf %134, %135 : vector<32x1xf32>
    %137 = math.rsqrt %136 : vector<32x1xf32>
    %138 = vector.broadcast %137 : vector<32x1xf32> to vector<32x32xf32>
    %139 = arith.mulf %129, %138 : vector<32x32xf32>
    %140 = vector.broadcast %122 : vector<1x32xf32> to vector<32x32xf32>
    %141 = arith.mulf %139, %140 : vector<32x32xf32>
    %142 = vector.broadcast %123 : vector<1x32xf32> to vector<32x32xf32>
    %143 = arith.addf %141, %142 : vector<32x32xf32>
    %144 = arith.truncf %143 : vector<32x32xf32> to vector<32x32xbf16>
    %c0_48 = arith.constant 0 : index
    %c0_49 = arith.constant 0 : index
    %145 = vector.load %arg4[%c0_48, %c0_49] : memref<32x32xbf16, #tpu.memory_space<vmem>>, vector<32x32xbf16>
    %cst_50 = arith.constant dense<0.000000e+00> : vector<32x32xf32>
    %146 = tpu.matmul %144, %145, %cst_50 {dimension_numbers = #tpu.dot_dimension_numbers<[1], [0], [0], [1], [0, 0, 1, 1], [], []>} : vector<32x32xbf16>, vector<32x32xbf16>, vector<32x32xf32> -> vector<32x32xf32>
    %147 = vector.extract_strided_slice %146 {offsets = [0, 0], sizes = [32, 8], strides = [1, 1]} : vector<32x32xf32> to vector<32x8xf32>
    %148 = vector.shape_cast %147 : vector<32x8xf32> to vector<4x8x8xf32>
    %149 = arith.truncf %148 : vector<4x8x8xf32> to vector<4x8x8xbf16>
    %150 = vector.extract_strided_slice %6 {offsets = [0, 64], sizes = [32, 8], strides = [1, 1]} : vector<32x128xf32> to vector<32x8xf32>
    %151 = vector.shape_cast %150 : vector<32x8xf32> to vector<4x8x8xf32>
    %152 = arith.truncf %151 : vector<4x8x8xf32> to vector<4x8x8xbf16>
    %153 = vector.extract_strided_slice %6 {offsets = [0, 96], sizes = [32, 8], strides = [1, 1]} : vector<32x128xf32> to vector<32x8xf32>
    %154 = vector.shape_cast %153 : vector<32x8xf32> to vector<4x8x8xf32>
    %155 = arith.truncf %154 : vector<4x8x8xf32> to vector<4x8x8xbf16>
    "tpu.trace_start"() <{level = 10 : i32, message = "bqd,bkd->bqk"}> : () -> ()
    %cst_51 = arith.constant dense<0.000000e+00> : vector<4x8x8xf32>
    %156 = tpu.matmul %149, %152, %cst_51 {dimension_numbers = #tpu.dot_dimension_numbers<[2], [2], [1], [1], [0, 0, 0, 1, 1, 1], [0], [0]>} : vector<4x8x8xbf16>, vector<4x8x8xbf16>, vector<4x8x8xf32> -> vector<4x8x8xf32>
    "tpu.trace_stop"() : () -> ()
    %cst_52 = arith.constant dense<0xFF800000> : vector<4x8xf32>
    %157 = vector.multi_reduction <maximumf>, %156, %cst_52 [2] : vector<4x8x8xf32> to vector<4x8xf32>
    %158 = vector.shape_cast %157 : vector<4x8xf32> to vector<4x8x1xf32>
    %159 = vector.broadcast %158 : vector<4x8x1xf32> to vector<4x8x8xf32>
    %160 = arith.subf %156, %159 : vector<4x8x8xf32>
    %161 = math.exp %160 : vector<4x8x8xf32>
    %cst_53 = arith.constant dense<0.000000e+00> : vector<4x8xf32>
    %162 = vector.multi_reduction <add>, %161, %cst_53 [2] : vector<4x8x8xf32> to vector<4x8xf32>
    %163 = vector.shape_cast %162 : vector<4x8xf32> to vector<4x8x1xf32>
    %164 = tpu.reciprocal %163 {approx = true} : vector<4x8x1xf32> -> vector<4x8x1xf32>
    %165 = vector.broadcast %164 : vector<4x8x1xf32> to vector<4x8x8xf32>
    %166 = arith.mulf %161, %165 : vector<4x8x8xf32>
    %167 = arith.truncf %166 : vector<4x8x8xf32> to vector<4x8x8xbf16>
    "tpu.trace_start"() <{level = 10 : i32, message = "bqk,bkd->bqd"}> : () -> ()
    %cst_54 = arith.constant dense<0.000000e+00> : vector<4x8x8xf32>
    %168 = tpu.matmul %167, %155, %cst_54 {dimension_numbers = #tpu.dot_dimension_numbers<[2], [1], [1], [2], [0, 0, 0, 1, 1, 2], [0], [0]>} : vector<4x8x8xbf16>, vector<4x8x8xbf16>, vector<4x8x8xf32> -> vector<4x8x8xf32>
    "tpu.trace_stop"() : () -> ()
    %169 = vector.shape_cast %168 : vector<4x8x8xf32> to vector<32x8xf32>
    %170 = arith.truncf %169 : vector<32x8xf32> to vector<32x8xbf16>
    %c0_55 = arith.constant 0 : index
    %c0_56 = arith.constant 0 : index
    %c0_57 = arith.constant 0 : index
    %171 = vector.load %arg7[%c0_55, %c0_56, %c0_57] : memref<4x8x32xbf16, #tpu.memory_space<vmem>>, vector<1x8x32xbf16>
    %172 = vector.shape_cast %171 : vector<1x8x32xbf16> to vector<8x32xbf16>
    %cst_58 = arith.constant dense<0.000000e+00> : vector<32x32xf32>
    %173 = tpu.matmul %170, %172, %cst_58 {dimension_numbers = #tpu.dot_dimension_numbers<[1], [0], [0], [1], [0, 0, 1, 1], [], []>} : vector<32x8xbf16>, vector<8x32xbf16>, vector<32x32xf32> -> vector<32x32xf32>
    %174 = arith.addf %143, %173 : vector<32x32xf32>
    %175 = vector.extract_strided_slice %146 {offsets = [0, 8], sizes = [32, 8], strides = [1, 1]} : vector<32x32xf32> to vector<32x8xf32>
    %176 = vector.shape_cast %175 : vector<32x8xf32> to vector<4x8x8xf32>
    %177 = arith.truncf %176 : vector<4x8x8xf32> to vector<4x8x8xbf16>
    %178 = vector.extract_strided_slice %6 {offsets = [0, 72], sizes = [32, 8], strides = [1, 1]} : vector<32x128xf32> to vector<32x8xf32>
    %179 = vector.shape_cast %178 : vector<32x8xf32> to vector<4x8x8xf32>
    %180 = arith.truncf %179 : vector<4x8x8xf32> to vector<4x8x8xbf16>
    %181 = vector.extract_strided_slice %6 {offsets = [0, 104], sizes = [32, 8], strides = [1, 1]} : vector<32x128xf32> to vector<32x8xf32>
    %182 = vector.shape_cast %181 : vector<32x8xf32> to vector<4x8x8xf32>
    %183 = arith.truncf %182 : vector<4x8x8xf32> to vector<4x8x8xbf16>
    "tpu.trace_start"() <{level = 10 : i32, message = "bqd,bkd->bqk"}> : () -> ()
    %cst_59 = arith.constant dense<0.000000e+00> : vector<4x8x8xf32>
    %184 = tpu.matmul %177, %180, %cst_59 {dimension_numbers = #tpu.dot_dimension_numbers<[2], [2], [1], [1], [0, 0, 0, 1, 1, 1], [0], [0]>} : vector<4x8x8xbf16>, vector<4x8x8xbf16>, vector<4x8x8xf32> -> vector<4x8x8xf32>
    "tpu.trace_stop"() : () -> ()
    %cst_60 = arith.constant dense<0xFF800000> : vector<4x8xf32>
    %185 = vector.multi_reduction <maximumf>, %184, %cst_60 [2] : vector<4x8x8xf32> to vector<4x8xf32>
    %186 = vector.shape_cast %185 : vector<4x8xf32> to vector<4x8x1xf32>
    %187 = vector.broadcast %186 : vector<4x8x1xf32> to vector<4x8x8xf32>
    %188 = arith.subf %184, %187 : vector<4x8x8xf32>
    %189 = math.exp %188 : vector<4x8x8xf32>
    %cst_61 = arith.constant dense<0.000000e+00> : vector<4x8xf32>
    %190 = vector.multi_reduction <add>, %189, %cst_61 [2] : vector<4x8x8xf32> to vector<4x8xf32>
    %191 = vector.shape_cast %190 : vector<4x8xf32> to vector<4x8x1xf32>
    %192 = tpu.reciprocal %191 {approx = true} : vector<4x8x1xf32> -> vector<4x8x1xf32>
    %193 = vector.broadcast %192 : vector<4x8x1xf32> to vector<4x8x8xf32>
    %194 = arith.mulf %189, %193 : vector<4x8x8xf32>
    %195 = arith.truncf %194 : vector<4x8x8xf32> to vector<4x8x8xbf16>
    "tpu.trace_start"() <{level = 10 : i32, message = "bqk,bkd->bqd"}> : () -> ()
    %cst_62 = arith.constant dense<0.000000e+00> : vector<4x8x8xf32>
    %196 = tpu.matmul %195, %183, %cst_62 {dimension_numbers = #tpu.dot_dimension_numbers<[2], [1], [1], [2], [0, 0, 0, 1, 1, 2], [0], [0]>} : vector<4x8x8xbf16>, vector<4x8x8xbf16>, vector<4x8x8xf32> -> vector<4x8x8xf32>
    "tpu.trace_stop"() : () -> ()
    %197 = vector.shape_cast %196 : vector<4x8x8xf32> to vector<32x8xf32>
    %198 = arith.truncf %197 : vector<32x8xf32> to vector<32x8xbf16>
    %c1_63 = arith.constant 1 : index
    %c0_64 = arith.constant 0 : index
    %c0_65 = arith.constant 0 : index
    %199 = vector.load %arg7[%c1_63, %c0_64, %c0_65] : memref<4x8x32xbf16, #tpu.memory_space<vmem>>, vector<1x8x32xbf16>
    %200 = vector.shape_cast %199 : vector<1x8x32xbf16> to vector<8x32xbf16>
    %cst_66 = arith.constant dense<0.000000e+00> : vector<32x32xf32>
    %201 = tpu.matmul %198, %200, %cst_66 {dimension_numbers = #tpu.dot_dimension_numbers<[1], [0], [0], [1], [0, 0, 1, 1], [], []>} : vector<32x8xbf16>, vector<8x32xbf16>, vector<32x32xf32> -> vector<32x32xf32>
    %202 = arith.addf %174, %201 : vector<32x32xf32>
    %203 = vector.extract_strided_slice %146 {offsets = [0, 16], sizes = [32, 8], strides = [1, 1]} : vector<32x32xf32> to vector<32x8xf32>
    %204 = vector.shape_cast %203 : vector<32x8xf32> to vector<4x8x8xf32>
    %205 = arith.truncf %204 : vector<4x8x8xf32> to vector<4x8x8xbf16>
    %206 = vector.extract_strided_slice %6 {offsets = [0, 80], sizes = [32, 8], strides = [1, 1]} : vector<32x128xf32> to vector<32x8xf32>
    %207 = vector.shape_cast %206 : vector<32x8xf32> to vector<4x8x8xf32>
    %208 = arith.truncf %207 : vector<4x8x8xf32> to vector<4x8x8xbf16>
    %209 = vector.extract_strided_slice %6 {offsets = [0, 112], sizes = [32, 8], strides = [1, 1]} : vector<32x128xf32> to vector<32x8xf32>
    %210 = vector.shape_cast %209 : vector<32x8xf32> to vector<4x8x8xf32>
    %211 = arith.truncf %210 : vector<4x8x8xf32> to vector<4x8x8xbf16>
    "tpu.trace_start"() <{level = 10 : i32, message = "bqd,bkd->bqk"}> : () -> ()
    %cst_67 = arith.constant dense<0.000000e+00> : vector<4x8x8xf32>
    %212 = tpu.matmul %205, %208, %cst_67 {dimension_numbers = #tpu.dot_dimension_numbers<[2], [2], [1], [1], [0, 0, 0, 1, 1, 1], [0], [0]>} : vector<4x8x8xbf16>, vector<4x8x8xbf16>, vector<4x8x8xf32> -> vector<4x8x8xf32>
    "tpu.trace_stop"() : () -> ()
    %cst_68 = arith.constant dense<0xFF800000> : vector<4x8xf32>
    %213 = vector.multi_reduction <maximumf>, %212, %cst_68 [2] : vector<4x8x8xf32> to vector<4x8xf32>
    %214 = vector.shape_cast %213 : vector<4x8xf32> to vector<4x8x1xf32>
    %215 = vector.broadcast %214 : vector<4x8x1xf32> to vector<4x8x8xf32>
    %216 = arith.subf %212, %215 : vector<4x8x8xf32>
    %217 = math.exp %216 : vector<4x8x8xf32>
    %cst_69 = arith.constant dense<0.000000e+00> : vector<4x8xf32>
    %218 = vector.multi_reduction <add>, %217, %cst_69 [2] : vector<4x8x8xf32> to vector<4x8xf32>
    %219 = vector.shape_cast %218 : vector<4x8xf32> to vector<4x8x1xf32>
    %220 = tpu.reciprocal %219 {approx = true} : vector<4x8x1xf32> -> vector<4x8x1xf32>
    %221 = vector.broadcast %220 : vector<4x8x1xf32> to vector<4x8x8xf32>
    %222 = arith.mulf %217, %221 : vector<4x8x8xf32>
    %223 = arith.truncf %222 : vector<4x8x8xf32> to vector<4x8x8xbf16>
    "tpu.trace_start"() <{level = 10 : i32, message = "bqk,bkd->bqd"}> : () -> ()
    %cst_70 = arith.constant dense<0.000000e+00> : vector<4x8x8xf32>
    %224 = tpu.matmul %223, %211, %cst_70 {dimension_numbers = #tpu.dot_dimension_numbers<[2], [1], [1], [2], [0, 0, 0, 1, 1, 2], [0], [0]>} : vector<4x8x8xbf16>, vector<4x8x8xbf16>, vector<4x8x8xf32> -> vector<4x8x8xf32>
    "tpu.trace_stop"() : () -> ()
    %225 = vector.shape_cast %224 : vector<4x8x8xf32> to vector<32x8xf32>
    %226 = arith.truncf %225 : vector<32x8xf32> to vector<32x8xbf16>
    %c2_71 = arith.constant 2 : index
    %c0_72 = arith.constant 0 : index
    %c0_73 = arith.constant 0 : index
    %227 = vector.load %arg7[%c2_71, %c0_72, %c0_73] : memref<4x8x32xbf16, #tpu.memory_space<vmem>>, vector<1x8x32xbf16>
    %228 = vector.shape_cast %227 : vector<1x8x32xbf16> to vector<8x32xbf16>
    %cst_74 = arith.constant dense<0.000000e+00> : vector<32x32xf32>
    %229 = tpu.matmul %226, %228, %cst_74 {dimension_numbers = #tpu.dot_dimension_numbers<[1], [0], [0], [1], [0, 0, 1, 1], [], []>} : vector<32x8xbf16>, vector<8x32xbf16>, vector<32x32xf32> -> vector<32x32xf32>
    %230 = arith.addf %202, %229 : vector<32x32xf32>
    %231 = vector.extract_strided_slice %146 {offsets = [0, 24], sizes = [32, 8], strides = [1, 1]} : vector<32x32xf32> to vector<32x8xf32>
    %232 = vector.shape_cast %231 : vector<32x8xf32> to vector<4x8x8xf32>
    %233 = arith.truncf %232 : vector<4x8x8xf32> to vector<4x8x8xbf16>
    %234 = vector.extract_strided_slice %6 {offsets = [0, 88], sizes = [32, 8], strides = [1, 1]} : vector<32x128xf32> to vector<32x8xf32>
    %235 = vector.shape_cast %234 : vector<32x8xf32> to vector<4x8x8xf32>
    %236 = arith.truncf %235 : vector<4x8x8xf32> to vector<4x8x8xbf16>
    %237 = vector.extract_strided_slice %6 {offsets = [0, 120], sizes = [32, 8], strides = [1, 1]} : vector<32x128xf32> to vector<32x8xf32>
    %238 = vector.shape_cast %237 : vector<32x8xf32> to vector<4x8x8xf32>
    %239 = arith.truncf %238 : vector<4x8x8xf32> to vector<4x8x8xbf16>
    "tpu.trace_start"() <{level = 10 : i32, message = "bqd,bkd->bqk"}> : () -> ()
    %cst_75 = arith.constant dense<0.000000e+00> : vector<4x8x8xf32>
    %240 = tpu.matmul %233, %236, %cst_75 {dimension_numbers = #tpu.dot_dimension_numbers<[2], [2], [1], [1], [0, 0, 0, 1, 1, 1], [0], [0]>} : vector<4x8x8xbf16>, vector<4x8x8xbf16>, vector<4x8x8xf32> -> vector<4x8x8xf32>
    "tpu.trace_stop"() : () -> ()
    %cst_76 = arith.constant dense<0xFF800000> : vector<4x8xf32>
    %241 = vector.multi_reduction <maximumf>, %240, %cst_76 [2] : vector<4x8x8xf32> to vector<4x8xf32>
    %242 = vector.shape_cast %241 : vector<4x8xf32> to vector<4x8x1xf32>
    %243 = vector.broadcast %242 : vector<4x8x1xf32> to vector<4x8x8xf32>
    %244 = arith.subf %240, %243 : vector<4x8x8xf32>
    %245 = math.exp %244 : vector<4x8x8xf32>
    %cst_77 = arith.constant dense<0.000000e+00> : vector<4x8xf32>
    %246 = vector.multi_reduction <add>, %245, %cst_77 [2] : vector<4x8x8xf32> to vector<4x8xf32>
    %247 = vector.shape_cast %246 : vector<4x8xf32> to vector<4x8x1xf32>
    %248 = tpu.reciprocal %247 {approx = true} : vector<4x8x1xf32> -> vector<4x8x1xf32>
    %249 = vector.broadcast %248 : vector<4x8x1xf32> to vector<4x8x8xf32>
    %250 = arith.mulf %245, %249 : vector<4x8x8xf32>
    %251 = arith.truncf %250 : vector<4x8x8xf32> to vector<4x8x8xbf16>
    "tpu.trace_start"() <{level = 10 : i32, message = "bqk,bkd->bqd"}> : () -> ()
    %cst_78 = arith.constant dense<0.000000e+00> : vector<4x8x8xf32>
    %252 = tpu.matmul %251, %239, %cst_78 {dimension_numbers = #tpu.dot_dimension_numbers<[2], [1], [1], [2], [0, 0, 0, 1, 1, 2], [0], [0]>} : vector<4x8x8xbf16>, vector<4x8x8xbf16>, vector<4x8x8xf32> -> vector<4x8x8xf32>
    "tpu.trace_stop"() : () -> ()
    %253 = vector.shape_cast %252 : vector<4x8x8xf32> to vector<32x8xf32>
    %254 = arith.truncf %253 : vector<32x8xf32> to vector<32x8xbf16>
    %c3_79 = arith.constant 3 : index
    %c0_80 = arith.constant 0 : index
    %c0_81 = arith.constant 0 : index
    %255 = vector.load %arg7[%c3_79, %c0_80, %c0_81] : memref<4x8x32xbf16, #tpu.memory_space<vmem>>, vector<1x8x32xbf16>
    %256 = vector.shape_cast %255 : vector<1x8x32xbf16> to vector<8x32xbf16>
    %cst_82 = arith.constant dense<0.000000e+00> : vector<32x32xf32>
    %257 = tpu.matmul %254, %256, %cst_82 {dimension_numbers = #tpu.dot_dimension_numbers<[1], [0], [0], [1], [0, 0, 1, 1], [], []>} : vector<32x8xbf16>, vector<8x32xbf16>, vector<32x32xf32> -> vector<32x32xf32>
    %258 = arith.addf %230, %257 : vector<32x32xf32>
    %c0_83 = arith.constant 0 : index
    %c0_84 = arith.constant 0 : index
    %259 = vector.load %arg10[%c0_83, %c0_84] : memref<1x32xf32, #tpu.memory_space<vmem>>, vector<1x32xf32>
    %c0_85 = arith.constant 0 : index
    %c0_86 = arith.constant 0 : index
    %260 = vector.load %arg11[%c0_85, %c0_86] : memref<1x32xf32, #tpu.memory_space<vmem>>, vector<1x32xf32>
    %cst_87 = arith.constant dense<0.000000e+00> : vector<32xf32>
    %261 = vector.multi_reduction <add>, %258, %cst_87 [1] : vector<32x32xf32> to vector<32xf32>
    %262 = vector.shape_cast %261 : vector<32xf32> to vector<32x1xf32>
    %cst_88 = arith.constant 3.200000e+01 : f32
    %263 = vector.broadcast %cst_88 : f32 to vector<32x1xf32>
    %264 = arith.divf %262, %263 : vector<32x1xf32>
    %265 = vector.broadcast %264 : vector<32x1xf32> to vector<32x32xf32>
    %266 = arith.subf %258, %265 : vector<32x32xf32>
    %267 = arith.mulf %266, %266 : vector<32x32xf32>
    %cst_89 = arith.constant dense<0.000000e+00> : vector<32xf32>
    %268 = vector.multi_reduction <add>, %267, %cst_89 [1] : vector<32x32xf32> to vector<32xf32>
    %269 = vector.shape_cast %268 : vector<32xf32> to vector<32x1xf32>
    %cst_90 = arith.constant 3.200000e+01 : f32
    %270 = vector.broadcast %cst_90 : f32 to vector<32x1xf32>
    %271 = arith.divf %269, %270 : vector<32x1xf32>
    %cst_91 = arith.constant 9.99999997E-7 : f32
    %272 = vector.broadcast %cst_91 : f32 to vector<32x1xf32>
    %273 = arith.addf %271, %272 : vector<32x1xf32>
    %274 = math.rsqrt %273 : vector<32x1xf32>
    %275 = vector.broadcast %274 : vector<32x1xf32> to vector<32x32xf32>
    %276 = arith.mulf %266, %275 : vector<32x32xf32>
    %277 = vector.broadcast %259 : vector<1x32xf32> to vector<32x32xf32>
    %278 = arith.mulf %276, %277 : vector<32x32xf32>
    %279 = vector.broadcast %260 : vector<1x32xf32> to vector<32x32xf32>
    %280 = arith.addf %278, %279 : vector<32x32xf32>
    %281 = arith.truncf %280 : vector<32x32xf32> to vector<32x32xbf16>
    %c0_92 = arith.constant 0 : index
    %c0_93 = arith.constant 0 : index
    %282 = vector.load %arg15[%c0_92, %c0_93] : memref<1x32xf32, #tpu.memory_space<vmem>>, vector<1x32xf32>
    %283 = vector.broadcast %282 : vector<1x32xf32> to vector<32x32xf32>
    %284 = arith.addf %280, %283 : vector<32x32xf32>
    %c0_94 = arith.constant 0 : index
    %c0_95 = arith.constant 0 : index
    %285 = vector.load %arg12[%c0_94, %c0_95] : memref<32x64xbf16, #tpu.memory_space<vmem>>, vector<32x64xbf16>
    %cst_96 = arith.constant dense<0.000000e+00> : vector<32x64xf32>
    %286 = tpu.matmul %281, %285, %cst_96 {dimension_numbers = #tpu.dot_dimension_numbers<[1], [0], [0], [1], [0, 0, 1, 1], [], []>} : vector<32x32xbf16>, vector<32x64xbf16>, vector<32x64xf32> -> vector<32x64xf32>
    %c0_97 = arith.constant 0 : index
    %c0_98 = arith.constant 0 : index
    %287 = vector.load %arg13[%c0_97, %c0_98] : memref<1x64xf32, #tpu.memory_space<vmem>>, vector<1x64xf32>
    %288 = vector.broadcast %287 : vector<1x64xf32> to vector<32x64xf32>
    %289 = arith.addf %286, %288 : vector<32x64xf32>
    %cst_99 = arith.constant 0.000000e+00 : f32
    %290 = vector.broadcast %cst_99 : f32 to vector<32x64xf32>
    %291 = arith.maximumf %289, %290 : vector<32x64xf32>
    %292 = arith.truncf %291 : vector<32x64xf32> to vector<32x64xbf16>
    %c0_100 = arith.constant 0 : index
    %c0_101 = arith.constant 0 : index
    %293 = vector.load %arg14[%c0_100, %c0_101] : memref<64x32xbf16, #tpu.memory_space<vmem>>, vector<64x32xbf16>
    %cst_102 = arith.constant dense<0.000000e+00> : vector<32x32xf32>
    %294 = tpu.matmul %292, %293, %cst_102 {dimension_numbers = #tpu.dot_dimension_numbers<[1], [0], [0], [1], [0, 0, 1, 1], [], []>} : vector<32x64xbf16>, vector<64x32xbf16>, vector<32x32xf32> -> vector<32x32xf32>
    %295 = arith.addf %284, %294 : vector<32x32xf32>
    %c0_103 = arith.constant 0 : index
    %c0_104 = arith.constant 0 : index
    %296 = vector.load %arg16[%c0_103, %c0_104] : memref<1x32xf32, #tpu.memory_space<vmem>>, vector<1x32xf32>
    %c0_105 = arith.constant 0 : index
    %c0_106 = arith.constant 0 : index
    %297 = vector.load %arg17[%c0_105, %c0_106] : memref<1x32xf32, #tpu.memory_space<vmem>>, vector<1x32xf32>
    %cst_107 = arith.constant dense<0.000000e+00> : vector<32xf32>
    %298 = vector.multi_reduction <add>, %295, %cst_107 [1] : vector<32x32xf32> to vector<32xf32>
    %299 = vector.shape_cast %298 : vector<32xf32> to vector<32x1xf32>
    %cst_108 = arith.constant 3.200000e+01 : f32
    %300 = vector.broadcast %cst_108 : f32 to vector<32x1xf32>
    %301 = arith.divf %299, %300 : vector<32x1xf32>
    %302 = vector.broadcast %301 : vector<32x1xf32> to vector<32x32xf32>
    %303 = arith.subf %295, %302 : vector<32x32xf32>
    %304 = arith.mulf %303, %303 : vector<32x32xf32>
    %cst_109 = arith.constant dense<0.000000e+00> : vector<32xf32>
    %305 = vector.multi_reduction <add>, %304, %cst_109 [1] : vector<32x32xf32> to vector<32xf32>
    %306 = vector.shape_cast %305 : vector<32xf32> to vector<32x1xf32>
    %cst_110 = arith.constant 3.200000e+01 : f32
    %307 = vector.broadcast %cst_110 : f32 to vector<32x1xf32>
    %308 = arith.divf %306, %307 : vector<32x1xf32>
    %cst_111 = arith.constant 9.99999997E-7 : f32
    %309 = vector.broadcast %cst_111 : f32 to vector<32x1xf32>
    %310 = arith.addf %308, %309 : vector<32x1xf32>
    %311 = math.rsqrt %310 : vector<32x1xf32>
    %312 = vector.broadcast %311 : vector<32x1xf32> to vector<32x32xf32>
    %313 = arith.mulf %303, %312 : vector<32x32xf32>
    %314 = vector.broadcast %296 : vector<1x32xf32> to vector<32x32xf32>
    %315 = arith.mulf %313, %314 : vector<32x32xf32>
    %316 = vector.broadcast %297 : vector<1x32xf32> to vector<32x32xf32>
    %317 = arith.addf %315, %316 : vector<32x32xf32>
    %318 = vector.shape_cast %317 : vector<32x32xf32> to vector<4x8x32xf32>
    %c0_112 = arith.constant 0 : index
    %c0_113 = arith.constant 0 : index
    %c0_114 = arith.constant 0 : index
    %319 = vector.load %arg18[%c0_112, %c0_113, %c0_114] : memref<4x8x32xf32, #tpu.memory_space<vmem>>, vector<4x8x32xf32>
    tpu.vector_store %arg18[%c0_112, %c0_113, %c0_114], %318 {strides = array<i32>} : memref<4x8x32xf32, #tpu.memory_space<vmem>>, vector<4x8x32xf32>,
    return
  }
  func.func @transform_0(%arg0: i32) -> (i32, i32, i32) {
    %c0_i32 = arith.constant 0 : i32
    %c0_i32_0 = arith.constant 0 : i32
    %c0_i32_1 = arith.constant 0 : i32
    return %arg0, %c0_i32, %c0_i32_0 : i32, i32, i32
  }
  func.func @transform_1(%arg0: i32) -> (i32, i32, i32) {
    %c0_i32 = arith.constant 0 : i32
    %c0_i32_0 = arith.constant 0 : i32
    %c0_i32_1 = arith.constant 0 : i32
    return %arg0, %c0_i32, %c0_i32_0 : i32, i32, i32
  }
  func.func @transform_2(%arg0: i32) -> (i32, i32) {
    %c0_i32 = arith.constant 0 : i32
    %c0_i32_0 = arith.constant 0 : i32
    %c0_i32_1 = arith.constant 0 : i32
    return %c0_i32, %c0_i32_0 : i32, i32
  }
  func.func @transform_3(%arg0: i32) -> (i32, i32) {
    %c0_i32 = arith.constant 0 : i32
    %c0_i32_0 = arith.constant 0 : i32
    %c0_i32_1 = arith.constant 0 : i32
    return %c0_i32, %c0_i32_0 : i32, i32
  }
  func.func @transform_4(%arg0: i32) -> (i32, i32) {
    %c0_i32 = arith.constant 0 : i32
    %c0_i32_0 = arith.constant 0 : i32
    %c0_i32_1 = arith.constant 0 : i32
    return %c0_i32, %c0_i32_0 : i32, i32
  }
  func.func @transform_5(%arg0: i32) -> (i32, i32, i32) {
    %c0_i32 = arith.constant 0 : i32
    %c0_i32_0 = arith.constant 0 : i32
    %c0_i32_1 = arith.constant 0 : i32
    %c0_i32_2 = arith.constant 0 : i32
    return %c0_i32, %c0_i32_0, %c0_i32_1 : i32, i32, i32
  }
  func.func @transform_6(%arg0: i32) -> (i32, i32, i32) {
    %c0_i32 = arith.constant 0 : i32
    %c0_i32_0 = arith.constant 0 : i32
    %c0_i32_1 = arith.constant 0 : i32
    %c0_i32_2 = arith.constant 0 : i32
    return %c0_i32, %c0_i32_0, %c0_i32_1 : i32, i32, i32
  }
  func.func @transform_7(%arg0: i32) -> (i32, i32) {
    %c0_i32 = arith.constant 0 : i32
    %c0_i32_0 = arith.constant 0 : i32
    %c0_i32_1 = arith.constant 0 : i32
    return %c0_i32, %c0_i32_0 : i32, i32
  }
  func.func @transform_8(%arg0: i32) -> (i32, i32) {
    %c0_i32 = arith.constant 0 : i32
    %c0_i32_0 = arith.constant 0 : i32
    %c0_i32_1 = arith.constant 0 : i32
    return %c0_i32, %c0_i32_0 : i32, i32
  }
  func.func @transform_9(%arg0: i32) -> (i32, i32) {
    %c0_i32 = arith.constant 0 : i32
    %c0_i32_0 = arith.constant 0 : i32
    %c0_i32_1 = arith.constant 0 : i32
    return %c0_i32, %c0_i32_0 : i32, i32
  }
  func.func @transform_10(%arg0: i32) -> (i32, i32) {
    %c0_i32 = arith.constant 0 : i32
    %c0_i32_0 = arith.constant 0 : i32
    %c0_i32_1 = arith.constant 0 : i32
    return %c0_i32, %c0_i32_0 : i32, i32
  }
  func.func @transform_11(%arg0: i32) -> (i32, i32) {
    %c0_i32 = arith.constant 0 : i32
    %c0_i32_0 = arith.constant 0 : i32
    %c0_i32_1 = arith.constant 0 : i32
    return %c0_i32, %c0_i32_0 : i32, i32
  }
  func.func @transform_12(%arg0: i32) -> (i32, i32) {
    %c0_i32 = arith.constant 0 : i32
    %c0_i32_0 = arith.constant 0 : i32
    %c0_i32_1 = arith.constant 0 : i32
    return %c0_i32, %c0_i32_0 : i32, i32
  }
  func.func @transform_13(%arg0: i32) -> (i32, i32) {
    %c0_i32 = arith.constant 0 : i32
    %c0_i32_0 = arith.constant 0 : i32
    %c0_i32_1 = arith.constant 0 : i32
    return %c0_i32, %c0_i32_0 : i32, i32
  }
  func.func @transform_14(%arg0: i32) -> (i32, i32) {
    %c0_i32 = arith.constant 0 : i32
    %c0_i32_0 = arith.constant 0 : i32
    %c0_i32_1 = arith.constant 0 : i32
    return %c0_i32, %c0_i32_0 : i32, i32
  }
  func.func @transform_15(%arg0: i32) -> (i32, i32) {
    %c0_i32 = arith.constant 0 : i32
    %c0_i32_0 = arith.constant 0 : i32
    %c0_i32_1 = arith.constant 0 : i32
    return %c0_i32, %c0_i32_0 : i32, i32
  }
  func.func @transform_16(%arg0: i32) -> (i32, i32) {
    %c0_i32 = arith.constant 0 : i32
    %c0_i32_0 = arith.constant 0 : i32
    %c0_i32_1 = arith.constant 0 : i32
    return %c0_i32, %c0_i32_0 : i32, i32
  }
  func.func @transform_17(%arg0: i32) -> (i32, i32, i32) {
    %c0_i32 = arith.constant 0 : i32
    %c0_i32_0 = arith.constant 0 : i32
    %c0_i32_1 = arith.constant 0 : i32
    return %arg0, %c0_i32, %c0_i32_0 : i32, i32, i32
  }
}

</mosaic_0001>

<llo_original>
// kernel: tpu_custom_call.1
$region0: #{tpu_custom_call.1}
  #allocation0 [shape = 'u32[]', space=smem, size = 0x4, offset = 0x4, fixed_abs, tag = 'smem constant byte address 0x4 - core index']
  #allocation1 [shape = 'u32[144,128]{1,0:T(1,128)}', space=vmem, size = 0x12000, scoped, tag = 'internal scratch']
  %s0 = inlined_call_operand.vmem [shape: f32[4,8,32], index: 0, kind: input, shape index: {}]
  %s1 = inlined_call_operand.hbm [shape: f32[4,8,32], index: 1, kind: input, shape index: {}]
  %s2 = inlined_call_operand.vmem [shape: bf16[32,32], index: 2, kind: input, shape index: {}]
  %s3 = inlined_call_operand.hbm [shape: bf16[32,32], index: 3, kind: input, shape index: {}]
  %s4 = inlined_call_operand.hbm [shape: bf16[32,128], index: 4, kind: input, shape index: {}]
  %s5 = inlined_call_operand.hbm [shape: bf16[4,8,32], index: 5, kind: input, shape index: {}]
  %s6 = inlined_call_operand.hbm [shape: bf16[4,8,32], index: 6, kind: input, shape index: {}]
  %s7 = inlined_call_operand.hbm [shape: f32[1,32], index: 7, kind: input, shape index: {}]
  %s8 = inlined_call_operand.hbm [shape: f32[1,32], index: 8, kind: input, shape index: {}]
  %s9 = inlined_call_operand.hbm [shape: f32[1,32], index: 9, kind: input, shape index: {}]
  %s10 = inlined_call_operand.vmem [shape: f32[1,32], index: 10, kind: input, shape index: {}]
  %s11 = inlined_call_operand.vmem [shape: bf16[32,64], index: 11, kind: input, shape index: {}]
  %s12 = inlined_call_operand.vmem [shape: f32[1,64], index: 12, kind: input, shape index: {}]
  %s13 = inlined_call_operand.vmem [shape: bf16[64,32], index: 13, kind: input, shape index: {}]
  %s14 = inlined_call_operand.vmem [shape: f32[1,32], index: 14, kind: input, shape index: {}]
  %s15 = inlined_call_operand.vmem [shape: f32[1,32], index: 15, kind: input, shape index: {}]
  %s16 = inlined_call_operand.vmem [shape: f32[1,32], index: 16, kind: input, shape index: {}]
  %s17 = inlined_call_operand.hbm [shape: f32[4,8,32], index: 17, kind: output, shape index: {}]
  %s18 = sld [smem:[#allocation0]]
  $region110: #{tpu_custom_call.1} parent=0
    _
  %s20 = ssub.s32 1, %s18
  %s21 = scalar_select 0, %s20, %s18
  $region1: #{tpu_custom_call.1} parent=0
    #allocation2 [shape = 'u8[16384]{0}', space=vmem, size = 0x4000, scoped, tag = 'input window, operand 1, single buffered']
    #allocation3 [shape = 's32[1]{0}', space=sflag, size = 0x4, scoped, tag = 'scoped memory for tpu_custom_call.1']
    #allocation4 [shape = 's32[1]{0}', space=sflag, size = 0x4, scoped, tag = 'scoped memory for tpu_custom_call.1']
    #allocation5 [shape = 'u8[8192]{0}', space=vmem, size = 0x2000, scoped, tag = 'input window, operand 3, single buffered']
    #allocation6 [shape = 's32[1]{0}', space=sflag, size = 0x4, scoped, tag = 'scoped memory for tpu_custom_call.1']
    #allocation7 [shape = 'u8[8192]{0}', space=vmem, size = 0x2000, scoped, tag = 'input window, operand 4, single buffered']
    #allocation8 [shape = 'u8[8192]{0}', space=vmem, size = 0x2000, scoped, tag = 'input window, operand 5, single buffered']
    #allocation9 [shape = 's32[1]{0}', space=sflag, size = 0x4, scoped, tag = 'scoped memory for tpu_custom_call.1']
    #allocation10 [shape = 'u8[8192]{0}', space=vmem, size = 0x2000, scoped, tag = 'input window, operand 6, single buffered']
    #allocation11 [shape = 'u8[512]{0}', space=vmem, size = 0x400, scoped, tag = 'input window, operand 7, single buffered']
    #allocation12 [shape = 's32[1]{0}', space=sflag, size = 0x4, scoped, tag = 'scoped memory for tpu_custom_call.1']
    #allocation13 [shape = 'u8[512]{0}', space=vmem, size = 0x400, scoped, tag = 'input window, operand 8, single buffered']
    #allocation14 [shape = 'u8[512]{0}', space=vmem, size = 0x400, scoped, tag = 'input window, operand 9, single buffered']
    #allocation15 [shape = 's32[1]{0}', space=sflag, size = 0x4, scoped, tag = 'scoped memory for tpu_custom_call.1']
    #allocation16 [shape = 'u8[16384]{0}', space=vmem, size = 0x4000, scoped, tag = 'output window, operand 0, single buffered']
    %22 = vsyncpa [#allocation3], 0
    %23 = vsyncpa [#allocation6], 0
    %24 = vsyncpa [#allocation9], 0
    %25 = vsyncpa [#allocation12], 0
    %26 = vsyncpa [#allocation15], 0
    %27 = vsyncpa [#allocation4], 0
    // Predicated region
    $region2: #{tpu_custom_call.1} parent=1 // pred_check
      _
    $region3: #{tpu_custom_call.1} parent=1 // pred_check_branch
      %29 = sbr.rel (0) target = $region5
    $region4: #{tpu_custom_call.1} parent=1 // pred_region
      _
    $region5: #{tpu_custom_call.1} parent=1 // pred_fallthru
      _
    // Predicated region
    $region6: #{tpu_custom_call.1} parent=1 // pred_check
      _
    $region7: #{tpu_custom_call.1} parent=1 // pred_check_branch
      %31 = sbr.rel (0) target = $region9
    $region8: #{tpu_custom_call.1} parent=1 // pred_region
      %s33 = ssub.s32 512, 512
      %34 = vsyncadd [#allocation3], %s33
      %s35 = sshll.u32 [#allocation2], 4
      %s36 = int_to_ptr.vmem [resolvable:$true] %s35
      %41 = dma.hbm_to_vmem [thread:$0]  %s1, 512, %s36, [#allocation3], 128, 128, 8
    $region9: #{tpu_custom_call.1} parent=1 // pred_fallthru
      _
    // Predicated region
    $region10: #{tpu_custom_call.1} parent=1 // pred_check
      _
    $region11: #{tpu_custom_call.1} parent=1 // pred_check_branch
      %43 = sbr.rel (0) target = $region13
    $region12: #{tpu_custom_call.1} parent=1 // pred_region
      _
    $region13: #{tpu_custom_call.1} parent=1 // pred_fallthru
      _
    // Predicated region
    $region14: #{tpu_custom_call.1} parent=1 // pred_check
      _
    $region15: #{tpu_custom_call.1} parent=1 // pred_check_branch
      %45 = sbr.rel (0) target = $region17
    $region16: #{tpu_custom_call.1} parent=1 // pred_region
      %s47 = ssub.s32 256, 256
      %48 = vsyncadd [#allocation6], %s47
      %s49 = sshll.u32 [#allocation5], 4
      %s50 = int_to_ptr.vmem [resolvable:$true] %s49
      %55 = dma.hbm_to_vmem [thread:$0]  %s3, 256, %s50, [#allocation6], 64, 64, 4
    $region17: #{tpu_custom_call.1} parent=1 // pred_fallthru
      _
    // Predicated region
    $region18: #{tpu_custom_call.1} parent=1 // pred_check
      _
    $region19: #{tpu_custom_call.1} parent=1 // pred_check_branch
      %57 = sbr.rel (0) target = $region21
    $region20: #{tpu_custom_call.1} parent=1 // pred_region
      %s59 = ssub.s32 256, 256
      %60 = vsyncadd [#allocation6], %s59
      %s61 = sshll.u32 [#allocation7], 4
      %s62 = int_to_ptr.vmem [resolvable:$true] %s61
      %67 = dma.hbm_to_vmem [thread:$0]  %s4, 256, %s62, [#allocation6], 64, 64, 4
    $region21: #{tpu_custom_call.1} parent=1 // pred_fallthru
      _
    // Predicated region
    $region22: #{tpu_custom_call.1} parent=1 // pred_check
      _
    $region23: #{tpu_custom_call.1} parent=1 // pred_check_branch
      %69 = sbr.rel (0) target = $region25
    $region24: #{tpu_custom_call.1} parent=1 // pred_region
      %s71 = ssub.s32 256, 256
      %72 = vsyncadd [#allocation9], %s71
      %s73 = sshll.u32 [#allocation8], 4
      %s74 = int_to_ptr.vmem [resolvable:$true] %s73
      %79 = dma.hbm_to_vmem [thread:$0]  %s5, 256, %s74, [#allocation9], 64, 64, 4
    $region25: #{tpu_custom_call.1} parent=1 // pred_fallthru
      _
    // Predicated region
    $region26: #{tpu_custom_call.1} parent=1 // pred_check
      _
    $region27: #{tpu_custom_call.1} parent=1 // pred_check_branch
      %81 = sbr.rel (0) target = $region29
    $region28: #{tpu_custom_call.1} parent=1 // pred_region
      %s83 = ssub.s32 256, 256
      %84 = vsyncadd [#allocation9], %s83
      %s85 = sshll.u32 [#allocation10], 4
      %s86 = int_to_ptr.vmem [resolvable:$true] %s85
      %91 = dma.hbm_to_vmem [thread:$0]  %s6, 256, %s86, [#allocation9], 64, 64, 4
    $region29: #{tpu_custom_call.1} parent=1 // pred_fallthru
      _
    // Predicated region
    $region30: #{tpu_custom_call.1} parent=1 // pred_check
      _
    $region31: #{tpu_custom_call.1} parent=1 // pred_check_branch
      %93 = sbr.rel (0) target = $region33
    $region32: #{tpu_custom_call.1} parent=1 // pred_region
      %s95 = ssub.s32 16, 16
      %96 = vsyncadd [#allocation12], %s95
      %s98 = sshll.u32 [#allocation11], 4
      %s99 = int_to_ptr.vmem [resolvable:$true] %s98
      %101 = dma.hbm_to_vmem [thread:$0]  %s7, 16, %s99, [#allocation12]
    $region33: #{tpu_custom_call.1} parent=1 // pred_fallthru
      _
    // Predicated region
    $region34: #{tpu_custom_call.1} parent=1 // pred_check
      _
    $region35: #{tpu_custom_call.1} parent=1 // pred_check_branch
      %103 = sbr.rel (0) target = $region37
    $region36: #{tpu_custom_call.1} parent=1 // pred_region
      %s105 = ssub.s32 16, 16
      %106 = vsyncadd [#allocation12], %s105
      %s108 = sshll.u32 [#allocation13], 4
      %s109 = int_to_ptr.vmem [resolvable:$true] %s108
      %111 = dma.hbm_to_vmem [thread:$0]  %s8, 16, %s109, [#allocation12]
    $region37: #{tpu_custom_call.1} parent=1 // pred_fallthru
      _
    // Predicated region
    $region38: #{tpu_custom_call.1} parent=1 // pred_check
      _
    $region39: #{tpu_custom_call.1} parent=1 // pred_check_branch
      %113 = sbr.rel (0) target = $region41
    $region40: #{tpu_custom_call.1} parent=1 // pred_region
      %s115 = ssub.s32 16, 16
      %116 = vsyncadd [#allocation15], %s115
      %s118 = sshll.u32 [#allocation14], 4
      %s119 = int_to_ptr.vmem [resolvable:$true] %s118
      %121 = dma.hbm_to_vmem [thread:$0]  %s9, 16, %s119, [#allocation15]
    $region41: #{tpu_custom_call.1} parent=1 // pred_fallthru
      _
    // Predicated region
    $region42: #{tpu_custom_call.1} parent=1 // pred_check
      _
    $region43: #{tpu_custom_call.1} parent=1 // pred_check_branch
      %123 = sbr.rel (0) target = $region45
    $region44: #{tpu_custom_call.1} parent=1 // pred_region
      _
    $region45: #{tpu_custom_call.1} parent=1 // pred_fallthru
      _
    // Predicated region
    $region46: #{tpu_custom_call.1} parent=1 // pred_check
      _
    $region47: #{tpu_custom_call.1} parent=1 // pred_check_branch
      %125 = sbr.rel (0) target = $region49
    $region48: #{tpu_custom_call.1} parent=1 // pred_region
      _
    $region49: #{tpu_custom_call.1} parent=1 // pred_fallthru
      _
    // Predicated region
    $region50: #{tpu_custom_call.1} parent=1 // pred_check
      _
    $region51: #{tpu_custom_call.1} parent=1 // pred_check_branch
      %127 = sbr.rel (0) target = $region53
    $region52: #{tpu_custom_call.1} parent=1 // pred_region
      _
    $region53: #{tpu_custom_call.1} parent=1 // pred_fallthru
      _
    // Predicated region
    $region54: #{tpu_custom_call.1} parent=1 // pred_check
      _
    $region55: #{tpu_custom_call.1} parent=1 // pred_check_branch
      %129 = sbr.rel (0) target = $region57
    $region56: #{tpu_custom_call.1} parent=1 // pred_region
      _
    $region57: #{tpu_custom_call.1} parent=1 // pred_fallthru
      _
    // Predicated region
    $region58: #{tpu_custom_call.1} parent=1 // pred_check
      _
    $region59: #{tpu_custom_call.1} parent=1 // pred_check_branch
      %131 = sbr.rel (0) target = $region61
    $region60: #{tpu_custom_call.1} parent=1 // pred_region
      _
    $region61: #{tpu_custom_call.1} parent=1 // pred_fallthru
      _
    // Predicated region
    $region62: #{tpu_custom_call.1} parent=1 // pred_check
      _
    $region63: #{tpu_custom_call.1} parent=1 // pred_check_branch
      %133 = sbr.rel (0) target = $region65
    $region64: #{tpu_custom_call.1} parent=1 // pred_region
      _
    $region65: #{tpu_custom_call.1} parent=1 // pred_fallthru
      _
    // Predicated region
    $region66: #{tpu_custom_call.1} parent=1 // pred_check
      _
    $region67: #{tpu_custom_call.1} parent=1 // pred_check_branch
      %135 = sbr.rel (0) target = $region69
    $region68: #{tpu_custom_call.1} parent=1 // pred_region
      _
    $region69: #{tpu_custom_call.1} parent=1 // pred_fallthru
      _
    // Predicated region
    $region70: #{tpu_custom_call.1} parent=1 // pred_check
      _
    $region71: #{tpu_custom_call.1} parent=1 // pred_check_branch
      %137 = sbr.rel (0) target = $region73
    $region72: #{tpu_custom_call.1} parent=1 // pred_region
      %138 = dma.done [#allocation3], 512
    $region73: #{tpu_custom_call.1} parent=1 // pred_fallthru
      _
    // Predicated region
    $region74: #{tpu_custom_call.1} parent=1 // pred_check
      _
    $region75: #{tpu_custom_call.1} parent=1 // pred_check_branch
      %140 = sbr.rel (0) target = $region77
    $region76: #{tpu_custom_call.1} parent=1 // pred_region
      %141 = dma.done [#allocation6], 256
    $region77: #{tpu_custom_call.1} parent=1 // pred_fallthru
      _
    // Predicated region
    $region78: #{tpu_custom_call.1} parent=1 // pred_check
      _
    $region79: #{tpu_custom_call.1} parent=1 // pred_check_branch
      %143 = sbr.rel (0) target = $region81
    $region80: #{tpu_custom_call.1} parent=1 // pred_region
      %144 = dma.done [#allocation6], 256
    $region81: #{tpu_custom_call.1} parent=1 // pred_fallthru
      _
    // Predicated region
    $region82: #{tpu_custom_call.1} parent=1 // pred_check
      _
    $region83: #{tpu_custom_call.1} parent=1 // pred_check_branch
      %146 = sbr.rel (0) target = $region85
    $region84: #{tpu_custom_call.1} parent=1 // pred_region
      %147 = dma.done [#allocation9], 256
    $region85: #{tpu_custom_call.1} parent=1 // pred_fallthru
      _
    // Predicated region
    $region86: #{tpu_custom_call.1} parent=1 // pred_check
      _
    $region87: #{tpu_custom_call.1} parent=1 // pred_check_branch
      %149 = sbr.rel (0) target = $region89
    $region88: #{tpu_custom_call.1} parent=1 // pred_region
      %150 = dma.done [#allocation9], 256
    $region89: #{tpu_custom_call.1} parent=1 // pred_fallthru
      _
    // Predicated region
    $region90: #{tpu_custom_call.1} parent=1 // pred_check
      _
    $region91: #{tpu_custom_call.1} parent=1 // pred_check_branch
      %152 = sbr.rel (0) target = $region93
    $region92: #{tpu_custom_call.1} parent=1 // pred_region
      %153 = dma.done [#allocation12], 16
    $region93: #{tpu_custom_call.1} parent=1 // pred_fallthru
      _
    // Predicated region
    $region94: #{tpu_custom_call.1} parent=1 // pred_check
      _
    $region95: #{tpu_custom_call.1} parent=1 // pred_check_branch
      %155 = sbr.rel (0) target = $region97
    $region96: #{tpu_custom_call.1} parent=1 // pred_region
      %156 = dma.done [#allocation12], 16
    $region97: #{tpu_custom_call.1} parent=1 // pred_fallthru
      _
    // Predicated region
    $region98: #{tpu_custom_call.1} parent=1 // pred_check
      _
    $region99: #{tpu_custom_call.1} parent=1 // pred_check_branch
      %158 = sbr.rel (0) target = $region101
    $region100: #{tpu_custom_call.1} parent=1 // pred_region
      %159 = dma.done [#allocation15], 16
    $region101: #{tpu_custom_call.1} parent=1 // pred_fallthru
      _
    %v161 = vld [vmem:[%s0] sm:$0xff]
    %v162 = vld [vmem:[%s0 + $0x8] sm:$0xff]
    %v163 = vld [vmem:[%s0 + $0x10] sm:$0xff]
    %v164 = vld [vmem:[%s0 + $0x18] sm:$0xff]
    %v165 = vld [vmem:[#allocation2] sm:$0xff]
    %v166 = vld [vmem:[#allocation2 + $0x8] sm:$0xff]
    %v167 = vld [vmem:[#allocation2 + $0x10] sm:$0xff]
    %v168 = vld [vmem:[#allocation2 + $0x18] sm:$0xff]
    %v169 = vpack.c.bf16 %v166, %v165
    %v170 = vpack.c.bf16 %v168, %v167
    %v171 = vld [vmem:[#allocation7] sm:$0xf]
    %v172 = vld [vmem:[#allocation7 + $0x4] sm:$0xf]
    %v173 = vld [vmem:[#allocation7 + $0x8] sm:$0xf]
    %v174 = vld [vmem:[#allocation7 + $0xc] sm:$0xf]
    %v179 = vunpack.c.l.b16 %v171
    %v180 = vunpack.c.l.b16 %v172
    %v181 = vunpack.c.l.b16 %v173
    %v182 = vunpack.c.l.b16 %v174
    %v183 = vpack.c.b16 %v180, %v179
    %v184 = vpack.c.b16 %v182, %v181
    %vm187 = vcmask 261120
    %v189 = vsel %vm187, %v169, 0
    %v192 = vsel %vm187, %v170, 0
    %194 = vmatprep.subr.bf16.mxu0 0
    %195 = vmatpush1.bf16.msra.mxu0 0
    %196 = vmatprep.subr.bf16.mxu0 0
    %197 = vmatpush1.bf16.msra.mxu0 0
    %198 = vmatprep.subr.bf16.mxu0 0
    %199 = vmatpush1.bf16.msra.mxu0 0
    %200 = vmatprep.subr.bf16.mxu0 0
    %201 = vmatpush1.bf16.msra.mxu0 0
    %202 = vmatprep.subr.bf16.mxu0 0
    %203 = vmatpush1.bf16.msra.mxu0 0
    %204 = vmatprep.subr.bf16.mxu0 0
    %205 = vmatpush1.bf16.msra.mxu0 0
    %206 = vmatprep.subr.bf16.mxu0 0
    %207 = vmatpush1.bf16.msra.mxu0 %v184
    %208 = vmatprep.subr.bf16.mxu0 0
    %209 = vmatpush1.bf16.msra.mxu0 %v183
    %210 = vmatprep.subr.bf16.mxu0 0
    %211 = vmatpush2.bf16.msra.mxu0 0
    %212 = vmatprep.subr.bf16.mxu0 0
    %213 = vmatpush2.bf16.msra.mxu0 0
    %214 = vmatprep.subr.bf16.mxu0 0
    %215 = vmatpush2.bf16.msra.mxu0 0
    %216 = vmatprep.subr.bf16.mxu0 0
    %217 = vmatpush2.bf16.msra.mxu0 0
    %218 = vmatprep.subr.bf16.mxu0 0
    %219 = vmatpush2.bf16.msra.mxu0 0
    %220 = vmatprep.subr.bf16.mxu0 0
    %221 = vmatpush2.bf16.msra.mxu0 0
    %222 = vmatprep.subr.bf16.mxu0 0
    %223 = vmatpush2.bf16.msra.mxu0 0
    %224 = vmatprep.subr.bf16.mxu0 0
    %225 = vmatpush2.bf16.msra.mxu0 0
    %226 = vmatprep.mubr.bf16.mxu0 0
    %227 = vmatmul.mubr.bf16.gmra.mxu0 %v189
    %v228 = vpop.f32.mrf.mxu0
    %v229 = vadd.f32 0.0, %v228
    %v230 = vpop.f32.mrf.mxu0
    %v231 = vpop.f32.mrf.mxu0
    %v232 = vadd.f32 0.0, %v231
    %v233 = vpop.f32.mrf.mxu0
    %234 = vmatprep.mubr.bf16.mxu0 0
    %235 = vmatmul.mubr.bf16.gmra.mxu0 %v192
    %v236 = vpop.f32.mrf.mxu0
    %v237 = vadd.f32 0.0, %v236
    %v238 = vpop.f32.mrf.mxu0
    %v239 = vpop.f32.mrf.mxu0
    %v240 = vadd.f32 0.0, %v239
    %v241 = vpop.f32.mrf.mxu0
    %242 = vdwg.mxu0
    %v243 = vpack.c.bf16 %v162, %v161
    %v244 = vpack.c.bf16 %v164, %v163
    %v245 = vld [vmem:[%s2] sm:$0xf]
    %v246 = vld [vmem:[%s2 + $0x4] sm:$0xf]
    %v247 = vld [vmem:[%s2 + $0x8] sm:$0xf]
    %v248 = vld [vmem:[%s2 + $0xc] sm:$0xf]
    %v253 = vunpack.c.l.b16 %v245
    %v254 = vunpack.c.l.b16 %v246
    %v255 = vunpack.c.l.b16 %v247
    %v256 = vunpack.c.l.b16 %v248
    %v257 = vpack.c.b16 %v254, %v253
    %v258 = vpack.c.b16 %v256, %v255
    %v262 = vsel %vm187, %v243, 0
    %v265 = vsel %vm187, %v244, 0
    %267 = vmatprep.subr.bf16.mxu0 0
    %268 = vmatpush1.bf16.msra.mxu0 0
    %269 = vmatprep.subr.bf16.mxu0 0
    %270 = vmatpush1.bf16.msra.mxu0 0
    %271 = vmatprep.subr.bf16.mxu0 0
    %272 = vmatpush1.bf16.msra.mxu0 0
    %273 = vmatprep.subr.bf16.mxu0 0
    %274 = vmatpush1.bf16.msra.mxu0 0
    %275 = vmatprep.subr.bf16.mxu0 0
    %276 = vmatpush1.bf16.msra.mxu0 0
    %277 = vmatprep.subr.bf16.mxu0 0
    %278 = vmatpush1.bf16.msra.mxu0 0
    %279 = vmatprep.subr.bf16.mxu0 0
    %280 = vmatpush1.bf16.msra.mxu0 %v258
    %281 = vmatprep.subr.bf16.mxu0 0
    %282 = vmatpush1.bf16.msra.mxu0 %v257
    %283 = vmatprep.subr.bf16.mxu0 0
    %284 = vmatpush2.bf16.msra.mxu0 0
    %285 = vmatprep.subr.bf16.mxu0 0
    %286 = vmatpush2.bf16.msra.mxu0 0
    %287 = vmatprep.subr.bf16.mxu0 0
    %288 = vmatpush2.bf16.msra.mxu0 0
    %289 = vmatprep.subr.bf16.mxu0 0
    %290 = vmatpush2.bf16.msra.mxu0 0
    %291 = vmatprep.subr.bf16.mxu0 0
    %292 = vmatpush2.bf16.msra.mxu0 0
    %293 = vmatprep.subr.bf16.mxu0 0
    %294 = vmatpush2.bf16.msra.mxu0 0
    %295 = vmatprep.subr.bf16.mxu0 0
    %296 = vmatpush2.bf16.msra.mxu0 0
    %297 = vmatprep.subr.bf16.mxu0 0
    %298 = vmatpush2.bf16.msra.mxu0 0
    %299 = vmatprep.mubr.bf16.mxu0 0
    %300 = vmatmul.mubr.bf16.gmra.mxu0 %v262
    %v301 = vpop.f32.mrf.mxu0
    %v302 = vadd.f32 0.0, %v301
    %v303 = vpop.f32.mrf.mxu0
    %v304 = vpop.f32.mrf.mxu0
    %v305 = vadd.f32 0.0, %v304
    %v306 = vpop.f32.mrf.mxu0
    %307 = vmatprep.mubr.bf16.mxu0 0
    %308 = vmatmul.mubr.bf16.gmra.mxu0 %v265
    %v309 = vpop.f32.mrf.mxu0
    %v310 = vadd.f32 0.0, %v309
    %v311 = vpop.f32.mrf.mxu0
    %v312 = vpop.f32.mrf.mxu0
    %v313 = vadd.f32 0.0, %v312
    %v314 = vpop.f32.mrf.mxu0
    %315 = vdwg.mxu0
    %v316 = vpack.c.bf16 %v302, %v302
    %v317 = vpack.c.bf16 %v305, %v305
    %v318 = vpack.c.bf16 %v310, %v310
    %v319 = vpack.c.bf16 %v313, %v313
    %v320 = vpack.c.bf16 %v229, %v229
    %v321 = vpack.c.bf16 %v232, %v232
    %v322 = vpack.c.bf16 %v237, %v237
    %v323 = vpack.c.bf16 %v240, %v240
    %vm324 = vcmask 64512
    %v326 = vsel %vm324, %v316, 0
    %v329 = vsel %vm324, %v320, 0
    %331 = vmatprep.subr.bf16.mxu0 0
    %332 = vmatpush1.bf16.xpose.msra.mxu0 0
    %333 = vmatprep.subr.bf16.mxu0 0
    %334 = vmatpush1.bf16.xpose.msra.mxu0 0
    %335 = vmatprep.subr.bf16.mxu0 0
    %336 = vmatpush1.bf16.xpose.msra.mxu0 0
    %337 = vmatprep.subr.bf16.mxu0 0
    %338 = vmatpush1.bf16.xpose.msra.mxu0 0
    %339 = vmatprep.subr.bf16.mxu0 0
    %340 = vmatpush1.bf16.xpose.msra.mxu0 0
    %341 = vmatprep.subr.bf16.mxu0 0
    %342 = vmatpush1.bf16.xpose.msra.mxu0 0
    %343 = vmatprep.subr.bf16.mxu0 0
    %344 = vmatpush1.bf16.xpose.msra.mxu0 0
    %345 = vmatprep.subr.bf16.mxu0 0
    %346 = vmatpush1.bf16.xpose.msra.mxu0 %v329
    %347 = vmatprep.subr.bf16.mxu0 0
    %348 = vmatpush2.bf16.xpose.msra.mxu0 0
    %349 = vmatprep.subr.bf16.mxu0 0
    %350 = vmatpush2.bf16.xpose.msra.mxu0 0
    %351 = vmatprep.subr.bf16.mxu0 0
    %352 = vmatpush2.bf16.xpose.msra.mxu0 0
    %353 = vmatprep.subr.bf16.mxu0 0
    %354 = vmatpush2.bf16.xpose.msra.mxu0 0
    %355 = vmatprep.subr.bf16.mxu0 0
    %356 = vmatpush2.bf16.xpose.msra.mxu0 0
    %357 = vmatprep.subr.bf16.mxu0 0
    %358 = vmatpush2.bf16.xpose.msra.mxu0 0
    %359 = vmatprep.subr.bf16.mxu0 0
    %360 = vmatpush2.bf16.xpose.msra.mxu0 0
    %361 = vmatprep.subr.bf16.mxu0 0
    %362 = vmatpush2.bf16.xpose.msra.mxu0 0
    %363 = vmatprep.mubr.bf16.mxu0 0
    %364 = vmatmul.mubr.bf16.gmra.mxu0 %v326
    %v365 = vpop.f32.mrf.mxu0
    %v366 = vadd.f32 0.0, %v365
    %v367 = vpop.f32.mrf.mxu0
    %v368 = vpop.f32.mrf.mxu0
    %v369 = vpop.f32.mrf.mxu0
    %370 = vdwg.mxu0
    %v372 = vsel %vm324, %v317, 0
    %v375 = vsel %vm324, %v321, 0
    %377 = vmatprep.subr.bf16.mxu0 0
    %378 = vmatpush1.bf16.xpose.msra.mxu0 0
    %379 = vmatprep.subr.bf16.mxu0 0
    %380 = vmatpush1.bf16.xpose.msra.mxu0 0
    %381 = vmatprep.subr.bf16.mxu0 0
    %382 = vmatpush1.bf16.xpose.msra.mxu0 0
    %383 = vmatprep.subr.bf16.mxu0 0
    %384 = vmatpush1.bf16.xpose.msra.mxu0 0
    %385 = vmatprep.subr.bf16.mxu0 0
    %386 = vmatpush1.bf16.xpose.msra.mxu0 0
    %387 = vmatprep.subr.bf16.mxu0 0
    %388 = vmatpush1.bf16.xpose.msra.mxu0 0
    %389 = vmatprep.subr.bf16.mxu0 0
    %390 = vmatpush1.bf16.xpose.msra.mxu0 0
    %391 = vmatprep.subr.bf16.mxu0 0
    %392 = vmatpush1.bf16.xpose.msra.mxu0 %v375
    %393 = vmatprep.subr.bf16.mxu0 0
    %394 = vmatpush2.bf16.xpose.msra.mxu0 0
    %395 = vmatprep.subr.bf16.mxu0 0
    %396 = vmatpush2.bf16.xpose.msra.mxu0 0
    %397 = vmatprep.subr.bf16.mxu0 0
    %398 = vmatpush2.bf16.xpose.msra.mxu0 0
    %399 = vmatprep.subr.bf16.mxu0 0
    %400 = vmatpush2.bf16.xpose.msra.mxu0 0
    %401 = vmatprep.subr.bf16.mxu0 0
    %402 = vmatpush2.bf16.xpose.msra.mxu0 0
    %403 = vmatprep.subr.bf16.mxu0 0
    %404 = vmatpush2.bf16.xpose.msra.mxu0 0
    %405 = vmatprep.subr.bf16.mxu0 0
    %406 = vmatpush2.bf16.xpose.msra.mxu0 0
    %407 = vmatprep.subr.bf16.mxu0 0
    %408 = vmatpush2.bf16.xpose.msra.mxu0 0
    %409 = vmatprep.mubr.bf16.mxu0 0
    %410 = vmatmul.mubr.bf16.gmra.mxu0 %v372
    %v411 = vpop.f32.mrf.mxu0
    %v412 = vadd.f32 0.0, %v411
    %v413 = vpop.f32.mrf.mxu0
    %v414 = vpop.f32.mrf.mxu0
    %v415 = vpop.f32.mrf.mxu0
    %416 = vdwg.mxu0
    %v418 = vsel %vm324, %v318, 0
    %v421 = vsel %vm324, %v322, 0
    %423 = vmatprep.subr.bf16.mxu0 0
    %424 = vmatpush1.bf16.xpose.msra.mxu0 0
    %425 = vmatprep.subr.bf16.mxu0 0
    %426 = vmatpush1.bf16.xpose.msra.mxu0 0
    %427 = vmatprep.subr.bf16.mxu0 0
    %428 = vmatpush1.bf16.xpose.msra.mxu0 0
    %429 = vmatprep.subr.bf16.mxu0 0
    %430 = vmatpush1.bf16.xpose.msra.mxu0 0
    %431 = vmatprep.subr.bf16.mxu0 0
    %432 = vmatpush1.bf16.xpose.msra.mxu0 0
    %433 = vmatprep.subr.bf16.mxu0 0
    %434 = vmatpush1.bf16.xpose.msra.mxu0 0
    %435 = vmatprep.subr.bf16.mxu0 0
    %436 = vmatpush1.bf16.xpose.msra.mxu0 0
    %437 = vmatprep.subr.bf16.mxu0 0
    %438 = vmatpush1.bf16.xpose.msra.mxu0 %v421
    %439 = vmatprep.subr.bf16.mxu0 0
    %440 = vmatpush2.bf16.xpose.msra.mxu0 0
    %441 = vmatprep.subr.bf16.mxu0 0
    %442 = vmatpush2.bf16.xpose.msra.mxu0 0
    %443 = vmatprep.subr.bf16.mxu0 0
    %444 = vmatpush2.bf16.xpose.msra.mxu0 0
    %445 = vmatprep.subr.bf16.mxu0 0
    %446 = vmatpush2.bf16.xpose.msra.mxu0 0
    %447 = vmatprep.subr.bf16.mxu0 0
    %448 = vmatpush2.bf16.xpose.msra.mxu0 0
    %449 = vmatprep.subr.bf16.mxu0 0
    %450 = vmatpush2.bf16.xpose.msra.mxu0 0
    %451 = vmatprep.subr.bf16.mxu0 0
    %452 = vmatpush2.bf16.xpose.msra.mxu0 0
    %453 = vmatprep.subr.bf16.mxu0 0
    %454 = vmatpush2.bf16.xpose.msra.mxu0 0
    %455 = vmatprep.mubr.bf16.mxu0 0
    %456 = vmatmul.mubr.bf16.gmra.mxu0 %v418
    %v457 = vpop.f32.mrf.mxu0
    %v458 = vadd.f32 0.0, %v457
    %v459 = vpop.f32.mrf.mxu0
    %v460 = vpop.f32.mrf.mxu0
    %v461 = vpop.f32.mrf.mxu0
    %462 = vdwg.mxu0
    %v464 = vsel %vm324, %v319, 0
    %v467 = vsel %vm324, %v323, 0
    %469 = vmatprep.subr.bf16.mxu0 0
    %470 = vmatpush1.bf16.xpose.msra.mxu0 0
    %471 = vmatprep.subr.bf16.mxu0 0
    %472 = vmatpush1.bf16.xpose.msra.mxu0 0
    %473 = vmatprep.subr.bf16.mxu0 0
    %474 = vmatpush1.bf16.xpose.msra.mxu0 0
    %475 = vmatprep.subr.bf16.mxu0 0
    %476 = vmatpush1.bf16.xpose.msra.mxu0 0
    %477 = vmatprep.subr.bf16.mxu0 0
    %478 = vmatpush1.bf16.xpose.msra.mxu0 0
    %479 = vmatprep.subr.bf16.mxu0 0
    %480 = vmatpush1.bf16.xpose.msra.mxu0 0
    %481 = vmatprep.subr.bf16.mxu0 0
    %482 = vmatpush1.bf16.xpose.msra.mxu0 0
    %483 = vmatprep.subr.bf16.mxu0 0
    %484 = vmatpush1.bf16.xpose.msra.mxu0 %v467
    %485 = vmatprep.subr.bf16.mxu0 0
    %486 = vmatpush2.bf16.xpose.msra.mxu0 0
    %487 = vmatprep.subr.bf16.mxu0 0
    %488 = vmatpush2.bf16.xpose.msra.mxu0 0
    %489 = vmatprep.subr.bf16.mxu0 0
    %490 = vmatpush2.bf16.xpose.msra.mxu0 0
    %491 = vmatprep.subr.bf16.mxu0 0
    %492 = vmatpush2.bf16.xpose.msra.mxu0 0
    %493 = vmatprep.subr.bf16.mxu0 0
    %494 = vmatpush2.bf16.xpose.msra.mxu0 0
    %495 = vmatprep.subr.bf16.mxu0 0
    %496 = vmatpush2.bf16.xpose.msra.mxu0 0
    %497 = vmatprep.subr.bf16.mxu0 0
    %498 = vmatpush2.bf16.xpose.msra.mxu0 0
    %499 = vmatprep.subr.bf16.mxu0 0
    %500 = vmatpush2.bf16.xpose.msra.mxu0 0
    %501 = vmatprep.mubr.bf16.mxu0 0
    %502 = vmatmul.mubr.bf16.gmra.mxu0 %v464
    %v503 = vpop.f32.mrf.mxu0
    %v504 = vadd.f32 0.0, %v503
    %v505 = vpop.f32.mrf.mxu0
    %v506 = vpop.f32.mrf.mxu0
    %v507 = vpop.f32.mrf.mxu0
    %508 = vdwg.mxu0
    %v509 = vsel %vm324, %v366, -inf
    %510 = vmax.xlane.f32.xlu0 %v509
    %v511 = vpop.xlane.xlu0 %510
    %v512 = vsel %vm324, %v412, -inf
    %513 = vmax.xlane.f32.xlu0 %v512
    %v514 = vpop.xlane.xlu0 %513
    %v515 = vsel %vm324, %v458, -inf
    %516 = vmax.xlane.f32.xlu0 %v515
    %v517 = vpop.xlane.xlu0 %516
    %v518 = vsel %vm324, %v504, -inf
    %519 = vmax.xlane.f32.xlu0 %v518
    %v520 = vpop.xlane.xlu0 %519
    %v521 = vsub.f32 %v366, %v511
    %v522 = vsub.f32 %v412, %v514
    %v523 = vsub.f32 %v458, %v517
    %v524 = vsub.f32 %v504, %v520
    %v525 = vmul.f32 %v521, 1.442695
    %v526 = vpow.pop %v525
    %v527 = vmul.f32 %v522, 1.442695
    %v528 = vpow.pop %v527
    %v529 = vmul.f32 %v523, 1.442695
    %v530 = vpow.pop %v529
    %v531 = vmul.f32 %v524, 1.442695
    %v532 = vpow.pop %v531
    %v533 = vsel %vm324, %v526, 0.0
    %534 = vadd.xlane.f32.xlu0 %v533
    %v535 = vpop.xlane.xlu0 %534
    %v536 = vsel %vm324, %v528, 0.0
    %537 = vadd.xlane.f32.xlu0 %v536
    %v538 = vpop.xlane.xlu0 %537
    %v539 = vsel %vm324, %v530, 0.0
    %540 = vadd.xlane.f32.xlu0 %v539
    %v541 = vpop.xlane.xlu0 %540
    %v542 = vsel %vm324, %v532, 0.0
    %543 = vadd.xlane.f32.xlu0 %v542
    %v544 = vpop.xlane.xlu0 %543
    %v545 = vrcp.pop %v535
    %v546 = vrcp.pop %v538
    %v547 = vrcp.pop %v541
    %v548 = vrcp.pop %v544
    %v549 = vmul.f32 %v526, %v545
    %v550 = vmul.f32 %v528, %v546
    %v551 = vmul.f32 %v530, %v547
    %v552 = vmul.f32 %v532, %v548
    %v553 = vpack.c.bf16 %v549, %v549
    %v554 = vpack.c.bf16 %v550, %v550
    %v555 = vpack.c.bf16 %v551, %v551
    %v556 = vpack.c.bf16 %v552, %v552
    %558 = vrot.lane.b32.xlu0 %v320, 96
    %v559 = vpop.permute.xlu0 %558
    %v561 = vsel %vm324, %v553, 0
    %vm563 = vcmask 1043456
    %v565 = vsel %vm563, %v559, 0
    %567 = vmatprep.subr.bf16.mxu0 0
    %568 = vmatpush1.bf16.msra.mxu0 0
    %569 = vmatprep.subr.bf16.mxu0 0
    %570 = vmatpush1.bf16.msra.mxu0 0
    %571 = vmatprep.subr.bf16.mxu0 0
    %572 = vmatpush1.bf16.msra.mxu0 0
    %573 = vmatprep.subr.bf16.mxu0 0
    %574 = vmatpush1.bf16.msra.mxu0 0
    %575 = vmatprep.subr.bf16.mxu0 0
    %576 = vmatpush1.bf16.msra.mxu0 0
    %577 = vmatprep.subr.bf16.mxu0 0
    %578 = vmatpush1.bf16.msra.mxu0 0
    %579 = vmatprep.subr.bf16.mxu0 0
    %580 = vmatpush1.bf16.msra.mxu0 0
    %581 = vmatprep.subr.bf16.mxu0 0
    %582 = vmatpush1.bf16.msra.mxu0 %v565
    %583 = vmatprep.subr.bf16.mxu0 0
    %584 = vmatpush2.bf16.msra.mxu0 0
    %585 = vmatprep.subr.bf16.mxu0 0
    %586 = vmatpush2.bf16.msra.mxu0 0
    %587 = vmatprep.subr.bf16.mxu0 0
    %588 = vmatpush2.bf16.msra.mxu0 0
    %589 = vmatprep.subr.bf16.mxu0 0
    %590 = vmatpush2.bf16.msra.mxu0 0
    %591 = vmatprep.subr.bf16.mxu0 0
    %592 = vmatpush2.bf16.msra.mxu0 0
    %593 = vmatprep.subr.bf16.mxu0 0
    %594 = vmatpush2.bf16.msra.mxu0 0
    %595 = vmatprep.subr.bf16.mxu0 0
    %596 = vmatpush2.bf16.msra.mxu0 0
    %597 = vmatprep.subr.bf16.mxu0 0
    %598 = vmatpush2.bf16.msra.mxu0 0
    %599 = vmatprep.mubr.bf16.mxu0 0
    %600 = vmatmul.mubr.bf16.gmra.mxu0 %v561
    %v601 = vpop.f32.mrf.mxu0
    %v602 = vadd.f32 0.0, %v601
    %v603 = vpop.f32.mrf.mxu0
    %v604 = vpop.f32.mrf.mxu0
    %v605 = vpop.f32.mrf.mxu0
    %606 = vdwg.mxu0
    %608 = vrot.lane.b32.xlu0 %v321, 96
    %v609 = vpop.permute.xlu0 %608
    %v611 = vsel %vm324, %v554, 0
    %v614 = vsel %vm563, %v609, 0
    %616 = vmatprep.subr.bf16.mxu0 0
    %617 = vmatpush1.bf16.msra.mxu0 0
    %618 = vmatprep.subr.bf16.mxu0 0
    %619 = vmatpush1.bf16.msra.mxu0 0
    %620 = vmatprep.subr.bf16.mxu0 0
    %621 = vmatpush1.bf16.msra.mxu0 0
    %622 = vmatprep.subr.bf16.mxu0 0
    %623 = vmatpush1.bf16.msra.mxu0 0
    %624 = vmatprep.subr.bf16.mxu0 0
    %625 = vmatpush1.bf16.msra.mxu0 0
    %626 = vmatprep.subr.bf16.mxu0 0
    %627 = vmatpush1.bf16.msra.mxu0 0
    %628 = vmatprep.subr.bf16.mxu0 0
    %629 = vmatpush1.bf16.msra.mxu0 0
    %630 = vmatprep.subr.bf16.mxu0 0
    %631 = vmatpush1.bf16.msra.mxu0 %v614
    %632 = vmatprep.subr.bf16.mxu0 0
    %633 = vmatpush2.bf16.msra.mxu0 0
    %634 = vmatprep.subr.bf16.mxu0 0
    %635 = vmatpush2.bf16.msra.mxu0 0
    %636 = vmatprep.subr.bf16.mxu0 0
    %637 = vmatpush2.bf16.msra.mxu0 0
    %638 = vmatprep.subr.bf16.mxu0 0
    %639 = vmatpush2.bf16.msra.mxu0 0
    %640 = vmatprep.subr.bf16.mxu0 0
    %641 = vmatpush2.bf16.msra.mxu0 0
    %642 = vmatprep.subr.bf16.mxu0 0
    %643 = vmatpush2.bf16.msra.mxu0 0
    %644 = vmatprep.subr.bf16.mxu0 0
    %645 = vmatpush2.bf16.msra.mxu0 0
    %646 = vmatprep.subr.bf16.mxu0 0
    %647 = vmatpush2.bf16.msra.mxu0 0
    %648 = vmatprep.mubr.bf16.mxu0 0
    %649 = vmatmul.mubr.bf16.gmra.mxu0 %v611
    %v650 = vpop.f32.mrf.mxu0
    %v651 = vadd.f32 0.0, %v650
    %v652 = vpop.f32.mrf.mxu0
    %v653 = vpop.f32.mrf.mxu0
    %v654 = vpop.f32.mrf.mxu0
    %655 = vdwg.mxu0
    %657 = vrot.lane.b32.xlu0 %v322, 96
    %v658 = vpop.permute.xlu0 %657
    %v660 = vsel %vm324, %v555, 0
    %v663 = vsel %vm563, %v658, 0
    %665 = vmatprep.subr.bf16.mxu0 0
    %666 = vmatpush1.bf16.msra.mxu0 0
    %667 = vmatprep.subr.bf16.mxu0 0
    %668 = vmatpush1.bf16.msra.mxu0 0
    %669 = vmatprep.subr.bf16.mxu0 0
    %670 = vmatpush1.bf16.msra.mxu0 0
    %671 = vmatprep.subr.bf16.mxu0 0
    %672 = vmatpush1.bf16.msra.mxu0 0
    %673 = vmatprep.subr.bf16.mxu0 0
    %674 = vmatpush1.bf16.msra.mxu0 0
    %675 = vmatprep.subr.bf16.mxu0 0
    %676 = vmatpush1.bf16.msra.mxu0 0
    %677 = vmatprep.subr.bf16.mxu0 0
    %678 = vmatpush1.bf16.msra.mxu0 0
    %679 = vmatprep.subr.bf16.mxu0 0
    %680 = vmatpush1.bf16.msra.mxu0 %v663
    %681 = vmatprep.subr.bf16.mxu0 0
    %682 = vmatpush2.bf16.msra.mxu0 0
    %683 = vmatprep.subr.bf16.mxu0 0
    %684 = vmatpush2.bf16.msra.mxu0 0
    %685 = vmatprep.subr.bf16.mxu0 0
    %686 = vmatpush2.bf16.msra.mxu0 0
    %687 = vmatprep.subr.bf16.mxu0 0
    %688 = vmatpush2.bf16.msra.mxu0 0
    %689 = vmatprep.subr.bf16.mxu0 0
    %690 = vmatpush2.bf16.msra.mxu0 0
    %691 = vmatprep.subr.bf16.mxu0 0
    %692 = vmatpush2.bf16.msra.mxu0 0
    %693 = vmatprep.subr.bf16.mxu0 0
    %694 = vmatpush2.bf16.msra.mxu0 0
    %695 = vmatprep.subr.bf16.mxu0 0
    %696 = vmatpush2.bf16.msra.mxu0 0
    %697 = vmatprep.mubr.bf16.mxu0 0
    %698 = vmatmul.mubr.bf16.gmra.mxu0 %v660
    %v699 = vpop.f32.mrf.mxu0
    %v700 = vadd.f32 0.0, %v699
    %v701 = vpop.f32.mrf.mxu0
    %v702 = vpop.f32.mrf.mxu0
    %v703 = vpop.f32.mrf.mxu0
    %704 = vdwg.mxu0
    %706 = vrot.lane.b32.xlu0 %v323, 96
    %v707 = vpop.permute.xlu0 %706
    %v709 = vsel %vm324, %v556, 0
    %v712 = vsel %vm563, %v707, 0
    %714 = vmatprep.subr.bf16.mxu0 0
    %715 = vmatpush1.bf16.msra.mxu0 0
    %716 = vmatprep.subr.bf16.mxu0 0
    %717 = vmatpush1.bf16.msra.mxu0 0
    %718 = vmatprep.subr.bf16.mxu0 0
    %719 = vmatpush1.bf16.msra.mxu0 0
    %720 = vmatprep.subr.bf16.mxu0 0
    %721 = vmatpush1.bf16.msra.mxu0 0
    %722 = vmatprep.subr.bf16.mxu0 0
    %723 = vmatpush1.bf16.msra.mxu0 0
    %724 = vmatprep.subr.bf16.mxu0 0
    %725 = vmatpush1.bf16.msra.mxu0 0
    %726 = vmatprep.subr.bf16.mxu0 0
    %727 = vmatpush1.bf16.msra.mxu0 0
    %728 = vmatprep.subr.bf16.mxu0 0
    %729 = vmatpush1.bf16.msra.mxu0 %v712
    %730 = vmatprep.subr.bf16.mxu0 0
    %731 = vmatpush2.bf16.msra.mxu0 0
    %732 = vmatprep.subr.bf16.mxu0 0
    %733 = vmatpush2.bf16.msra.mxu0 0
    %734 = vmatprep.subr.bf16.mxu0 0
    %735 = vmatpush2.bf16.msra.mxu0 0
    %736 = vmatprep.subr.bf16.mxu0 0
    %737 = vmatpush2.bf16.msra.mxu0 0
    %738 = vmatprep.subr.bf16.mxu0 0
    %739 = vmatpush2.bf16.msra.mxu0 0
    %740 = vmatprep.subr.bf16.mxu0 0
    %741 = vmatpush2.bf16.msra.mxu0 0
    %742 = vmatprep.subr.bf16.mxu0 0
    %743 = vmatpush2.bf16.msra.mxu0 0
    %744 = vmatprep.subr.bf16.mxu0 0
    %745 = vmatpush2.bf16.msra.mxu0 0
    %746 = vmatprep.mubr.bf16.mxu0 0
    %747 = vmatmul.mubr.bf16.gmra.mxu0 %v709
    %v748 = vpop.f32.mrf.mxu0
    %v749 = vadd.f32 0.0, %v748
    %v750 = vpop.f32.mrf.mxu0
    %v751 = vpop.f32.mrf.mxu0
    %v752 = vpop.f32.mrf.mxu0
    %753 = vdwg.mxu0
    %v754 = vpack.c.bf16 %v651, %v602
    %v755 = vpack.c.bf16 %v749, %v700
    %v756 = vld [vmem:[#allocation8] sm:$0xf]
    %v758 = vsel %vm324, %v754, 0
    %v761 = vsel %vm324, %v755, 0
    %v764 = vsel %vm563, %v756, 0
    %766 = vmatprep.subr.bf16.mxu0 0
    %767 = vmatpush1.bf16.msra.mxu0 0
    %768 = vmatprep.subr.bf16.mxu0 0
    %769 = vmatpush1.bf16.msra.mxu0 0
    %770 = vmatprep.subr.bf16.mxu0 0
    %771 = vmatpush1.bf16.msra.mxu0 0
    %772 = vmatprep.subr.bf16.mxu0 0
    %773 = vmatpush1.bf16.msra.mxu0 0
    %774 = vmatprep.subr.bf16.mxu0 0
    %775 = vmatpush1.bf16.msra.mxu0 0
    %776 = vmatprep.subr.bf16.mxu0 0
    %777 = vmatpush1.bf16.msra.mxu0 0
    %778 = vmatprep.subr.bf16.mxu0 0
    %779 = vmatpush1.bf16.msra.mxu0 0
    %780 = vmatprep.subr.bf16.mxu0 0
    %781 = vmatpush1.bf16.msra.mxu0 %v764
    %782 = vmatprep.subr.bf16.mxu0 0
    %783 = vmatpush2.bf16.msra.mxu0 0
    %784 = vmatprep.subr.bf16.mxu0 0
    %785 = vmatpush2.bf16.msra.mxu0 0
    %786 = vmatprep.subr.bf16.mxu0 0
    %787 = vmatpush2.bf16.msra.mxu0 0
    %788 = vmatprep.subr.bf16.mxu0 0
    %789 = vmatpush2.bf16.msra.mxu0 0
    %790 = vmatprep.subr.bf16.mxu0 0
    %791 = vmatpush2.bf16.msra.mxu0 0
    %792 = vmatprep.subr.bf16.mxu0 0
    %793 = vmatpush2.bf16.msra.mxu0 0
    %794 = vmatprep.subr.bf16.mxu0 0
    %795 = vmatpush2.bf16.msra.mxu0 0
    %796 = vmatprep.subr.bf16.mxu0 0
    %797 = vmatpush2.bf16.msra.mxu0 0
    %798 = vmatprep.mubr.bf16.mxu0 0
    %799 = vmatmul.mubr.bf16.gmra.mxu0 %v758
    %v800 = vpop.f32.mrf.mxu0
    %v801 = vadd.f32 0.0, %v800
    %v802 = vpop.f32.mrf.mxu0
    %v803 = vpop.f32.mrf.mxu0
    %v804 = vadd.f32 0.0, %v803
    %v805 = vpop.f32.mrf.mxu0
    %806 = vmatprep.mubr.bf16.mxu0 0
    %807 = vmatmul.mubr.bf16.gmra.mxu0 %v761
    %v808 = vpop.f32.mrf.mxu0
    %v809 = vadd.f32 0.0, %v808
    %v810 = vpop.f32.mrf.mxu0
    %v811 = vpop.f32.mrf.mxu0
    %v812 = vadd.f32 0.0, %v811
    %v813 = vpop.f32.mrf.mxu0
    %814 = vdwg.mxu0
    %v815 = vadd.f32 %v161, %v801
    %v816 = vadd.f32 %v162, %v804
    %v817 = vadd.f32 %v163, %v809
    %v818 = vadd.f32 %v164, %v812
    %820 = vrot.lane.b32.xlu0 %v316, 120
    %v821 = vpop.permute.xlu0 %820
    %822 = vrot.lane.b32.xlu0 %v320, 120
    %v823 = vpop.permute.xlu0 %822
    %v825 = vsel %vm324, %v821, 0
    %v828 = vsel %vm324, %v823, 0
    %830 = vmatprep.subr.bf16.mxu0 0
    %831 = vmatpush1.bf16.xpose.msra.mxu0 0
    %832 = vmatprep.subr.bf16.mxu0 0
    %833 = vmatpush1.bf16.xpose.msra.mxu0 0
    %834 = vmatprep.subr.bf16.mxu0 0
    %835 = vmatpush1.bf16.xpose.msra.mxu0 0
    %836 = vmatprep.subr.bf16.mxu0 0
    %837 = vmatpush1.bf16.xpose.msra.mxu0 0
    %838 = vmatprep.subr.bf16.mxu0 0
    %839 = vmatpush1.bf16.xpose.msra.mxu0 0
    %840 = vmatprep.subr.bf16.mxu0 0
    %841 = vmatpush1.bf16.xpose.msra.mxu0 0
    %842 = vmatprep.subr.bf16.mxu0 0
    %843 = vmatpush1.bf16.xpose.msra.mxu0 0
    %844 = vmatprep.subr.bf16.mxu0 0
    %845 = vmatpush1.bf16.xpose.msra.mxu0 %v828
    %846 = vmatprep.subr.bf16.mxu0 0
    %847 = vmatpush2.bf16.xpose.msra.mxu0 0
    %848 = vmatprep.subr.bf16.mxu0 0
    %849 = vmatpush2.bf16.xpose.msra.mxu0 0
    %850 = vmatprep.subr.bf16.mxu0 0
    %851 = vmatpush2.bf16.xpose.msra.mxu0 0
    %852 = vmatprep.subr.bf16.mxu0 0
    %853 = vmatpush2.bf16.xpose.msra.mxu0 0
    %854 = vmatprep.subr.bf16.mxu0 0
    %855 = vmatpush2.bf16.xpose.msra.mxu0 0
    %856 = vmatprep.subr.bf16.mxu0 0
    %857 = vmatpush2.bf16.xpose.msra.mxu0 0
    %858 = vmatprep.subr.bf16.mxu0 0
    %859 = vmatpush2.bf16.xpose.msra.mxu0 0
    %860 = vmatprep.subr.bf16.mxu0 0
    %861 = vmatpush2.bf16.xpose.msra.mxu0 0
    %862 = vmatprep.mubr.bf16.mxu0 0
    %863 = vmatmul.mubr.bf16.gmra.mxu0 %v825
    %v864 = vpop.f32.mrf.mxu0
    %v865 = vadd.f32 0.0, %v864
    %v866 = vpop.f32.mrf.mxu0
    %v867 = vpop.f32.mrf.mxu0
    %v868 = vpop.f32.mrf.mxu0
    %869 = vdwg.mxu0
    %871 = vrot.lane.b32.xlu0 %v317, 120
    %v872 = vpop.permute.xlu0 %871
    %873 = vrot.lane.b32.xlu0 %v321, 120
    %v874 = vpop.permute.xlu0 %873
    %v876 = vsel %vm324, %v872, 0
    %v879 = vsel %vm324, %v874, 0
    %881 = vmatprep.subr.bf16.mxu0 0
    %882 = vmatpush1.bf16.xpose.msra.mxu0 0
    %883 = vmatprep.subr.bf16.mxu0 0
    %884 = vmatpush1.bf16.xpose.msra.mxu0 0
    %885 = vmatprep.subr.bf16.mxu0 0
    %886 = vmatpush1.bf16.xpose.msra.mxu0 0
    %887 = vmatprep.subr.bf16.mxu0 0
    %888 = vmatpush1.bf16.xpose.msra.mxu0 0
    %889 = vmatprep.subr.bf16.mxu0 0
    %890 = vmatpush1.bf16.xpose.msra.mxu0 0
    %891 = vmatprep.subr.bf16.mxu0 0
    %892 = vmatpush1.bf16.xpose.msra.mxu0 0
    %893 = vmatprep.subr.bf16.mxu0 0
    %894 = vmatpush1.bf16.xpose.msra.mxu0 0
    %895 = vmatprep.subr.bf16.mxu0 0
    %896 = vmatpush1.bf16.xpose.msra.mxu0 %v879
    %897 = vmatprep.subr.bf16.mxu0 0
    %898 = vmatpush2.bf16.xpose.msra.mxu0 0
    %899 = vmatprep.subr.bf16.mxu0 0
    %900 = vmatpush2.bf16.xpose.msra.mxu0 0
    %901 = vmatprep.subr.bf16.mxu0 0
    %902 = vmatpush2.bf16.xpose.msra.mxu0 0
    %903 = vmatprep.subr.bf16.mxu0 0
    %904 = vmatpush2.bf16.xpose.msra.mxu0 0
    %905 = vmatprep.subr.bf16.mxu0 0
    %906 = vmatpush2.bf16.xpose.msra.mxu0 0
    %907 = vmatprep.subr.bf16.mxu0 0
    %908 = vmatpush2.bf16.xpose.msra.mxu0 0
    %909 = vmatprep.subr.bf16.mxu0 0
    %910 = vmatpush2.bf16.xpose.msra.mxu0 0
    %911 = vmatprep.subr.bf16.mxu0 0
    %912 = vmatpush2.bf16.xpose.msra.mxu0 0
    %913 = vmatprep.mubr.bf16.mxu0 0
    %914 = vmatmul.mubr.bf16.gmra.mxu0 %v876
    %v915 = vpop.f32.mrf.mxu0
    %v916 = vadd.f32 0.0, %v915
    %v917 = vpop.f32.mrf.mxu0
    %v918 = vpop.f32.mrf.mxu0
    %v919 = vpop.f32.mrf.mxu0
    %920 = vdwg.mxu0
    %922 = vrot.lane.b32.xlu0 %v318, 120
    %v923 = vpop.permute.xlu0 %922
    %924 = vrot.lane.b32.xlu0 %v322, 120
    %v925 = vpop.permute.xlu0 %924
    %v927 = vsel %vm324, %v923, 0
    %v930 = vsel %vm324, %v925, 0
    %932 = vmatprep.subr.bf16.mxu0 0
    %933 = vmatpush1.bf16.xpose.msra.mxu0 0
    %934 = vmatprep.subr.bf16.mxu0 0
    %935 = vmatpush1.bf16.xpose.msra.mxu0 0
    %936 = vmatprep.subr.bf16.mxu0 0
    %937 = vmatpush1.bf16.xpose.msra.mxu0 0
    %938 = vmatprep.subr.bf16.mxu0 0
    %939 = vmatpush1.bf16.xpose.msra.mxu0 0
    %940 = vmatprep.subr.bf16.mxu0 0
    %941 = vmatpush1.bf16.xpose.msra.mxu0 0
    %942 = vmatprep.subr.bf16.mxu0 0
    %943 = vmatpush1.bf16.xpose.msra.mxu0 0
    %944 = vmatprep.subr.bf16.mxu0 0
    %945 = vmatpush1.bf16.xpose.msra.mxu0 0
    %946 = vmatprep.subr.bf16.mxu0 0
    %947 = vmatpush1.bf16.xpose.msra.mxu0 %v930
    %948 = vmatprep.subr.bf16.mxu0 0
    %949 = vmatpush2.bf16.xpose.msra.mxu0 0
    %950 = vmatprep.subr.bf16.mxu0 0
    %951 = vmatpush2.bf16.xpose.msra.mxu0 0
    %952 = vmatprep.subr.bf16.mxu0 0
    %953 = vmatpush2.bf16.xpose.msra.mxu0 0
    %954 = vmatprep.subr.bf16.mxu0 0
    %955 = vmatpush2.bf16.xpose.msra.mxu0 0
    %956 = vmatprep.subr.bf16.mxu0 0
    %957 = vmatpush2.bf16.xpose.msra.mxu0 0
    %958 = vmatprep.subr.bf16.mxu0 0
    %959 = vmatpush2.bf16.xpose.msra.mxu0 0
    %960 = vmatprep.subr.bf16.mxu0 0
    %961 = vmatpush2.bf16.xpose.msra.mxu0 0
    %962 = vmatprep.subr.bf16.mxu0 0
    %963 = vmatpush2.bf16.xpose.msra.mxu0 0
    %964 = vmatprep.mubr.bf16.mxu0 0
    %965 = vmatmul.mubr.bf16.gmra.mxu0 %v927
    %v966 = vpop.f32.mrf.mxu0
    %v967 = vadd.f32 0.0, %v966
    %v968 = vpop.f32.mrf.mxu0
    %v969 = vpop.f32.mrf.mxu0
    %v970 = vpop.f32.mrf.mxu0
    %971 = vdwg.mxu0
    %973 = vrot.lane.b32.xlu0 %v319, 120
    %v974 = vpop.permute.xlu0 %973
    %975 = vrot.lane.b32.xlu0 %v323, 120
    %v976 = vpop.permute.xlu0 %975
    %v978 = vsel %vm324, %v974, 0
    %v981 = vsel %vm324, %v976, 0
    %983 = vmatprep.subr.bf16.mxu0 0
    %984 = vmatpush1.bf16.xpose.msra.mxu0 0
    %985 = vmatprep.subr.bf16.mxu0 0
    %986 = vmatpush1.bf16.xpose.msra.mxu0 0
    %987 = vmatprep.subr.bf16.mxu0 0
    %988 = vmatpush1.bf16.xpose.msra.mxu0 0
    %989 = vmatprep.subr.bf16.mxu0 0
    %990 = vmatpush1.bf16.xpose.msra.mxu0 0
    %991 = vmatprep.subr.bf16.mxu0 0
    %992 = vmatpush1.bf16.xpose.msra.mxu0 0
    %993 = vmatprep.subr.bf16.mxu0 0
    %994 = vmatpush1.bf16.xpose.msra.mxu0 0
    %995 = vmatprep.subr.bf16.mxu0 0
    %996 = vmatpush1.bf16.xpose.msra.mxu0 0
    %997 = vmatprep.subr.bf16.mxu0 0
    %998 = vmatpush1.bf16.xpose.msra.mxu0 %v981
    %999 = vmatprep.subr.bf16.mxu0 0
    %1000 = vmatpush2.bf16.xpose.msra.mxu0 0
    %1001 = vmatprep.subr.bf16.mxu0 0
    %1002 = vmatpush2.bf16.xpose.msra.mxu0 0
    %1003 = vmatprep.subr.bf16.mxu0 0
    %1004 = vmatpush2.bf16.xpose.msra.mxu0 0
    %1005 = vmatprep.subr.bf16.mxu0 0
    %1006 = vmatpush2.bf16.xpose.msra.mxu0 0
    %1007 = vmatprep.subr.bf16.mxu0 0
    %1008 = vmatpush2.bf16.xpose.msra.mxu0 0
    %1009 = vmatprep.subr.bf16.mxu0 0
    %1010 = vmatpush2.bf16.xpose.msra.mxu0 0
    %1011 = vmatprep.subr.bf16.mxu0 0
    %1012 = vmatpush2.bf16.xpose.msra.mxu0 0
    %1013 = vmatprep.subr.bf16.mxu0 0
    %1014 = vmatpush2.bf16.xpose.msra.mxu0 0
    %1015 = vmatprep.mubr.bf16.mxu0 0
    %1016 = vmatmul.mubr.bf16.gmra.mxu0 %v978
    %v1017 = vpop.f32.mrf.mxu0
    %v1018 = vadd.f32 0.0, %v1017
    %v1019 = vpop.f32.mrf.mxu0
    %v1020 = vpop.f32.mrf.mxu0
    %v1021 = vpop.f32.mrf.mxu0
    %1022 = vdwg.mxu0
    %v1023 = vsel %vm324, %v865, -inf
    %1024 = vmax.xlane.f32.xlu0 %v1023
    %v1025 = vpop.xlane.xlu0 %1024
    %v1026 = vsel %vm324, %v916, -inf
    %1027 = vmax.xlane.f32.xlu0 %v1026
    %v1028 = vpop.xlane.xlu0 %1027
    %v1029 = vsel %vm324, %v967, -inf
    %1030 = vmax.xlane.f32.xlu0 %v1029
    %v1031 = vpop.xlane.xlu0 %1030
    %v1032 = vsel %vm324, %v1018, -inf
    %1033 = vmax.xlane.f32.xlu0 %v1032
    %v1034 = vpop.xlane.xlu0 %1033
    %v1035 = vsub.f32 %v865, %v1025
    %v1036 = vsub.f32 %v916, %v1028
    %v1037 = vsub.f32 %v967, %v1031
    %v1038 = vsub.f32 %v1018, %v1034
    %v1039 = vmul.f32 %v1035, 1.442695
    %v1040 = vpow.pop %v1039
    %v1041 = vmul.f32 %v1036, 1.442695
    %v1042 = vpow.pop %v1041
    %v1043 = vmul.f32 %v1037, 1.442695
    %v1044 = vpow.pop %v1043
    %v1045 = vmul.f32 %v1038, 1.442695
    %v1046 = vpow.pop %v1045
    %v1047 = vsel %vm324, %v1040, 0.0
    %1048 = vadd.xlane.f32.xlu0 %v1047
    %v1049 = vpop.xlane.xlu0 %1048
    %v1050 = vsel %vm324, %v1042, 0.0
    %1051 = vadd.xlane.f32.xlu0 %v1050
    %v1052 = vpop.xlane.xlu0 %1051
    %v1053 = vsel %vm324, %v1044, 0.0
    %1054 = vadd.xlane.f32.xlu0 %v1053
    %v1055 = vpop.xlane.xlu0 %1054
    %v1056 = vsel %vm324, %v1046, 0.0
    %1057 = vadd.xlane.f32.xlu0 %v1056
    %v1058 = vpop.xlane.xlu0 %1057
    %v1059 = vrcp.pop %v1049
    %v1060 = vrcp.pop %v1052
    %v1061 = vrcp.pop %v1055
    %v1062 = vrcp.pop %v1058
    %v1063 = vmul.f32 %v1040, %v1059
    %v1064 = vmul.f32 %v1042, %v1060
    %v1065 = vmul.f32 %v1044, %v1061
    %v1066 = vmul.f32 %v1046, %v1062
    %v1067 = vpack.c.bf16 %v1063, %v1063
    %v1068 = vpack.c.bf16 %v1064, %v1064
    %v1069 = vpack.c.bf16 %v1065, %v1065
    %v1070 = vpack.c.bf16 %v1066, %v1066
    %1071 = vrot.lane.b32.xlu0 %v320, 88
    %v1072 = vpop.permute.xlu0 %1071
    %v1074 = vsel %vm324, %v1067, 0
    %v1077 = vsel %vm563, %v1072, 0
    %1079 = vmatprep.subr.bf16.mxu0 0
    %1080 = vmatpush1.bf16.msra.mxu0 0
    %1081 = vmatprep.subr.bf16.mxu0 0
    %1082 = vmatpush1.bf16.msra.mxu0 0
    %1083 = vmatprep.subr.bf16.mxu0 0
    %1084 = vmatpush1.bf16.msra.mxu0 0
    %1085 = vmatprep.subr.bf16.mxu0 0
    %1086 = vmatpush1.bf16.msra.mxu0 0
    %1087 = vmatprep.subr.bf16.mxu0 0
    %1088 = vmatpush1.bf16.msra.mxu0 0
    %1089 = vmatprep.subr.bf16.mxu0 0
    %1090 = vmatpush1.bf16.msra.mxu0 0
    %1091 = vmatprep.subr.bf16.mxu0 0
    %1092 = vmatpush1.bf16.msra.mxu0 0
    %1093 = vmatprep.subr.bf16.mxu0 0
    %1094 = vmatpush1.bf16.msra.mxu0 %v1077
    %1095 = vmatprep.subr.bf16.mxu0 0
    %1096 = vmatpush2.bf16.msra.mxu0 0
    %1097 = vmatprep.subr.bf16.mxu0 0
    %1098 = vmatpush2.bf16.msra.mxu0 0
    %1099 = vmatprep.subr.bf16.mxu0 0
    %1100 = vmatpush2.bf16.msra.mxu0 0
    %1101 = vmatprep.subr.bf16.mxu0 0
    %1102 = vmatpush2.bf16.msra.mxu0 0
    %1103 = vmatprep.subr.bf16.mxu0 0
    %1104 = vmatpush2.bf16.msra.mxu0 0
    %1105 = vmatprep.subr.bf16.mxu0 0
    %1106 = vmatpush2.bf16.msra.mxu0 0
    %1107 = vmatprep.subr.bf16.mxu0 0
    %1108 = vmatpush2.bf16.msra.mxu0 0
    %1109 = vmatprep.subr.bf16.mxu0 0
    %1110 = vmatpush2.bf16.msra.mxu0 0
    %1111 = vmatprep.mubr.bf16.mxu0 0
    %1112 = vmatmul.mubr.bf16.gmra.mxu0 %v1074
    %v1113 = vpop.f32.mrf.mxu0
    %v1114 = vadd.f32 0.0, %v1113
    %v1115 = vpop.f32.mrf.mxu0
    %v1116 = vpop.f32.mrf.mxu0
    %v1117 = vpop.f32.mrf.mxu0
    %1118 = vdwg.mxu0
    %1119 = vrot.lane.b32.xlu0 %v321, 88
    %v1120 = vpop.permute.xlu0 %1119
    %v1122 = vsel %vm324, %v1068, 0
    %v1125 = vsel %vm563, %v1120, 0
    %1127 = vmatprep.subr.bf16.mxu0 0
    %1128 = vmatpush1.bf16.msra.mxu0 0
    %1129 = vmatprep.subr.bf16.mxu0 0
    %1130 = vmatpush1.bf16.msra.mxu0 0
    %1131 = vmatprep.subr.bf16.mxu0 0
    %1132 = vmatpush1.bf16.msra.mxu0 0
    %1133 = vmatprep.subr.bf16.mxu0 0
    %1134 = vmatpush1.bf16.msra.mxu0 0
    %1135 = vmatprep.subr.bf16.mxu0 0
    %1136 = vmatpush1.bf16.msra.mxu0 0
    %1137 = vmatprep.subr.bf16.mxu0 0
    %1138 = vmatpush1.bf16.msra.mxu0 0
    %1139 = vmatprep.subr.bf16.mxu0 0
    %1140 = vmatpush1.bf16.msra.mxu0 0
    %1141 = vmatprep.subr.bf16.mxu0 0
    %1142 = vmatpush1.bf16.msra.mxu0 %v1125
    %1143 = vmatprep.subr.bf16.mxu0 0
    %1144 = vmatpush2.bf16.msra.mxu0 0
    %1145 = vmatprep.subr.bf16.mxu0 0
    %1146 = vmatpush2.bf16.msra.mxu0 0
    %1147 = vmatprep.subr.bf16.mxu0 0
    %1148 = vmatpush2.bf16.msra.mxu0 0
    %1149 = vmatprep.subr.bf16.mxu0 0
    %1150 = vmatpush2.bf16.msra.mxu0 0
    %1151 = vmatprep.subr.bf16.mxu0 0
    %1152 = vmatpush2.bf16.msra.mxu0 0
    %1153 = vmatprep.subr.bf16.mxu0 0
    %1154 = vmatpush2.bf16.msra.mxu0 0
    %1155 = vmatprep.subr.bf16.mxu0 0
    %1156 = vmatpush2.bf16.msra.mxu0 0
    %1157 = vmatprep.subr.bf16.mxu0 0
    %1158 = vmatpush2.bf16.msra.mxu0 0
    %1159 = vmatprep.mubr.bf16.mxu0 0
    %1160 = vmatmul.mubr.bf16.gmra.mxu0 %v1122
    %v1161 = vpop.f32.mrf.mxu0
    %v1162 = vadd.f32 0.0, %v1161
    %v1163 = vpop.f32.mrf.mxu0
    %v1164 = vpop.f32.mrf.mxu0
    %v1165 = vpop.f32.mrf.mxu0
    %1166 = vdwg.mxu0
    %1167 = vrot.lane.b32.xlu0 %v322, 88
    %v1168 = vpop.permute.xlu0 %1167
    %v1170 = vsel %vm324, %v1069, 0
    %v1173 = vsel %vm563, %v1168, 0
    %1175 = vmatprep.subr.bf16.mxu0 0
    %1176 = vmatpush1.bf16.msra.mxu0 0
    %1177 = vmatprep.subr.bf16.mxu0 0
    %1178 = vmatpush1.bf16.msra.mxu0 0
    %1179 = vmatprep.subr.bf16.mxu0 0
    %1180 = vmatpush1.bf16.msra.mxu0 0
    %1181 = vmatprep.subr.bf16.mxu0 0
    %1182 = vmatpush1.bf16.msra.mxu0 0
    %1183 = vmatprep.subr.bf16.mxu0 0
    %1184 = vmatpush1.bf16.msra.mxu0 0
    %1185 = vmatprep.subr.bf16.mxu0 0
    %1186 = vmatpush1.bf16.msra.mxu0 0
    %1187 = vmatprep.subr.bf16.mxu0 0
    %1188 = vmatpush1.bf16.msra.mxu0 0
    %1189 = vmatprep.subr.bf16.mxu0 0
    %1190 = vmatpush1.bf16.msra.mxu0 %v1173
    %1191 = vmatprep.subr.bf16.mxu0 0
    %1192 = vmatpush2.bf16.msra.mxu0 0
    %1193 = vmatprep.subr.bf16.mxu0 0
    %1194 = vmatpush2.bf16.msra.mxu0 0
    %1195 = vmatprep.subr.bf16.mxu0 0
    %1196 = vmatpush2.bf16.msra.mxu0 0
    %1197 = vmatprep.subr.bf16.mxu0 0
    %1198 = vmatpush2.bf16.msra.mxu0 0
    %1199 = vmatprep.subr.bf16.mxu0 0
    %1200 = vmatpush2.bf16.msra.mxu0 0
    %1201 = vmatprep.subr.bf16.mxu0 0
    %1202 = vmatpush2.bf16.msra.mxu0 0
    %1203 = vmatprep.subr.bf16.mxu0 0
    %1204 = vmatpush2.bf16.msra.mxu0 0
    %1205 = vmatprep.subr.bf16.mxu0 0
    %1206 = vmatpush2.bf16.msra.mxu0 0
    %1207 = vmatprep.mubr.bf16.mxu0 0
    %1208 = vmatmul.mubr.bf16.gmra.mxu0 %v1170
    %v1209 = vpop.f32.mrf.mxu0
    %v1210 = vadd.f32 0.0, %v1209
    %v1211 = vpop.f32.mrf.mxu0
    %v1212 = vpop.f32.mrf.mxu0
    %v1213 = vpop.f32.mrf.mxu0
    %1214 = vdwg.mxu0
    %1215 = vrot.lane.b32.xlu0 %v323, 88
    %v1216 = vpop.permute.xlu0 %1215
    %v1218 = vsel %vm324, %v1070, 0
    %v1221 = vsel %vm563, %v1216, 0
    %1223 = vmatprep.subr.bf16.mxu0 0
    %1224 = vmatpush1.bf16.msra.mxu0 0
    %1225 = vmatprep.subr.bf16.mxu0 0
    %1226 = vmatpush1.bf16.msra.mxu0 0
    %1227 = vmatprep.subr.bf16.mxu0 0
    %1228 = vmatpush1.bf16.msra.mxu0 0
    %1229 = vmatprep.subr.bf16.mxu0 0
    %1230 = vmatpush1.bf16.msra.mxu0 0
    %1231 = vmatprep.subr.bf16.mxu0 0
    %1232 = vmatpush1.bf16.msra.mxu0 0
    %1233 = vmatprep.subr.bf16.mxu0 0
    %1234 = vmatpush1.bf16.msra.mxu0 0
    %1235 = vmatprep.subr.bf16.mxu0 0
    %1236 = vmatpush1.bf16.msra.mxu0 0
    %1237 = vmatprep.subr.bf16.mxu0 0
    %1238 = vmatpush1.bf16.msra.mxu0 %v1221
    %1239 = vmatprep.subr.bf16.mxu0 0
    %1240 = vmatpush2.bf16.msra.mxu0 0
    %1241 = vmatprep.subr.bf16.mxu0 0
    %1242 = vmatpush2.bf16.msra.mxu0 0
    %1243 = vmatprep.subr.bf16.mxu0 0
    %1244 = vmatpush2.bf16.msra.mxu0 0
    %1245 = vmatprep.subr.bf16.mxu0 0
    %1246 = vmatpush2.bf16.msra.mxu0 0
    %1247 = vmatprep.subr.bf16.mxu0 0
    %1248 = vmatpush2.bf16.msra.mxu0 0
    %1249 = vmatprep.subr.bf16.mxu0 0
    %1250 = vmatpush2.bf16.msra.mxu0 0
    %1251 = vmatprep.subr.bf16.mxu0 0
    %1252 = vmatpush2.bf16.msra.mxu0 0
    %1253 = vmatprep.subr.bf16.mxu0 0
    %1254 = vmatpush2.bf16.msra.mxu0 0
    %1255 = vmatprep.mubr.bf16.mxu0 0
    %1256 = vmatmul.mubr.bf16.gmra.mxu0 %v1218
    %v1257 = vpop.f32.mrf.mxu0
    %v1258 = vadd.f32 0.0, %v1257
    %v1259 = vpop.f32.mrf.mxu0
    %v1260 = vpop.f32.mrf.mxu0
    %v1261 = vpop.f32.mrf.mxu0
    %1262 = vdwg.mxu0
    %v1263 = vpack.c.bf16 %v1162, %v1114
    %v1264 = vpack.c.bf16 %v1258, %v1210
    %s1265 = scalar_lea.vmem [#allocation8], 4
    %v1266 = vld [vmem:[%s1265] sm:$0xf]
    %v1268 = vsel %vm324, %v1263, 0
    %v1271 = vsel %vm324, %v1264, 0
    %v1274 = vsel %vm563, %v1266, 0
    %1276 = vmatprep.subr.bf16.mxu0 0
    %1277 = vmatpush1.bf16.msra.mxu0 0
    %1278 = vmatprep.subr.bf16.mxu0 0
    %1279 = vmatpush1.bf16.msra.mxu0 0
    %1280 = vmatprep.subr.bf16.mxu0 0
    %1281 = vmatpush1.bf16.msra.mxu0 0
    %1282 = vmatprep.subr.bf16.mxu0 0
    %1283 = vmatpush1.bf16.msra.mxu0 0
    %1284 = vmatprep.subr.bf16.mxu0 0
    %1285 = vmatpush1.bf16.msra.mxu0 0
    %1286 = vmatprep.subr.bf16.mxu0 0
    %1287 = vmatpush1.bf16.msra.mxu0 0
    %1288 = vmatprep.subr.bf16.mxu0 0
    %1289 = vmatpush1.bf16.msra.mxu0 0
    %1290 = vmatprep.subr.bf16.mxu0 0
    %1291 = vmatpush1.bf16.msra.mxu0 %v1274
    %1292 = vmatprep.subr.bf16.mxu0 0
    %1293 = vmatpush2.bf16.msra.mxu0 0
    %1294 = vmatprep.subr.bf16.mxu0 0
    %1295 = vmatpush2.bf16.msra.mxu0 0
    %1296 = vmatprep.subr.bf16.mxu0 0
    %1297 = vmatpush2.bf16.msra.mxu0 0
    %1298 = vmatprep.subr.bf16.mxu0 0
    %1299 = vmatpush2.bf16.msra.mxu0 0
    %1300 = vmatprep.subr.bf16.mxu0 0
    %1301 = vmatpush2.bf16.msra.mxu0 0
    %1302 = vmatprep.subr.bf16.mxu0 0
    %1303 = vmatpush2.bf16.msra.mxu0 0
    %1304 = vmatprep.subr.bf16.mxu0 0
    %1305 = vmatpush2.bf16.msra.mxu0 0
    %1306 = vmatprep.subr.bf16.mxu0 0
    %1307 = vmatpush2.bf16.msra.mxu0 0
    %1308 = vmatprep.mubr.bf16.mxu0 0
    %1309 = vmatmul.mubr.bf16.gmra.mxu0 %v1268
    %v1310 = vpop.f32.mrf.mxu0
    %v1311 = vadd.f32 0.0, %v1310
    %v1312 = vpop.f32.mrf.mxu0
    %v1313 = vpop.f32.mrf.mxu0
    %v1314 = vadd.f32 0.0, %v1313
    %v1315 = vpop.f32.mrf.mxu0
    %1316 = vmatprep.mubr.bf16.mxu0 0
    %1317 = vmatmul.mubr.bf16.gmra.mxu0 %v1271
    %v1318 = vpop.f32.mrf.mxu0
    %v1319 = vadd.f32 0.0, %v1318
    %v1320 = vpop.f32.mrf.mxu0
    %v1321 = vpop.f32.mrf.mxu0
    %v1322 = vadd.f32 0.0, %v1321
    %v1323 = vpop.f32.mrf.mxu0
    %1324 = vdwg.mxu0
    %v1325 = vadd.f32 %v815, %v1311
    %v1326 = vadd.f32 %v816, %v1314
    %v1327 = vadd.f32 %v817, %v1319
    %v1328 = vadd.f32 %v818, %v1322
    %1329 = vrot.lane.b32.xlu0 %v316, 112
    %v1330 = vpop.permute.xlu0 %1329
    %1331 = vrot.lane.b32.xlu0 %v320, 112
    %v1332 = vpop.permute.xlu0 %1331
    %v1334 = vsel %vm324, %v1330, 0
    %v1337 = vsel %vm324, %v1332, 0
    %1339 = vmatprep.subr.bf16.mxu0 0
    %1340 = vmatpush1.bf16.xpose.msra.mxu0 0
    %1341 = vmatprep.subr.bf16.mxu0 0
    %1342 = vmatpush1.bf16.xpose.msra.mxu0 0
    %1343 = vmatprep.subr.bf16.mxu0 0
    %1344 = vmatpush1.bf16.xpose.msra.mxu0 0
    %1345 = vmatprep.subr.bf16.mxu0 0
    %1346 = vmatpush1.bf16.xpose.msra.mxu0 0
    %1347 = vmatprep.subr.bf16.mxu0 0
    %1348 = vmatpush1.bf16.xpose.msra.mxu0 0
    %1349 = vmatprep.subr.bf16.mxu0 0
    %1350 = vmatpush1.bf16.xpose.msra.mxu0 0
    %1351 = vmatprep.subr.bf16.mxu0 0
    %1352 = vmatpush1.bf16.xpose.msra.mxu0 0
    %1353 = vmatprep.subr.bf16.mxu0 0
    %1354 = vmatpush1.bf16.xpose.msra.mxu0 %v1337
    %1355 = vmatprep.subr.bf16.mxu0 0
    %1356 = vmatpush2.bf16.xpose.msra.mxu0 0
    %1357 = vmatprep.subr.bf16.mxu0 0
    %1358 = vmatpush2.bf16.xpose.msra.mxu0 0
    %1359 = vmatprep.subr.bf16.mxu0 0
    %1360 = vmatpush2.bf16.xpose.msra.mxu0 0
    %1361 = vmatprep.subr.bf16.mxu0 0
    %1362 = vmatpush2.bf16.xpose.msra.mxu0 0
    %1363 = vmatprep.subr.bf16.mxu0 0
    %1364 = vmatpush2.bf16.xpose.msra.mxu0 0
    %1365 = vmatprep.subr.bf16.mxu0 0
    %1366 = vmatpush2.bf16.xpose.msra.mxu0 0
    %1367 = vmatprep.subr.bf16.mxu0 0
    %1368 = vmatpush2.bf16.xpose.msra.mxu0 0
    %1369 = vmatprep.subr.bf16.mxu0 0
    %1370 = vmatpush2.bf16.xpose.msra.mxu0 0
    %1371 = vmatprep.mubr.bf16.mxu0 0
    %1372 = vmatmul.mubr.bf16.gmra.mxu0 %v1334
    %v1373 = vpop.f32.mrf.mxu0
    %v1374 = vadd.f32 0.0, %v1373
    %v1375 = vpop.f32.mrf.mxu0
    %v1376 = vpop.f32.mrf.mxu0
    %v1377 = vpop.f32.mrf.mxu0
    %1378 = vdwg.mxu0
    %1379 = vrot.lane.b32.xlu0 %v317, 112
    %v1380 = vpop.permute.xlu0 %1379
    %1381 = vrot.lane.b32.xlu0 %v321, 112
    %v1382 = vpop.permute.xlu0 %1381
    %v1384 = vsel %vm324, %v1380, 0
    %v1387 = vsel %vm324, %v1382, 0
    %1389 = vmatprep.subr.bf16.mxu0 0
    %1390 = vmatpush1.bf16.xpose.msra.mxu0 0
    %1391 = vmatprep.subr.bf16.mxu0 0
    %1392 = vmatpush1.bf16.xpose.msra.mxu0 0
    %1393 = vmatprep.subr.bf16.mxu0 0
    %1394 = vmatpush1.bf16.xpose.msra.mxu0 0
    %1395 = vmatprep.subr.bf16.mxu0 0
    %1396 = vmatpush1.bf16.xpose.msra.mxu0 0
    %1397 = vmatprep.subr.bf16.mxu0 0
    %1398 = vmatpush1.bf16.xpose.msra.mxu0 0
    %1399 = vmatprep.subr.bf16.mxu0 0
    %1400 = vmatpush1.bf16.xpose.msra.mxu0 0
    %1401 = vmatprep.subr.bf16.mxu0 0
    %1402 = vmatpush1.bf16.xpose.msra.mxu0 0
    %1403 = vmatprep.subr.bf16.mxu0 0
    %1404 = vmatpush1.bf16.xpose.msra.mxu0 %v1387
    %1405 = vmatprep.subr.bf16.mxu0 0
    %1406 = vmatpush2.bf16.xpose.msra.mxu0 0
    %1407 = vmatprep.subr.bf16.mxu0 0
    %1408 = vmatpush2.bf16.xpose.msra.mxu0 0
    %1409 = vmatprep.subr.bf16.mxu0 0
    %1410 = vmatpush2.bf16.xpose.msra.mxu0 0
    %1411 = vmatprep.subr.bf16.mxu0 0
    %1412 = vmatpush2.bf16.xpose.msra.mxu0 0
    %1413 = vmatprep.subr.bf16.mxu0 0
    %1414 = vmatpush2.bf16.xpose.msra.mxu0 0
    %1415 = vmatprep.subr.bf16.mxu0 0
    %1416 = vmatpush2.bf16.xpose.msra.mxu0 0
    %1417 = vmatprep.subr.bf16.mxu0 0
    %1418 = vmatpush2.bf16.xpose.msra.mxu0 0
    %1419 = vmatprep.subr.bf16.mxu0 0
    %1420 = vmatpush2.bf16.xpose.msra.mxu0 0
    %1421 = vmatprep.mubr.bf16.mxu0 0
    %1422 = vmatmul.mubr.bf16.gmra.mxu0 %v1384
    %v1423 = vpop.f32.mrf.mxu0
    %v1424 = vadd.f32 0.0, %v1423
    %v1425 = vpop.f32.mrf.mxu0
    %v1426 = vpop.f32.mrf.mxu0
    %v1427 = vpop.f32.mrf.mxu0
    %1428 = vdwg.mxu0
    %1429 = vrot.lane.b32.xlu0 %v318, 112
    %v1430 = vpop.permute.xlu0 %1429
    %1431 = vrot.lane.b32.xlu0 %v322, 112
    %v1432 = vpop.permute.xlu0 %1431
    %v1434 = vsel %vm324, %v1430, 0
    %v1437 = vsel %vm324, %v1432, 0
    %1439 = vmatprep.subr.bf16.mxu0 0
    %1440 = vmatpush1.bf16.xpose.msra.mxu0 0
    %1441 = vmatprep.subr.bf16.mxu0 0
    %1442 = vmatpush1.bf16.xpose.msra.mxu0 0
    %1443 = vmatprep.subr.bf16.mxu0 0
    %1444 = vmatpush1.bf16.xpose.msra.mxu0 0
    %1445 = vmatprep.subr.bf16.mxu0 0
    %1446 = vmatpush1.bf16.xpose.msra.mxu0 0
    %1447 = vmatprep.subr.bf16.mxu0 0
    %1448 = vmatpush1.bf16.xpose.msra.mxu0 0
    %1449 = vmatprep.subr.bf16.mxu0 0
    %1450 = vmatpush1.bf16.xpose.msra.mxu0 0
    %1451 = vmatprep.subr.bf16.mxu0 0
    %1452 = vmatpush1.bf16.xpose.msra.mxu0 0
    %1453 = vmatprep.subr.bf16.mxu0 0
    %1454 = vmatpush1.bf16.xpose.msra.mxu0 %v1437
    %1455 = vmatprep.subr.bf16.mxu0 0
    %1456 = vmatpush2.bf16.xpose.msra.mxu0 0
    %1457 = vmatprep.subr.bf16.mxu0 0
    %1458 = vmatpush2.bf16.xpose.msra.mxu0 0
    %1459 = vmatprep.subr.bf16.mxu0 0
    %1460 = vmatpush2.bf16.xpose.msra.mxu0 0
    %1461 = vmatprep.subr.bf16.mxu0 0
    %1462 = vmatpush2.bf16.xpose.msra.mxu0 0
    %1463 = vmatprep.subr.bf16.mxu0 0
    %1464 = vmatpush2.bf16.xpose.msra.mxu0 0
    %1465 = vmatprep.subr.bf16.mxu0 0
    %1466 = vmatpush2.bf16.xpose.msra.mxu0 0
    %1467 = vmatprep.subr.bf16.mxu0 0
    %1468 = vmatpush2.bf16.xpose.msra.mxu0 0
    %1469 = vmatprep.subr.bf16.mxu0 0
    %1470 = vmatpush2.bf16.xpose.msra.mxu0 0
    %1471 = vmatprep.mubr.bf16.mxu0 0
    %1472 = vmatmul.mubr.bf16.gmra.mxu0 %v1434
    %v1473 = vpop.f32.mrf.mxu0
    %v1474 = vadd.f32 0.0, %v1473
    %v1475 = vpop.f32.mrf.mxu0
    %v1476 = vpop.f32.mrf.mxu0
    %v1477 = vpop.f32.mrf.mxu0
    %1478 = vdwg.mxu0
    %1479 = vrot.lane.b32.xlu0 %v319, 112
    %v1480 = vpop.permute.xlu0 %1479
    %1481 = vrot.lane.b32.xlu0 %v323, 112
    %v1482 = vpop.permute.xlu0 %1481
    %v1484 = vsel %vm324, %v1480, 0
    %v1487 = vsel %vm324, %v1482, 0
    %1489 = vmatprep.subr.bf16.mxu0 0
    %1490 = vmatpush1.bf16.xpose.msra.mxu0 0
    %1491 = vmatprep.subr.bf16.mxu0 0
    %1492 = vmatpush1.bf16.xpose.msra.mxu0 0
    %1493 = vmatprep.subr.bf16.mxu0 0
    %1494 = vmatpush1.bf16.xpose.msra.mxu0 0
    %1495 = vmatprep.subr.bf16.mxu0 0
    %1496 = vmatpush1.bf16.xpose.msra.mxu0 0
    %1497 = vmatprep.subr.bf16.mxu0 0
    %1498 = vmatpush1.bf16.xpose.msra.mxu0 0
    %1499 = vmatprep.subr.bf16.mxu0 0
    %1500 = vmatpush1.bf16.xpose.msra.mxu0 0
    %1501 = vmatprep.subr.bf16.mxu0 0
    %1502 = vmatpush1.bf16.xpose.msra.mxu0 0
    %1503 = vmatprep.subr.bf16.mxu0 0
    %1504 = vmatpush1.bf16.xpose.msra.mxu0 %v1487
    %1505 = vmatprep.subr.bf16.mxu0 0
    %1506 = vmatpush2.bf16.xpose.msra.mxu0 0
    %1507 = vmatprep.subr.bf16.mxu0 0
    %1508 = vmatpush2.bf16.xpose.msra.mxu0 0
    %1509 = vmatprep.subr.bf16.mxu0 0
    %1510 = vmatpush2.bf16.xpose.msra.mxu0 0
    %1511 = vmatprep.subr.bf16.mxu0 0
    %1512 = vmatpush2.bf16.xpose.msra.mxu0 0
    %1513 = vmatprep.subr.bf16.mxu0 0
    %1514 = vmatpush2.bf16.xpose.msra.mxu0 0
    %1515 = vmatprep.subr.bf16.mxu0 0
    %1516 = vmatpush2.bf16.xpose.msra.mxu0 0
    %1517 = vmatprep.subr.bf16.mxu0 0
    %1518 = vmatpush2.bf16.xpose.msra.mxu0 0
    %1519 = vmatprep.subr.bf16.mxu0 0
    %1520 = vmatpush2.bf16.xpose.msra.mxu0 0
    %1521 = vmatprep.mubr.bf16.mxu0 0
    %1522 = vmatmul.mubr.bf16.gmra.mxu0 %v1484
    %v1523 = vpop.f32.mrf.mxu0
    %v1524 = vadd.f32 0.0, %v1523
    %v1525 = vpop.f32.mrf.mxu0
    %v1526 = vpop.f32.mrf.mxu0
    %v1527 = vpop.f32.mrf.mxu0
    %1528 = vdwg.mxu0
    %v1529 = vsel %vm324, %v1374, -inf
    %1530 = vmax.xlane.f32.xlu0 %v1529
    %v1531 = vpop.xlane.xlu0 %1530
    %v1532 = vsel %vm324, %v1424, -inf
    %1533 = vmax.xlane.f32.xlu0 %v1532
    %v1534 = vpop.xlane.xlu0 %1533
    %v1535 = vsel %vm324, %v1474, -inf
    %1536 = vmax.xlane.f32.xlu0 %v1535
    %v1537 = vpop.xlane.xlu0 %1536
    %v1538 = vsel %vm324, %v1524, -inf
    %1539 = vmax.xlane.f32.xlu0 %v1538
    %v1540 = vpop.xlane.xlu0 %1539
    %v1541 = vsub.f32 %v1374, %v1531
    %v1542 = vsub.f32 %v1424, %v1534
    %v1543 = vsub.f32 %v1474, %v1537
    %v1544 = vsub.f32 %v1524, %v1540
    %v1545 = vmul.f32 %v1541, 1.442695
    %v1546 = vpow.pop %v1545
    %v1547 = vmul.f32 %v1542, 1.442695
    %v1548 = vpow.pop %v1547
    %v1549 = vmul.f32 %v1543, 1.442695
    %v1550 = vpow.pop %v1549
    %v1551 = vmul.f32 %v1544, 1.442695
    %v1552 = vpow.pop %v1551
    %v1553 = vsel %vm324, %v1546, 0.0
    %1554 = vadd.xlane.f32.xlu0 %v1553
    %v1555 = vpop.xlane.xlu0 %1554
    %v1556 = vsel %vm324, %v1548, 0.0
    %1557 = vadd.xlane.f32.xlu0 %v1556
    %v1558 = vpop.xlane.xlu0 %1557
    %v1559 = vsel %vm324, %v1550, 0.0
    %1560 = vadd.xlane.f32.xlu0 %v1559
    %v1561 = vpop.xlane.xlu0 %1560
    %v1562 = vsel %vm324, %v1552, 0.0
    %1563 = vadd.xlane.f32.xlu0 %v1562
    %v1564 = vpop.xlane.xlu0 %1563
    %v1565 = vrcp.pop %v1555
    %v1566 = vrcp.pop %v1558
    %v1567 = vrcp.pop %v1561
    %v1568 = vrcp.pop %v1564
    %v1569 = vmul.f32 %v1546, %v1565
    %v1570 = vmul.f32 %v1548, %v1566
    %v1571 = vmul.f32 %v1550, %v1567
    %v1572 = vmul.f32 %v1552, %v1568
    %v1573 = vpack.c.bf16 %v1569, %v1569
    %v1574 = vpack.c.bf16 %v1570, %v1570
    %v1575 = vpack.c.bf16 %v1571, %v1571
    %v1576 = vpack.c.bf16 %v1572, %v1572
    %1577 = vrot.lane.b32.xlu0 %v320, 80
    %v1578 = vpop.permute.xlu0 %1577
    %v1580 = vsel %vm324, %v1573, 0
    %v1583 = vsel %vm563, %v1578, 0
    %1585 = vmatprep.subr.bf16.mxu0 0
    %1586 = vmatpush1.bf16.msra.mxu0 0
    %1587 = vmatprep.subr.bf16.mxu0 0
    %1588 = vmatpush1.bf16.msra.mxu0 0
    %1589 = vmatprep.subr.bf16.mxu0 0
    %1590 = vmatpush1.bf16.msra.mxu0 0
    %1591 = vmatprep.subr.bf16.mxu0 0
    %1592 = vmatpush1.bf16.msra.mxu0 0
    %1593 = vmatprep.subr.bf16.mxu0 0
    %1594 = vmatpush1.bf16.msra.mxu0 0
    %1595 = vmatprep.subr.bf16.mxu0 0
    %1596 = vmatpush1.bf16.msra.mxu0 0
    %1597 = vmatprep.subr.bf16.mxu0 0
    %1598 = vmatpush1.bf16.msra.mxu0 0
    %1599 = vmatprep.subr.bf16.mxu0 0
    %1600 = vmatpush1.bf16.msra.mxu0 %v1583
    %1601 = vmatprep.subr.bf16.mxu0 0
    %1602 = vmatpush2.bf16.msra.mxu0 0
    %1603 = vmatprep.subr.bf16.mxu0 0
    %1604 = vmatpush2.bf16.msra.mxu0 0
    %1605 = vmatprep.subr.bf16.mxu0 0
    %1606 = vmatpush2.bf16.msra.mxu0 0
    %1607 = vmatprep.subr.bf16.mxu0 0
    %1608 = vmatpush2.bf16.msra.mxu0 0
    %1609 = vmatprep.subr.bf16.mxu0 0
    %1610 = vmatpush2.bf16.msra.mxu0 0
    %1611 = vmatprep.subr.bf16.mxu0 0
    %1612 = vmatpush2.bf16.msra.mxu0 0
    %1613 = vmatprep.subr.bf16.mxu0 0
    %1614 = vmatpush2.bf16.msra.mxu0 0
    %1615 = vmatprep.subr.bf16.mxu0 0
    %1616 = vmatpush2.bf16.msra.mxu0 0
    %1617 = vmatprep.mubr.bf16.mxu0 0
    %1618 = vmatmul.mubr.bf16.gmra.mxu0 %v1580
    %v1619 = vpop.f32.mrf.mxu0
    %v1620 = vadd.f32 0.0, %v1619
    %v1621 = vpop.f32.mrf.mxu0
    %v1622 = vpop.f32.mrf.mxu0
    %v1623 = vpop.f32.mrf.mxu0
    %1624 = vdwg.mxu0
    %1625 = vrot.lane.b32.xlu0 %v321, 80
    %v1626 = vpop.permute.xlu0 %1625
    %v1628 = vsel %vm324, %v1574, 0
    %v1631 = vsel %vm563, %v1626, 0
    %1633 = vmatprep.subr.bf16.mxu0 0
    %1634 = vmatpush1.bf16.msra.mxu0 0
    %1635 = vmatprep.subr.bf16.mxu0 0
    %1636 = vmatpush1.bf16.msra.mxu0 0
    %1637 = vmatprep.subr.bf16.mxu0 0
    %1638 = vmatpush1.bf16.msra.mxu0 0
    %1639 = vmatprep.subr.bf16.mxu0 0
    %1640 = vmatpush1.bf16.msra.mxu0 0
    %1641 = vmatprep.subr.bf16.mxu0 0
    %1642 = vmatpush1.bf16.msra.mxu0 0
    %1643 = vmatprep.subr.bf16.mxu0 0
    %1644 = vmatpush1.bf16.msra.mxu0 0
    %1645 = vmatprep.subr.bf16.mxu0 0
    %1646 = vmatpush1.bf16.msra.mxu0 0
    %1647 = vmatprep.subr.bf16.mxu0 0
    %1648 = vmatpush1.bf16.msra.mxu0 %v1631
    %1649 = vmatprep.subr.bf16.mxu0 0
    %1650 = vmatpush2.bf16.msra.mxu0 0
    %1651 = vmatprep.subr.bf16.mxu0 0
    %1652 = vmatpush2.bf16.msra.mxu0 0
    %1653 = vmatprep.subr.bf16.mxu0 0
    %1654 = vmatpush2.bf16.msra.mxu0 0
    %1655 = vmatprep.subr.bf16.mxu0 0
    %1656 = vmatpush2.bf16.msra.mxu0 0
    %1657 = vmatprep.subr.bf16.mxu0 0
    %1658 = vmatpush2.bf16.msra.mxu0 0
    %1659 = vmatprep.subr.bf16.mxu0 0
    %1660 = vmatpush2.bf16.msra.mxu0 0
    %1661 = vmatprep.subr.bf16.mxu0 0
    %1662 = vmatpush2.bf16.msra.mxu0 0
    %1663 = vmatprep.subr.bf16.mxu0 0
    %1664 = vmatpush2.bf16.msra.mxu0 0
    %1665 = vmatprep.mubr.bf16.mxu0 0
    %1666 = vmatmul.mubr.bf16.gmra.mxu0 %v1628
    %v1667 = vpop.f32.mrf.mxu0
    %v1668 = vadd.f32 0.0, %v1667
    %v1669 = vpop.f32.mrf.mxu0
    %v1670 = vpop.f32.mrf.mxu0
    %v1671 = vpop.f32.mrf.mxu0
    %1672 = vdwg.mxu0
    %1673 = vrot.lane.b32.xlu0 %v322, 80
    %v1674 = vpop.permute.xlu0 %1673
    %v1676 = vsel %vm324, %v1575, 0
    %v1679 = vsel %vm563, %v1674, 0
    %1681 = vmatprep.subr.bf16.mxu0 0
    %1682 = vmatpush1.bf16.msra.mxu0 0
    %1683 = vmatprep.subr.bf16.mxu0 0
    %1684 = vmatpush1.bf16.msra.mxu0 0
    %1685 = vmatprep.subr.bf16.mxu0 0
    %1686 = vmatpush1.bf16.msra.mxu0 0
    %1687 = vmatprep.subr.bf16.mxu0 0
    %1688 = vmatpush1.bf16.msra.mxu0 0
    %1689 = vmatprep.subr.bf16.mxu0 0
    %1690 = vmatpush1.bf16.msra.mxu0 0
    %1691 = vmatprep.subr.bf16.mxu0 0
    %1692 = vmatpush1.bf16.msra.mxu0 0
    %1693 = vmatprep.subr.bf16.mxu0 0
    %1694 = vmatpush1.bf16.msra.mxu0 0
    %1695 = vmatprep.subr.bf16.mxu0 0
    %1696 = vmatpush1.bf16.msra.mxu0 %v1679
    %1697 = vmatprep.subr.bf16.mxu0 0
    %1698 = vmatpush2.bf16.msra.mxu0 0
    %1699 = vmatprep.subr.bf16.mxu0 0
    %1700 = vmatpush2.bf16.msra.mxu0 0
    %1701 = vmatprep.subr.bf16.mxu0 0
    %1702 = vmatpush2.bf16.msra.mxu0 0
    %1703 = vmatprep.subr.bf16.mxu0 0
    %1704 = vmatpush2.bf16.msra.mxu0 0
    %1705 = vmatprep.subr.bf16.mxu0 0
    %1706 = vmatpush2.bf16.msra.mxu0 0
    %1707 = vmatprep.subr.bf16.mxu0 0
    %1708 = vmatpush2.bf16.msra.mxu0 0
    %1709 = vmatprep.subr.bf16.mxu0 0
    %1710 = vmatpush2.bf16.msra.mxu0 0
    %1711 = vmatprep.subr.bf16.mxu0 0
    %1712 = vmatpush2.bf16.msra.mxu0 0
    %1713 = vmatprep.mubr.bf16.mxu0 0
    %1714 = vmatmul.mubr.bf16.gmra.mxu0 %v1676
    %v1715 = vpop.f32.mrf.mxu0
    %v1716 = vadd.f32 0.0, %v1715
    %v1717 = vpop.f32.mrf.mxu0
    %v1718 = vpop.f32.mrf.mxu0
    %v1719 = vpop.f32.mrf.mxu0
    %1720 = vdwg.mxu0
    %1721 = vrot.lane.b32.xlu0 %v323, 80
    %v1722 = vpop.permute.xlu0 %1721
    %v1724 = vsel %vm324, %v1576, 0
    %v1727 = vsel %vm563, %v1722, 0
    %1729 = vmatprep.subr.bf16.mxu0 0
    %1730 = vmatpush1.bf16.msra.mxu0 0
    %1731 = vmatprep.subr.bf16.mxu0 0
    %1732 = vmatpush1.bf16.msra.mxu0 0
    %1733 = vmatprep.subr.bf16.mxu0 0
    %1734 = vmatpush1.bf16.msra.mxu0 0
    %1735 = vmatprep.subr.bf16.mxu0 0
    %1736 = vmatpush1.bf16.msra.mxu0 0
    %1737 = vmatprep.subr.bf16.mxu0 0
    %1738 = vmatpush1.bf16.msra.mxu0 0
    %1739 = vmatprep.subr.bf16.mxu0 0
    %1740 = vmatpush1.bf16.msra.mxu0 0
    %1741 = vmatprep.subr.bf16.mxu0 0
    %1742 = vmatpush1.bf16.msra.mxu0 0
    %1743 = vmatprep.subr.bf16.mxu0 0
    %1744 = vmatpush1.bf16.msra.mxu0 %v1727
    %1745 = vmatprep.subr.bf16.mxu0 0
    %1746 = vmatpush2.bf16.msra.mxu0 0
    %1747 = vmatprep.subr.bf16.mxu0 0
    %1748 = vmatpush2.bf16.msra.mxu0 0
    %1749 = vmatprep.subr.bf16.mxu0 0
    %1750 = vmatpush2.bf16.msra.mxu0 0
    %1751 = vmatprep.subr.bf16.mxu0 0
    %1752 = vmatpush2.bf16.msra.mxu0 0
    %1753 = vmatprep.subr.bf16.mxu0 0
    %1754 = vmatpush2.bf16.msra.mxu0 0
    %1755 = vmatprep.subr.bf16.mxu0 0
    %1756 = vmatpush2.bf16.msra.mxu0 0
    %1757 = vmatprep.subr.bf16.mxu0 0
    %1758 = vmatpush2.bf16.msra.mxu0 0
    %1759 = vmatprep.subr.bf16.mxu0 0
    %1760 = vmatpush2.bf16.msra.mxu0 0
    %1761 = vmatprep.mubr.bf16.mxu0 0
    %1762 = vmatmul.mubr.bf16.gmra.mxu0 %v1724
    %v1763 = vpop.f32.mrf.mxu0
    %v1764 = vadd.f32 0.0, %v1763
    %v1765 = vpop.f32.mrf.mxu0
    %v1766 = vpop.f32.mrf.mxu0
    %v1767 = vpop.f32.mrf.mxu0
    %1768 = vdwg.mxu0
    %v1769 = vpack.c.bf16 %v1668, %v1620
    %v1770 = vpack.c.bf16 %v1764, %v1716
    %s1771 = scalar_lea.vmem [#allocation8], 8
    %v1772 = vld [vmem:[%s1771] sm:$0xf]
    %v1774 = vsel %vm324, %v1769, 0
    %v1777 = vsel %vm324, %v1770, 0
    %v1780 = vsel %vm563, %v1772, 0
    %1782 = vmatprep.subr.bf16.mxu0 0
    %1783 = vmatpush1.bf16.msra.mxu0 0
    %1784 = vmatprep.subr.bf16.mxu0 0
    %1785 = vmatpush1.bf16.msra.mxu0 0
    %1786 = vmatprep.subr.bf16.mxu0 0
    %1787 = vmatpush1.bf16.msra.mxu0 0
    %1788 = vmatprep.subr.bf16.mxu0 0
    %1789 = vmatpush1.bf16.msra.mxu0 0
    %1790 = vmatprep.subr.bf16.mxu0 0
    %1791 = vmatpush1.bf16.msra.mxu0 0
    %1792 = vmatprep.subr.bf16.mxu0 0
    %1793 = vmatpush1.bf16.msra.mxu0 0
    %1794 = vmatprep.subr.bf16.mxu0 0
    %1795 = vmatpush1.bf16.msra.mxu0 0
    %1796 = vmatprep.subr.bf16.mxu0 0
    %1797 = vmatpush1.bf16.msra.mxu0 %v1780
    %1798 = vmatprep.subr.bf16.mxu0 0
    %1799 = vmatpush2.bf16.msra.mxu0 0
    %1800 = vmatprep.subr.bf16.mxu0 0
    %1801 = vmatpush2.bf16.msra.mxu0 0
    %1802 = vmatprep.subr.bf16.mxu0 0
    %1803 = vmatpush2.bf16.msra.mxu0 0
    %1804 = vmatprep.subr.bf16.mxu0 0
    %1805 = vmatpush2.bf16.msra.mxu0 0
    %1806 = vmatprep.subr.bf16.mxu0 0
    %1807 = vmatpush2.bf16.msra.mxu0 0
    %1808 = vmatprep.subr.bf16.mxu0 0
    %1809 = vmatpush2.bf16.msra.mxu0 0
    %1810 = vmatprep.subr.bf16.mxu0 0
    %1811 = vmatpush2.bf16.msra.mxu0 0
    %1812 = vmatprep.subr.bf16.mxu0 0
    %1813 = vmatpush2.bf16.msra.mxu0 0
    %1814 = vmatprep.mubr.bf16.mxu0 0
    %1815 = vmatmul.mubr.bf16.gmra.mxu0 %v1774
    %v1816 = vpop.f32.mrf.mxu0
    %v1817 = vadd.f32 0.0, %v1816
    %v1818 = vpop.f32.mrf.mxu0
    %v1819 = vpop.f32.mrf.mxu0
    %v1820 = vadd.f32 0.0, %v1819
    %v1821 = vpop.f32.mrf.mxu0
    %1822 = vmatprep.mubr.bf16.mxu0 0
    %1823 = vmatmul.mubr.bf16.gmra.mxu0 %v1777
    %v1824 = vpop.f32.mrf.mxu0
    %v1825 = vadd.f32 0.0, %v1824
    %v1826 = vpop.f32.mrf.mxu0
    %v1827 = vpop.f32.mrf.mxu0
    %v1828 = vadd.f32 0.0, %v1827
    %v1829 = vpop.f32.mrf.mxu0
    %1830 = vdwg.mxu0
    %v1831 = vadd.f32 %v1325, %v1817
    %v1832 = vadd.f32 %v1326, %v1820
    %v1833 = vadd.f32 %v1327, %v1825
    %v1834 = vadd.f32 %v1328, %v1828
    %1835 = vrot.lane.b32.xlu0 %v316, 104
    %v1836 = vpop.permute.xlu0 %1835
    %1837 = vrot.lane.b32.xlu0 %v320, 104
    %v1838 = vpop.permute.xlu0 %1837
    %v1840 = vsel %vm324, %v1836, 0
    %v1843 = vsel %vm324, %v1838, 0
    %1845 = vmatprep.subr.bf16.mxu0 0
    %1846 = vmatpush1.bf16.xpose.msra.mxu0 0
    %1847 = vmatprep.subr.bf16.mxu0 0
    %1848 = vmatpush1.bf16.xpose.msra.mxu0 0
    %1849 = vmatprep.subr.bf16.mxu0 0
    %1850 = vmatpush1.bf16.xpose.msra.mxu0 0
    %1851 = vmatprep.subr.bf16.mxu0 0
    %1852 = vmatpush1.bf16.xpose.msra.mxu0 0
    %1853 = vmatprep.subr.bf16.mxu0 0
    %1854 = vmatpush1.bf16.xpose.msra.mxu0 0
    %1855 = vmatprep.subr.bf16.mxu0 0
    %1856 = vmatpush1.bf16.xpose.msra.mxu0 0
    %1857 = vmatprep.subr.bf16.mxu0 0
    %1858 = vmatpush1.bf16.xpose.msra.mxu0 0
    %1859 = vmatprep.subr.bf16.mxu0 0
    %1860 = vmatpush1.bf16.xpose.msra.mxu0 %v1843
    %1861 = vmatprep.subr.bf16.mxu0 0
    %1862 = vmatpush2.bf16.xpose.msra.mxu0 0
    %1863 = vmatprep.subr.bf16.mxu0 0
    %1864 = vmatpush2.bf16.xpose.msra.mxu0 0
    %1865 = vmatprep.subr.bf16.mxu0 0
    %1866 = vmatpush2.bf16.xpose.msra.mxu0 0
    %1867 = vmatprep.subr.bf16.mxu0 0
    %1868 = vmatpush2.bf16.xpose.msra.mxu0 0
    %1869 = vmatprep.subr.bf16.mxu0 0
    %1870 = vmatpush2.bf16.xpose.msra.mxu0 0
    %1871 = vmatprep.subr.bf16.mxu0 0
    %1872 = vmatpush2.bf16.xpose.msra.mxu0 0
    %1873 = vmatprep.subr.bf16.mxu0 0
    %1874 = vmatpush2.bf16.xpose.msra.mxu0 0
    %1875 = vmatprep.subr.bf16.mxu0 0
    %1876 = vmatpush2.bf16.xpose.msra.mxu0 0
    %1877 = vmatprep.mubr.bf16.mxu0 0
    %1878 = vmatmul.mubr.bf16.gmra.mxu0 %v1840
    %v1879 = vpop.f32.mrf.mxu0
    %v1880 = vadd.f32 0.0, %v1879
    %v1881 = vpop.f32.mrf.mxu0
    %v1882 = vpop.f32.mrf.mxu0
    %v1883 = vpop.f32.mrf.mxu0
    %1884 = vdwg.mxu0
    %1885 = vrot.lane.b32.xlu0 %v317, 104
    %v1886 = vpop.permute.xlu0 %1885
    %1887 = vrot.lane.b32.xlu0 %v321, 104
    %v1888 = vpop.permute.xlu0 %1887
    %v1890 = vsel %vm324, %v1886, 0
    %v1893 = vsel %vm324, %v1888, 0
    %1895 = vmatprep.subr.bf16.mxu0 0
    %1896 = vmatpush1.bf16.xpose.msra.mxu0 0
    %1897 = vmatprep.subr.bf16.mxu0 0
    %1898 = vmatpush1.bf16.xpose.msra.mxu0 0
    %1899 = vmatprep.subr.bf16.mxu0 0
    %1900 = vmatpush1.bf16.xpose.msra.mxu0 0
    %1901 = vmatprep.subr.bf16.mxu0 0
    %1902 = vmatpush1.bf16.xpose.msra.mxu0 0
    %1903 = vmatprep.subr.bf16.mxu0 0
    %1904 = vmatpush1.bf16.xpose.msra.mxu0 0
    %1905 = vmatprep.subr.bf16.mxu0 0
    %1906 = vmatpush1.bf16.xpose.msra.mxu0 0
    %1907 = vmatprep.subr.bf16.mxu0 0
    %1908 = vmatpush1.bf16.xpose.msra.mxu0 0
    %1909 = vmatprep.subr.bf16.mxu0 0
    %1910 = vmatpush1.bf16.xpose.msra.mxu0 %v1893
    %1911 = vmatprep.subr.bf16.mxu0 0
    %1912 = vmatpush2.bf16.xpose.msra.mxu0 0
    %1913 = vmatprep.subr.bf16.mxu0 0
    %1914 = vmatpush2.bf16.xpose.msra.mxu0 0
    %1915 = vmatprep.subr.bf16.mxu0 0
    %1916 = vmatpush2.bf16.xpose.msra.mxu0 0
    %1917 = vmatprep.subr.bf16.mxu0 0
    %1918 = vmatpush2.bf16.xpose.msra.mxu0 0
    %1919 = vmatprep.subr.bf16.mxu0 0
    %1920 = vmatpush2.bf16.xpose.msra.mxu0 0
    %1921 = vmatprep.subr.bf16.mxu0 0
    %1922 = vmatpush2.bf16.xpose.msra.mxu0 0
    %1923 = vmatprep.subr.bf16.mxu0 0
    %1924 = vmatpush2.bf16.xpose.msra.mxu0 0
    %1925 = vmatprep.subr.bf16.mxu0 0
    %1926 = vmatpush2.bf16.xpose.msra.mxu0 0
    %1927 = vmatprep.mubr.bf16.mxu0 0
    %1928 = vmatmul.mubr.bf16.gmra.mxu0 %v1890
    %v1929 = vpop.f32.mrf.mxu0
    %v1930 = vadd.f32 0.0, %v1929
    %v1931 = vpop.f32.mrf.mxu0
    %v1932 = vpop.f32.mrf.mxu0
    %v1933 = vpop.f32.mrf.mxu0
    %1934 = vdwg.mxu0
    %1935 = vrot.lane.b32.xlu0 %v318, 104
    %v1936 = vpop.permute.xlu0 %1935
    %1937 = vrot.lane.b32.xlu0 %v322, 104
    %v1938 = vpop.permute.xlu0 %1937
    %v1940 = vsel %vm324, %v1936, 0
    %v1943 = vsel %vm324, %v1938, 0
    %1945 = vmatprep.subr.bf16.mxu0 0
    %1946 = vmatpush1.bf16.xpose.msra.mxu0 0
    %1947 = vmatprep.subr.bf16.mxu0 0
    %1948 = vmatpush1.bf16.xpose.msra.mxu0 0
    %1949 = vmatprep.subr.bf16.mxu0 0
    %1950 = vmatpush1.bf16.xpose.msra.mxu0 0
    %1951 = vmatprep.subr.bf16.mxu0 0
    %1952 = vmatpush1.bf16.xpose.msra.mxu0 0
    %1953 = vmatprep.subr.bf16.mxu0 0
    %1954 = vmatpush1.bf16.xpose.msra.mxu0 0
    %1955 = vmatprep.subr.bf16.mxu0 0
    %1956 = vmatpush1.bf16.xpose.msra.mxu0 0
    %1957 = vmatprep.subr.bf16.mxu0 0
    %1958 = vmatpush1.bf16.xpose.msra.mxu0 0
    %1959 = vmatprep.subr.bf16.mxu0 0
    %1960 = vmatpush1.bf16.xpose.msra.mxu0 %v1943
    %1961 = vmatprep.subr.bf16.mxu0 0
    %1962 = vmatpush2.bf16.xpose.msra.mxu0 0
    %1963 = vmatprep.subr.bf16.mxu0 0
    %1964 = vmatpush2.bf16.xpose.msra.mxu0 0
    %1965 = vmatprep.subr.bf16.mxu0 0
    %1966 = vmatpush2.bf16.xpose.msra.mxu0 0
    %1967 = vmatprep.subr.bf16.mxu0 0
    %1968 = vmatpush2.bf16.xpose.msra.mxu0 0
    %1969 = vmatprep.subr.bf16.mxu0 0
    %1970 = vmatpush2.bf16.xpose.msra.mxu0 0
    %1971 = vmatprep.subr.bf16.mxu0 0
    %1972 = vmatpush2.bf16.xpose.msra.mxu0 0
    %1973 = vmatprep.subr.bf16.mxu0 0
    %1974 = vmatpush2.bf16.xpose.msra.mxu0 0
    %1975 = vmatprep.subr.bf16.mxu0 0
    %1976 = vmatpush2.bf16.xpose.msra.mxu0 0
    %1977 = vmatprep.mubr.bf16.mxu0 0
    %1978 = vmatmul.mubr.bf16.gmra.mxu0 %v1940
    %v1979 = vpop.f32.mrf.mxu0
    %v1980 = vadd.f32 0.0, %v1979
    %v1981 = vpop.f32.mrf.mxu0
    %v1982 = vpop.f32.mrf.mxu0
    %v1983 = vpop.f32.mrf.mxu0
    %1984 = vdwg.mxu0
    %1985 = vrot.lane.b32.xlu0 %v319, 104
    %v1986 = vpop.permute.xlu0 %1985
    %1987 = vrot.lane.b32.xlu0 %v323, 104
    %v1988 = vpop.permute.xlu0 %1987
    %v1990 = vsel %vm324, %v1986, 0
    %v1993 = vsel %vm324, %v1988, 0
    %1995 = vmatprep.subr.bf16.mxu0 0
    %1996 = vmatpush1.bf16.xpose.msra.mxu0 0
    %1997 = vmatprep.subr.bf16.mxu0 0
    %1998 = vmatpush1.bf16.xpose.msra.mxu0 0
    %1999 = vmatprep.subr.bf16.mxu0 0
    %2000 = vmatpush1.bf16.xpose.msra.mxu0 0
    %2001 = vmatprep.subr.bf16.mxu0 0
    %2002 = vmatpush1.bf16.xpose.msra.mxu0 0
    %2003 = vmatprep.subr.bf16.mxu0 0
    %2004 = vmatpush1.bf16.xpose.msra.mxu0 0
    %2005 = vmatprep.subr.bf16.mxu0 0
    %2006 = vmatpush1.bf16.xpose.msra.mxu0 0
    %2007 = vmatprep.subr.bf16.mxu0 0
    %2008 = vmatpush1.bf16.xpose.msra.mxu0 0
    %2009 = vmatprep.subr.bf16.mxu0 0
    %2010 = vmatpush1.bf16.xpose.msra.mxu0 %v1993
    %2011 = vmatprep.subr.bf16.mxu0 0
    %2012 = vmatpush2.bf16.xpose.msra.mxu0 0
    %2013 = vmatprep.subr.bf16.mxu0 0
    %2014 = vmatpush2.bf16.xpose.msra.mxu0 0
    %2015 = vmatprep.subr.bf16.mxu0 0
    %2016 = vmatpush2.bf16.xpose.msra.mxu0 0
    %2017 = vmatprep.subr.bf16.mxu0 0
    %2018 = vmatpush2.bf16.xpose.msra.mxu0 0
    %2019 = vmatprep.subr.bf16.mxu0 0
    %2020 = vmatpush2.bf16.xpose.msra.mxu0 0
    %2021 = vmatprep.subr.bf16.mxu0 0
    %2022 = vmatpush2.bf16.xpose.msra.mxu0 0
    %2023 = vmatprep.subr.bf16.mxu0 0
    %2024 = vmatpush2.bf16.xpose.msra.mxu0 0
    %2025 = vmatprep.subr.bf16.mxu0 0
    %2026 = vmatpush2.bf16.xpose.msra.mxu0 0
    %2027 = vmatprep.mubr.bf16.mxu0 0
    %2028 = vmatmul.mubr.bf16.gmra.mxu0 %v1990
    %v2029 = vpop.f32.mrf.mxu0
    %v2030 = vadd.f32 0.0, %v2029
    %v2031 = vpop.f32.mrf.mxu0
    %v2032 = vpop.f32.mrf.mxu0
    %v2033 = vpop.f32.mrf.mxu0
    %2034 = vdwg.mxu0
    %v2035 = vsel %vm324, %v1880, -inf
    %2036 = vmax.xlane.f32.xlu0 %v2035
    %v2037 = vpop.xlane.xlu0 %2036
    %v2038 = vsel %vm324, %v1930, -inf
    %2039 = vmax.xlane.f32.xlu0 %v2038
    %v2040 = vpop.xlane.xlu0 %2039
    %v2041 = vsel %vm324, %v1980, -inf
    %2042 = vmax.xlane.f32.xlu0 %v2041
    %v2043 = vpop.xlane.xlu0 %2042
    %v2044 = vsel %vm324, %v2030, -inf
    %2045 = vmax.xlane.f32.xlu0 %v2044
    %v2046 = vpop.xlane.xlu0 %2045
    %v2047 = vsub.f32 %v1880, %v2037
    %v2048 = vsub.f32 %v1930, %v2040
    %v2049 = vsub.f32 %v1980, %v2043
    %v2050 = vsub.f32 %v2030, %v2046
    %v2051 = vmul.f32 %v2047, 1.442695
    %v2052 = vpow.pop %v2051
    %v2053 = vmul.f32 %v2048, 1.442695
    %v2054 = vpow.pop %v2053
    %v2055 = vmul.f32 %v2049, 1.442695
    %v2056 = vpow.pop %v2055
    %v2057 = vmul.f32 %v2050, 1.442695
    %v2058 = vpow.pop %v2057
    %v2059 = vsel %vm324, %v2052, 0.0
    %2060 = vadd.xlane.f32.xlu0 %v2059
    %v2061 = vpop.xlane.xlu0 %2060
    %v2062 = vsel %vm324, %v2054, 0.0
    %2063 = vadd.xlane.f32.xlu0 %v2062
    %v2064 = vpop.xlane.xlu0 %2063
    %v2065 = vsel %vm324, %v2056, 0.0
    %2066 = vadd.xlane.f32.xlu0 %v2065
    %v2067 = vpop.xlane.xlu0 %2066
    %v2068 = vsel %vm324, %v2058, 0.0
    %2069 = vadd.xlane.f32.xlu0 %v2068
    %v2070 = vpop.xlane.xlu0 %2069
    %v2071 = vrcp.pop %v2061
    %v2072 = vrcp.pop %v2064
    %v2073 = vrcp.pop %v2067
    %v2074 = vrcp.pop %v2070
    %v2075 = vmul.f32 %v2052, %v2071
    %v2076 = vmul.f32 %v2054, %v2072
    %v2077 = vmul.f32 %v2056, %v2073
    %v2078 = vmul.f32 %v2058, %v2074
    %v2079 = vpack.c.bf16 %v2075, %v2075
    %v2080 = vpack.c.bf16 %v2076, %v2076
    %v2081 = vpack.c.bf16 %v2077, %v2077
    %v2082 = vpack.c.bf16 %v2078, %v2078
    %2083 = vrot.lane.b32.xlu0 %v320, 72
    %v2084 = vpop.permute.xlu0 %2083
    %v2086 = vsel %vm324, %v2079, 0
    %v2089 = vsel %vm563, %v2084, 0
    %2091 = vmatprep.subr.bf16.mxu0 0
    %2092 = vmatpush1.bf16.msra.mxu0 0
    %2093 = vmatprep.subr.bf16.mxu0 0
    %2094 = vmatpush1.bf16.msra.mxu0 0
    %2095 = vmatprep.subr.bf16.mxu0 0
    %2096 = vmatpush1.bf16.msra.mxu0 0
    %2097 = vmatprep.subr.bf16.mxu0 0
    %2098 = vmatpush1.bf16.msra.mxu0 0
    %2099 = vmatprep.subr.bf16.mxu0 0
    %2100 = vmatpush1.bf16.msra.mxu0 0
    %2101 = vmatprep.subr.bf16.mxu0 0
    %2102 = vmatpush1.bf16.msra.mxu0 0
    %2103 = vmatprep.subr.bf16.mxu0 0
    %2104 = vmatpush1.bf16.msra.mxu0 0
    %2105 = vmatprep.subr.bf16.mxu0 0
    %2106 = vmatpush1.bf16.msra.mxu0 %v2089
    %2107 = vmatprep.subr.bf16.mxu0 0
    %2108 = vmatpush2.bf16.msra.mxu0 0
    %2109 = vmatprep.subr.bf16.mxu0 0
    %2110 = vmatpush2.bf16.msra.mxu0 0
    %2111 = vmatprep.subr.bf16.mxu0 0
    %2112 = vmatpush2.bf16.msra.mxu0 0
    %2113 = vmatprep.subr.bf16.mxu0 0
    %2114 = vmatpush2.bf16.msra.mxu0 0
    %2115 = vmatprep.subr.bf16.mxu0 0
    %2116 = vmatpush2.bf16.msra.mxu0 0
    %2117 = vmatprep.subr.bf16.mxu0 0
    %2118 = vmatpush2.bf16.msra.mxu0 0
    %2119 = vmatprep.subr.bf16.mxu0 0
    %2120 = vmatpush2.bf16.msra.mxu0 0
    %2121 = vmatprep.subr.bf16.mxu0 0
    %2122 = vmatpush2.bf16.msra.mxu0 0
    %2123 = vmatprep.mubr.bf16.mxu0 0
    %2124 = vmatmul.mubr.bf16.gmra.mxu0 %v2086
    %v2125 = vpop.f32.mrf.mxu0
    %v2126 = vadd.f32 0.0, %v2125
    %v2127 = vpop.f32.mrf.mxu0
    %v2128 = vpop.f32.mrf.mxu0
    %v2129 = vpop.f32.mrf.mxu0
    %2130 = vdwg.mxu0
    %2131 = vrot.lane.b32.xlu0 %v321, 72
    %v2132 = vpop.permute.xlu0 %2131
    %v2134 = vsel %vm324, %v2080, 0
    %v2137 = vsel %vm563, %v2132, 0
    %2139 = vmatprep.subr.bf16.mxu0 0
    %2140 = vmatpush1.bf16.msra.mxu0 0
    %2141 = vmatprep.subr.bf16.mxu0 0
    %2142 = vmatpush1.bf16.msra.mxu0 0
    %2143 = vmatprep.subr.bf16.mxu0 0
    %2144 = vmatpush1.bf16.msra.mxu0 0
    %2145 = vmatprep.subr.bf16.mxu0 0
    %2146 = vmatpush1.bf16.msra.mxu0 0
    %2147 = vmatprep.subr.bf16.mxu0 0
    %2148 = vmatpush1.bf16.msra.mxu0 0
    %2149 = vmatprep.subr.bf16.mxu0 0
    %2150 = vmatpush1.bf16.msra.mxu0 0
    %2151 = vmatprep.subr.bf16.mxu0 0
    %2152 = vmatpush1.bf16.msra.mxu0 0
    %2153 = vmatprep.subr.bf16.mxu0 0
    %2154 = vmatpush1.bf16.msra.mxu0 %v2137
    %2155 = vmatprep.subr.bf16.mxu0 0
    %2156 = vmatpush2.bf16.msra.mxu0 0
    %2157 = vmatprep.subr.bf16.mxu0 0
    %2158 = vmatpush2.bf16.msra.mxu0 0
    %2159 = vmatprep.subr.bf16.mxu0 0
    %2160 = vmatpush2.bf16.msra.mxu0 0
    %2161 = vmatprep.subr.bf16.mxu0 0
    %2162 = vmatpush2.bf16.msra.mxu0 0
    %2163 = vmatprep.subr.bf16.mxu0 0
    %2164 = vmatpush2.bf16.msra.mxu0 0
    %2165 = vmatprep.subr.bf16.mxu0 0
    %2166 = vmatpush2.bf16.msra.mxu0 0
    %2167 = vmatprep.subr.bf16.mxu0 0
    %2168 = vmatpush2.bf16.msra.mxu0 0
    %2169 = vmatprep.subr.bf16.mxu0 0
    %2170 = vmatpush2.bf16.msra.mxu0 0
    %2171 = vmatprep.mubr.bf16.mxu0 0
    %2172 = vmatmul.mubr.bf16.gmra.mxu0 %v2134
    %v2173 = vpop.f32.mrf.mxu0
    %v2174 = vadd.f32 0.0, %v2173
    %v2175 = vpop.f32.mrf.mxu0
    %v2176 = vpop.f32.mrf.mxu0
    %v2177 = vpop.f32.mrf.mxu0
    %2178 = vdwg.mxu0
    %2179 = vrot.lane.b32.xlu0 %v322, 72
    %v2180 = vpop.permute.xlu0 %2179
    %v2182 = vsel %vm324, %v2081, 0
    %v2185 = vsel %vm563, %v2180, 0
    %2187 = vmatprep.subr.bf16.mxu0 0
    %2188 = vmatpush1.bf16.msra.mxu0 0
    %2189 = vmatprep.subr.bf16.mxu0 0
    %2190 = vmatpush1.bf16.msra.mxu0 0
    %2191 = vmatprep.subr.bf16.mxu0 0
    %2192 = vmatpush1.bf16.msra.mxu0 0
    %2193 = vmatprep.subr.bf16.mxu0 0
    %2194 = vmatpush1.bf16.msra.mxu0 0
    %2195 = vmatprep.subr.bf16.mxu0 0
    %2196 = vmatpush1.bf16.msra.mxu0 0
    %2197 = vmatprep.subr.bf16.mxu0 0
    %2198 = vmatpush1.bf16.msra.mxu0 0
    %2199 = vmatprep.subr.bf16.mxu0 0
    %2200 = vmatpush1.bf16.msra.mxu0 0
    %2201 = vmatprep.subr.bf16.mxu0 0
    %2202 = vmatpush1.bf16.msra.mxu0 %v2185
    %2203 = vmatprep.subr.bf16.mxu0 0
    %2204 = vmatpush2.bf16.msra.mxu0 0
    %2205 = vmatprep.subr.bf16.mxu0 0
    %2206 = vmatpush2.bf16.msra.mxu0 0
    %2207 = vmatprep.subr.bf16.mxu0 0
    %2208 = vmatpush2.bf16.msra.mxu0 0
    %2209 = vmatprep.subr.bf16.mxu0 0
    %2210 = vmatpush2.bf16.msra.mxu0 0
    %2211 = vmatprep.subr.bf16.mxu0 0
    %2212 = vmatpush2.bf16.msra.mxu0 0
    %2213 = vmatprep.subr.bf16.mxu0 0
    %2214 = vmatpush2.bf16.msra.mxu0 0
    %2215 = vmatprep.subr.bf16.mxu0 0
    %2216 = vmatpush2.bf16.msra.mxu0 0
    %2217 = vmatprep.subr.bf16.mxu0 0
    %2218 = vmatpush2.bf16.msra.mxu0 0
    %2219 = vmatprep.mubr.bf16.mxu0 0
    %2220 = vmatmul.mubr.bf16.gmra.mxu0 %v2182
    %v2221 = vpop.f32.mrf.mxu0
    %v2222 = vadd.f32 0.0, %v2221
    %v2223 = vpop.f32.mrf.mxu0
    %v2224 = vpop.f32.mrf.mxu0
    %v2225 = vpop.f32.mrf.mxu0
    %2226 = vdwg.mxu0
    %2227 = vrot.lane.b32.xlu0 %v323, 72
    %v2228 = vpop.permute.xlu0 %2227
    %v2230 = vsel %vm324, %v2082, 0
    %v2233 = vsel %vm563, %v2228, 0
    %2235 = vmatprep.subr.bf16.mxu0 0
    %2236 = vmatpush1.bf16.msra.mxu0 0
    %2237 = vmatprep.subr.bf16.mxu0 0
    %2238 = vmatpush1.bf16.msra.mxu0 0
    %2239 = vmatprep.subr.bf16.mxu0 0
    %2240 = vmatpush1.bf16.msra.mxu0 0
    %2241 = vmatprep.subr.bf16.mxu0 0
    %2242 = vmatpush1.bf16.msra.mxu0 0
    %2243 = vmatprep.subr.bf16.mxu0 0
    %2244 = vmatpush1.bf16.msra.mxu0 0
    %2245 = vmatprep.subr.bf16.mxu0 0
    %2246 = vmatpush1.bf16.msra.mxu0 0
    %2247 = vmatprep.subr.bf16.mxu0 0
    %2248 = vmatpush1.bf16.msra.mxu0 0
    %2249 = vmatprep.subr.bf16.mxu0 0
    %2250 = vmatpush1.bf16.msra.mxu0 %v2233
    %2251 = vmatprep.subr.bf16.mxu0 0
    %2252 = vmatpush2.bf16.msra.mxu0 0
    %2253 = vmatprep.subr.bf16.mxu0 0
    %2254 = vmatpush2.bf16.msra.mxu0 0
    %2255 = vmatprep.subr.bf16.mxu0 0
    %2256 = vmatpush2.bf16.msra.mxu0 0
    %2257 = vmatprep.subr.bf16.mxu0 0
    %2258 = vmatpush2.bf16.msra.mxu0 0
    %2259 = vmatprep.subr.bf16.mxu0 0
    %2260 = vmatpush2.bf16.msra.mxu0 0
    %2261 = vmatprep.subr.bf16.mxu0 0
    %2262 = vmatpush2.bf16.msra.mxu0 0
    %2263 = vmatprep.subr.bf16.mxu0 0
    %2264 = vmatpush2.bf16.msra.mxu0 0
    %2265 = vmatprep.subr.bf16.mxu0 0
    %2266 = vmatpush2.bf16.msra.mxu0 0
    %2267 = vmatprep.mubr.bf16.mxu0 0
    %2268 = vmatmul.mubr.bf16.gmra.mxu0 %v2230
    %v2269 = vpop.f32.mrf.mxu0
    %v2270 = vadd.f32 0.0, %v2269
    %v2271 = vpop.f32.mrf.mxu0
    %v2272 = vpop.f32.mrf.mxu0
    %v2273 = vpop.f32.mrf.mxu0
    %2274 = vdwg.mxu0
    %v2275 = vpack.c.bf16 %v2174, %v2126
    %v2276 = vpack.c.bf16 %v2270, %v2222
    %s2277 = scalar_lea.vmem [#allocation8], 12
    %v2278 = vld [vmem:[%s2277] sm:$0xf]
    %v2280 = vsel %vm324, %v2275, 0
    %v2283 = vsel %vm324, %v2276, 0
    %v2286 = vsel %vm563, %v2278, 0
    %2288 = vmatprep.subr.bf16.mxu0 0
    %2289 = vmatpush1.bf16.msra.mxu0 0
    %2290 = vmatprep.subr.bf16.mxu0 0
    %2291 = vmatpush1.bf16.msra.mxu0 0
    %2292 = vmatprep.subr.bf16.mxu0 0
    %2293 = vmatpush1.bf16.msra.mxu0 0
    %2294 = vmatprep.subr.bf16.mxu0 0
    %2295 = vmatpush1.bf16.msra.mxu0 0
    %2296 = vmatprep.subr.bf16.mxu0 0
    %2297 = vmatpush1.bf16.msra.mxu0 0
    %2298 = vmatprep.subr.bf16.mxu0 0
    %2299 = vmatpush1.bf16.msra.mxu0 0
    %2300 = vmatprep.subr.bf16.mxu0 0
    %2301 = vmatpush1.bf16.msra.mxu0 0
    %2302 = vmatprep.subr.bf16.mxu0 0
    %2303 = vmatpush1.bf16.msra.mxu0 %v2286
    %2304 = vmatprep.subr.bf16.mxu0 0
    %2305 = vmatpush2.bf16.msra.mxu0 0
    %2306 = vmatprep.subr.bf16.mxu0 0
    %2307 = vmatpush2.bf16.msra.mxu0 0
    %2308 = vmatprep.subr.bf16.mxu0 0
    %2309 = vmatpush2.bf16.msra.mxu0 0
    %2310 = vmatprep.subr.bf16.mxu0 0
    %2311 = vmatpush2.bf16.msra.mxu0 0
    %2312 = vmatprep.subr.bf16.mxu0 0
    %2313 = vmatpush2.bf16.msra.mxu0 0
    %2314 = vmatprep.subr.bf16.mxu0 0
    %2315 = vmatpush2.bf16.msra.mxu0 0
    %2316 = vmatprep.subr.bf16.mxu0 0
    %2317 = vmatpush2.bf16.msra.mxu0 0
    %2318 = vmatprep.subr.bf16.mxu0 0
    %2319 = vmatpush2.bf16.msra.mxu0 0
    %2320 = vmatprep.mubr.bf16.mxu0 0
    %2321 = vmatmul.mubr.bf16.gmra.mxu0 %v2280
    %v2322 = vpop.f32.mrf.mxu0
    %v2323 = vadd.f32 0.0, %v2322
    %v2324 = vpop.f32.mrf.mxu0
    %v2325 = vpop.f32.mrf.mxu0
    %v2326 = vadd.f32 0.0, %v2325
    %v2327 = vpop.f32.mrf.mxu0
    %2328 = vmatprep.mubr.bf16.mxu0 0
    %2329 = vmatmul.mubr.bf16.gmra.mxu0 %v2283
    %v2330 = vpop.f32.mrf.mxu0
    %v2331 = vadd.f32 0.0, %v2330
    %v2332 = vpop.f32.mrf.mxu0
    %v2333 = vpop.f32.mrf.mxu0
    %v2334 = vadd.f32 0.0, %v2333
    %v2335 = vpop.f32.mrf.mxu0
    %2336 = vdwg.mxu0
    %v2337 = vadd.f32 %v1831, %v2323
    %v2338 = vadd.f32 %v1832, %v2326
    %v2339 = vadd.f32 %v1833, %v2331
    %v2340 = vadd.f32 %v1834, %v2334
    %v2341 = vld [vmem:[#allocation11] sm:$0x1]
    %v2342 = vld [vmem:[#allocation13] sm:$0x1]
    %v2343 = vsel %vm187, %v2337, 0.0
    %2344 = vadd.xlane.f32.xlu0 %v2343
    %v2345 = vpop.xlane.xlu0 %2344
    %v2346 = vsel %vm187, %v2338, 0.0
    %2347 = vadd.xlane.f32.xlu0 %v2346
    %v2348 = vpop.xlane.xlu0 %2347
    %v2349 = vsel %vm187, %v2339, 0.0
    %2350 = vadd.xlane.f32.xlu0 %v2349
    %v2351 = vpop.xlane.xlu0 %2350
    %v2352 = vsel %vm187, %v2340, 0.0
    %2353 = vadd.xlane.f32.xlu0 %v2352
    %v2354 = vpop.xlane.xlu0 %2353
    %v2355 = vrcp.pop 32.0
    %v2356 = vmul.f32 %v2345, %v2355
    %v2357 = vmul.f32 %v2348, %v2355
    %v2358 = vmul.f32 %v2351, %v2355
    %v2359 = vmul.f32 %v2354, %v2355
    %v2360 = vsub.f32 %v2337, %v2356
    %v2361 = vsub.f32 %v2338, %v2357
    %v2362 = vsub.f32 %v2339, %v2358
    %v2363 = vsub.f32 %v2340, %v2359
    %v2364 = vmul.f32 %v2360, %v2360
    %v2365 = vmul.f32 %v2361, %v2361
    %v2366 = vmul.f32 %v2362, %v2362
    %v2367 = vmul.f32 %v2363, %v2363
    %v2368 = vsel %vm187, %v2364, 0.0
    %2369 = vadd.xlane.f32.xlu0 %v2368
    %v2370 = vpop.xlane.xlu0 %2369
    %v2371 = vsel %vm187, %v2365, 0.0
    %2372 = vadd.xlane.f32.xlu0 %v2371
    %v2373 = vpop.xlane.xlu0 %2372
    %v2374 = vsel %vm187, %v2366, 0.0
    %2375 = vadd.xlane.f32.xlu0 %v2374
    %v2376 = vpop.xlane.xlu0 %2375
    %v2377 = vsel %vm187, %v2367, 0.0
    %2378 = vadd.xlane.f32.xlu0 %v2377
    %v2379 = vpop.xlane.xlu0 %2378
    %v2380 = vmul.f32 %v2370, %v2355
    %v2381 = vmul.f32 %v2373, %v2355
    %v2382 = vmul.f32 %v2376, %v2355
    %v2383 = vmul.f32 %v2379, %v2355
    %v2384 = vadd.f32 %v2380, 1e-06
    %v2385 = vadd.f32 %v2381, 1e-06
    %v2386 = vadd.f32 %v2382, 1e-06
    %v2387 = vadd.f32 %v2383, 1e-06
    %v2388 = vrsqrt.pop %v2384
    %v2389 = vrsqrt.pop %v2385
    %v2390 = vrsqrt.pop %v2386
    %v2391 = vrsqrt.pop %v2387
    %v2392 = vmul.f32 %v2360, %v2388
    %v2393 = vmul.f32 %v2361, %v2389
    %v2394 = vmul.f32 %v2362, %v2390
    %v2395 = vmul.f32 %v2363, %v2391
    %v2397 = vlaneseq
    %v2398 = vshrl.u32 %v2397, 7
    %v2399 = vsub.s32 0, %v2398
    %v2400 = vrot.slane %v2341, %v2399
    %v2402 = vmul.f32 %v2392, %v2400
    %v2403 = vmul.f32 %v2393, %v2400
    %v2404 = vmul.f32 %v2394, %v2400
    %v2405 = vmul.f32 %v2395, %v2400
    %v2407 = vlaneseq
    %v2408 = vshrl.u32 %v2407, 7
    %v2409 = vsub.s32 0, %v2408
    %v2410 = vrot.slane %v2342, %v2409
    %v2412 = vadd.f32 %v2402, %v2410
    %v2413 = vadd.f32 %v2403, %v2410
    %v2414 = vadd.f32 %v2404, %v2410
    %v2415 = vadd.f32 %v2405, %v2410
    %v2416 = vpack.c.bf16 %v2413, %v2412
    %v2417 = vpack.c.bf16 %v2415, %v2414
    %v2418 = vld [vmem:[#allocation5] sm:$0xf]
    %v2419 = vld [vmem:[#allocation5 + $0x4] sm:$0xf]
    %v2420 = vld [vmem:[#allocation5 + $0x8] sm:$0xf]
    %v2421 = vld [vmem:[#allocation5 + $0xc] sm:$0xf]
    %v2426 = vunpack.c.l.b16 %v2418
    %v2427 = vunpack.c.l.b16 %v2419
    %v2428 = vunpack.c.l.b16 %v2420
    %v2429 = vunpack.c.l.b16 %v2421
    %v2430 = vpack.c.b16 %v2427, %v2426
    %v2431 = vpack.c.b16 %v2429, %v2428
    %v2435 = vsel %vm187, %v2416, 0
    %v2438 = vsel %vm187, %v2417, 0
    %2440 = vmatprep.subr.bf16.mxu0 0
    %2441 = vmatpush1.bf16.msra.mxu0 0
    %2442 = vmatprep.subr.bf16.mxu0 0
    %2443 = vmatpush1.bf16.msra.mxu0 0
    %2444 = vmatprep.subr.bf16.mxu0 0
    %2445 = vmatpush1.bf16.msra.mxu0 0
    %2446 = vmatprep.subr.bf16.mxu0 0
    %2447 = vmatpush1.bf16.msra.mxu0 0
    %2448 = vmatprep.subr.bf16.mxu0 0
    %2449 = vmatpush1.bf16.msra.mxu0 0
    %2450 = vmatprep.subr.bf16.mxu0 0
    %2451 = vmatpush1.bf16.msra.mxu0 0
    %2452 = vmatprep.subr.bf16.mxu0 0
    %2453 = vmatpush1.bf16.msra.mxu0 %v2431
    %2454 = vmatprep.subr.bf16.mxu0 0
    %2455 = vmatpush1.bf16.msra.mxu0 %v2430
    %2456 = vmatprep.subr.bf16.mxu0 0
    %2457 = vmatpush2.bf16.msra.mxu0 0
    %2458 = vmatprep.subr.bf16.mxu0 0
    %2459 = vmatpush2.bf16.msra.mxu0 0
    %2460 = vmatprep.subr.bf16.mxu0 0
    %2461 = vmatpush2.bf16.msra.mxu0 0
    %2462 = vmatprep.subr.bf16.mxu0 0
    %2463 = vmatpush2.bf16.msra.mxu0 0
    %2464 = vmatprep.subr.bf16.mxu0 0
    %2465 = vmatpush2.bf16.msra.mxu0 0
    %2466 = vmatprep.subr.bf16.mxu0 0
    %2467 = vmatpush2.bf16.msra.mxu0 0
    %2468 = vmatprep.subr.bf16.mxu0 0
    %2469 = vmatpush2.bf16.msra.mxu0 0
    %2470 = vmatprep.subr.bf16.mxu0 0
    %2471 = vmatpush2.bf16.msra.mxu0 0
    %2472 = vmatprep.mubr.bf16.mxu0 0
    %2473 = vmatmul.mubr.bf16.gmra.mxu0 %v2435
    %v2474 = vpop.f32.mrf.mxu0
    %v2475 = vadd.f32 0.0, %v2474
    %v2476 = vpop.f32.mrf.mxu0
    %v2477 = vpop.f32.mrf.mxu0
    %v2478 = vadd.f32 0.0, %v2477
    %v2479 = vpop.f32.mrf.mxu0
    %2480 = vmatprep.mubr.bf16.mxu0 0
    %2481 = vmatmul.mubr.bf16.gmra.mxu0 %v2438
    %v2482 = vpop.f32.mrf.mxu0
    %v2483 = vadd.f32 0.0, %v2482
    %v2484 = vpop.f32.mrf.mxu0
    %v2485 = vpop.f32.mrf.mxu0
    %v2486 = vadd.f32 0.0, %v2485
    %v2487 = vpop.f32.mrf.mxu0
    %2488 = vdwg.mxu0
    %v2489 = vpack.c.bf16 %v2475, %v2475
    %v2490 = vpack.c.bf16 %v2478, %v2478
    %v2491 = vpack.c.bf16 %v2483, %v2483
    %v2492 = vpack.c.bf16 %v2486, %v2486
    %2493 = vrot.lane.b32.xlu0 %v320, 64
    %v2494 = vpop.permute.xlu0 %2493
    %v2496 = vsel %vm324, %v2489, 0
    %v2499 = vsel %vm324, %v2494, 0
    %2501 = vmatprep.subr.bf16.mxu0 0
    %2502 = vmatpush1.bf16.xpose.msra.mxu0 0
    %2503 = vmatprep.subr.bf16.mxu0 0
    %2504 = vmatpush1.bf16.xpose.msra.mxu0 0
    %2505 = vmatprep.subr.bf16.mxu0 0
    %2506 = vmatpush1.bf16.xpose.msra.mxu0 0
    %2507 = vmatprep.subr.bf16.mxu0 0
    %2508 = vmatpush1.bf16.xpose.msra.mxu0 0
    %2509 = vmatprep.subr.bf16.mxu0 0
    %2510 = vmatpush1.bf16.xpose.msra.mxu0 0
    %2511 = vmatprep.subr.bf16.mxu0 0
    %2512 = vmatpush1.bf16.xpose.msra.mxu0 0
    %2513 = vmatprep.subr.bf16.mxu0 0
    %2514 = vmatpush1.bf16.xpose.msra.mxu0 0
    %2515 = vmatprep.subr.bf16.mxu0 0
    %2516 = vmatpush1.bf16.xpose.msra.mxu0 %v2499
    %2517 = vmatprep.subr.bf16.mxu0 0
    %2518 = vmatpush2.bf16.xpose.msra.mxu0 0
    %2519 = vmatprep.subr.bf16.mxu0 0
    %2520 = vmatpush2.bf16.xpose.msra.mxu0 0
    %2521 = vmatprep.subr.bf16.mxu0 0
    %2522 = vmatpush2.bf16.xpose.msra.mxu0 0
    %2523 = vmatprep.subr.bf16.mxu0 0
    %2524 = vmatpush2.bf16.xpose.msra.mxu0 0
    %2525 = vmatprep.subr.bf16.mxu0 0
    %2526 = vmatpush2.bf16.xpose.msra.mxu0 0
    %2527 = vmatprep.subr.bf16.mxu0 0
    %2528 = vmatpush2.bf16.xpose.msra.mxu0 0
    %2529 = vmatprep.subr.bf16.mxu0 0
    %2530 = vmatpush2.bf16.xpose.msra.mxu0 0
    %2531 = vmatprep.subr.bf16.mxu0 0
    %2532 = vmatpush2.bf16.xpose.msra.mxu0 0
    %2533 = vmatprep.mubr.bf16.mxu0 0
    %2534 = vmatmul.mubr.bf16.gmra.mxu0 %v2496
    %v2535 = vpop.f32.mrf.mxu0
    %v2536 = vadd.f32 0.0, %v2535
    %v2537 = vpop.f32.mrf.mxu0
    %v2538 = vpop.f32.mrf.mxu0
    %v2539 = vpop.f32.mrf.mxu0
    %2540 = vdwg.mxu0
    %2541 = vrot.lane.b32.xlu0 %v321, 64
    %v2542 = vpop.permute.xlu0 %2541
    %v2544 = vsel %vm324, %v2490, 0
    %v2547 = vsel %vm324, %v2542, 0
    %2549 = vmatprep.subr.bf16.mxu0 0
    %2550 = vmatpush1.bf16.xpose.msra.mxu0 0
    %2551 = vmatprep.subr.bf16.mxu0 0
    %2552 = vmatpush1.bf16.xpose.msra.mxu0 0
    %2553 = vmatprep.subr.bf16.mxu0 0
    %2554 = vmatpush1.bf16.xpose.msra.mxu0 0
    %2555 = vmatprep.subr.bf16.mxu0 0
    %2556 = vmatpush1.bf16.xpose.msra.mxu0 0
    %2557 = vmatprep.subr.bf16.mxu0 0
    %2558 = vmatpush1.bf16.xpose.msra.mxu0 0
    %2559 = vmatprep.subr.bf16.mxu0 0
    %2560 = vmatpush1.bf16.xpose.msra.mxu0 0
    %2561 = vmatprep.subr.bf16.mxu0 0
    %2562 = vmatpush1.bf16.xpose.msra.mxu0 0
    %2563 = vmatprep.subr.bf16.mxu0 0
    %2564 = vmatpush1.bf16.xpose.msra.mxu0 %v2547
    %2565 = vmatprep.subr.bf16.mxu0 0
    %2566 = vmatpush2.bf16.xpose.msra.mxu0 0
    %2567 = vmatprep.subr.bf16.mxu0 0
    %2568 = vmatpush2.bf16.xpose.msra.mxu0 0
    %2569 = vmatprep.subr.bf16.mxu0 0
    %2570 = vmatpush2.bf16.xpose.msra.mxu0 0
    %2571 = vmatprep.subr.bf16.mxu0 0
    %2572 = vmatpush2.bf16.xpose.msra.mxu0 0
    %2573 = vmatprep.subr.bf16.mxu0 0
    %2574 = vmatpush2.bf16.xpose.msra.mxu0 0
    %2575 = vmatprep.subr.bf16.mxu0 0
    %2576 = vmatpush2.bf16.xpose.msra.mxu0 0
    %2577 = vmatprep.subr.bf16.mxu0 0
    %2578 = vmatpush2.bf16.xpose.msra.mxu0 0
    %2579 = vmatprep.subr.bf16.mxu0 0
    %2580 = vmatpush2.bf16.xpose.msra.mxu0 0
    %2581 = vmatprep.mubr.bf16.mxu0 0
    %2582 = vmatmul.mubr.bf16.gmra.mxu0 %v2544
    %v2583 = vpop.f32.mrf.mxu0
    %v2584 = vadd.f32 0.0, %v2583
    %v2585 = vpop.f32.mrf.mxu0
    %v2586 = vpop.f32.mrf.mxu0
    %v2587 = vpop.f32.mrf.mxu0
    %2588 = vdwg.mxu0
    %2589 = vrot.lane.b32.xlu0 %v322, 64
    %v2590 = vpop.permute.xlu0 %2589
    %v2592 = vsel %vm324, %v2491, 0
    %v2595 = vsel %vm324, %v2590, 0
    %2597 = vmatprep.subr.bf16.mxu0 0
    %2598 = vmatpush1.bf16.xpose.msra.mxu0 0
    %2599 = vmatprep.subr.bf16.mxu0 0
    %2600 = vmatpush1.bf16.xpose.msra.mxu0 0
    %2601 = vmatprep.subr.bf16.mxu0 0
    %2602 = vmatpush1.bf16.xpose.msra.mxu0 0
    %2603 = vmatprep.subr.bf16.mxu0 0
    %2604 = vmatpush1.bf16.xpose.msra.mxu0 0
    %2605 = vmatprep.subr.bf16.mxu0 0
    %2606 = vmatpush1.bf16.xpose.msra.mxu0 0
    %2607 = vmatprep.subr.bf16.mxu0 0
    %2608 = vmatpush1.bf16.xpose.msra.mxu0 0
    %2609 = vmatprep.subr.bf16.mxu0 0
    %2610 = vmatpush1.bf16.xpose.msra.mxu0 0
    %2611 = vmatprep.subr.bf16.mxu0 0
    %2612 = vmatpush1.bf16.xpose.msra.mxu0 %v2595
    %2613 = vmatprep.subr.bf16.mxu0 0
    %2614 = vmatpush2.bf16.xpose.msra.mxu0 0
    %2615 = vmatprep.subr.bf16.mxu0 0
    %2616 = vmatpush2.bf16.xpose.msra.mxu0 0
    %2617 = vmatprep.subr.bf16.mxu0 0
    %2618 = vmatpush2.bf16.xpose.msra.mxu0 0
    %2619 = vmatprep.subr.bf16.mxu0 0
    %2620 = vmatpush2.bf16.xpose.msra.mxu0 0
    %2621 = vmatprep.subr.bf16.mxu0 0
    %2622 = vmatpush2.bf16.xpose.msra.mxu0 0
    %2623 = vmatprep.subr.bf16.mxu0 0
    %2624 = vmatpush2.bf16.xpose.msra.mxu0 0
    %2625 = vmatprep.subr.bf16.mxu0 0
    %2626 = vmatpush2.bf16.xpose.msra.mxu0 0
    %2627 = vmatprep.subr.bf16.mxu0 0
    %2628 = vmatpush2.bf16.xpose.msra.mxu0 0
    %2629 = vmatprep.mubr.bf16.mxu0 0
    %2630 = vmatmul.mubr.bf16.gmra.mxu0 %v2592
    %v2631 = vpop.f32.mrf.mxu0
    %v2632 = vadd.f32 0.0, %v2631
    %v2633 = vpop.f32.mrf.mxu0
    %v2634 = vpop.f32.mrf.mxu0
    %v2635 = vpop.f32.mrf.mxu0
    %2636 = vdwg.mxu0
    %2637 = vrot.lane.b32.xlu0 %v323, 64
    %v2638 = vpop.permute.xlu0 %2637
    %v2640 = vsel %vm324, %v2492, 0
    %v2643 = vsel %vm324, %v2638, 0
    %2645 = vmatprep.subr.bf16.mxu0 0
    %2646 = vmatpush1.bf16.xpose.msra.mxu0 0
    %2647 = vmatprep.subr.bf16.mxu0 0
    %2648 = vmatpush1.bf16.xpose.msra.mxu0 0
    %2649 = vmatprep.subr.bf16.mxu0 0
    %2650 = vmatpush1.bf16.xpose.msra.mxu0 0
    %2651 = vmatprep.subr.bf16.mxu0 0
    %2652 = vmatpush1.bf16.xpose.msra.mxu0 0
    %2653 = vmatprep.subr.bf16.mxu0 0
    %2654 = vmatpush1.bf16.xpose.msra.mxu0 0
    %2655 = vmatprep.subr.bf16.mxu0 0
    %2656 = vmatpush1.bf16.xpose.msra.mxu0 0
    %2657 = vmatprep.subr.bf16.mxu0 0
    %2658 = vmatpush1.bf16.xpose.msra.mxu0 0
    %2659 = vmatprep.subr.bf16.mxu0 0
    %2660 = vmatpush1.bf16.xpose.msra.mxu0 %v2643
    %2661 = vmatprep.subr.bf16.mxu0 0
    %2662 = vmatpush2.bf16.xpose.msra.mxu0 0
    %2663 = vmatprep.subr.bf16.mxu0 0
    %2664 = vmatpush2.bf16.xpose.msra.mxu0 0
    %2665 = vmatprep.subr.bf16.mxu0 0
    %2666 = vmatpush2.bf16.xpose.msra.mxu0 0
    %2667 = vmatprep.subr.bf16.mxu0 0
    %2668 = vmatpush2.bf16.xpose.msra.mxu0 0
    %2669 = vmatprep.subr.bf16.mxu0 0
    %2670 = vmatpush2.bf16.xpose.msra.mxu0 0
    %2671 = vmatprep.subr.bf16.mxu0 0
    %2672 = vmatpush2.bf16.xpose.msra.mxu0 0
    %2673 = vmatprep.subr.bf16.mxu0 0
    %2674 = vmatpush2.bf16.xpose.msra.mxu0 0
    %2675 = vmatprep.subr.bf16.mxu0 0
    %2676 = vmatpush2.bf16.xpose.msra.mxu0 0
    %2677 = vmatprep.mubr.bf16.mxu0 0
    %2678 = vmatmul.mubr.bf16.gmra.mxu0 %v2640
    %v2679 = vpop.f32.mrf.mxu0
    %v2680 = vadd.f32 0.0, %v2679
    %v2681 = vpop.f32.mrf.mxu0
    %v2682 = vpop.f32.mrf.mxu0
    %v2683 = vpop.f32.mrf.mxu0
    %2684 = vdwg.mxu0
    %v2685 = vsel %vm324, %v2536, -inf
    %2686 = vmax.xlane.f32.xlu0 %v2685
    %v2687 = vpop.xlane.xlu0 %2686
    %v2688 = vsel %vm324, %v2584, -inf
    %2689 = vmax.xlane.f32.xlu0 %v2688
    %v2690 = vpop.xlane.xlu0 %2689
    %v2691 = vsel %vm324, %v2632, -inf
    %2692 = vmax.xlane.f32.xlu0 %v2691
    %v2693 = vpop.xlane.xlu0 %2692
    %v2694 = vsel %vm324, %v2680, -inf
    %2695 = vmax.xlane.f32.xlu0 %v2694
    %v2696 = vpop.xlane.xlu0 %2695
    %v2697 = vsub.f32 %v2536, %v2687
    %v2698 = vsub.f32 %v2584, %v2690
    %v2699 = vsub.f32 %v2632, %v2693
    %v2700 = vsub.f32 %v2680, %v2696
    %v2701 = vmul.f32 %v2697, 1.442695
    %v2702 = vpow.pop %v2701
    %v2703 = vmul.f32 %v2698, 1.442695
    %v2704 = vpow.pop %v2703
    %v2705 = vmul.f32 %v2699, 1.442695
    %v2706 = vpow.pop %v2705
    %v2707 = vmul.f32 %v2700, 1.442695
    %v2708 = vpow.pop %v2707
    %v2709 = vsel %vm324, %v2702, 0.0
    %2710 = vadd.xlane.f32.xlu0 %v2709
    %v2711 = vpop.xlane.xlu0 %2710
    %v2712 = vsel %vm324, %v2704, 0.0
    %2713 = vadd.xlane.f32.xlu0 %v2712
    %v2714 = vpop.xlane.xlu0 %2713
    %v2715 = vsel %vm324, %v2706, 0.0
    %2716 = vadd.xlane.f32.xlu0 %v2715
    %v2717 = vpop.xlane.xlu0 %2716
    %v2718 = vsel %vm324, %v2708, 0.0
    %2719 = vadd.xlane.f32.xlu0 %v2718
    %v2720 = vpop.xlane.xlu0 %2719
    %v2721 = vrcp.pop %v2711
    %v2722 = vrcp.pop %v2714
    %v2723 = vrcp.pop %v2717
    %v2724 = vrcp.pop %v2720
    %v2725 = vmul.f32 %v2702, %v2721
    %v2726 = vmul.f32 %v2704, %v2722
    %v2727 = vmul.f32 %v2706, %v2723
    %v2728 = vmul.f32 %v2708, %v2724
    %v2729 = vpack.c.bf16 %v2725, %v2725
    %v2730 = vpack.c.bf16 %v2726, %v2726
    %v2731 = vpack.c.bf16 %v2727, %v2727
    %v2732 = vpack.c.bf16 %v2728, %v2728
    %2733 = vrot.lane.b32.xlu0 %v320, 32
    %v2734 = vpop.permute.xlu0 %2733
    %v2736 = vsel %vm324, %v2729, 0
    %v2739 = vsel %vm563, %v2734, 0
    %2741 = vmatprep.subr.bf16.mxu0 0
    %2742 = vmatpush1.bf16.msra.mxu0 0
    %2743 = vmatprep.subr.bf16.mxu0 0
    %2744 = vmatpush1.bf16.msra.mxu0 0
    %2745 = vmatprep.subr.bf16.mxu0 0
    %2746 = vmatpush1.bf16.msra.mxu0 0
    %2747 = vmatprep.subr.bf16.mxu0 0
    %2748 = vmatpush1.bf16.msra.mxu0 0
    %2749 = vmatprep.subr.bf16.mxu0 0
    %2750 = vmatpush1.bf16.msra.mxu0 0
    %2751 = vmatprep.subr.bf16.mxu0 0
    %2752 = vmatpush1.bf16.msra.mxu0 0
    %2753 = vmatprep.subr.bf16.mxu0 0
    %2754 = vmatpush1.bf16.msra.mxu0 0
    %2755 = vmatprep.subr.bf16.mxu0 0
    %2756 = vmatpush1.bf16.msra.mxu0 %v2739
    %2757 = vmatprep.subr.bf16.mxu0 0
    %2758 = vmatpush2.bf16.msra.mxu0 0
    %2759 = vmatprep.subr.bf16.mxu0 0
    %2760 = vmatpush2.bf16.msra.mxu0 0
    %2761 = vmatprep.subr.bf16.mxu0 0
    %2762 = vmatpush2.bf16.msra.mxu0 0
    %2763 = vmatprep.subr.bf16.mxu0 0
    %2764 = vmatpush2.bf16.msra.mxu0 0
    %2765 = vmatprep.subr.bf16.mxu0 0
    %2766 = vmatpush2.bf16.msra.mxu0 0
    %2767 = vmatprep.subr.bf16.mxu0 0
    %2768 = vmatpush2.bf16.msra.mxu0 0
    %2769 = vmatprep.subr.bf16.mxu0 0
    %2770 = vmatpush2.bf16.msra.mxu0 0
    %2771 = vmatprep.subr.bf16.mxu0 0
    %2772 = vmatpush2.bf16.msra.mxu0 0
    %2773 = vmatprep.mubr.bf16.mxu0 0
    %2774 = vmatmul.mubr.bf16.gmra.mxu0 %v2736
    %v2775 = vpop.f32.mrf.mxu0
    %v2776 = vadd.f32 0.0, %v2775
    %v2777 = vpop.f32.mrf.mxu0
    %v2778 = vpop.f32.mrf.mxu0
    %v2779 = vpop.f32.mrf.mxu0
    %2780 = vdwg.mxu0
    %2781 = vrot.lane.b32.xlu0 %v321, 32
    %v2782 = vpop.permute.xlu0 %2781
    %v2784 = vsel %vm324, %v2730, 0
    %v2787 = vsel %vm563, %v2782, 0
    %2789 = vmatprep.subr.bf16.mxu0 0
    %2790 = vmatpush1.bf16.msra.mxu0 0
    %2791 = vmatprep.subr.bf16.mxu0 0
    %2792 = vmatpush1.bf16.msra.mxu0 0
    %2793 = vmatprep.subr.bf16.mxu0 0
    %2794 = vmatpush1.bf16.msra.mxu0 0
    %2795 = vmatprep.subr.bf16.mxu0 0
    %2796 = vmatpush1.bf16.msra.mxu0 0
    %2797 = vmatprep.subr.bf16.mxu0 0
    %2798 = vmatpush1.bf16.msra.mxu0 0
    %2799 = vmatprep.subr.bf16.mxu0 0
    %2800 = vmatpush1.bf16.msra.mxu0 0
    %2801 = vmatprep.subr.bf16.mxu0 0
    %2802 = vmatpush1.bf16.msra.mxu0 0
    %2803 = vmatprep.subr.bf16.mxu0 0
    %2804 = vmatpush1.bf16.msra.mxu0 %v2787
    %2805 = vmatprep.subr.bf16.mxu0 0
    %2806 = vmatpush2.bf16.msra.mxu0 0
    %2807 = vmatprep.subr.bf16.mxu0 0
    %2808 = vmatpush2.bf16.msra.mxu0 0
    %2809 = vmatprep.subr.bf16.mxu0 0
    %2810 = vmatpush2.bf16.msra.mxu0 0
    %2811 = vmatprep.subr.bf16.mxu0 0
    %2812 = vmatpush2.bf16.msra.mxu0 0
    %2813 = vmatprep.subr.bf16.mxu0 0
    %2814 = vmatpush2.bf16.msra.mxu0 0
    %2815 = vmatprep.subr.bf16.mxu0 0
    %2816 = vmatpush2.bf16.msra.mxu0 0
    %2817 = vmatprep.subr.bf16.mxu0 0
    %2818 = vmatpush2.bf16.msra.mxu0 0
    %2819 = vmatprep.subr.bf16.mxu0 0
    %2820 = vmatpush2.bf16.msra.mxu0 0
    %2821 = vmatprep.mubr.bf16.mxu0 0
    %2822 = vmatmul.mubr.bf16.gmra.mxu0 %v2784
    %v2823 = vpop.f32.mrf.mxu0
    %v2824 = vadd.f32 0.0, %v2823
    %v2825 = vpop.f32.mrf.mxu0
    %v2826 = vpop.f32.mrf.mxu0
    %v2827 = vpop.f32.mrf.mxu0
    %2828 = vdwg.mxu0
    %2829 = vrot.lane.b32.xlu0 %v322, 32
    %v2830 = vpop.permute.xlu0 %2829
    %v2832 = vsel %vm324, %v2731, 0
    %v2835 = vsel %vm563, %v2830, 0
    %2837 = vmatprep.subr.bf16.mxu0 0
    %2838 = vmatpush1.bf16.msra.mxu0 0
    %2839 = vmatprep.subr.bf16.mxu0 0
    %2840 = vmatpush1.bf16.msra.mxu0 0
    %2841 = vmatprep.subr.bf16.mxu0 0
    %2842 = vmatpush1.bf16.msra.mxu0 0
    %2843 = vmatprep.subr.bf16.mxu0 0
    %2844 = vmatpush1.bf16.msra.mxu0 0
    %2845 = vmatprep.subr.bf16.mxu0 0
    %2846 = vmatpush1.bf16.msra.mxu0 0
    %2847 = vmatprep.subr.bf16.mxu0 0
    %2848 = vmatpush1.bf16.msra.mxu0 0
    %2849 = vmatprep.subr.bf16.mxu0 0
    %2850 = vmatpush1.bf16.msra.mxu0 0
    %2851 = vmatprep.subr.bf16.mxu0 0
    %2852 = vmatpush1.bf16.msra.mxu0 %v2835
    %2853 = vmatprep.subr.bf16.mxu0 0
    %2854 = vmatpush2.bf16.msra.mxu0 0
    %2855 = vmatprep.subr.bf16.mxu0 0
    %2856 = vmatpush2.bf16.msra.mxu0 0
    %2857 = vmatprep.subr.bf16.mxu0 0
    %2858 = vmatpush2.bf16.msra.mxu0 0
    %2859 = vmatprep.subr.bf16.mxu0 0
    %2860 = vmatpush2.bf16.msra.mxu0 0
    %2861 = vmatprep.subr.bf16.mxu0 0
    %2862 = vmatpush2.bf16.msra.mxu0 0
    %2863 = vmatprep.subr.bf16.mxu0 0
    %2864 = vmatpush2.bf16.msra.mxu0 0
    %2865 = vmatprep.subr.bf16.mxu0 0
    %2866 = vmatpush2.bf16.msra.mxu0 0
    %2867 = vmatprep.subr.bf16.mxu0 0
    %2868 = vmatpush2.bf16.msra.mxu0 0
    %2869 = vmatprep.mubr.bf16.mxu0 0
    %2870 = vmatmul.mubr.bf16.gmra.mxu0 %v2832
    %v2871 = vpop.f32.mrf.mxu0
    %v2872 = vadd.f32 0.0, %v2871
    %v2873 = vpop.f32.mrf.mxu0
    %v2874 = vpop.f32.mrf.mxu0
    %v2875 = vpop.f32.mrf.mxu0
    %2876 = vdwg.mxu0
    %2877 = vrot.lane.b32.xlu0 %v323, 32
    %v2878 = vpop.permute.xlu0 %2877
    %v2880 = vsel %vm324, %v2732, 0
    %v2883 = vsel %vm563, %v2878, 0
    %2885 = vmatprep.subr.bf16.mxu0 0
    %2886 = vmatpush1.bf16.msra.mxu0 0
    %2887 = vmatprep.subr.bf16.mxu0 0
    %2888 = vmatpush1.bf16.msra.mxu0 0
    %2889 = vmatprep.subr.bf16.mxu0 0
    %2890 = vmatpush1.bf16.msra.mxu0 0
    %2891 = vmatprep.subr.bf16.mxu0 0
    %2892 = vmatpush1.bf16.msra.mxu0 0
    %2893 = vmatprep.subr.bf16.mxu0 0
    %2894 = vmatpush1.bf16.msra.mxu0 0
    %2895 = vmatprep.subr.bf16.mxu0 0
    %2896 = vmatpush1.bf16.msra.mxu0 0
    %2897 = vmatprep.subr.bf16.mxu0 0
    %2898 = vmatpush1.bf16.msra.mxu0 0
    %2899 = vmatprep.subr.bf16.mxu0 0
    %2900 = vmatpush1.bf16.msra.mxu0 %v2883
    %2901 = vmatprep.subr.bf16.mxu0 0
    %2902 = vmatpush2.bf16.msra.mxu0 0
    %2903 = vmatprep.subr.bf16.mxu0 0
    %2904 = vmatpush2.bf16.msra.mxu0 0
    %2905 = vmatprep.subr.bf16.mxu0 0
    %2906 = vmatpush2.bf16.msra.mxu0 0
    %2907 = vmatprep.subr.bf16.mxu0 0
    %2908 = vmatpush2.bf16.msra.mxu0 0
    %2909 = vmatprep.subr.bf16.mxu0 0
    %2910 = vmatpush2.bf16.msra.mxu0 0
    %2911 = vmatprep.subr.bf16.mxu0 0
    %2912 = vmatpush2.bf16.msra.mxu0 0
    %2913 = vmatprep.subr.bf16.mxu0 0
    %2914 = vmatpush2.bf16.msra.mxu0 0
    %2915 = vmatprep.subr.bf16.mxu0 0
    %2916 = vmatpush2.bf16.msra.mxu0 0
    %2917 = vmatprep.mubr.bf16.mxu0 0
    %2918 = vmatmul.mubr.bf16.gmra.mxu0 %v2880
    %v2919 = vpop.f32.mrf.mxu0
    %v2920 = vadd.f32 0.0, %v2919
    %v2921 = vpop.f32.mrf.mxu0
    %v2922 = vpop.f32.mrf.mxu0
    %v2923 = vpop.f32.mrf.mxu0
    %2924 = vdwg.mxu0
    %v2925 = vpack.c.bf16 %v2824, %v2776
    %v2926 = vpack.c.bf16 %v2920, %v2872
    %v2927 = vld [vmem:[#allocation10] sm:$0xf]
    %v2929 = vsel %vm324, %v2925, 0
    %v2932 = vsel %vm324, %v2926, 0
    %v2935 = vsel %vm563, %v2927, 0
    %2937 = vmatprep.subr.bf16.mxu0 0
    %2938 = vmatpush1.bf16.msra.mxu0 0
    %2939 = vmatprep.subr.bf16.mxu0 0
    %2940 = vmatpush1.bf16.msra.mxu0 0
    %2941 = vmatprep.subr.bf16.mxu0 0
    %2942 = vmatpush1.bf16.msra.mxu0 0
    %2943 = vmatprep.subr.bf16.mxu0 0
    %2944 = vmatpush1.bf16.msra.mxu0 0
    %2945 = vmatprep.subr.bf16.mxu0 0
    %2946 = vmatpush1.bf16.msra.mxu0 0
    %2947 = vmatprep.subr.bf16.mxu0 0
    %2948 = vmatpush1.bf16.msra.mxu0 0
    %2949 = vmatprep.subr.bf16.mxu0 0
    %2950 = vmatpush1.bf16.msra.mxu0 0
    %2951 = vmatprep.subr.bf16.mxu0 0
    %2952 = vmatpush1.bf16.msra.mxu0 %v2935
    %2953 = vmatprep.subr.bf16.mxu0 0
    %2954 = vmatpush2.bf16.msra.mxu0 0
    %2955 = vmatprep.subr.bf16.mxu0 0
    %2956 = vmatpush2.bf16.msra.mxu0 0
    %2957 = vmatprep.subr.bf16.mxu0 0
    %2958 = vmatpush2.bf16.msra.mxu0 0
    %2959 = vmatprep.subr.bf16.mxu0 0
    %2960 = vmatpush2.bf16.msra.mxu0 0
    %2961 = vmatprep.subr.bf16.mxu0 0
    %2962 = vmatpush2.bf16.msra.mxu0 0
    %2963 = vmatprep.subr.bf16.mxu0 0
    %2964 = vmatpush2.bf16.msra.mxu0 0
    %2965 = vmatprep.subr.bf16.mxu0 0
    %2966 = vmatpush2.bf16.msra.mxu0 0
    %2967 = vmatprep.subr.bf16.mxu0 0
    %2968 = vmatpush2.bf16.msra.mxu0 0
    %2969 = vmatprep.mubr.bf16.mxu0 0
    %2970 = vmatmul.mubr.bf16.gmra.mxu0 %v2929
    %v2971 = vpop.f32.mrf.mxu0
    %v2972 = vadd.f32 0.0, %v2971
    %v2973 = vpop.f32.mrf.mxu0
    %v2974 = vpop.f32.mrf.mxu0
    %v2975 = vadd.f32 0.0, %v2974
    %v2976 = vpop.f32.mrf.mxu0
    %2977 = vmatprep.mubr.bf16.mxu0 0
    %2978 = vmatmul.mubr.bf16.gmra.mxu0 %v2932
    %v2979 = vpop.f32.mrf.mxu0
    %v2980 = vadd.f32 0.0, %v2979
    %v2981 = vpop.f32.mrf.mxu0
    %v2982 = vpop.f32.mrf.mxu0
    %v2983 = vadd.f32 0.0, %v2982
    %v2984 = vpop.f32.mrf.mxu0
    %2985 = vdwg.mxu0
    %v2986 = vadd.f32 %v2412, %v2972
    %v2987 = vadd.f32 %v2413, %v2975
    %v2988 = vadd.f32 %v2414, %v2980
    %v2989 = vadd.f32 %v2415, %v2983
    %2991 = vrot.lane.b32.xlu0 %v2489, 120
    %v2992 = vpop.permute.xlu0 %2991
    %2993 = vrot.lane.b32.xlu0 %v320, 56
    %v2994 = vpop.permute.xlu0 %2993
    %v2996 = vsel %vm324, %v2992, 0
    %v2999 = vsel %vm324, %v2994, 0
    %3001 = vmatprep.subr.bf16.mxu0 0
    %3002 = vmatpush1.bf16.xpose.msra.mxu0 0
    %3003 = vmatprep.subr.bf16.mxu0 0
    %3004 = vmatpush1.bf16.xpose.msra.mxu0 0
    %3005 = vmatprep.subr.bf16.mxu0 0
    %3006 = vmatpush1.bf16.xpose.msra.mxu0 0
    %3007 = vmatprep.subr.bf16.mxu0 0
    %3008 = vmatpush1.bf16.xpose.msra.mxu0 0
    %3009 = vmatprep.subr.bf16.mxu0 0
    %3010 = vmatpush1.bf16.xpose.msra.mxu0 0
    %3011 = vmatprep.subr.bf16.mxu0 0
    %3012 = vmatpush1.bf16.xpose.msra.mxu0 0
    %3013 = vmatprep.subr.bf16.mxu0 0
    %3014 = vmatpush1.bf16.xpose.msra.mxu0 0
    %3015 = vmatprep.subr.bf16.mxu0 0
    %3016 = vmatpush1.bf16.xpose.msra.mxu0 %v2999
    %3017 = vmatprep.subr.bf16.mxu0 0
    %3018 = vmatpush2.bf16.xpose.msra.mxu0 0
    %3019 = vmatprep.subr.bf16.mxu0 0
    %3020 = vmatpush2.bf16.xpose.msra.mxu0 0
    %3021 = vmatprep.subr.bf16.mxu0 0
    %3022 = vmatpush2.bf16.xpose.msra.mxu0 0
    %3023 = vmatprep.subr.bf16.mxu0 0
    %3024 = vmatpush2.bf16.xpose.msra.mxu0 0
    %3025 = vmatprep.subr.bf16.mxu0 0
    %3026 = vmatpush2.bf16.xpose.msra.mxu0 0
    %3027 = vmatprep.subr.bf16.mxu0 0
    %3028 = vmatpush2.bf16.xpose.msra.mxu0 0
    %3029 = vmatprep.subr.bf16.mxu0 0
    %3030 = vmatpush2.bf16.xpose.msra.mxu0 0
    %3031 = vmatprep.subr.bf16.mxu0 0
    %3032 = vmatpush2.bf16.xpose.msra.mxu0 0
    %3033 = vmatprep.mubr.bf16.mxu0 0
    %3034 = vmatmul.mubr.bf16.gmra.mxu0 %v2996
    %v3035 = vpop.f32.mrf.mxu0
    %v3036 = vadd.f32 0.0, %v3035
    %v3037 = vpop.f32.mrf.mxu0
    %v3038 = vpop.f32.mrf.mxu0
    %v3039 = vpop.f32.mrf.mxu0
    %3040 = vdwg.mxu0
    %3042 = vrot.lane.b32.xlu0 %v2490, 120
    %v3043 = vpop.permute.xlu0 %3042
    %3044 = vrot.lane.b32.xlu0 %v321, 56
    %v3045 = vpop.permute.xlu0 %3044
    %v3047 = vsel %vm324, %v3043, 0
    %v3050 = vsel %vm324, %v3045, 0
    %3052 = vmatprep.subr.bf16.mxu0 0
    %3053 = vmatpush1.bf16.xpose.msra.mxu0 0
    %3054 = vmatprep.subr.bf16.mxu0 0
    %3055 = vmatpush1.bf16.xpose.msra.mxu0 0
    %3056 = vmatprep.subr.bf16.mxu0 0
    %3057 = vmatpush1.bf16.xpose.msra.mxu0 0
    %3058 = vmatprep.subr.bf16.mxu0 0
    %3059 = vmatpush1.bf16.xpose.msra.mxu0 0
    %3060 = vmatprep.subr.bf16.mxu0 0
    %3061 = vmatpush1.bf16.xpose.msra.mxu0 0
    %3062 = vmatprep.subr.bf16.mxu0 0
    %3063 = vmatpush1.bf16.xpose.msra.mxu0 0
    %3064 = vmatprep.subr.bf16.mxu0 0
    %3065 = vmatpush1.bf16.xpose.msra.mxu0 0
    %3066 = vmatprep.subr.bf16.mxu0 0
    %3067 = vmatpush1.bf16.xpose.msra.mxu0 %v3050
    %3068 = vmatprep.subr.bf16.mxu0 0
    %3069 = vmatpush2.bf16.xpose.msra.mxu0 0
    %3070 = vmatprep.subr.bf16.mxu0 0
    %3071 = vmatpush2.bf16.xpose.msra.mxu0 0
    %3072 = vmatprep.subr.bf16.mxu0 0
    %3073 = vmatpush2.bf16.xpose.msra.mxu0 0
    %3074 = vmatprep.subr.bf16.mxu0 0
    %3075 = vmatpush2.bf16.xpose.msra.mxu0 0
    %3076 = vmatprep.subr.bf16.mxu0 0
    %3077 = vmatpush2.bf16.xpose.msra.mxu0 0
    %3078 = vmatprep.subr.bf16.mxu0 0
    %3079 = vmatpush2.bf16.xpose.msra.mxu0 0
    %3080 = vmatprep.subr.bf16.mxu0 0
    %3081 = vmatpush2.bf16.xpose.msra.mxu0 0
    %3082 = vmatprep.subr.bf16.mxu0 0
    %3083 = vmatpush2.bf16.xpose.msra.mxu0 0
    %3084 = vmatprep.mubr.bf16.mxu0 0
    %3085 = vmatmul.mubr.bf16.gmra.mxu0 %v3047
    %v3086 = vpop.f32.mrf.mxu0
    %v3087 = vadd.f32 0.0, %v3086
    %v3088 = vpop.f32.mrf.mxu0
    %v3089 = vpop.f32.mrf.mxu0
    %v3090 = vpop.f32.mrf.mxu0
    %3091 = vdwg.mxu0
    %3093 = vrot.lane.b32.xlu0 %v2491, 120
    %v3094 = vpop.permute.xlu0 %3093
    %3095 = vrot.lane.b32.xlu0 %v322, 56
    %v3096 = vpop.permute.xlu0 %3095
    %v3098 = vsel %vm324, %v3094, 0
    %v3101 = vsel %vm324, %v3096, 0
    %3103 = vmatprep.subr.bf16.mxu0 0
    %3104 = vmatpush1.bf16.xpose.msra.mxu0 0
    %3105 = vmatprep.subr.bf16.mxu0 0
    %3106 = vmatpush1.bf16.xpose.msra.mxu0 0
    %3107 = vmatprep.subr.bf16.mxu0 0
    %3108 = vmatpush1.bf16.xpose.msra.mxu0 0
    %3109 = vmatprep.subr.bf16.mxu0 0
    %3110 = vmatpush1.bf16.xpose.msra.mxu0 0
    %3111 = vmatprep.subr.bf16.mxu0 0
    %3112 = vmatpush1.bf16.xpose.msra.mxu0 0
    %3113 = vmatprep.subr.bf16.mxu0 0
    %3114 = vmatpush1.bf16.xpose.msra.mxu0 0
    %3115 = vmatprep.subr.bf16.mxu0 0
    %3116 = vmatpush1.bf16.xpose.msra.mxu0 0
    %3117 = vmatprep.subr.bf16.mxu0 0
    %3118 = vmatpush1.bf16.xpose.msra.mxu0 %v3101
    %3119 = vmatprep.subr.bf16.mxu0 0
    %3120 = vmatpush2.bf16.xpose.msra.mxu0 0
    %3121 = vmatprep.subr.bf16.mxu0 0
    %3122 = vmatpush2.bf16.xpose.msra.mxu0 0
    %3123 = vmatprep.subr.bf16.mxu0 0
    %3124 = vmatpush2.bf16.xpose.msra.mxu0 0
    %3125 = vmatprep.subr.bf16.mxu0 0
    %3126 = vmatpush2.bf16.xpose.msra.mxu0 0
    %3127 = vmatprep.subr.bf16.mxu0 0
    %3128 = vmatpush2.bf16.xpose.msra.mxu0 0
    %3129 = vmatprep.subr.bf16.mxu0 0
    %3130 = vmatpush2.bf16.xpose.msra.mxu0 0
    %3131 = vmatprep.subr.bf16.mxu0 0
    %3132 = vmatpush2.bf16.xpose.msra.mxu0 0
    %3133 = vmatprep.subr.bf16.mxu0 0
    %3134 = vmatpush2.bf16.xpose.msra.mxu0 0
    %3135 = vmatprep.mubr.bf16.mxu0 0
    %3136 = vmatmul.mubr.bf16.gmra.mxu0 %v3098
    %v3137 = vpop.f32.mrf.mxu0
    %v3138 = vadd.f32 0.0, %v3137
    %v3139 = vpop.f32.mrf.mxu0
    %v3140 = vpop.f32.mrf.mxu0
    %v3141 = vpop.f32.mrf.mxu0
    %3142 = vdwg.mxu0
    %3144 = vrot.lane.b32.xlu0 %v2492, 120
    %v3145 = vpop.permute.xlu0 %3144
    %3146 = vrot.lane.b32.xlu0 %v323, 56
    %v3147 = vpop.permute.xlu0 %3146
    %v3149 = vsel %vm324, %v3145, 0
    %v3152 = vsel %vm324, %v3147, 0
    %3154 = vmatprep.subr.bf16.mxu0 0
    %3155 = vmatpush1.bf16.xpose.msra.mxu0 0
    %3156 = vmatprep.subr.bf16.mxu0 0
    %3157 = vmatpush1.bf16.xpose.msra.mxu0 0
    %3158 = vmatprep.subr.bf16.mxu0 0
    %3159 = vmatpush1.bf16.xpose.msra.mxu0 0
    %3160 = vmatprep.subr.bf16.mxu0 0
    %3161 = vmatpush1.bf16.xpose.msra.mxu0 0
    %3162 = vmatprep.subr.bf16.mxu0 0
    %3163 = vmatpush1.bf16.xpose.msra.mxu0 0
    %3164 = vmatprep.subr.bf16.mxu0 0
    %3165 = vmatpush1.bf16.xpose.msra.mxu0 0
    %3166 = vmatprep.subr.bf16.mxu0 0
    %3167 = vmatpush1.bf16.xpose.msra.mxu0 0
    %3168 = vmatprep.subr.bf16.mxu0 0
    %3169 = vmatpush1.bf16.xpose.msra.mxu0 %v3152
    %3170 = vmatprep.subr.bf16.mxu0 0
    %3171 = vmatpush2.bf16.xpose.msra.mxu0 0
    %3172 = vmatprep.subr.bf16.mxu0 0
    %3173 = vmatpush2.bf16.xpose.msra.mxu0 0
    %3174 = vmatprep.subr.bf16.mxu0 0
    %3175 = vmatpush2.bf16.xpose.msra.mxu0 0
    %3176 = vmatprep.subr.bf16.mxu0 0
    %3177 = vmatpush2.bf16.xpose.msra.mxu0 0
    %3178 = vmatprep.subr.bf16.mxu0 0
    %3179 = vmatpush2.bf16.xpose.msra.mxu0 0
    %3180 = vmatprep.subr.bf16.mxu0 0
    %3181 = vmatpush2.bf16.xpose.msra.mxu0 0
    %3182 = vmatprep.subr.bf16.mxu0 0
    %3183 = vmatpush2.bf16.xpose.msra.mxu0 0
    %3184 = vmatprep.subr.bf16.mxu0 0
    %3185 = vmatpush2.bf16.xpose.msra.mxu0 0
    %3186 = vmatprep.mubr.bf16.mxu0 0
    %3187 = vmatmul.mubr.bf16.gmra.mxu0 %v3149
    %v3188 = vpop.f32.mrf.mxu0
    %v3189 = vadd.f32 0.0, %v3188
    %v3190 = vpop.f32.mrf.mxu0
    %v3191 = vpop.f32.mrf.mxu0
    %v3192 = vpop.f32.mrf.mxu0
    %3193 = vdwg.mxu0
    %v3194 = vsel %vm324, %v3036, -inf
    %3195 = vmax.xlane.f32.xlu0 %v3194
    %v3196 = vpop.xlane.xlu0 %3195
    %v3197 = vsel %vm324, %v3087, -inf
    %3198 = vmax.xlane.f32.xlu0 %v3197
    %v3199 = vpop.xlane.xlu0 %3198
    %v3200 = vsel %vm324, %v3138, -inf
    %3201 = vmax.xlane.f32.xlu0 %v3200
    %v3202 = vpop.xlane.xlu0 %3201
    %v3203 = vsel %vm324, %v3189, -inf
    %3204 = vmax.xlane.f32.xlu0 %v3203
    %v3205 = vpop.xlane.xlu0 %3204
    %v3206 = vsub.f32 %v3036, %v3196
    %v3207 = vsub.f32 %v3087, %v3199
    %v3208 = vsub.f32 %v3138, %v3202
    %v3209 = vsub.f32 %v3189, %v3205
    %v3210 = vmul.f32 %v3206, 1.442695
    %v3211 = vpow.pop %v3210
    %v3212 = vmul.f32 %v3207, 1.442695
    %v3213 = vpow.pop %v3212
    %v3214 = vmul.f32 %v3208, 1.442695
    %v3215 = vpow.pop %v3214
    %v3216 = vmul.f32 %v3209, 1.442695
    %v3217 = vpow.pop %v3216
    %v3218 = vsel %vm324, %v3211, 0.0
    %3219 = vadd.xlane.f32.xlu0 %v3218
    %v3220 = vpop.xlane.xlu0 %3219
    %v3221 = vsel %vm324, %v3213, 0.0
    %3222 = vadd.xlane.f32.xlu0 %v3221
    %v3223 = vpop.xlane.xlu0 %3222
    %v3224 = vsel %vm324, %v3215, 0.0
    %3225 = vadd.xlane.f32.xlu0 %v3224
    %v3226 = vpop.xlane.xlu0 %3225
    %v3227 = vsel %vm324, %v3217, 0.0
    %3228 = vadd.xlane.f32.xlu0 %v3227
    %v3229 = vpop.xlane.xlu0 %3228
    %v3230 = vrcp.pop %v3220
    %v3231 = vrcp.pop %v3223
    %v3232 = vrcp.pop %v3226
    %v3233 = vrcp.pop %v3229
    %v3234 = vmul.f32 %v3211, %v3230
    %v3235 = vmul.f32 %v3213, %v3231
    %v3236 = vmul.f32 %v3215, %v3232
    %v3237 = vmul.f32 %v3217, %v3233
    %v3238 = vpack.c.bf16 %v3234, %v3234
    %v3239 = vpack.c.bf16 %v3235, %v3235
    %v3240 = vpack.c.bf16 %v3236, %v3236
    %v3241 = vpack.c.bf16 %v3237, %v3237
    %3242 = vrot.lane.b32.xlu0 %v320, 24
    %v3243 = vpop.permute.xlu0 %3242
    %v3245 = vsel %vm324, %v3238, 0
    %v3248 = vsel %vm563, %v3243, 0
    %3250 = vmatprep.subr.bf16.mxu0 0
    %3251 = vmatpush1.bf16.msra.mxu0 0
    %3252 = vmatprep.subr.bf16.mxu0 0
    %3253 = vmatpush1.bf16.msra.mxu0 0
    %3254 = vmatprep.subr.bf16.mxu0 0
    %3255 = vmatpush1.bf16.msra.mxu0 0
    %3256 = vmatprep.subr.bf16.mxu0 0
    %3257 = vmatpush1.bf16.msra.mxu0 0
    %3258 = vmatprep.subr.bf16.mxu0 0
    %3259 = vmatpush1.bf16.msra.mxu0 0
    %3260 = vmatprep.subr.bf16.mxu0 0
    %3261 = vmatpush1.bf16.msra.mxu0 0
    %3262 = vmatprep.subr.bf16.mxu0 0
    %3263 = vmatpush1.bf16.msra.mxu0 0
    %3264 = vmatprep.subr.bf16.mxu0 0
    %3265 = vmatpush1.bf16.msra.mxu0 %v3248
    %3266 = vmatprep.subr.bf16.mxu0 0
    %3267 = vmatpush2.bf16.msra.mxu0 0
    %3268 = vmatprep.subr.bf16.mxu0 0
    %3269 = vmatpush2.bf16.msra.mxu0 0
    %3270 = vmatprep.subr.bf16.mxu0 0
    %3271 = vmatpush2.bf16.msra.mxu0 0
    %3272 = vmatprep.subr.bf16.mxu0 0
    %3273 = vmatpush2.bf16.msra.mxu0 0
    %3274 = vmatprep.subr.bf16.mxu0 0
    %3275 = vmatpush2.bf16.msra.mxu0 0
    %3276 = vmatprep.subr.bf16.mxu0 0
    %3277 = vmatpush2.bf16.msra.mxu0 0
    %3278 = vmatprep.subr.bf16.mxu0 0
    %3279 = vmatpush2.bf16.msra.mxu0 0
    %3280 = vmatprep.subr.bf16.mxu0 0
    %3281 = vmatpush2.bf16.msra.mxu0 0
    %3282 = vmatprep.mubr.bf16.mxu0 0
    %3283 = vmatmul.mubr.bf16.gmra.mxu0 %v3245
    %v3284 = vpop.f32.mrf.mxu0
    %v3285 = vadd.f32 0.0, %v3284
    %v3286 = vpop.f32.mrf.mxu0
    %v3287 = vpop.f32.mrf.mxu0
    %v3288 = vpop.f32.mrf.mxu0
    %3289 = vdwg.mxu0
    %3290 = vrot.lane.b32.xlu0 %v321, 24
    %v3291 = vpop.permute.xlu0 %3290
    %v3293 = vsel %vm324, %v3239, 0
    %v3296 = vsel %vm563, %v3291, 0
    %3298 = vmatprep.subr.bf16.mxu0 0
    %3299 = vmatpush1.bf16.msra.mxu0 0
    %3300 = vmatprep.subr.bf16.mxu0 0
    %3301 = vmatpush1.bf16.msra.mxu0 0
    %3302 = vmatprep.subr.bf16.mxu0 0
    %3303 = vmatpush1.bf16.msra.mxu0 0
    %3304 = vmatprep.subr.bf16.mxu0 0
    %3305 = vmatpush1.bf16.msra.mxu0 0
    %3306 = vmatprep.subr.bf16.mxu0 0
    %3307 = vmatpush1.bf16.msra.mxu0 0
    %3308 = vmatprep.subr.bf16.mxu0 0
    %3309 = vmatpush1.bf16.msra.mxu0 0
    %3310 = vmatprep.subr.bf16.mxu0 0
    %3311 = vmatpush1.bf16.msra.mxu0 0
    %3312 = vmatprep.subr.bf16.mxu0 0
    %3313 = vmatpush1.bf16.msra.mxu0 %v3296
    %3314 = vmatprep.subr.bf16.mxu0 0
    %3315 = vmatpush2.bf16.msra.mxu0 0
    %3316 = vmatprep.subr.bf16.mxu0 0
    %3317 = vmatpush2.bf16.msra.mxu0 0
    %3318 = vmatprep.subr.bf16.mxu0 0
    %3319 = vmatpush2.bf16.msra.mxu0 0
    %3320 = vmatprep.subr.bf16.mxu0 0
    %3321 = vmatpush2.bf16.msra.mxu0 0
    %3322 = vmatprep.subr.bf16.mxu0 0
    %3323 = vmatpush2.bf16.msra.mxu0 0
    %3324 = vmatprep.subr.bf16.mxu0 0
    %3325 = vmatpush2.bf16.msra.mxu0 0
    %3326 = vmatprep.subr.bf16.mxu0 0
    %3327 = vmatpush2.bf16.msra.mxu0 0
    %3328 = vmatprep.subr.bf16.mxu0 0
    %3329 = vmatpush2.bf16.msra.mxu0 0
    %3330 = vmatprep.mubr.bf16.mxu0 0
    %3331 = vmatmul.mubr.bf16.gmra.mxu0 %v3293
    %v3332 = vpop.f32.mrf.mxu0
    %v3333 = vadd.f32 0.0, %v3332
    %v3334 = vpop.f32.mrf.mxu0
    %v3335 = vpop.f32.mrf.mxu0
    %v3336 = vpop.f32.mrf.mxu0
    %3337 = vdwg.mxu0
    %3338 = vrot.lane.b32.xlu0 %v322, 24
    %v3339 = vpop.permute.xlu0 %3338
    %v3341 = vsel %vm324, %v3240, 0
    %v3344 = vsel %vm563, %v3339, 0
    %3346 = vmatprep.subr.bf16.mxu0 0
    %3347 = vmatpush1.bf16.msra.mxu0 0
    %3348 = vmatprep.subr.bf16.mxu0 0
    %3349 = vmatpush1.bf16.msra.mxu0 0
    %3350 = vmatprep.subr.bf16.mxu0 0
    %3351 = vmatpush1.bf16.msra.mxu0 0
    %3352 = vmatprep.subr.bf16.mxu0 0
    %3353 = vmatpush1.bf16.msra.mxu0 0
    %3354 = vmatprep.subr.bf16.mxu0 0
    %3355 = vmatpush1.bf16.msra.mxu0 0
    %3356 = vmatprep.subr.bf16.mxu0 0
    %3357 = vmatpush1.bf16.msra.mxu0 0
    %3358 = vmatprep.subr.bf16.mxu0 0
    %3359 = vmatpush1.bf16.msra.mxu0 0
    %3360 = vmatprep.subr.bf16.mxu0 0
    %3361 = vmatpush1.bf16.msra.mxu0 %v3344
    %3362 = vmatprep.subr.bf16.mxu0 0
    %3363 = vmatpush2.bf16.msra.mxu0 0
    %3364 = vmatprep.subr.bf16.mxu0 0
    %3365 = vmatpush2.bf16.msra.mxu0 0
    %3366 = vmatprep.subr.bf16.mxu0 0
    %3367 = vmatpush2.bf16.msra.mxu0 0
    %3368 = vmatprep.subr.bf16.mxu0 0
    %3369 = vmatpush2.bf16.msra.mxu0 0
    %3370 = vmatprep.subr.bf16.mxu0 0
    %3371 = vmatpush2.bf16.msra.mxu0 0
    %3372 = vmatprep.subr.bf16.mxu0 0
    %3373 = vmatpush2.bf16.msra.mxu0 0
    %3374 = vmatprep.subr.bf16.mxu0 0
    %3375 = vmatpush2.bf16.msra.mxu0 0
    %3376 = vmatprep.subr.bf16.mxu0 0
    %3377 = vmatpush2.bf16.msra.mxu0 0
    %3378 = vmatprep.mubr.bf16.mxu0 0
    %3379 = vmatmul.mubr.bf16.gmra.mxu0 %v3341
    %v3380 = vpop.f32.mrf.mxu0
    %v3381 = vadd.f32 0.0, %v3380
    %v3382 = vpop.f32.mrf.mxu0
    %v3383 = vpop.f32.mrf.mxu0
    %v3384 = vpop.f32.mrf.mxu0
    %3385 = vdwg.mxu0
    %3386 = vrot.lane.b32.xlu0 %v323, 24
    %v3387 = vpop.permute.xlu0 %3386
    %v3389 = vsel %vm324, %v3241, 0
    %v3392 = vsel %vm563, %v3387, 0
    %3394 = vmatprep.subr.bf16.mxu0 0
    %3395 = vmatpush1.bf16.msra.mxu0 0
    %3396 = vmatprep.subr.bf16.mxu0 0
    %3397 = vmatpush1.bf16.msra.mxu0 0
    %3398 = vmatprep.subr.bf16.mxu0 0
    %3399 = vmatpush1.bf16.msra.mxu0 0
    %3400 = vmatprep.subr.bf16.mxu0 0
    %3401 = vmatpush1.bf16.msra.mxu0 0
    %3402 = vmatprep.subr.bf16.mxu0 0
    %3403 = vmatpush1.bf16.msra.mxu0 0
    %3404 = vmatprep.subr.bf16.mxu0 0
    %3405 = vmatpush1.bf16.msra.mxu0 0
    %3406 = vmatprep.subr.bf16.mxu0 0
    %3407 = vmatpush1.bf16.msra.mxu0 0
    %3408 = vmatprep.subr.bf16.mxu0 0
    %3409 = vmatpush1.bf16.msra.mxu0 %v3392
    %3410 = vmatprep.subr.bf16.mxu0 0
    %3411 = vmatpush2.bf16.msra.mxu0 0
    %3412 = vmatprep.subr.bf16.mxu0 0
    %3413 = vmatpush2.bf16.msra.mxu0 0
    %3414 = vmatprep.subr.bf16.mxu0 0
    %3415 = vmatpush2.bf16.msra.mxu0 0
    %3416 = vmatprep.subr.bf16.mxu0 0
    %3417 = vmatpush2.bf16.msra.mxu0 0
    %3418 = vmatprep.subr.bf16.mxu0 0
    %3419 = vmatpush2.bf16.msra.mxu0 0
    %3420 = vmatprep.subr.bf16.mxu0 0
    %3421 = vmatpush2.bf16.msra.mxu0 0
    %3422 = vmatprep.subr.bf16.mxu0 0
    %3423 = vmatpush2.bf16.msra.mxu0 0
    %3424 = vmatprep.subr.bf16.mxu0 0
    %3425 = vmatpush2.bf16.msra.mxu0 0
    %3426 = vmatprep.mubr.bf16.mxu0 0
    %3427 = vmatmul.mubr.bf16.gmra.mxu0 %v3389
    %v3428 = vpop.f32.mrf.mxu0
    %v3429 = vadd.f32 0.0, %v3428
    %v3430 = vpop.f32.mrf.mxu0
    %v3431 = vpop.f32.mrf.mxu0
    %v3432 = vpop.f32.mrf.mxu0
    %3433 = vdwg.mxu0
    %v3434 = vpack.c.bf16 %v3333, %v3285
    %v3435 = vpack.c.bf16 %v3429, %v3381
    %s3436 = scalar_lea.vmem [#allocation10], 4
    %v3437 = vld [vmem:[%s3436] sm:$0xf]
    %v3439 = vsel %vm324, %v3434, 0
    %v3442 = vsel %vm324, %v3435, 0
    %v3445 = vsel %vm563, %v3437, 0
    %3447 = vmatprep.subr.bf16.mxu0 0
    %3448 = vmatpush1.bf16.msra.mxu0 0
    %3449 = vmatprep.subr.bf16.mxu0 0
    %3450 = vmatpush1.bf16.msra.mxu0 0
    %3451 = vmatprep.subr.bf16.mxu0 0
    %3452 = vmatpush1.bf16.msra.mxu0 0
    %3453 = vmatprep.subr.bf16.mxu0 0
    %3454 = vmatpush1.bf16.msra.mxu0 0
    %3455 = vmatprep.subr.bf16.mxu0 0
    %3456 = vmatpush1.bf16.msra.mxu0 0
    %3457 = vmatprep.subr.bf16.mxu0 0
    %3458 = vmatpush1.bf16.msra.mxu0 0
    %3459 = vmatprep.subr.bf16.mxu0 0
    %3460 = vmatpush1.bf16.msra.mxu0 0
    %3461 = vmatprep.subr.bf16.mxu0 0
    %3462 = vmatpush1.bf16.msra.mxu0 %v3445
    %3463 = vmatprep.subr.bf16.mxu0 0
    %3464 = vmatpush2.bf16.msra.mxu0 0
    %3465 = vmatprep.subr.bf16.mxu0 0
    %3466 = vmatpush2.bf16.msra.mxu0 0
    %3467 = vmatprep.subr.bf16.mxu0 0
    %3468 = vmatpush2.bf16.msra.mxu0 0
    %3469 = vmatprep.subr.bf16.mxu0 0
    %3470 = vmatpush2.bf16.msra.mxu0 0
    %3471 = vmatprep.subr.bf16.mxu0 0
    %3472 = vmatpush2.bf16.msra.mxu0 0
    %3473 = vmatprep.subr.bf16.mxu0 0
    %3474 = vmatpush2.bf16.msra.mxu0 0
    %3475 = vmatprep.subr.bf16.mxu0 0
    %3476 = vmatpush2.bf16.msra.mxu0 0
    %3477 = vmatprep.subr.bf16.mxu0 0
    %3478 = vmatpush2.bf16.msra.mxu0 0
    %3479 = vmatprep.mubr.bf16.mxu0 0
    %3480 = vmatmul.mubr.bf16.gmra.mxu0 %v3439
    %v3481 = vpop.f32.mrf.mxu0
    %v3482 = vadd.f32 0.0, %v3481
    %v3483 = vpop.f32.mrf.mxu0
    %v3484 = vpop.f32.mrf.mxu0
    %v3485 = vadd.f32 0.0, %v3484
    %v3486 = vpop.f32.mrf.mxu0
    %3487 = vmatprep.mubr.bf16.mxu0 0
    %3488 = vmatmul.mubr.bf16.gmra.mxu0 %v3442
    %v3489 = vpop.f32.mrf.mxu0
    %v3490 = vadd.f32 0.0, %v3489
    %v3491 = vpop.f32.mrf.mxu0
    %v3492 = vpop.f32.mrf.mxu0
    %v3493 = vadd.f32 0.0, %v3492
    %v3494 = vpop.f32.mrf.mxu0
    %3495 = vdwg.mxu0
    %v3496 = vadd.f32 %v2986, %v3482
    %v3497 = vadd.f32 %v2987, %v3485
    %v3498 = vadd.f32 %v2988, %v3490
    %v3499 = vadd.f32 %v2989, %v3493
    %3500 = vrot.lane.b32.xlu0 %v2489, 112
    %v3501 = vpop.permute.xlu0 %3500
    %3502 = vrot.lane.b32.xlu0 %v320, 48
    %v3503 = vpop.permute.xlu0 %3502
    %v3505 = vsel %vm324, %v3501, 0
    %v3508 = vsel %vm324, %v3503, 0
    %3510 = vmatprep.subr.bf16.mxu0 0
    %3511 = vmatpush1.bf16.xpose.msra.mxu0 0
    %3512 = vmatprep.subr.bf16.mxu0 0
    %3513 = vmatpush1.bf16.xpose.msra.mxu0 0
    %3514 = vmatprep.subr.bf16.mxu0 0
    %3515 = vmatpush1.bf16.xpose.msra.mxu0 0
    %3516 = vmatprep.subr.bf16.mxu0 0
    %3517 = vmatpush1.bf16.xpose.msra.mxu0 0
    %3518 = vmatprep.subr.bf16.mxu0 0
    %3519 = vmatpush1.bf16.xpose.msra.mxu0 0
    %3520 = vmatprep.subr.bf16.mxu0 0
    %3521 = vmatpush1.bf16.xpose.msra.mxu0 0
    %3522 = vmatprep.subr.bf16.mxu0 0
    %3523 = vmatpush1.bf16.xpose.msra.mxu0 0
    %3524 = vmatprep.subr.bf16.mxu0 0
    %3525 = vmatpush1.bf16.xpose.msra.mxu0 %v3508
    %3526 = vmatprep.subr.bf16.mxu0 0
    %3527 = vmatpush2.bf16.xpose.msra.mxu0 0
    %3528 = vmatprep.subr.bf16.mxu0 0
    %3529 = vmatpush2.bf16.xpose.msra.mxu0 0
    %3530 = vmatprep.subr.bf16.mxu0 0
    %3531 = vmatpush2.bf16.xpose.msra.mxu0 0
    %3532 = vmatprep.subr.bf16.mxu0 0
    %3533 = vmatpush2.bf16.xpose.msra.mxu0 0
    %3534 = vmatprep.subr.bf16.mxu0 0
    %3535 = vmatpush2.bf16.xpose.msra.mxu0 0
    %3536 = vmatprep.subr.bf16.mxu0 0
    %3537 = vmatpush2.bf16.xpose.msra.mxu0 0
    %3538 = vmatprep.subr.bf16.mxu0 0
    %3539 = vmatpush2.bf16.xpose.msra.mxu0 0
    %3540 = vmatprep.subr.bf16.mxu0 0
    %3541 = vmatpush2.bf16.xpose.msra.mxu0 0
    %3542 = vmatprep.mubr.bf16.mxu0 0
    %3543 = vmatmul.mubr.bf16.gmra.mxu0 %v3505
    %v3544 = vpop.f32.mrf.mxu0
    %v3545 = vadd.f32 0.0, %v3544
    %v3546 = vpop.f32.mrf.mxu0
    %v3547 = vpop.f32.mrf.mxu0
    %v3548 = vpop.f32.mrf.mxu0
    %3549 = vdwg.mxu0
    %3550 = vrot.lane.b32.xlu0 %v2490, 112
    %v3551 = vpop.permute.xlu0 %3550
    %3552 = vrot.lane.b32.xlu0 %v321, 48
    %v3553 = vpop.permute.xlu0 %3552
    %v3555 = vsel %vm324, %v3551, 0
    %v3558 = vsel %vm324, %v3553, 0
    %3560 = vmatprep.subr.bf16.mxu0 0
    %3561 = vmatpush1.bf16.xpose.msra.mxu0 0
    %3562 = vmatprep.subr.bf16.mxu0 0
    %3563 = vmatpush1.bf16.xpose.msra.mxu0 0
    %3564 = vmatprep.subr.bf16.mxu0 0
    %3565 = vmatpush1.bf16.xpose.msra.mxu0 0
    %3566 = vmatprep.subr.bf16.mxu0 0
    %3567 = vmatpush1.bf16.xpose.msra.mxu0 0
    %3568 = vmatprep.subr.bf16.mxu0 0
    %3569 = vmatpush1.bf16.xpose.msra.mxu0 0
    %3570 = vmatprep.subr.bf16.mxu0 0
    %3571 = vmatpush1.bf16.xpose.msra.mxu0 0
    %3572 = vmatprep.subr.bf16.mxu0 0
    %3573 = vmatpush1.bf16.xpose.msra.mxu0 0
    %3574 = vmatprep.subr.bf16.mxu0 0
    %3575 = vmatpush1.bf16.xpose.msra.mxu0 %v3558
    %3576 = vmatprep.subr.bf16.mxu0 0
    %3577 = vmatpush2.bf16.xpose.msra.mxu0 0
    %3578 = vmatprep.subr.bf16.mxu0 0
    %3579 = vmatpush2.bf16.xpose.msra.mxu0 0
    %3580 = vmatprep.subr.bf16.mxu0 0
    %3581 = vmatpush2.bf16.xpose.msra.mxu0 0
    %3582 = vmatprep.subr.bf16.mxu0 0
    %3583 = vmatpush2.bf16.xpose.msra.mxu0 0
    %3584 = vmatprep.subr.bf16.mxu0 0
    %3585 = vmatpush2.bf16.xpose.msra.mxu0 0
    %3586 = vmatprep.subr.bf16.mxu0 0
    %3587 = vmatpush2.bf16.xpose.msra.mxu0 0
    %3588 = vmatprep.subr.bf16.mxu0 0
    %3589 = vmatpush2.bf16.xpose.msra.mxu0 0
    %3590 = vmatprep.subr.bf16.mxu0 0
    %3591 = vmatpush2.bf16.xpose.msra.mxu0 0
    %3592 = vmatprep.mubr.bf16.mxu0 0
    %3593 = vmatmul.mubr.bf16.gmra.mxu0 %v3555
    %v3594 = vpop.f32.mrf.mxu0
    %v3595 = vadd.f32 0.0, %v3594
    %v3596 = vpop.f32.mrf.mxu0
    %v3597 = vpop.f32.mrf.mxu0
    %v3598 = vpop.f32.mrf.mxu0
    %3599 = vdwg.mxu0
    %3600 = vrot.lane.b32.xlu0 %v2491, 112
    %v3601 = vpop.permute.xlu0 %3600
    %3602 = vrot.lane.b32.xlu0 %v322, 48
    %v3603 = vpop.permute.xlu0 %3602
    %v3605 = vsel %vm324, %v3601, 0
    %v3608 = vsel %vm324, %v3603, 0
    %3610 = vmatprep.subr.bf16.mxu0 0
    %3611 = vmatpush1.bf16.xpose.msra.mxu0 0
    %3612 = vmatprep.subr.bf16.mxu0 0
    %3613 = vmatpush1.bf16.xpose.msra.mxu0 0
    %3614 = vmatprep.subr.bf16.mxu0 0
    %3615 = vmatpush1.bf16.xpose.msra.mxu0 0
    %3616 = vmatprep.subr.bf16.mxu0 0
    %3617 = vmatpush1.bf16.xpose.msra.mxu0 0
    %3618 = vmatprep.subr.bf16.mxu0 0
    %3619 = vmatpush1.bf16.xpose.msra.mxu0 0
    %3620 = vmatprep.subr.bf16.mxu0 0
    %3621 = vmatpush1.bf16.xpose.msra.mxu0 0
    %3622 = vmatprep.subr.bf16.mxu0 0
    %3623 = vmatpush1.bf16.xpose.msra.mxu0 0
    %3624 = vmatprep.subr.bf16.mxu0 0
    %3625 = vmatpush1.bf16.xpose.msra.mxu0 %v3608
    %3626 = vmatprep.subr.bf16.mxu0 0
    %3627 = vmatpush2.bf16.xpose.msra.mxu0 0
    %3628 = vmatprep.subr.bf16.mxu0 0
    %3629 = vmatpush2.bf16.xpose.msra.mxu0 0
    %3630 = vmatprep.subr.bf16.mxu0 0
    %3631 = vmatpush2.bf16.xpose.msra.mxu0 0
    %3632 = vmatprep.subr.bf16.mxu0 0
    %3633 = vmatpush2.bf16.xpose.msra.mxu0 0
    %3634 = vmatprep.subr.bf16.mxu0 0
    %3635 = vmatpush2.bf16.xpose.msra.mxu0 0
    %3636 = vmatprep.subr.bf16.mxu0 0
    %3637 = vmatpush2.bf16.xpose.msra.mxu0 0
    %3638 = vmatprep.subr.bf16.mxu0 0
    %3639 = vmatpush2.bf16.xpose.msra.mxu0 0
    %3640 = vmatprep.subr.bf16.mxu0 0
    %3641 = vmatpush2.bf16.xpose.msra.mxu0 0
    %3642 = vmatprep.mubr.bf16.mxu0 0
    %3643 = vmatmul.mubr.bf16.gmra.mxu0 %v3605
    %v3644 = vpop.f32.mrf.mxu0
    %v3645 = vadd.f32 0.0, %v3644
    %v3646 = vpop.f32.mrf.mxu0
    %v3647 = vpop.f32.mrf.mxu0
    %v3648 = vpop.f32.mrf.mxu0
    %3649 = vdwg.mxu0
    %3650 = vrot.lane.b32.xlu0 %v2492, 112
    %v3651 = vpop.permute.xlu0 %3650
    %3652 = vrot.lane.b32.xlu0 %v323, 48
    %v3653 = vpop.permute.xlu0 %3652
    %v3655 = vsel %vm324, %v3651, 0
    %v3658 = vsel %vm324, %v3653, 0
    %3660 = vmatprep.subr.bf16.mxu0 0
    %3661 = vmatpush1.bf16.xpose.msra.mxu0 0
    %3662 = vmatprep.subr.bf16.mxu0 0
    %3663 = vmatpush1.bf16.xpose.msra.mxu0 0
    %3664 = vmatprep.subr.bf16.mxu0 0
    %3665 = vmatpush1.bf16.xpose.msra.mxu0 0
    %3666 = vmatprep.subr.bf16.mxu0 0
    %3667 = vmatpush1.bf16.xpose.msra.mxu0 0
    %3668 = vmatprep.subr.bf16.mxu0 0
    %3669 = vmatpush1.bf16.xpose.msra.mxu0 0
    %3670 = vmatprep.subr.bf16.mxu0 0
    %3671 = vmatpush1.bf16.xpose.msra.mxu0 0
    %3672 = vmatprep.subr.bf16.mxu0 0
    %3673 = vmatpush1.bf16.xpose.msra.mxu0 0
    %3674 = vmatprep.subr.bf16.mxu0 0
    %3675 = vmatpush1.bf16.xpose.msra.mxu0 %v3658
    %3676 = vmatprep.subr.bf16.mxu0 0
    %3677 = vmatpush2.bf16.xpose.msra.mxu0 0
    %3678 = vmatprep.subr.bf16.mxu0 0
    %3679 = vmatpush2.bf16.xpose.msra.mxu0 0
    %3680 = vmatprep.subr.bf16.mxu0 0
    %3681 = vmatpush2.bf16.xpose.msra.mxu0 0
    %3682 = vmatprep.subr.bf16.mxu0 0
    %3683 = vmatpush2.bf16.xpose.msra.mxu0 0
    %3684 = vmatprep.subr.bf16.mxu0 0
    %3685 = vmatpush2.bf16.xpose.msra.mxu0 0
    %3686 = vmatprep.subr.bf16.mxu0 0
    %3687 = vmatpush2.bf16.xpose.msra.mxu0 0
    %3688 = vmatprep.subr.bf16.mxu0 0
    %3689 = vmatpush2.bf16.xpose.msra.mxu0 0
    %3690 = vmatprep.subr.bf16.mxu0 0
    %3691 = vmatpush2.bf16.xpose.msra.mxu0 0
    %3692 = vmatprep.mubr.bf16.mxu0 0
    %3693 = vmatmul.mubr.bf16.gmra.mxu0 %v3655
    %v3694 = vpop.f32.mrf.mxu0
    %v3695 = vadd.f32 0.0, %v3694
    %v3696 = vpop.f32.mrf.mxu0
    %v3697 = vpop.f32.mrf.mxu0
    %v3698 = vpop.f32.mrf.mxu0
    %3699 = vdwg.mxu0
    %v3700 = vsel %vm324, %v3545, -inf
    %3701 = vmax.xlane.f32.xlu0 %v3700
    %v3702 = vpop.xlane.xlu0 %3701
    %v3703 = vsel %vm324, %v3595, -inf
    %3704 = vmax.xlane.f32.xlu0 %v3703
    %v3705 = vpop.xlane.xlu0 %3704
    %v3706 = vsel %vm324, %v3645, -inf
    %3707 = vmax.xlane.f32.xlu0 %v3706
    %v3708 = vpop.xlane.xlu0 %3707
    %v3709 = vsel %vm324, %v3695, -inf
    %3710 = vmax.xlane.f32.xlu0 %v3709
    %v3711 = vpop.xlane.xlu0 %3710
    %v3712 = vsub.f32 %v3545, %v3702
    %v3713 = vsub.f32 %v3595, %v3705
    %v3714 = vsub.f32 %v3645, %v3708
    %v3715 = vsub.f32 %v3695, %v3711
    %v3716 = vmul.f32 %v3712, 1.442695
    %v3717 = vpow.pop %v3716
    %v3718 = vmul.f32 %v3713, 1.442695
    %v3719 = vpow.pop %v3718
    %v3720 = vmul.f32 %v3714, 1.442695
    %v3721 = vpow.pop %v3720
    %v3722 = vmul.f32 %v3715, 1.442695
    %v3723 = vpow.pop %v3722
    %v3724 = vsel %vm324, %v3717, 0.0
    %3725 = vadd.xlane.f32.xlu0 %v3724
    %v3726 = vpop.xlane.xlu0 %3725
    %v3727 = vsel %vm324, %v3719, 0.0
    %3728 = vadd.xlane.f32.xlu0 %v3727
    %v3729 = vpop.xlane.xlu0 %3728
    %v3730 = vsel %vm324, %v3721, 0.0
    %3731 = vadd.xlane.f32.xlu0 %v3730
    %v3732 = vpop.xlane.xlu0 %3731
    %v3733 = vsel %vm324, %v3723, 0.0
    %3734 = vadd.xlane.f32.xlu0 %v3733
    %v3735 = vpop.xlane.xlu0 %3734
    %v3736 = vrcp.pop %v3726
    %v3737 = vrcp.pop %v3729
    %v3738 = vrcp.pop %v3732
    %v3739 = vrcp.pop %v3735
    %v3740 = vmul.f32 %v3717, %v3736
    %v3741 = vmul.f32 %v3719, %v3737
    %v3742 = vmul.f32 %v3721, %v3738
    %v3743 = vmul.f32 %v3723, %v3739
    %v3744 = vpack.c.bf16 %v3740, %v3740
    %v3745 = vpack.c.bf16 %v3741, %v3741
    %v3746 = vpack.c.bf16 %v3742, %v3742
    %v3747 = vpack.c.bf16 %v3743, %v3743
    %3748 = vrot.lane.b32.xlu0 %v320, 16
    %v3749 = vpop.permute.xlu0 %3748
    %v3751 = vsel %vm324, %v3744, 0
    %v3754 = vsel %vm563, %v3749, 0
    %3756 = vmatprep.subr.bf16.mxu0 0
    %3757 = vmatpush1.bf16.msra.mxu0 0
    %3758 = vmatprep.subr.bf16.mxu0 0
    %3759 = vmatpush1.bf16.msra.mxu0 0
    %3760 = vmatprep.subr.bf16.mxu0 0
    %3761 = vmatpush1.bf16.msra.mxu0 0
    %3762 = vmatprep.subr.bf16.mxu0 0
    %3763 = vmatpush1.bf16.msra.mxu0 0
    %3764 = vmatprep.subr.bf16.mxu0 0
    %3765 = vmatpush1.bf16.msra.mxu0 0
    %3766 = vmatprep.subr.bf16.mxu0 0
    %3767 = vmatpush1.bf16.msra.mxu0 0
    %3768 = vmatprep.subr.bf16.mxu0 0
    %3769 = vmatpush1.bf16.msra.mxu0 0
    %3770 = vmatprep.subr.bf16.mxu0 0
    %3771 = vmatpush1.bf16.msra.mxu0 %v3754
    %3772 = vmatprep.subr.bf16.mxu0 0
    %3773 = vmatpush2.bf16.msra.mxu0 0
    %3774 = vmatprep.subr.bf16.mxu0 0
    %3775 = vmatpush2.bf16.msra.mxu0 0
    %3776 = vmatprep.subr.bf16.mxu0 0
    %3777 = vmatpush2.bf16.msra.mxu0 0
    %3778 = vmatprep.subr.bf16.mxu0 0
    %3779 = vmatpush2.bf16.msra.mxu0 0
    %3780 = vmatprep.subr.bf16.mxu0 0
    %3781 = vmatpush2.bf16.msra.mxu0 0
    %3782 = vmatprep.subr.bf16.mxu0 0
    %3783 = vmatpush2.bf16.msra.mxu0 0
    %3784 = vmatprep.subr.bf16.mxu0 0
    %3785 = vmatpush2.bf16.msra.mxu0 0
    %3786 = vmatprep.subr.bf16.mxu0 0
    %3787 = vmatpush2.bf16.msra.mxu0 0
    %3788 = vmatprep.mubr.bf16.mxu0 0
    %3789 = vmatmul.mubr.bf16.gmra.mxu0 %v3751
    %v3790 = vpop.f32.mrf.mxu0
    %v3791 = vadd.f32 0.0, %v3790
    %v3792 = vpop.f32.mrf.mxu0
    %v3793 = vpop.f32.mrf.mxu0
    %v3794 = vpop.f32.mrf.mxu0
    %3795 = vdwg.mxu0
    %3796 = vrot.lane.b32.xlu0 %v321, 16
    %v3797 = vpop.permute.xlu0 %3796
    %v3799 = vsel %vm324, %v3745, 0
    %v3802 = vsel %vm563, %v3797, 0
    %3804 = vmatprep.subr.bf16.mxu0 0
    %3805 = vmatpush1.bf16.msra.mxu0 0
    %3806 = vmatprep.subr.bf16.mxu0 0
    %3807 = vmatpush1.bf16.msra.mxu0 0
    %3808 = vmatprep.subr.bf16.mxu0 0
    %3809 = vmatpush1.bf16.msra.mxu0 0
    %3810 = vmatprep.subr.bf16.mxu0 0
    %3811 = vmatpush1.bf16.msra.mxu0 0
    %3812 = vmatprep.subr.bf16.mxu0 0
    %3813 = vmatpush1.bf16.msra.mxu0 0
    %3814 = vmatprep.subr.bf16.mxu0 0
    %3815 = vmatpush1.bf16.msra.mxu0 0
    %3816 = vmatprep.subr.bf16.mxu0 0
    %3817 = vmatpush1.bf16.msra.mxu0 0
    %3818 = vmatprep.subr.bf16.mxu0 0
    %3819 = vmatpush1.bf16.msra.mxu0 %v3802
    %3820 = vmatprep.subr.bf16.mxu0 0
    %3821 = vmatpush2.bf16.msra.mxu0 0
    %3822 = vmatprep.subr.bf16.mxu0 0
    %3823 = vmatpush2.bf16.msra.mxu0 0
    %3824 = vmatprep.subr.bf16.mxu0 0
    %3825 = vmatpush2.bf16.msra.mxu0 0
    %3826 = vmatprep.subr.bf16.mxu0 0
    %3827 = vmatpush2.bf16.msra.mxu0 0
    %3828 = vmatprep.subr.bf16.mxu0 0
    %3829 = vmatpush2.bf16.msra.mxu0 0
    %3830 = vmatprep.subr.bf16.mxu0 0
    %3831 = vmatpush2.bf16.msra.mxu0 0
    %3832 = vmatprep.subr.bf16.mxu0 0
    %3833 = vmatpush2.bf16.msra.mxu0 0
    %3834 = vmatprep.subr.bf16.mxu0 0
    %3835 = vmatpush2.bf16.msra.mxu0 0
    %3836 = vmatprep.mubr.bf16.mxu0 0
    %3837 = vmatmul.mubr.bf16.gmra.mxu0 %v3799
    %v3838 = vpop.f32.mrf.mxu0
    %v3839 = vadd.f32 0.0, %v3838
    %v3840 = vpop.f32.mrf.mxu0
    %v3841 = vpop.f32.mrf.mxu0
    %v3842 = vpop.f32.mrf.mxu0
    %3843 = vdwg.mxu0
    %3844 = vrot.lane.b32.xlu0 %v322, 16
    %v3845 = vpop.permute.xlu0 %3844
    %v3847 = vsel %vm324, %v3746, 0
    %v3850 = vsel %vm563, %v3845, 0
    %3852 = vmatprep.subr.bf16.mxu0 0
    %3853 = vmatpush1.bf16.msra.mxu0 0
    %3854 = vmatprep.subr.bf16.mxu0 0
    %3855 = vmatpush1.bf16.msra.mxu0 0
    %3856 = vmatprep.subr.bf16.mxu0 0
    %3857 = vmatpush1.bf16.msra.mxu0 0
    %3858 = vmatprep.subr.bf16.mxu0 0
    %3859 = vmatpush1.bf16.msra.mxu0 0
    %3860 = vmatprep.subr.bf16.mxu0 0
    %3861 = vmatpush1.bf16.msra.mxu0 0
    %3862 = vmatprep.subr.bf16.mxu0 0
    %3863 = vmatpush1.bf16.msra.mxu0 0
    %3864 = vmatprep.subr.bf16.mxu0 0
    %3865 = vmatpush1.bf16.msra.mxu0 0
    %3866 = vmatprep.subr.bf16.mxu0 0
    %3867 = vmatpush1.bf16.msra.mxu0 %v3850
    %3868 = vmatprep.subr.bf16.mxu0 0
    %3869 = vmatpush2.bf16.msra.mxu0 0
    %3870 = vmatprep.subr.bf16.mxu0 0
    %3871 = vmatpush2.bf16.msra.mxu0 0
    %3872 = vmatprep.subr.bf16.mxu0 0
    %3873 = vmatpush2.bf16.msra.mxu0 0
    %3874 = vmatprep.subr.bf16.mxu0 0
    %3875 = vmatpush2.bf16.msra.mxu0 0
    %3876 = vmatprep.subr.bf16.mxu0 0
    %3877 = vmatpush2.bf16.msra.mxu0 0
    %3878 = vmatprep.subr.bf16.mxu0 0
    %3879 = vmatpush2.bf16.msra.mxu0 0
    %3880 = vmatprep.subr.bf16.mxu0 0
    %3881 = vmatpush2.bf16.msra.mxu0 0
    %3882 = vmatprep.subr.bf16.mxu0 0
    %3883 = vmatpush2.bf16.msra.mxu0 0
    %3884 = vmatprep.mubr.bf16.mxu0 0
    %3885 = vmatmul.mubr.bf16.gmra.mxu0 %v3847
    %v3886 = vpop.f32.mrf.mxu0
    %v3887 = vadd.f32 0.0, %v3886
    %v3888 = vpop.f32.mrf.mxu0
    %v3889 = vpop.f32.mrf.mxu0
    %v3890 = vpop.f32.mrf.mxu0
    %3891 = vdwg.mxu0
    %3892 = vrot.lane.b32.xlu0 %v323, 16
    %v3893 = vpop.permute.xlu0 %3892
    %v3895 = vsel %vm324, %v3747, 0
    %v3898 = vsel %vm563, %v3893, 0
    %3900 = vmatprep.subr.bf16.mxu0 0
    %3901 = vmatpush1.bf16.msra.mxu0 0
    %3902 = vmatprep.subr.bf16.mxu0 0
    %3903 = vmatpush1.bf16.msra.mxu0 0
    %3904 = vmatprep.subr.bf16.mxu0 0
    %3905 = vmatpush1.bf16.msra.mxu0 0
    %3906 = vmatprep.subr.bf16.mxu0 0
    %3907 = vmatpush1.bf16.msra.mxu0 0
    %3908 = vmatprep.subr.bf16.mxu0 0
    %3909 = vmatpush1.bf16.msra.mxu0 0
    %3910 = vmatprep.subr.bf16.mxu0 0
    %3911 = vmatpush1.bf16.msra.mxu0 0
    %3912 = vmatprep.subr.bf16.mxu0 0
    %3913 = vmatpush1.bf16.msra.mxu0 0
    %3914 = vmatprep.subr.bf16.mxu0 0
    %3915 = vmatpush1.bf16.msra.mxu0 %v3898
    %3916 = vmatprep.subr.bf16.mxu0 0
    %3917 = vmatpush2.bf16.msra.mxu0 0
    %3918 = vmatprep.subr.bf16.mxu0 0
    %3919 = vmatpush2.bf16.msra.mxu0 0
    %3920 = vmatprep.subr.bf16.mxu0 0
    %3921 = vmatpush2.bf16.msra.mxu0 0
    %3922 = vmatprep.subr.bf16.mxu0 0
    %3923 = vmatpush2.bf16.msra.mxu0 0
    %3924 = vmatprep.subr.bf16.mxu0 0
    %3925 = vmatpush2.bf16.msra.mxu0 0
    %3926 = vmatprep.subr.bf16.mxu0 0
    %3927 = vmatpush2.bf16.msra.mxu0 0
    %3928 = vmatprep.subr.bf16.mxu0 0
    %3929 = vmatpush2.bf16.msra.mxu0 0
    %3930 = vmatprep.subr.bf16.mxu0 0
    %3931 = vmatpush2.bf16.msra.mxu0 0
    %3932 = vmatprep.mubr.bf16.mxu0 0
    %3933 = vmatmul.mubr.bf16.gmra.mxu0 %v3895
    %v3934 = vpop.f32.mrf.mxu0
    %v3935 = vadd.f32 0.0, %v3934
    %v3936 = vpop.f32.mrf.mxu0
    %v3937 = vpop.f32.mrf.mxu0
    %v3938 = vpop.f32.mrf.mxu0
    %3939 = vdwg.mxu0
    %v3940 = vpack.c.bf16 %v3839, %v3791
    %v3941 = vpack.c.bf16 %v3935, %v3887
    %s3942 = scalar_lea.vmem [#allocation10], 8
    %v3943 = vld [vmem:[%s3942] sm:$0xf]
    %v3945 = vsel %vm324, %v3940, 0
    %v3948 = vsel %vm324, %v3941, 0
    %v3951 = vsel %vm563, %v3943, 0
    %3953 = vmatprep.subr.bf16.mxu0 0
    %3954 = vmatpush1.bf16.msra.mxu0 0
    %3955 = vmatprep.subr.bf16.mxu0 0
    %3956 = vmatpush1.bf16.msra.mxu0 0
    %3957 = vmatprep.subr.bf16.mxu0 0
    %3958 = vmatpush1.bf16.msra.mxu0 0
    %3959 = vmatprep.subr.bf16.mxu0 0
    %3960 = vmatpush1.bf16.msra.mxu0 0
    %3961 = vmatprep.subr.bf16.mxu0 0
    %3962 = vmatpush1.bf16.msra.mxu0 0
    %3963 = vmatprep.subr.bf16.mxu0 0
    %3964 = vmatpush1.bf16.msra.mxu0 0
    %3965 = vmatprep.subr.bf16.mxu0 0
    %3966 = vmatpush1.bf16.msra.mxu0 0
    %3967 = vmatprep.subr.bf16.mxu0 0
    %3968 = vmatpush1.bf16.msra.mxu0 %v3951
    %3969 = vmatprep.subr.bf16.mxu0 0
    %3970 = vmatpush2.bf16.msra.mxu0 0
    %3971 = vmatprep.subr.bf16.mxu0 0
    %3972 = vmatpush2.bf16.msra.mxu0 0
    %3973 = vmatprep.subr.bf16.mxu0 0
    %3974 = vmatpush2.bf16.msra.mxu0 0
    %3975 = vmatprep.subr.bf16.mxu0 0
    %3976 = vmatpush2.bf16.msra.mxu0 0
    %3977 = vmatprep.subr.bf16.mxu0 0
    %3978 = vmatpush2.bf16.msra.mxu0 0
    %3979 = vmatprep.subr.bf16.mxu0 0
    %3980 = vmatpush2.bf16.msra.mxu0 0
    %3981 = vmatprep.subr.bf16.mxu0 0
    %3982 = vmatpush2.bf16.msra.mxu0 0
    %3983 = vmatprep.subr.bf16.mxu0 0
    %3984 = vmatpush2.bf16.msra.mxu0 0
    %3985 = vmatprep.mubr.bf16.mxu0 0
    %3986 = vmatmul.mubr.bf16.gmra.mxu0 %v3945
    %v3987 = vpop.f32.mrf.mxu0
    %v3988 = vadd.f32 0.0, %v3987
    %v3989 = vpop.f32.mrf.mxu0
    %v3990 = vpop.f32.mrf.mxu0
    %v3991 = vadd.f32 0.0, %v3990
    %v3992 = vpop.f32.mrf.mxu0
    %3993 = vmatprep.mubr.bf16.mxu0 0
    %3994 = vmatmul.mubr.bf16.gmra.mxu0 %v3948
    %v3995 = vpop.f32.mrf.mxu0
    %v3996 = vadd.f32 0.0, %v3995
    %v3997 = vpop.f32.mrf.mxu0
    %v3998 = vpop.f32.mrf.mxu0
    %v3999 = vadd.f32 0.0, %v3998
    %v4000 = vpop.f32.mrf.mxu0
    %4001 = vdwg.mxu0
    %v4002 = vadd.f32 %v3496, %v3988
    %v4003 = vadd.f32 %v3497, %v3991
    %v4004 = vadd.f32 %v3498, %v3996
    %v4005 = vadd.f32 %v3499, %v3999
    %4006 = vrot.lane.b32.xlu0 %v2489, 104
    %v4007 = vpop.permute.xlu0 %4006
    %4008 = vrot.lane.b32.xlu0 %v320, 40
    %v4009 = vpop.permute.xlu0 %4008
    %v4011 = vsel %vm324, %v4007, 0
    %v4014 = vsel %vm324, %v4009, 0
    %4016 = vmatprep.subr.bf16.mxu0 0
    %4017 = vmatpush1.bf16.xpose.msra.mxu0 0
    %4018 = vmatprep.subr.bf16.mxu0 0
    %4019 = vmatpush1.bf16.xpose.msra.mxu0 0
    %4020 = vmatprep.subr.bf16.mxu0 0
    %4021 = vmatpush1.bf16.xpose.msra.mxu0 0
    %4022 = vmatprep.subr.bf16.mxu0 0
    %4023 = vmatpush1.bf16.xpose.msra.mxu0 0
    %4024 = vmatprep.subr.bf16.mxu0 0
    %4025 = vmatpush1.bf16.xpose.msra.mxu0 0
    %4026 = vmatprep.subr.bf16.mxu0 0
    %4027 = vmatpush1.bf16.xpose.msra.mxu0 0
    %4028 = vmatprep.subr.bf16.mxu0 0
    %4029 = vmatpush1.bf16.xpose.msra.mxu0 0
    %4030 = vmatprep.subr.bf16.mxu0 0
    %4031 = vmatpush1.bf16.xpose.msra.mxu0 %v4014
    %4032 = vmatprep.subr.bf16.mxu0 0
    %4033 = vmatpush2.bf16.xpose.msra.mxu0 0
    %4034 = vmatprep.subr.bf16.mxu0 0
    %4035 = vmatpush2.bf16.xpose.msra.mxu0 0
    %4036 = vmatprep.subr.bf16.mxu0 0
    %4037 = vmatpush2.bf16.xpose.msra.mxu0 0
    %4038 = vmatprep.subr.bf16.mxu0 0
    %4039 = vmatpush2.bf16.xpose.msra.mxu0 0
    %4040 = vmatprep.subr.bf16.mxu0 0
    %4041 = vmatpush2.bf16.xpose.msra.mxu0 0
    %4042 = vmatprep.subr.bf16.mxu0 0
    %4043 = vmatpush2.bf16.xpose.msra.mxu0 0
    %4044 = vmatprep.subr.bf16.mxu0 0
    %4045 = vmatpush2.bf16.xpose.msra.mxu0 0
    %4046 = vmatprep.subr.bf16.mxu0 0
    %4047 = vmatpush2.bf16.xpose.msra.mxu0 0
    %4048 = vmatprep.mubr.bf16.mxu0 0
    %4049 = vmatmul.mubr.bf16.gmra.mxu0 %v4011
    %v4050 = vpop.f32.mrf.mxu0
    %v4051 = vadd.f32 0.0, %v4050
    %v4052 = vpop.f32.mrf.mxu0
    %v4053 = vpop.f32.mrf.mxu0
    %v4054 = vpop.f32.mrf.mxu0
    %4055 = vdwg.mxu0
    %4056 = vrot.lane.b32.xlu0 %v2490, 104
    %v4057 = vpop.permute.xlu0 %4056
    %4058 = vrot.lane.b32.xlu0 %v321, 40
    %v4059 = vpop.permute.xlu0 %4058
    %v4061 = vsel %vm324, %v4057, 0
    %v4064 = vsel %vm324, %v4059, 0
    %4066 = vmatprep.subr.bf16.mxu0 0
    %4067 = vmatpush1.bf16.xpose.msra.mxu0 0
    %4068 = vmatprep.subr.bf16.mxu0 0
    %4069 = vmatpush1.bf16.xpose.msra.mxu0 0
    %4070 = vmatprep.subr.bf16.mxu0 0
    %4071 = vmatpush1.bf16.xpose.msra.mxu0 0
    %4072 = vmatprep.subr.bf16.mxu0 0
    %4073 = vmatpush1.bf16.xpose.msra.mxu0 0
    %4074 = vmatprep.subr.bf16.mxu0 0
    %4075 = vmatpush1.bf16.xpose.msra.mxu0 0
    %4076 = vmatprep.subr.bf16.mxu0 0
    %4077 = vmatpush1.bf16.xpose.msra.mxu0 0
    %4078 = vmatprep.subr.bf16.mxu0 0
    %4079 = vmatpush1.bf16.xpose.msra.mxu0 0
    %4080 = vmatprep.subr.bf16.mxu0 0
    %4081 = vmatpush1.bf16.xpose.msra.mxu0 %v4064
    %4082 = vmatprep.subr.bf16.mxu0 0
    %4083 = vmatpush2.bf16.xpose.msra.mxu0 0
    %4084 = vmatprep.subr.bf16.mxu0 0
    %4085 = vmatpush2.bf16.xpose.msra.mxu0 0
    %4086 = vmatprep.subr.bf16.mxu0 0
    %4087 = vmatpush2.bf16.xpose.msra.mxu0 0
    %4088 = vmatprep.subr.bf16.mxu0 0
    %4089 = vmatpush2.bf16.xpose.msra.mxu0 0
    %4090 = vmatprep.subr.bf16.mxu0 0
    %4091 = vmatpush2.bf16.xpose.msra.mxu0 0
    %4092 = vmatprep.subr.bf16.mxu0 0
    %4093 = vmatpush2.bf16.xpose.msra.mxu0 0
    %4094 = vmatprep.subr.bf16.mxu0 0
    %4095 = vmatpush2.bf16.xpose.msra.mxu0 0
    %4096 = vmatprep.subr.bf16.mxu0 0
    %4097 = vmatpush2.bf16.xpose.msra.mxu0 0
    %4098 = vmatprep.mubr.bf16.mxu0 0
    %4099 = vmatmul.mubr.bf16.gmra.mxu0 %v4061
    %v4100 = vpop.f32.mrf.mxu0
    %v4101 = vadd.f32 0.0, %v4100
    %v4102 = vpop.f32.mrf.mxu0
    %v4103 = vpop.f32.mrf.mxu0
    %v4104 = vpop.f32.mrf.mxu0
    %4105 = vdwg.mxu0
    %4106 = vrot.lane.b32.xlu0 %v2491, 104
    %v4107 = vpop.permute.xlu0 %4106
    %4108 = vrot.lane.b32.xlu0 %v322, 40
    %v4109 = vpop.permute.xlu0 %4108
    %v4111 = vsel %vm324, %v4107, 0
    %v4114 = vsel %vm324, %v4109, 0
    %4116 = vmatprep.subr.bf16.mxu0 0
    %4117 = vmatpush1.bf16.xpose.msra.mxu0 0
    %4118 = vmatprep.subr.bf16.mxu0 0
    %4119 = vmatpush1.bf16.xpose.msra.mxu0 0
    %4120 = vmatprep.subr.bf16.mxu0 0
    %4121 = vmatpush1.bf16.xpose.msra.mxu0 0
    %4122 = vmatprep.subr.bf16.mxu0 0
    %4123 = vmatpush1.bf16.xpose.msra.mxu0 0
    %4124 = vmatprep.subr.bf16.mxu0 0
    %4125 = vmatpush1.bf16.xpose.msra.mxu0 0
    %4126 = vmatprep.subr.bf16.mxu0 0
    %4127 = vmatpush1.bf16.xpose.msra.mxu0 0
    %4128 = vmatprep.subr.bf16.mxu0 0
    %4129 = vmatpush1.bf16.xpose.msra.mxu0 0
    %4130 = vmatprep.subr.bf16.mxu0 0
    %4131 = vmatpush1.bf16.xpose.msra.mxu0 %v4114
    %4132 = vmatprep.subr.bf16.mxu0 0
    %4133 = vmatpush2.bf16.xpose.msra.mxu0 0
    %4134 = vmatprep.subr.bf16.mxu0 0
    %4135 = vmatpush2.bf16.xpose.msra.mxu0 0
    %4136 = vmatprep.subr.bf16.mxu0 0
    %4137 = vmatpush2.bf16.xpose.msra.mxu0 0
    %4138 = vmatprep.subr.bf16.mxu0 0
    %4139 = vmatpush2.bf16.xpose.msra.mxu0 0
    %4140 = vmatprep.subr.bf16.mxu0 0
    %4141 = vmatpush2.bf16.xpose.msra.mxu0 0
    %4142 = vmatprep.subr.bf16.mxu0 0
    %4143 = vmatpush2.bf16.xpose.msra.mxu0 0
    %4144 = vmatprep.subr.bf16.mxu0 0
    %4145 = vmatpush2.bf16.xpose.msra.mxu0 0
    %4146 = vmatprep.subr.bf16.mxu0 0
    %4147 = vmatpush2.bf16.xpose.msra.mxu0 0
    %4148 = vmatprep.mubr.bf16.mxu0 0
    %4149 = vmatmul.mubr.bf16.gmra.mxu0 %v4111
    %v4150 = vpop.f32.mrf.mxu0
    %v4151 = vadd.f32 0.0, %v4150
    %v4152 = vpop.f32.mrf.mxu0
    %v4153 = vpop.f32.mrf.mxu0
    %v4154 = vpop.f32.mrf.mxu0
    %4155 = vdwg.mxu0
    %4156 = vrot.lane.b32.xlu0 %v2492, 104
    %v4157 = vpop.permute.xlu0 %4156
    %4158 = vrot.lane.b32.xlu0 %v323, 40
    %v4159 = vpop.permute.xlu0 %4158
    %v4161 = vsel %vm324, %v4157, 0
    %v4164 = vsel %vm324, %v4159, 0
    %4166 = vmatprep.subr.bf16.mxu0 0
    %4167 = vmatpush1.bf16.xpose.msra.mxu0 0
    %4168 = vmatprep.subr.bf16.mxu0 0
    %4169 = vmatpush1.bf16.xpose.msra.mxu0 0
    %4170 = vmatprep.subr.bf16.mxu0 0
    %4171 = vmatpush1.bf16.xpose.msra.mxu0 0
    %4172 = vmatprep.subr.bf16.mxu0 0
    %4173 = vmatpush1.bf16.xpose.msra.mxu0 0
    %4174 = vmatprep.subr.bf16.mxu0 0
    %4175 = vmatpush1.bf16.xpose.msra.mxu0 0
    %4176 = vmatprep.subr.bf16.mxu0 0
    %4177 = vmatpush1.bf16.xpose.msra.mxu0 0
    %4178 = vmatprep.subr.bf16.mxu0 0
    %4179 = vmatpush1.bf16.xpose.msra.mxu0 0
    %4180 = vmatprep.subr.bf16.mxu0 0
    %4181 = vmatpush1.bf16.xpose.msra.mxu0 %v4164
    %4182 = vmatprep.subr.bf16.mxu0 0
    %4183 = vmatpush2.bf16.xpose.msra.mxu0 0
    %4184 = vmatprep.subr.bf16.mxu0 0
    %4185 = vmatpush2.bf16.xpose.msra.mxu0 0
    %4186 = vmatprep.subr.bf16.mxu0 0
    %4187 = vmatpush2.bf16.xpose.msra.mxu0 0
    %4188 = vmatprep.subr.bf16.mxu0 0
    %4189 = vmatpush2.bf16.xpose.msra.mxu0 0
    %4190 = vmatprep.subr.bf16.mxu0 0
    %4191 = vmatpush2.bf16.xpose.msra.mxu0 0
    %4192 = vmatprep.subr.bf16.mxu0 0
    %4193 = vmatpush2.bf16.xpose.msra.mxu0 0
    %4194 = vmatprep.subr.bf16.mxu0 0
    %4195 = vmatpush2.bf16.xpose.msra.mxu0 0
    %4196 = vmatprep.subr.bf16.mxu0 0
    %4197 = vmatpush2.bf16.xpose.msra.mxu0 0
    %4198 = vmatprep.mubr.bf16.mxu0 0
    %4199 = vmatmul.mubr.bf16.gmra.mxu0 %v4161
    %v4200 = vpop.f32.mrf.mxu0
    %v4201 = vadd.f32 0.0, %v4200
    %v4202 = vpop.f32.mrf.mxu0
    %v4203 = vpop.f32.mrf.mxu0
    %v4204 = vpop.f32.mrf.mxu0
    %4205 = vdwg.mxu0
    %v4206 = vsel %vm324, %v4051, -inf
    %4207 = vmax.xlane.f32.xlu0 %v4206
    %v4208 = vpop.xlane.xlu0 %4207
    %v4209 = vsel %vm324, %v4101, -inf
    %4210 = vmax.xlane.f32.xlu0 %v4209
    %v4211 = vpop.xlane.xlu0 %4210
    %v4212 = vsel %vm324, %v4151, -inf
    %4213 = vmax.xlane.f32.xlu0 %v4212
    %v4214 = vpop.xlane.xlu0 %4213
    %v4215 = vsel %vm324, %v4201, -inf
    %4216 = vmax.xlane.f32.xlu0 %v4215
    %v4217 = vpop.xlane.xlu0 %4216
    %v4218 = vsub.f32 %v4051, %v4208
    %v4219 = vsub.f32 %v4101, %v4211
    %v4220 = vsub.f32 %v4151, %v4214
    %v4221 = vsub.f32 %v4201, %v4217
    %v4222 = vmul.f32 %v4218, 1.442695
    %v4223 = vpow.pop %v4222
    %v4224 = vmul.f32 %v4219, 1.442695
    %v4225 = vpow.pop %v4224
    %v4226 = vmul.f32 %v4220, 1.442695
    %v4227 = vpow.pop %v4226
    %v4228 = vmul.f32 %v4221, 1.442695
    %v4229 = vpow.pop %v4228
    %v4230 = vsel %vm324, %v4223, 0.0
    %4231 = vadd.xlane.f32.xlu0 %v4230
    %v4232 = vpop.xlane.xlu0 %4231
    %v4233 = vsel %vm324, %v4225, 0.0
    %4234 = vadd.xlane.f32.xlu0 %v4233
    %v4235 = vpop.xlane.xlu0 %4234
    %v4236 = vsel %vm324, %v4227, 0.0
    %4237 = vadd.xlane.f32.xlu0 %v4236
    %v4238 = vpop.xlane.xlu0 %4237
    %v4239 = vsel %vm324, %v4229, 0.0
    %4240 = vadd.xlane.f32.xlu0 %v4239
    %v4241 = vpop.xlane.xlu0 %4240
    %v4242 = vrcp.pop %v4232
    %v4243 = vrcp.pop %v4235
    %v4244 = vrcp.pop %v4238
    %v4245 = vrcp.pop %v4241
    %v4246 = vmul.f32 %v4223, %v4242
    %v4247 = vmul.f32 %v4225, %v4243
    %v4248 = vmul.f32 %v4227, %v4244
    %v4249 = vmul.f32 %v4229, %v4245
    %v4250 = vpack.c.bf16 %v4246, %v4246
    %v4251 = vpack.c.bf16 %v4247, %v4247
    %v4252 = vpack.c.bf16 %v4248, %v4248
    %v4253 = vpack.c.bf16 %v4249, %v4249
    %4254 = vrot.lane.b32.xlu0 %v320, 8
    %v4255 = vpop.permute.xlu0 %4254
    %v4257 = vsel %vm324, %v4250, 0
    %v4260 = vsel %vm563, %v4255, 0
    %4262 = vmatprep.subr.bf16.mxu0 0
    %4263 = vmatpush1.bf16.msra.mxu0 0
    %4264 = vmatprep.subr.bf16.mxu0 0
    %4265 = vmatpush1.bf16.msra.mxu0 0
    %4266 = vmatprep.subr.bf16.mxu0 0
    %4267 = vmatpush1.bf16.msra.mxu0 0
    %4268 = vmatprep.subr.bf16.mxu0 0
    %4269 = vmatpush1.bf16.msra.mxu0 0
    %4270 = vmatprep.subr.bf16.mxu0 0
    %4271 = vmatpush1.bf16.msra.mxu0 0
    %4272 = vmatprep.subr.bf16.mxu0 0
    %4273 = vmatpush1.bf16.msra.mxu0 0
    %4274 = vmatprep.subr.bf16.mxu0 0
    %4275 = vmatpush1.bf16.msra.mxu0 0
    %4276 = vmatprep.subr.bf16.mxu0 0
    %4277 = vmatpush1.bf16.msra.mxu0 %v4260
    %4278 = vmatprep.subr.bf16.mxu0 0
    %4279 = vmatpush2.bf16.msra.mxu0 0
    %4280 = vmatprep.subr.bf16.mxu0 0
    %4281 = vmatpush2.bf16.msra.mxu0 0
    %4282 = vmatprep.subr.bf16.mxu0 0
    %4283 = vmatpush2.bf16.msra.mxu0 0
    %4284 = vmatprep.subr.bf16.mxu0 0
    %4285 = vmatpush2.bf16.msra.mxu0 0
    %4286 = vmatprep.subr.bf16.mxu0 0
    %4287 = vmatpush2.bf16.msra.mxu0 0
    %4288 = vmatprep.subr.bf16.mxu0 0
    %4289 = vmatpush2.bf16.msra.mxu0 0
    %4290 = vmatprep.subr.bf16.mxu0 0
    %4291 = vmatpush2.bf16.msra.mxu0 0
    %4292 = vmatprep.subr.bf16.mxu0 0
    %4293 = vmatpush2.bf16.msra.mxu0 0
    %4294 = vmatprep.mubr.bf16.mxu0 0
    %4295 = vmatmul.mubr.bf16.gmra.mxu0 %v4257
    %v4296 = vpop.f32.mrf.mxu0
    %v4297 = vadd.f32 0.0, %v4296
    %v4298 = vpop.f32.mrf.mxu0
    %v4299 = vpop.f32.mrf.mxu0
    %v4300 = vpop.f32.mrf.mxu0
    %4301 = vdwg.mxu0
    %4302 = vrot.lane.b32.xlu0 %v321, 8
    %v4303 = vpop.permute.xlu0 %4302
    %v4305 = vsel %vm324, %v4251, 0
    %v4308 = vsel %vm563, %v4303, 0
    %4310 = vmatprep.subr.bf16.mxu0 0
    %4311 = vmatpush1.bf16.msra.mxu0 0
    %4312 = vmatprep.subr.bf16.mxu0 0
    %4313 = vmatpush1.bf16.msra.mxu0 0
    %4314 = vmatprep.subr.bf16.mxu0 0
    %4315 = vmatpush1.bf16.msra.mxu0 0
    %4316 = vmatprep.subr.bf16.mxu0 0
    %4317 = vmatpush1.bf16.msra.mxu0 0
    %4318 = vmatprep.subr.bf16.mxu0 0
    %4319 = vmatpush1.bf16.msra.mxu0 0
    %4320 = vmatprep.subr.bf16.mxu0 0
    %4321 = vmatpush1.bf16.msra.mxu0 0
    %4322 = vmatprep.subr.bf16.mxu0 0
    %4323 = vmatpush1.bf16.msra.mxu0 0
    %4324 = vmatprep.subr.bf16.mxu0 0
    %4325 = vmatpush1.bf16.msra.mxu0 %v4308
    %4326 = vmatprep.subr.bf16.mxu0 0
    %4327 = vmatpush2.bf16.msra.mxu0 0
    %4328 = vmatprep.subr.bf16.mxu0 0
    %4329 = vmatpush2.bf16.msra.mxu0 0
    %4330 = vmatprep.subr.bf16.mxu0 0
    %4331 = vmatpush2.bf16.msra.mxu0 0
    %4332 = vmatprep.subr.bf16.mxu0 0
    %4333 = vmatpush2.bf16.msra.mxu0 0
    %4334 = vmatprep.subr.bf16.mxu0 0
    %4335 = vmatpush2.bf16.msra.mxu0 0
    %4336 = vmatprep.subr.bf16.mxu0 0
    %4337 = vmatpush2.bf16.msra.mxu0 0
    %4338 = vmatprep.subr.bf16.mxu0 0
    %4339 = vmatpush2.bf16.msra.mxu0 0
    %4340 = vmatprep.subr.bf16.mxu0 0
    %4341 = vmatpush2.bf16.msra.mxu0 0
    %4342 = vmatprep.mubr.bf16.mxu0 0
    %4343 = vmatmul.mubr.bf16.gmra.mxu0 %v4305
    %v4344 = vpop.f32.mrf.mxu0
    %v4345 = vadd.f32 0.0, %v4344
    %v4346 = vpop.f32.mrf.mxu0
    %v4347 = vpop.f32.mrf.mxu0
    %v4348 = vpop.f32.mrf.mxu0
    %4349 = vdwg.mxu0
    %4350 = vrot.lane.b32.xlu0 %v322, 8
    %v4351 = vpop.permute.xlu0 %4350
    %v4353 = vsel %vm324, %v4252, 0
    %v4356 = vsel %vm563, %v4351, 0
    %4358 = vmatprep.subr.bf16.mxu0 0
    %4359 = vmatpush1.bf16.msra.mxu0 0
    %4360 = vmatprep.subr.bf16.mxu0 0
    %4361 = vmatpush1.bf16.msra.mxu0 0
    %4362 = vmatprep.subr.bf16.mxu0 0
    %4363 = vmatpush1.bf16.msra.mxu0 0
    %4364 = vmatprep.subr.bf16.mxu0 0
    %4365 = vmatpush1.bf16.msra.mxu0 0
    %4366 = vmatprep.subr.bf16.mxu0 0
    %4367 = vmatpush1.bf16.msra.mxu0 0
    %4368 = vmatprep.subr.bf16.mxu0 0
    %4369 = vmatpush1.bf16.msra.mxu0 0
    %4370 = vmatprep.subr.bf16.mxu0 0
    %4371 = vmatpush1.bf16.msra.mxu0 0
    %4372 = vmatprep.subr.bf16.mxu0 0
    %4373 = vmatpush1.bf16.msra.mxu0 %v4356
    %4374 = vmatprep.subr.bf16.mxu0 0
    %4375 = vmatpush2.bf16.msra.mxu0 0
    %4376 = vmatprep.subr.bf16.mxu0 0
    %4377 = vmatpush2.bf16.msra.mxu0 0
    %4378 = vmatprep.subr.bf16.mxu0 0
    %4379 = vmatpush2.bf16.msra.mxu0 0
    %4380 = vmatprep.subr.bf16.mxu0 0
    %4381 = vmatpush2.bf16.msra.mxu0 0
    %4382 = vmatprep.subr.bf16.mxu0 0
    %4383 = vmatpush2.bf16.msra.mxu0 0
    %4384 = vmatprep.subr.bf16.mxu0 0
    %4385 = vmatpush2.bf16.msra.mxu0 0
    %4386 = vmatprep.subr.bf16.mxu0 0
    %4387 = vmatpush2.bf16.msra.mxu0 0
    %4388 = vmatprep.subr.bf16.mxu0 0
    %4389 = vmatpush2.bf16.msra.mxu0 0
    %4390 = vmatprep.mubr.bf16.mxu0 0
    %4391 = vmatmul.mubr.bf16.gmra.mxu0 %v4353
    %v4392 = vpop.f32.mrf.mxu0
    %v4393 = vadd.f32 0.0, %v4392
    %v4394 = vpop.f32.mrf.mxu0
    %v4395 = vpop.f32.mrf.mxu0
    %v4396 = vpop.f32.mrf.mxu0
    %4397 = vdwg.mxu0
    %4398 = vrot.lane.b32.xlu0 %v323, 8
    %v4399 = vpop.permute.xlu0 %4398
    %v4401 = vsel %vm324, %v4253, 0
    %v4404 = vsel %vm563, %v4399, 0
    %4406 = vmatprep.subr.bf16.mxu0 0
    %4407 = vmatpush1.bf16.msra.mxu0 0
    %4408 = vmatprep.subr.bf16.mxu0 0
    %4409 = vmatpush1.bf16.msra.mxu0 0
    %4410 = vmatprep.subr.bf16.mxu0 0
    %4411 = vmatpush1.bf16.msra.mxu0 0
    %4412 = vmatprep.subr.bf16.mxu0 0
    %4413 = vmatpush1.bf16.msra.mxu0 0
    %4414 = vmatprep.subr.bf16.mxu0 0
    %4415 = vmatpush1.bf16.msra.mxu0 0
    %4416 = vmatprep.subr.bf16.mxu0 0
    %4417 = vmatpush1.bf16.msra.mxu0 0
    %4418 = vmatprep.subr.bf16.mxu0 0
    %4419 = vmatpush1.bf16.msra.mxu0 0
    %4420 = vmatprep.subr.bf16.mxu0 0
    %4421 = vmatpush1.bf16.msra.mxu0 %v4404
    %4422 = vmatprep.subr.bf16.mxu0 0
    %4423 = vmatpush2.bf16.msra.mxu0 0
    %4424 = vmatprep.subr.bf16.mxu0 0
    %4425 = vmatpush2.bf16.msra.mxu0 0
    %4426 = vmatprep.subr.bf16.mxu0 0
    %4427 = vmatpush2.bf16.msra.mxu0 0
    %4428 = vmatprep.subr.bf16.mxu0 0
    %4429 = vmatpush2.bf16.msra.mxu0 0
    %4430 = vmatprep.subr.bf16.mxu0 0
    %4431 = vmatpush2.bf16.msra.mxu0 0
    %4432 = vmatprep.subr.bf16.mxu0 0
    %4433 = vmatpush2.bf16.msra.mxu0 0
    %4434 = vmatprep.subr.bf16.mxu0 0
    %4435 = vmatpush2.bf16.msra.mxu0 0
    %4436 = vmatprep.subr.bf16.mxu0 0
    %4437 = vmatpush2.bf16.msra.mxu0 0
    %4438 = vmatprep.mubr.bf16.mxu0 0
    %4439 = vmatmul.mubr.bf16.gmra.mxu0 %v4401
    %v4440 = vpop.f32.mrf.mxu0
    %v4441 = vadd.f32 0.0, %v4440
    %v4442 = vpop.f32.mrf.mxu0
    %v4443 = vpop.f32.mrf.mxu0
    %v4444 = vpop.f32.mrf.mxu0
    %4445 = vdwg.mxu0
    %v4446 = vpack.c.bf16 %v4345, %v4297
    %v4447 = vpack.c.bf16 %v4441, %v4393
    %s4448 = scalar_lea.vmem [#allocation10], 12
    %v4449 = vld [vmem:[%s4448] sm:$0xf]
    %v4451 = vsel %vm324, %v4446, 0
    %v4454 = vsel %vm324, %v4447, 0
    %v4457 = vsel %vm563, %v4449, 0
    %4459 = vmatprep.subr.bf16.mxu0 0
    %4460 = vmatpush1.bf16.msra.mxu0 0
    %4461 = vmatprep.subr.bf16.mxu0 0
    %4462 = vmatpush1.bf16.msra.mxu0 0
    %4463 = vmatprep.subr.bf16.mxu0 0
    %4464 = vmatpush1.bf16.msra.mxu0 0
    %4465 = vmatprep.subr.bf16.mxu0 0
    %4466 = vmatpush1.bf16.msra.mxu0 0
    %4467 = vmatprep.subr.bf16.mxu0 0
    %4468 = vmatpush1.bf16.msra.mxu0 0
    %4469 = vmatprep.subr.bf16.mxu0 0
    %4470 = vmatpush1.bf16.msra.mxu0 0
    %4471 = vmatprep.subr.bf16.mxu0 0
    %4472 = vmatpush1.bf16.msra.mxu0 0
    %4473 = vmatprep.subr.bf16.mxu0 0
    %4474 = vmatpush1.bf16.msra.mxu0 %v4457
    %4475 = vmatprep.subr.bf16.mxu0 0
    %4476 = vmatpush2.bf16.msra.mxu0 0
    %4477 = vmatprep.subr.bf16.mxu0 0
    %4478 = vmatpush2.bf16.msra.mxu0 0
    %4479 = vmatprep.subr.bf16.mxu0 0
    %4480 = vmatpush2.bf16.msra.mxu0 0
    %4481 = vmatprep.subr.bf16.mxu0 0
    %4482 = vmatpush2.bf16.msra.mxu0 0
    %4483 = vmatprep.subr.bf16.mxu0 0
    %4484 = vmatpush2.bf16.msra.mxu0 0
    %4485 = vmatprep.subr.bf16.mxu0 0
    %4486 = vmatpush2.bf16.msra.mxu0 0
    %4487 = vmatprep.subr.bf16.mxu0 0
    %4488 = vmatpush2.bf16.msra.mxu0 0
    %4489 = vmatprep.subr.bf16.mxu0 0
    %4490 = vmatpush2.bf16.msra.mxu0 0
    %4491 = vmatprep.mubr.bf16.mxu0 0
    %4492 = vmatmul.mubr.bf16.gmra.mxu0 %v4451
    %v4493 = vpop.f32.mrf.mxu0
    %v4494 = vadd.f32 0.0, %v4493
    %v4495 = vpop.f32.mrf.mxu0
    %v4496 = vpop.f32.mrf.mxu0
    %v4497 = vadd.f32 0.0, %v4496
    %v4498 = vpop.f32.mrf.mxu0
    %4499 = vmatprep.mubr.bf16.mxu0 0
    %4500 = vmatmul.mubr.bf16.gmra.mxu0 %v4454
    %v4501 = vpop.f32.mrf.mxu0
    %v4502 = vadd.f32 0.0, %v4501
    %v4503 = vpop.f32.mrf.mxu0
    %v4504 = vpop.f32.mrf.mxu0
    %v4505 = vadd.f32 0.0, %v4504
    %v4506 = vpop.f32.mrf.mxu0
    %4507 = vdwg.mxu0
    %v4508 = vadd.f32 %v4002, %v4494
    %v4509 = vadd.f32 %v4003, %v4497
    %v4510 = vadd.f32 %v4004, %v4502
    %v4511 = vadd.f32 %v4005, %v4505
    %v4512 = vld [vmem:[#allocation14] sm:$0x1]
    %v4513 = vld [vmem:[%s10] sm:$0x1]
    %v4514 = vsel %vm187, %v4508, 0.0
    %4515 = vadd.xlane.f32.xlu0 %v4514
    %v4516 = vpop.xlane.xlu0 %4515
    %v4517 = vsel %vm187, %v4509, 0.0
    %4518 = vadd.xlane.f32.xlu0 %v4517
    %v4519 = vpop.xlane.xlu0 %4518
    %v4520 = vsel %vm187, %v4510, 0.0
    %4521 = vadd.xlane.f32.xlu0 %v4520
    %v4522 = vpop.xlane.xlu0 %4521
    %v4523 = vsel %vm187, %v4511, 0.0
    %4524 = vadd.xlane.f32.xlu0 %v4523
    %v4525 = vpop.xlane.xlu0 %4524
    %v4526 = vmul.f32 %v4516, %v2355
    %v4527 = vmul.f32 %v4519, %v2355
    %v4528 = vmul.f32 %v4522, %v2355
    %v4529 = vmul.f32 %v4525, %v2355
    %v4530 = vsub.f32 %v4508, %v4526
    %v4531 = vsub.f32 %v4509, %v4527
    %v4532 = vsub.f32 %v4510, %v4528
    %v4533 = vsub.f32 %v4511, %v4529
    %v4534 = vmul.f32 %v4530, %v4530
    %v4535 = vmul.f32 %v4531, %v4531
    %v4536 = vmul.f32 %v4532, %v4532
    %v4537 = vmul.f32 %v4533, %v4533
    %v4538 = vsel %vm187, %v4534, 0.0
    %4539 = vadd.xlane.f32.xlu0 %v4538
    %v4540 = vpop.xlane.xlu0 %4539
    %v4541 = vsel %vm187, %v4535, 0.0
    %4542 = vadd.xlane.f32.xlu0 %v4541
    %v4543 = vpop.xlane.xlu0 %4542
    %v4544 = vsel %vm187, %v4536, 0.0
    %4545 = vadd.xlane.f32.xlu0 %v4544
    %v4546 = vpop.xlane.xlu0 %4545
    %v4547 = vsel %vm187, %v4537, 0.0
    %4548 = vadd.xlane.f32.xlu0 %v4547
    %v4549 = vpop.xlane.xlu0 %4548
    %v4550 = vmul.f32 %v4540, %v2355
    %v4551 = vmul.f32 %v4543, %v2355
    %v4552 = vmul.f32 %v4546, %v2355
    %v4553 = vmul.f32 %v4549, %v2355
    %v4554 = vadd.f32 %v4550, 1e-06
    %v4555 = vadd.f32 %v4551, 1e-06
    %v4556 = vadd.f32 %v4552, 1e-06
    %v4557 = vadd.f32 %v4553, 1e-06
    %v4558 = vrsqrt.pop %v4554
    %v4559 = vrsqrt.pop %v4555
    %v4560 = vrsqrt.pop %v4556
    %v4561 = vrsqrt.pop %v4557
    %v4562 = vmul.f32 %v4530, %v4558
    %v4563 = vmul.f32 %v4531, %v4559
    %v4564 = vmul.f32 %v4532, %v4560
    %v4565 = vmul.f32 %v4533, %v4561
    %v4567 = vlaneseq
    %v4568 = vshrl.u32 %v4567, 7
    %v4569 = vsub.s32 0, %v4568
    %v4570 = vrot.slane %v4512, %v4569
    %v4572 = vmul.f32 %v4562, %v4570
    %v4573 = vmul.f32 %v4563, %v4570
    %v4574 = vmul.f32 %v4564, %v4570
    %v4575 = vmul.f32 %v4565, %v4570
    %v4577 = vlaneseq
    %v4578 = vshrl.u32 %v4577, 7
    %v4579 = vsub.s32 0, %v4578
    %v4580 = vrot.slane %v4513, %v4579
    %v4582 = vadd.f32 %v4572, %v4580
    %v4583 = vadd.f32 %v4573, %v4580
    %v4584 = vadd.f32 %v4574, %v4580
    %v4585 = vadd.f32 %v4575, %v4580
    %v4586 = vpack.c.bf16 %v4583, %v4582
    %v4587 = vpack.c.bf16 %v4585, %v4584
    %v4588 = vld [vmem:[%s14] sm:$0x1]
    %v4590 = vlaneseq
    %v4591 = vshrl.u32 %v4590, 7
    %v4592 = vsub.s32 0, %v4591
    %v4593 = vrot.slane %v4588, %v4592
    %v4595 = vadd.f32 %v4582, %v4593
    %v4596 = vadd.f32 %v4583, %v4593
    %v4597 = vadd.f32 %v4584, %v4593
    %v4598 = vadd.f32 %v4585, %v4593
    %v4599 = vld [vmem:[%s11] sm:$0xf]
    %v4600 = vld [vmem:[%s11 + $0x4] sm:$0xf]
    %v4601 = vld [vmem:[%s11 + $0x8] sm:$0xf]
    %v4602 = vld [vmem:[%s11 + $0xc] sm:$0xf]
    %v4603 = vld [vmem:[%s12] sm:$0x1]
    %v4605 = vlaneseq
    %v4606 = vshrl.u32 %v4605, 7
    %v4607 = vsub.s32 0, %v4606
    %v4608 = vrot.slane %v4603, %v4607
    %v4614 = vunpack.c.l.b16 %v4599
    %v4615 = vunpack.c.l.b16 %v4600
    %v4616 = vunpack.c.l.b16 %v4601
    %v4617 = vunpack.c.l.b16 %v4602
    %v4618 = vpack.c.b16 %v4615, %v4614
    %v4619 = vpack.c.b16 %v4617, %v4616
    %v4623 = vsel %vm187, %v4586, 0
    %v4626 = vsel %vm187, %v4587, 0
    %4628 = vmatprep.subr.bf16.mxu0 0
    %4629 = vmatpush1.bf16.msra.mxu0 0
    %4630 = vmatprep.subr.bf16.mxu0 0
    %4631 = vmatpush1.bf16.msra.mxu0 0
    %4632 = vmatprep.subr.bf16.mxu0 0
    %4633 = vmatpush1.bf16.msra.mxu0 0
    %4634 = vmatprep.subr.bf16.mxu0 0
    %4635 = vmatpush1.bf16.msra.mxu0 0
    %4636 = vmatprep.subr.bf16.mxu0 0
    %4637 = vmatpush1.bf16.msra.mxu0 0
    %4638 = vmatprep.subr.bf16.mxu0 0
    %4639 = vmatpush1.bf16.msra.mxu0 0
    %4640 = vmatprep.subr.bf16.mxu0 0
    %4641 = vmatpush1.bf16.msra.mxu0 %v4619
    %4642 = vmatprep.subr.bf16.mxu0 0
    %4643 = vmatpush1.bf16.msra.mxu0 %v4618
    %4644 = vmatprep.subr.bf16.mxu0 0
    %4645 = vmatpush2.bf16.msra.mxu0 0
    %4646 = vmatprep.subr.bf16.mxu0 0
    %4647 = vmatpush2.bf16.msra.mxu0 0
    %4648 = vmatprep.subr.bf16.mxu0 0
    %4649 = vmatpush2.bf16.msra.mxu0 0
    %4650 = vmatprep.subr.bf16.mxu0 0
    %4651 = vmatpush2.bf16.msra.mxu0 0
    %4652 = vmatprep.subr.bf16.mxu0 0
    %4653 = vmatpush2.bf16.msra.mxu0 0
    %4654 = vmatprep.subr.bf16.mxu0 0
    %4655 = vmatpush2.bf16.msra.mxu0 0
    %4656 = vmatprep.subr.bf16.mxu0 0
    %4657 = vmatpush2.bf16.msra.mxu0 0
    %4658 = vmatprep.subr.bf16.mxu0 0
    %4659 = vmatpush2.bf16.msra.mxu0 0
    %4660 = vmatprep.mubr.bf16.mxu0 0
    %4661 = vmatmul.mubr.bf16.gmra.mxu0 %v4623
    %v4662 = vpop.f32.mrf.mxu0
    %v4663 = vadd.f32 %v4608, %v4662
    %v4664 = vpop.f32.mrf.mxu0
    %v4665 = vpop.f32.mrf.mxu0
    %v4666 = vadd.f32 %v4608, %v4665
    %v4667 = vpop.f32.mrf.mxu0
    %4668 = vmatprep.mubr.bf16.mxu0 0
    %4669 = vmatmul.mubr.bf16.gmra.mxu0 %v4626
    %v4670 = vpop.f32.mrf.mxu0
    %v4671 = vadd.f32 %v4608, %v4670
    %v4672 = vpop.f32.mrf.mxu0
    %v4673 = vpop.f32.mrf.mxu0
    %v4674 = vadd.f32 %v4608, %v4673
    %v4675 = vpop.f32.mrf.mxu0
    %4676 = vdwg.mxu0
    %v4677 = vmax.f32 %v4663, 0.0
    %v4678 = vmax.f32 %v4666, 0.0
    %v4679 = vmax.f32 %v4671, 0.0
    %v4680 = vmax.f32 %v4674, 0.0
    %v4681 = vpack.c.bf16 %v4678, %v4677
    %v4682 = vpack.c.bf16 %v4680, %v4679
    %v4683 = vld [vmem:[%s13] sm:$0xf]
    %v4684 = vld [vmem:[%s13 + $0x4] sm:$0xf]
    %v4685 = vld [vmem:[%s13 + $0x8] sm:$0xf]
    %v4686 = vld [vmem:[%s13 + $0xc] sm:$0xf]
    %v4687 = vld [vmem:[%s13 + $0x10] sm:$0xf]
    %v4688 = vld [vmem:[%s13 + $0x14] sm:$0xf]
    %v4689 = vld [vmem:[%s13 + $0x18] sm:$0xf]
    %v4690 = vld [vmem:[%s13 + $0x1c] sm:$0xf]
    %v4699 = vunpack.c.l.b16 %v4683
    %v4700 = vunpack.c.l.b16 %v4684
    %v4701 = vunpack.c.l.b16 %v4685
    %v4702 = vunpack.c.l.b16 %v4686
    %v4703 = vunpack.c.l.b16 %v4687
    %v4704 = vunpack.c.l.b16 %v4688
    %v4705 = vunpack.c.l.b16 %v4689
    %v4706 = vunpack.c.l.b16 %v4690
    %v4707 = vpack.c.b16 %v4700, %v4699
    %v4708 = vpack.c.b16 %v4702, %v4701
    %v4709 = vpack.c.b16 %v4704, %v4703
    %v4710 = vpack.c.b16 %v4706, %v4705
    %vm4715 = vcmask 523264
    %v4717 = vsel %vm4715, %v4681, 0
    %v4720 = vsel %vm4715, %v4682, 0
    %4722 = vmatprep.subr.bf16.mxu0 0
    %4723 = vmatpush1.bf16.msra.mxu0 0
    %4724 = vmatprep.subr.bf16.mxu0 0
    %4725 = vmatpush1.bf16.msra.mxu0 0
    %4726 = vmatprep.subr.bf16.mxu0 0
    %4727 = vmatpush1.bf16.msra.mxu0 0
    %4728 = vmatprep.subr.bf16.mxu0 0
    %4729 = vmatpush1.bf16.msra.mxu0 0
    %4730 = vmatprep.subr.bf16.mxu0 0
    %4731 = vmatpush1.bf16.msra.mxu0 %v4710
    %4732 = vmatprep.subr.bf16.mxu0 0
    %4733 = vmatpush1.bf16.msra.mxu0 %v4709
    %4734 = vmatprep.subr.bf16.mxu0 0
    %4735 = vmatpush1.bf16.msra.mxu0 %v4708
    %4736 = vmatprep.subr.bf16.mxu0 0
    %4737 = vmatpush1.bf16.msra.mxu0 %v4707
    %4738 = vmatprep.subr.bf16.mxu0 0
    %4739 = vmatpush2.bf16.msra.mxu0 0
    %4740 = vmatprep.subr.bf16.mxu0 0
    %4741 = vmatpush2.bf16.msra.mxu0 0
    %4742 = vmatprep.subr.bf16.mxu0 0
    %4743 = vmatpush2.bf16.msra.mxu0 0
    %4744 = vmatprep.subr.bf16.mxu0 0
    %4745 = vmatpush2.bf16.msra.mxu0 0
    %4746 = vmatprep.subr.bf16.mxu0 0
    %4747 = vmatpush2.bf16.msra.mxu0 0
    %4748 = vmatprep.subr.bf16.mxu0 0
    %4749 = vmatpush2.bf16.msra.mxu0 0
    %4750 = vmatprep.subr.bf16.mxu0 0
    %4751 = vmatpush2.bf16.msra.mxu0 0
    %4752 = vmatprep.subr.bf16.mxu0 0
    %4753 = vmatpush2.bf16.msra.mxu0 0
    %4754 = vmatprep.mubr.bf16.mxu0 0
    %4755 = vmatmul.mubr.bf16.gmra.mxu0 %v4717
    %v4756 = vpop.f32.mrf.mxu0
    %v4757 = vadd.f32 0.0, %v4756
    %v4758 = vpop.f32.mrf.mxu0
    %v4759 = vpop.f32.mrf.mxu0
    %v4760 = vadd.f32 0.0, %v4759
    %v4761 = vpop.f32.mrf.mxu0
    %4762 = vmatprep.mubr.bf16.mxu0 0
    %4763 = vmatmul.mubr.bf16.gmra.mxu0 %v4720
    %v4764 = vpop.f32.mrf.mxu0
    %v4765 = vadd.f32 0.0, %v4764
    %v4766 = vpop.f32.mrf.mxu0
    %v4767 = vpop.f32.mrf.mxu0
    %v4768 = vadd.f32 0.0, %v4767
    %v4769 = vpop.f32.mrf.mxu0
    %4770 = vdwg.mxu0
    %v4771 = vadd.f32 %v4595, %v4757
    %v4772 = vadd.f32 %v4596, %v4760
    %v4773 = vadd.f32 %v4597, %v4765
    %v4774 = vadd.f32 %v4598, %v4768
    %v4775 = vld [vmem:[%s15] sm:$0x1]
    %v4776 = vld [vmem:[%s16] sm:$0x1]
    %v4777 = vsel %vm187, %v4771, 0.0
    %4778 = vadd.xlane.f32.xlu0 %v4777
    %v4779 = vpop.xlane.xlu0 %4778
    %v4780 = vsel %vm187, %v4772, 0.0
    %4781 = vadd.xlane.f32.xlu0 %v4780
    %v4782 = vpop.xlane.xlu0 %4781
    %v4783 = vsel %vm187, %v4773, 0.0
    %4784 = vadd.xlane.f32.xlu0 %v4783
    %v4785 = vpop.xlane.xlu0 %4784
    %v4786 = vsel %vm187, %v4774, 0.0
    %4787 = vadd.xlane.f32.xlu0 %v4786
    %v4788 = vpop.xlane.xlu0 %4787
    %v4789 = vmul.f32 %v4779, %v2355
    %v4790 = vmul.f32 %v4782, %v2355
    %v4791 = vmul.f32 %v4785, %v2355
    %v4792 = vmul.f32 %v4788, %v2355
    %v4793 = vsub.f32 %v4771, %v4789
    %v4794 = vsub.f32 %v4772, %v4790
    %v4795 = vsub.f32 %v4773, %v4791
    %v4796 = vsub.f32 %v4774, %v4792
    %v4797 = vmul.f32 %v4793, %v4793
    %v4798 = vmul.f32 %v4794, %v4794
    %v4799 = vmul.f32 %v4795, %v4795
    %v4800 = vmul.f32 %v4796, %v4796
    %v4801 = vsel %vm187, %v4797, 0.0
    %4802 = vadd.xlane.f32.xlu0 %v4801
    %v4803 = vpop.xlane.xlu0 %4802
    %v4804 = vsel %vm187, %v4798, 0.0
    %4805 = vadd.xlane.f32.xlu0 %v4804
    %v4806 = vpop.xlane.xlu0 %4805
    %v4807 = vsel %vm187, %v4799, 0.0
    %4808 = vadd.xlane.f32.xlu0 %v4807
    %v4809 = vpop.xlane.xlu0 %4808
    %v4810 = vsel %vm187, %v4800, 0.0
    %4811 = vadd.xlane.f32.xlu0 %v4810
    %v4812 = vpop.xlane.xlu0 %4811
    %v4813 = vmul.f32 %v4803, %v2355
    %v4814 = vmul.f32 %v4806, %v2355
    %v4815 = vmul.f32 %v4809, %v2355
    %v4816 = vmul.f32 %v4812, %v2355
    %v4817 = vadd.f32 %v4813, 1e-06
    %v4818 = vadd.f32 %v4814, 1e-06
    %v4819 = vadd.f32 %v4815, 1e-06
    %v4820 = vadd.f32 %v4816, 1e-06
    %v4821 = vrsqrt.pop %v4817
    %v4822 = vrsqrt.pop %v4818
    %v4823 = vrsqrt.pop %v4819
    %v4824 = vrsqrt.pop %v4820
    %v4825 = vmul.f32 %v4793, %v4821
    %v4826 = vmul.f32 %v4794, %v4822
    %v4827 = vmul.f32 %v4795, %v4823
    %v4828 = vmul.f32 %v4796, %v4824
    %v4830 = vlaneseq
    %v4831 = vshrl.u32 %v4830, 7
    %v4832 = vsub.s32 0, %v4831
    %v4833 = vrot.slane %v4775, %v4832
    %v4835 = vmul.f32 %v4825, %v4833
    %v4836 = vmul.f32 %v4826, %v4833
    %v4837 = vmul.f32 %v4827, %v4833
    %v4838 = vmul.f32 %v4828, %v4833
    %v4840 = vlaneseq
    %v4841 = vshrl.u32 %v4840, 7
    %v4842 = vsub.s32 0, %v4841
    %v4843 = vrot.slane %v4776, %v4842
    %v4845 = vadd.f32 %v4835, %v4843
    %v4846 = vadd.f32 %v4836, %v4843
    %v4847 = vadd.f32 %v4837, %v4843
    %v4848 = vadd.f32 %v4838, %v4843
    %4849 = vst.msk [vmem:[#allocation16] sm:$0xff] %vm187, %v4845
    %4850 = vst.msk [vmem:[#allocation16 + $0x8] sm:$0xff] %vm187, %v4846
    %4851 = vst.msk [vmem:[#allocation16 + $0x10] sm:$0xff] %vm187, %v4847
    %4852 = vst.msk [vmem:[#allocation16 + $0x18] sm:$0xff] %vm187, %v4848
    // Predicated region
    $region102: #{tpu_custom_call.1} parent=1 // pred_check
      _
    $region103: #{tpu_custom_call.1} parent=1 // pred_check_branch
      %4854 = sbr.rel (0) target = $region105
    $region104: #{tpu_custom_call.1} parent=1 // pred_region
      %s4856 = ssub.s32 512, 512
      %4857 = vsyncadd [#allocation4], %s4856
      %s4858 = sshll.u32 [#allocation16], 4
      %s4859 = int_to_ptr.vmem [resolvable:$true] %s4858
      %4864 = dma.vmem_to_hbm [thread:$0]  %s4859, 512, %s17, [#allocation4], 128, 128, 8
    $region105: #{tpu_custom_call.1} parent=1 // pred_fallthru
      _
    // Predicated region
    $region106: #{tpu_custom_call.1} parent=1 // pred_check
      _
    $region107: #{tpu_custom_call.1} parent=1 // pred_check_branch
      %4866 = sbr.rel (0) target = $region109
    $region108: #{tpu_custom_call.1} parent=1 // pred_region
      %4867 = dma.done [#allocation4], 512
    $region109: #{tpu_custom_call.1} parent=1 // pred_fallthru
      _
    %4868 = vsyncpa [#allocation3], 1
    %4869 = vsyncpa [#allocation6], 1
    %4870 = vsyncpa [#allocation9], 1
    %4871 = vsyncpa [#allocation12], 1
    %4872 = vsyncpa [#allocation15], 1
    %4873 = vsyncpa [#allocation4], 1

// kernel: tpu_custom_call.1
$region0: #{tpu_custom_call.1}
  #allocation0 [shape = 'u32[]', space=smem, size = 0x4, offset = 0x4, fixed_abs, tag = 'smem constant byte address 0x4 - core index']
  #allocation1 [shape = 'u32[144,128]{1,0:T(1,128)}', space=vmem, size = 0x12000, scoped, tag = 'internal scratch']
  %s0 = inlined_call_operand.vmem [shape: f32[4,8,32], index: 0, kind: input, shape index: {}]
  %s1 = inlined_call_operand.hbm [shape: f32[4,8,32], index: 1, kind: input, shape index: {}]
  %s2 = inlined_call_operand.vmem [shape: bf16[32,32], index: 2, kind: input, shape index: {}]
  %s3 = inlined_call_operand.hbm [shape: bf16[32,32], index: 3, kind: input, shape index: {}]
  %s4 = inlined_call_operand.hbm [shape: bf16[32,128], index: 4, kind: input, shape index: {}]
  %s5 = inlined_call_operand.hbm [shape: bf16[4,8,32], index: 5, kind: input, shape index: {}]
  %s6 = inlined_call_operand.hbm [shape: bf16[4,8,32], index: 6, kind: input, shape index: {}]
  %s7 = inlined_call_operand.hbm [shape: f32[1,32], index: 7, kind: input, shape index: {}]
  %s8 = inlined_call_operand.hbm [shape: f32[1,32], index: 8, kind: input, shape index: {}]
  %s9 = inlined_call_operand.hbm [shape: f32[1,32], index: 9, kind: input, shape index: {}]
  %s10 = inlined_call_operand.vmem [shape: f32[1,32], index: 10, kind: input, shape index: {}]
  %s11 = inlined_call_operand.vmem [shape: bf16[32,64], index: 11, kind: input, shape index: {}]
  %s12 = inlined_call_operand.vmem [shape: f32[1,64], index: 12, kind: input, shape index: {}]
  %s13 = inlined_call_operand.vmem [shape: bf16[64,32], index: 13, kind: input, shape index: {}]
  %s14 = inlined_call_operand.vmem [shape: f32[1,32], index: 14, kind: input, shape index: {}]
  %s15 = inlined_call_operand.vmem [shape: f32[1,32], index: 15, kind: input, shape index: {}]
  %s16 = inlined_call_operand.vmem [shape: f32[1,32], index: 16, kind: input, shape index: {}]
  %s17 = inlined_call_operand.hbm [shape: f32[4,8,32], index: 17, kind: output, shape index: {}]
  %s18 = sld [smem:[#allocation0]]
  $region110: #{tpu_custom_call.1} parent=0
    _
  %s20 = ssub.s32 1, %s18
  %s21 = scalar_select 0, %s20, %s18
  $region1: #{tpu_custom_call.1} parent=0
    #allocation2 [shape = 'u8[16384]{0}', space=vmem, size = 0x4000, scoped, tag = 'input window, operand 1, single buffered']
    #allocation3 [shape = 's32[1]{0}', space=sflag, size = 0x4, scoped, tag = 'scoped memory for tpu_custom_call.1']
    #allocation4 [shape = 's32[1]{0}', space=sflag, size = 0x4, scoped, tag = 'scoped memory for tpu_custom_call.1']
    #allocation5 [shape = 'u8[8192]{0}', space=vmem, size = 0x2000, scoped, tag = 'input window, operand 3, single buffered']
    #allocation6 [shape = 's32[1]{0}', space=sflag, size = 0x4, scoped, tag = 'scoped memory for tpu_custom_call.1']
    #allocation7 [shape = 'u8[8192]{0}', space=vmem, size = 0x2000, scoped, tag = 'input window, operand 4, single buffered']
    #allocation8 [shape = 'u8[8192]{0}', space=vmem, size = 0x2000, scoped, tag = 'input window, operand 5, single buffered']
    #allocation9 [shape = 's32[1]{0}', space=sflag, size = 0x4, scoped, tag = 'scoped memory for tpu_custom_call.1']
    #allocation10 [shape = 'u8[8192]{0}', space=vmem, size = 0x2000, scoped, tag = 'input window, operand 6, single buffered']
    #allocation11 [shape = 'u8[512]{0}', space=vmem, size = 0x400, scoped, tag = 'input window, operand 7, single buffered']
    #allocation12 [shape = 's32[1]{0}', space=sflag, size = 0x4, scoped, tag = 'scoped memory for tpu_custom_call.1']
    #allocation13 [shape = 'u8[512]{0}', space=vmem, size = 0x400, scoped, tag = 'input window, operand 8, single buffered']
    #allocation14 [shape = 'u8[512]{0}', space=vmem, size = 0x400, scoped, tag = 'input window, operand 9, single buffered']
    #allocation15 [shape = 's32[1]{0}', space=sflag, size = 0x4, scoped, tag = 'scoped memory for tpu_custom_call.1']
    #allocation16 [shape = 'u8[16384]{0}', space=vmem, size = 0x4000, scoped, tag = 'output window, operand 0, single buffered']
    %22 = vsyncpa [#allocation3], 0
    %23 = vsyncpa [#allocation6], 0
    %24 = vsyncpa [#allocation9], 0
    %25 = vsyncpa [#allocation12], 0
    %26 = vsyncpa [#allocation15], 0
    %27 = vsyncpa [#allocation4], 0
    // Predicated region
    $region2: #{tpu_custom_call.1} parent=1 // pred_check
      _
    $region3: #{tpu_custom_call.1} parent=1 // pred_check_branch
      %29 = sbr.rel (0) target = $region5
    $region4: #{tpu_custom_call.1} parent=1 // pred_region
      _
    $region5: #{tpu_custom_call.1} parent=1 // pred_fallthru
      _
    // Predicated region
    $region6: #{tpu_custom_call.1} parent=1 // pred_check
      _
    $region7: #{tpu_custom_call.1} parent=1 // pred_check_branch
      %31 = sbr.rel (0) target = $region9
    $region8: #{tpu_custom_call.1} parent=1 // pred_region
      %s33 = ssub.s32 512, 512
      %34 = vsyncadd [#allocation3], %s33
      %s35 = sshll.u32 [#allocation2], 4
      %s36 = int_to_ptr.vmem [resolvable:$true] %s35
      %41 = dma.hbm_to_vmem [thread:$0]  %s1, 512, %s36, [#allocation3], 128, 128, 8
    $region9: #{tpu_custom_call.1} parent=1 // pred_fallthru
      _
    // Predicated region
    $region10: #{tpu_custom_call.1} parent=1 // pred_check
      _
    $region11: #{tpu_custom_call.1} parent=1 // pred_check_branch
      %43 = sbr.rel (0) target = $region13
    $region12: #{tpu_custom_call.1} parent=1 // pred_region
      _
    $region13: #{tpu_custom_call.1} parent=1 // pred_fallthru
      _
    // Predicated region
    $region14: #{tpu_custom_call.1} parent=1 // pred_check
      _
    $region15: #{tpu_custom_call.1} parent=1 // pred_check_branch
      %45 = sbr.rel (0) target = $region17
    $region16: #{tpu_custom_call.1} parent=1 // pred_region
      %s47 = ssub.s32 256, 256
      %48 = vsyncadd [#allocation6], %s47
      %s49 = sshll.u32 [#allocation5], 4
      %s50 = int_to_ptr.vmem [resolvable:$true] %s49
      %55 = dma.hbm_to_vmem [thread:$0]  %s3, 256, %s50, [#allocation6], 64, 64, 4
    $region17: #{tpu_custom_call.1} parent=1 // pred_fallthru
      _
    // Predicated region
    $region18: #{tpu_custom_call.1} parent=1 // pred_check
      _
    $region19: #{tpu_custom_call.1} parent=1 // pred_check_branch
      %57 = sbr.rel (0) target = $region21
    $region20: #{tpu_custom_call.1} parent=1 // pred_region
      %s59 = ssub.s32 256, 256
      %60 = vsyncadd [#allocation6], %s59
      %s61 = sshll.u32 [#allocation7], 4
      %s62 = int_to_ptr.vmem [resolvable:$true] %s61
      %67 = dma.hbm_to_vmem [thread:$0]  %s4, 256, %s62, [#allocation6], 64, 64, 4
    $region21: #{tpu_custom_call.1} parent=1 // pred_fallthru
      _
    // Predicated region
    $region22: #{tpu_custom_call.1} parent=1 // pred_check
      _
    $region23: #{tpu_custom_call.1} parent=1 // pred_check_branch
      %69 = sbr.rel (0) target = $region25
    $region24: #{tpu_custom_call.1} parent=1 // pred_region
      %s71 = ssub.s32 256, 256
      %72 = vsyncadd [#allocation9], %s71
      %s73 = sshll.u32 [#allocation8], 4
      %s74 = int_to_ptr.vmem [resolvable:$true] %s73
      %79 = dma.hbm_to_vmem [thread:$0]  %s5, 256, %s74, [#allocation9], 64, 64, 4
    $region25: #{tpu_custom_call.1} parent=1 // pred_fallthru
      _
    // Predicated region
    $region26: #{tpu_custom_call.1} parent=1 // pred_check
      _
    $region27: #{tpu_custom_call.1} parent=1 // pred_check_branch
      %81 = sbr.rel (0) target = $region29
    $region28: #{tpu_custom_call.1} parent=1 // pred_region
      %s83 = ssub.s32 256, 256
      %84 = vsyncadd [#allocation9], %s83
      %s85 = sshll.u32 [#allocation10], 4
      %s86 = int_to_ptr.vmem [resolvable:$true] %s85
      %91 = dma.hbm_to_vmem [thread:$0]  %s6, 256, %s86, [#allocation9], 64, 64, 4
    $region29: #{tpu_custom_call.1} parent=1 // pred_fallthru
      _
    // Predicated region
    $region30: #{tpu_custom_call.1} parent=1 // pred_check
      _
    $region31: #{tpu_custom_call.1} parent=1 // pred_check_branch
      %93 = sbr.rel (0) target = $region33
    $region32: #{tpu_custom_call.1} parent=1 // pred_region
      %s95 = ssub.s32 16, 16
      %96 = vsyncadd [#allocation12], %s95
      %s98 = sshll.u32 [#allocation11], 4
      %s99 = int_to_ptr.vmem [resolvable:$true] %s98
      %101 = dma.hbm_to_vmem [thread:$0]  %s7, 16, %s99, [#allocation12]
    $region33: #{tpu_custom_call.1} parent=1 // pred_fallthru
      _
    // Predicated region
    $region34: #{tpu_custom_call.1} parent=1 // pred_check
      _
    $region35: #{tpu_custom_call.1} parent=1 // pred_check_branch
      %103 = sbr.rel (0) target = $region37
    $region36: #{tpu_custom_call.1} parent=1 // pred_region
      %s105 = ssub.s32 16, 16
      %106 = vsyncadd [#allocation12], %s105
      %s108 = sshll.u32 [#allocation13], 4
      %s109 = int_to_ptr.vmem [resolvable:$true] %s108
      %111 = dma.hbm_to_vmem [thread:$0]  %s8, 16, %s109, [#allocation12]
    $region37: #{tpu_custom_call.1} parent=1 // pred_fallthru
      _
    // Predicated region
    $region38: #{tpu_custom_call.1} parent=1 // pred_check
      _
    $region39: #{tpu_custom_call.1} parent=1 // pred_check_branch
      %113 = sbr.rel (0) target = $region41
    $region40: #{tpu_custom_call.1} parent=1 // pred_region
      %s115 = ssub.s32 16, 16
      %116 = vsyncadd [#allocation15], %s115
      %s118 = sshll.u32 [#allocation14], 4
      %s119 = int_to_ptr.vmem [resolvable:$true] %s118
      %121 = dma.hbm_to_vmem [thread:$0]  %s9, 16, %s119, [#allocation15]
    $region41: #{tpu_custom_call.1} parent=1 // pred_fallthru
      _
    // Predicated region
    $region42: #{tpu_custom_call.1} parent=1 // pred_check
      _
    $region43: #{tpu_custom_call.1} parent=1 // pred_check_branch
      %123 = sbr.rel (0) target = $region45
    $region44: #{tpu_custom_call.1} parent=1 // pred_region
      _
    $region45: #{tpu_custom_call.1} parent=1 // pred_fallthru
      _
    // Predicated region
    $region46: #{tpu_custom_call.1} parent=1 // pred_check
      _
    $region47: #{tpu_custom_call.1} parent=1 // pred_check_branch
      %125 = sbr.rel (0) target = $region49
    $region48: #{tpu_custom_call.1} parent=1 // pred_region
      _
    $region49: #{tpu_custom_call.1} parent=1 // pred_fallthru
      _
    // Predicated region
    $region50: #{tpu_custom_call.1} parent=1 // pred_check
      _
    $region51: #{tpu_custom_call.1} parent=1 // pred_check_branch
      %127 = sbr.rel (0) target = $region53
    $region52: #{tpu_custom_call.1} parent=1 // pred_region
      _
    $region53: #{tpu_custom_call.1} parent=1 // pred_fallthru
      _
    // Predicated region
    $region54: #{tpu_custom_call.1} parent=1 // pred_check
      _
    $region55: #{tpu_custom_call.1} parent=1 // pred_check_branch
      %129 = sbr.rel (0) target = $region57
    $region56: #{tpu_custom_call.1} parent=1 // pred_region
      _
    $region57: #{tpu_custom_call.1} parent=1 // pred_fallthru
      _
    // Predicated region
    $region58: #{tpu_custom_call.1} parent=1 // pred_check
      _
    $region59: #{tpu_custom_call.1} parent=1 // pred_check_branch
      %131 = sbr.rel (0) target = $region61
    $region60: #{tpu_custom_call.1} parent=1 // pred_region
      _
    $region61: #{tpu_custom_call.1} parent=1 // pred_fallthru
      _
    // Predicated region
    $region62: #{tpu_custom_call.1} parent=1 // pred_check
      _
    $region63: #{tpu_custom_call.1} parent=1 // pred_check_branch
      %133 = sbr.rel (0) target = $region65
    $region64: #{tpu_custom_call.1} parent=1 // pred_region
      _
    $region65: #{tpu_custom_call.1} parent=1 // pred_fallthru
      _
    // Predicated region
    $region66: #{tpu_custom_call.1} parent=1 // pred_check
      _
    $region67: #{tpu_custom_call.1} parent=1 // pred_check_branch
      %135 = sbr.rel (0) target = $region69
    $region68: #{tpu_custom_call.1} parent=1 // pred_region
      _
    $region69: #{tpu_custom_call.1} parent=1 // pred_fallthru
      _
    // Predicated region
    $region70: #{tpu_custom_call.1} parent=1 // pred_check
      _
    $region71: #{tpu_custom_call.1} parent=1 // pred_check_branch
      %137 = sbr.rel (0) target = $region73
    $region72: #{tpu_custom_call.1} parent=1 // pred_region
      %138 = dma.done [#allocation3], 512
    $region73: #{tpu_custom_call.1} parent=1 // pred_fallthru
      _
    // Predicated region
    $region74: #{tpu_custom_call.1} parent=1 // pred_check
      _
    $region75: #{tpu_custom_call.1} parent=1 // pred_check_branch
      %140 = sbr.rel (0) target = $region77
    $region76: #{tpu_custom_call.1} parent=1 // pred_region
      %141 = dma.done [#allocation6], 256
    $region77: #{tpu_custom_call.1} parent=1 // pred_fallthru
      _
    // Predicated region
    $region78: #{tpu_custom_call.1} parent=1 // pred_check
      _
    $region79: #{tpu_custom_call.1} parent=1 // pred_check_branch
      %143 = sbr.rel (0) target = $region81
    $region80: #{tpu_custom_call.1} parent=1 // pred_region
      %144 = dma.done [#allocation6], 256
    $region81: #{tpu_custom_call.1} parent=1 // pred_fallthru
      _
    // Predicated region
    $region82: #{tpu_custom_call.1} parent=1 // pred_check
      _
    $region83: #{tpu_custom_call.1} parent=1 // pred_check_branch
      %146 = sbr.rel (0) target = $region85
    $region84: #{tpu_custom_call.1} parent=1 // pred_region
      %147 = dma.done [#allocation9], 256
    $region85: #{tpu_custom_call.1} parent=1 // pred_fallthru
      _
    // Predicated region
    $region86: #{tpu_custom_call.1} parent=1 // pred_check
      _
    $region87: #{tpu_custom_call.1} parent=1 // pred_check_branch
      %149 = sbr.rel (0) target = $region89
    $region88: #{tpu_custom_call.1} parent=1 // pred_region
      %150 = dma.done [#allocation9], 256
    $region89: #{tpu_custom_call.1} parent=1 // pred_fallthru
      _
    // Predicated region
    $region90: #{tpu_custom_call.1} parent=1 // pred_check
      _
    $region91: #{tpu_custom_call.1} parent=1 // pred_check_branch
      %152 = sbr.rel (0) target = $region93
    $region92: #{tpu_custom_call.1} parent=1 // pred_region
      %153 = dma.done [#allocation12], 16
    $region93: #{tpu_custom_call.1} parent=1 // pred_fallthru
      _
    // Predicated region
    $region94: #{tpu_custom_call.1} parent=1 // pred_check
      _
    $region95: #{tpu_custom_call.1} parent=1 // pred_check_branch
      %155 = sbr.rel (0) target = $region97
    $region96: #{tpu_custom_call.1} parent=1 // pred_region
      %156 = dma.done [#allocation12], 16
    $region97: #{tpu_custom_call.1} parent=1 // pred_fallthru
      _
    // Predicated region
    $region98: #{tpu_custom_call.1} parent=1 // pred_check
      _
    $region99: #{tpu_custom_call.1} parent=1 // pred_check_branch
      %158 = sbr.rel (0) target = $region101
    $region100: #{tpu_custom_call.1} parent=1 // pred_region
      %159 = dma.done [#allocation15], 16
    $region101: #{tpu_custom_call.1} parent=1 // pred_fallthru
      _
    %v161 = vld [vmem:[%s0] sm:$0xff]
    %v162 = vld [vmem:[%s0 + $0x8] sm:$0xff]
    %v163 = vld [vmem:[%s0 + $0x10] sm:$0xff]
    %v164 = vld [vmem:[%s0 + $0x18] sm:$0xff]
    %v165 = vld [vmem:[#allocation2] sm:$0xff]
    %v166 = vld [vmem:[#allocation2 + $0x8] sm:$0xff]
    %v167 = vld [vmem:[#allocation2 + $0x10] sm:$0xff]
    %v168 = vld [vmem:[#allocation2 + $0x18] sm:$0xff]
    %v169 = vpack.c.bf16 %v166, %v165
    %v170 = vpack.c.bf16 %v168, %v167
    %v171 = vld [vmem:[#allocation7] sm:$0xf]
    %v172 = vld [vmem:[#allocation7 + $0x4] sm:$0xf]
    %v173 = vld [vmem:[#allocation7 + $0x8] sm:$0xf]
    %v174 = vld [vmem:[#allocation7 + $0xc] sm:$0xf]
    %v179 = vunpack.c.l.b16 %v171
    %v180 = vunpack.c.l.b16 %v172
    %v181 = vunpack.c.l.b16 %v173
    %v182 = vunpack.c.l.b16 %v174
    %v183 = vpack.c.b16 %v180, %v179
    %v184 = vpack.c.b16 %v182, %v181
    %vm187 = vcmask 261120
    %v189 = vsel %vm187, %v169, 0
    %v192 = vsel %vm187, %v170, 0
    %194 = vmatprep.subr.bf16.mxu0 0
    %195 = vmatpush1.bf16.msra.mxu0 0
    %196 = vmatprep.subr.bf16.mxu0 0
    %197 = vmatpush1.bf16.msra.mxu0 0
    %198 = vmatprep.subr.bf16.mxu0 0
    %199 = vmatpush1.bf16.msra.mxu0 0
    %200 = vmatprep.subr.bf16.mxu0 0
    %201 = vmatpush1.bf16.msra.mxu0 0
    %202 = vmatprep.subr.bf16.mxu0 0
    %203 = vmatpush1.bf16.msra.mxu0 0
    %204 = vmatprep.subr.bf16.mxu0 0
    %205 = vmatpush1.bf16.msra.mxu0 0
    %206 = vmatprep.subr.bf16.mxu0 0
    %207 = vmatpush1.bf16.msra.mxu0 %v184
    %208 = vmatprep.subr.bf16.mxu0 0
    %209 = vmatpush1.bf16.msra.mxu0 %v183
    %210 = vmatprep.subr.bf16.mxu0 0
    %211 = vmatpush2.bf16.msra.mxu0 0
    %212 = vmatprep.subr.bf16.mxu0 0
    %213 = vmatpush2.bf16.msra.mxu0 0
    %214 = vmatprep.subr.bf16.mxu0 0
    %215 = vmatpush2.bf16.msra.mxu0 0
    %216 = vmatprep.subr.bf16.mxu0 0
    %217 = vmatpush2.bf16.msra.mxu0 0
    %218 = vmatprep.subr.bf16.mxu0 0
    %219 = vmatpush2.bf16.msra.mxu0 0
    %220 = vmatprep.subr.bf16.mxu0 0
    %221 = vmatpush2.bf16.msra.mxu0 0
    %222 = vmatprep.subr.bf16.mxu0 0
    %223 = vmatpush2.bf16.msra.mxu0 0
    %224 = vmatprep.subr.bf16.mxu0 0
    %225 = vmatpush2.bf16.msra.mxu0 0
    %226 = vmatprep.mubr.bf16.mxu0 0
    %227 = vmatmul.mubr.bf16.gmra.mxu0 %v189
    %v228 = vpop.f32.mrf.mxu0
    %v229 = vadd.f32 0.0, %v228
    %v230 = vpop.f32.mrf.mxu0
    %v231 = vpop.f32.mrf.mxu0
    %v232 = vadd.f32 0.0, %v231
    %v233 = vpop.f32.mrf.mxu0
    %234 = vmatprep.mubr.bf16.mxu0 0
    %235 = vmatmul.mubr.bf16.gmra.mxu0 %v192
    %v236 = vpop.f32.mrf.mxu0
    %v237 = vadd.f32 0.0, %v236
    %v238 = vpop.f32.mrf.mxu0
    %v239 = vpop.f32.mrf.mxu0
    %v240 = vadd.f32 0.0, %v239
    %v241 = vpop.f32.mrf.mxu0
    %242 = vdwg.mxu0
    %v243 = vpack.c.bf16 %v162, %v161
    %v244 = vpack.c.bf16 %v164, %v163
    %v245 = vld [vmem:[%s2] sm:$0xf]
    %v246 = vld [vmem:[%s2 + $0x4] sm:$0xf]
    %v247 = vld [vmem:[%s2 + $0x8] sm:$0xf]
    %v248 = vld [vmem:[%s2 + $0xc] sm:$0xf]
    %v253 = vunpack.c.l.b16 %v245
    %v254 = vunpack.c.l.b16 %v246
    %v255 = vunpack.c.l.b16 %v247
    %v256 = vunpack.c.l.b16 %v248
    %v257 = vpack.c.b16 %v254, %v253
    %v258 = vpack.c.b16 %v256, %v255
    %v262 = vsel %vm187, %v243, 0
    %v265 = vsel %vm187, %v244, 0
    %267 = vmatprep.subr.bf16.mxu0 0
    %268 = vmatpush1.bf16.msra.mxu0 0
    %269 = vmatprep.subr.bf16.mxu0 0
    %270 = vmatpush1.bf16.msra.mxu0 0
    %271 = vmatprep.subr.bf16.mxu0 0
    %272 = vmatpush1.bf16.msra.mxu0 0
    %273 = vmatprep.subr.bf16.mxu0 0
    %274 = vmatpush1.bf16.msra.mxu0 0
    %275 = vmatprep.subr.bf16.mxu0 0
    %276 = vmatpush1.bf16.msra.mxu0 0
    %277 = vmatprep.subr.bf16.mxu0 0
    %278 = vmatpush1.bf16.msra.mxu0 0
    %279 = vmatprep.subr.bf16.mxu0 0
    %280 = vmatpush1.bf16.msra.mxu0 %v258
    %281 = vmatprep.subr.bf16.mxu0 0
    %282 = vmatpush1.bf16.msra.mxu0 %v257
    %283 = vmatprep.subr.bf16.mxu0 0
    %284 = vmatpush2.bf16.msra.mxu0 0
    %285 = vmatprep.subr.bf16.mxu0 0
    %286 = vmatpush2.bf16.msra.mxu0 0
    %287 = vmatprep.subr.bf16.mxu0 0
    %288 = vmatpush2.bf16.msra.mxu0 0
    %289 = vmatprep.subr.bf16.mxu0 0
    %290 = vmatpush2.bf16.msra.mxu0 0
    %291 = vmatprep.subr.bf16.mxu0 0
    %292 = vmatpush2.bf16.msra.mxu0 0
    %293 = vmatprep.subr.bf16.mxu0 0
    %294 = vmatpush2.bf16.msra.mxu0 0
    %295 = vmatprep.subr.bf16.mxu0 0
    %296 = vmatpush2.bf16.msra.mxu0 0
    %297 = vmatprep.subr.bf16.mxu0 0
    %298 = vmatpush2.bf16.msra.mxu0 0
    %299 = vmatprep.mubr.bf16.mxu0 0
    %300 = vmatmul.mubr.bf16.gmra.mxu0 %v262
    %v301 = vpop.f32.mrf.mxu0
    %v302 = vadd.f32 0.0, %v301
    %v303 = vpop.f32.mrf.mxu0
    %v304 = vpop.f32.mrf.mxu0
    %v305 = vadd.f32 0.0, %v304
    %v306 = vpop.f32.mrf.mxu0
    %307 = vmatprep.mubr.bf16.mxu0 0
    %308 = vmatmul.mubr.bf16.gmra.mxu0 %v265
    %v309 = vpop.f32.mrf.mxu0
    %v310 = vadd.f32 0.0, %v309
    %v311 = vpop.f32.mrf.mxu0
    %v312 = vpop.f32.mrf.mxu0
    %v313 = vadd.f32 0.0, %v312
    %v314 = vpop.f32.mrf.mxu0
    %315 = vdwg.mxu0
    %v316 = vpack.c.bf16 %v302, %v302
    %v317 = vpack.c.bf16 %v305, %v305
    %v318 = vpack.c.bf16 %v310, %v310
    %v319 = vpack.c.bf16 %v313, %v313
    %v320 = vpack.c.bf16 %v229, %v229
    %v321 = vpack.c.bf16 %v232, %v232
    %v322 = vpack.c.bf16 %v237, %v237
    %v323 = vpack.c.bf16 %v240, %v240
    %vm324 = vcmask 64512
    %v326 = vsel %vm324, %v316, 0
    %v329 = vsel %vm324, %v320, 0
    %331 = vmatprep.subr.bf16.mxu0 0
    %332 = vmatpush1.bf16.xpose.msra.mxu0 0
    %333 = vmatprep.subr.bf16.mxu0 0
    %334 = vmatpush1.bf16.xpose.msra.mxu0 0
    %335 = vmatprep.subr.bf16.mxu0 0
    %336 = vmatpush1.bf16.xpose.msra.mxu0 0
    %337 = vmatprep.subr.bf16.mxu0 0
    %338 = vmatpush1.bf16.xpose.msra.mxu0 0
    %339 = vmatprep.subr.bf16.mxu0 0
    %340 = vmatpush1.bf16.xpose.msra.mxu0 0
    %341 = vmatprep.subr.bf16.mxu0 0
    %342 = vmatpush1.bf16.xpose.msra.mxu0 0
    %343 = vmatprep.subr.bf16.mxu0 0
    %344 = vmatpush1.bf16.xpose.msra.mxu0 0
    %345 = vmatprep.subr.bf16.mxu0 0
    %346 = vmatpush1.bf16.xpose.msra.mxu0 %v329
    %347 = vmatprep.subr.bf16.mxu0 0
    %348 = vmatpush2.bf16.xpose.msra.mxu0 0
    %349 = vmatprep.subr.bf16.mxu0 0
    %350 = vmatpush2.bf16.xpose.msra.mxu0 0
    %351 = vmatprep.subr.bf16.mxu0 0
    %352 = vmatpush2.bf16.xpose.msra.mxu0 0
    %353 = vmatprep.subr.bf16.mxu0 0
    %354 = vmatpush2.bf16.xpose.msra.mxu0 0
    %355 = vmatprep.subr.bf16.mxu0 0
    %356 = vmatpush2.bf16.xpose.msra.mxu0 0
    %357 = vmatprep.subr.bf16.mxu0 0
    %358 = vmatpush2.bf16.xpose.msra.mxu0 0
    %359 = vmatprep.subr.bf16.mxu0 0
    %360 = vmatpush2.bf16.xpose.msra.mxu0 0
    %361 = vmatprep.subr.bf16.mxu0 0
    %362 = vmatpush2.bf16.xpose.msra.mxu0 0
    %363 = vmatprep.mubr.bf16.mxu0 0
    %364 = vmatmul.mubr.bf16.gmra.mxu0 %v326
    %v365 = vpop.f32.mrf.mxu0
    %v366 = vadd.f32 0.0, %v365
    %v367 = vpop.f32.mrf.mxu0
    %v368 = vpop.f32.mrf.mxu0
    %v369 = vpop.f32.mrf.mxu0
    %370 = vdwg.mxu0
    %v372 = vsel %vm324, %v317, 0
    %v375 = vsel %vm324, %v321, 0
    %377 = vmatprep.subr.bf16.mxu0 0
    %378 = vmatpush1.bf16.xpose.msra.mxu0 0
    %379 = vmatprep.subr.bf16.mxu0 0
    %380 = vmatpush1.bf16.xpose.msra.mxu0 0
    %381 = vmatprep.subr.bf16.mxu0 0
    %382 = vmatpush1.bf16.xpose.msra.mxu0 0
    %383 = vmatprep.subr.bf16.mxu0 0
    %384 = vmatpush1.bf16.xpose.msra.mxu0 0
    %385 = vmatprep.subr.bf16.mxu0 0
    %386 = vmatpush1.bf16.xpose.msra.mxu0 0
    %387 = vmatprep.subr.bf16.mxu0 0
    %388 = vmatpush1.bf16.xpose.msra.mxu0 0
    %389 = vmatprep.subr.bf16.mxu0 0
    %390 = vmatpush1.bf16.xpose.msra.mxu0 0
    %391 = vmatprep.subr.bf16.mxu0 0
    %392 = vmatpush1.bf16.xpose.msra.mxu0 %v375
    %393 = vmatprep.subr.bf16.mxu0 0
    %394 = vmatpush2.bf16.xpose.msra.mxu0 0
    %395 = vmatprep.subr.bf16.mxu0 0
    %396 = vmatpush2.bf16.xpose.msra.mxu0 0
    %397 = vmatprep.subr.bf16.mxu0 0
    %398 = vmatpush2.bf16.xpose.msra.mxu0 0
    %399 = vmatprep.subr.bf16.mxu0 0
    %400 = vmatpush2.bf16.xpose.msra.mxu0 0
    %401 = vmatprep.subr.bf16.mxu0 0
    %402 = vmatpush2.bf16.xpose.msra.mxu0 0
    %403 = vmatprep.subr.bf16.mxu0 0
    %404 = vmatpush2.bf16.xpose.msra.mxu0 0
    %405 = vmatprep.subr.bf16.mxu0 0
    %406 = vmatpush2.bf16.xpose.msra.mxu0 0
    %407 = vmatprep.subr.bf16.mxu0 0
    %408 = vmatpush2.bf16.xpose.msra.mxu0 0
    %409 = vmatprep.mubr.bf16.mxu0 0
    %410 = vmatmul.mubr.bf16.gmra.mxu0 %v372
    %v411 = vpop.f32.mrf.mxu0
    %v412 = vadd.f32 0.0, %v411
    %v413 = vpop.f32.mrf.mxu0
    %v414 = vpop.f32.mrf.mxu0
    %v415 = vpop.f32.mrf.mxu0
    %416 = vdwg.mxu0
    %v418 = vsel %vm324, %v318, 0
    %v421 = vsel %vm324, %v322, 0
    %423 = vmatprep.subr.bf16.mxu0 0
    %424 = vmatpush1.bf16.xpose.msra.mxu0 0
    %425 = vmatprep.subr.bf16.mxu0 0
    %426 = vmatpush1.bf16.xpose.msra.mxu0 0
    %427 = vmatprep.subr.bf16.mxu0 0
    %428 = vmatpush1.bf16.xpose.msra.mxu0 0
    %429 = vmatprep.subr.bf16.mxu0 0
    %430 = vmatpush1.bf16.xpose.msra.mxu0 0
    %431 = vmatprep.subr.bf16.mxu0 0
    %432 = vmatpush1.bf16.xpose.msra.mxu0 0
    %433 = vmatprep.subr.bf16.mxu0 0
    %434 = vmatpush1.bf16.xpose.msra.mxu0 0
    %435 = vmatprep.subr.bf16.mxu0 0
    %436 = vmatpush1.bf16.xpose.msra.mxu0 0
    %437 = vmatprep.subr.bf16.mxu0 0
    %438 = vmatpush1.bf16.xpose.msra.mxu0 %v421
    %439 = vmatprep.subr.bf16.mxu0 0
    %440 = vmatpush2.bf16.xpose.msra.mxu0 0
    %441 = vmatprep.subr.bf16.mxu0 0
    %442 = vmatpush2.bf16.xpose.msra.mxu0 0
    %443 = vmatprep.subr.bf16.mxu0 0
    %444 = vmatpush2.bf16.xpose.msra.mxu0 0
    %445 = vmatprep.subr.bf16.mxu0 0
    %446 = vmatpush2.bf16.xpose.msra.mxu0 0
    %447 = vmatprep.subr.bf16.mxu0 0
    %448 = vmatpush2.bf16.xpose.msra.mxu0 0
    %449 = vmatprep.subr.bf16.mxu0 0
    %450 = vmatpush2.bf16.xpose.msra.mxu0 0
    %451 = vmatprep.subr.bf16.mxu0 0
    %452 = vmatpush2.bf16.xpose.msra.mxu0 0
    %453 = vmatprep.subr.bf16.mxu0 0
    %454 = vmatpush2.bf16.xpose.msra.mxu0 0
    %455 = vmatprep.mubr.bf16.mxu0 0
    %456 = vmatmul.mubr.bf16.gmra.mxu0 %v418
    %v457 = vpop.f32.mrf.mxu0
    %v458 = vadd.f32 0.0, %v457
    %v459 = vpop.f32.mrf.mxu0
    %v460 = vpop.f32.mrf.mxu0
    %v461 = vpop.f32.mrf.mxu0
    %462 = vdwg.mxu0
    %v464 = vsel %vm324, %v319, 0
    %v467 = vsel %vm324, %v323, 0
    %469 = vmatprep.subr.bf16.mxu0 0
    %470 = vmatpush1.bf16.xpose.msra.mxu0 0
    %471 = vmatprep.subr.bf16.mxu0 0
    %472 = vmatpush1.bf16.xpose.msra.mxu0 0
    %473 = vmatprep.subr.bf16.mxu0 0
    %474 = vmatpush1.bf16.xpose.msra.mxu0 0
    %475 = vmatprep.subr.bf16.mxu0 0
    %476 = vmatpush1.bf16.xpose.msra.mxu0 0
    %477 = vmatprep.subr.bf16.mxu0 0
    %478 = vmatpush1.bf16.xpose.msra.mxu0 0
    %479 = vmatprep.subr.bf16.mxu0 0
    %480 = vmatpush1.bf16.xpose.msra.mxu0 0
    %481 = vmatprep.subr.bf16.mxu0 0
    %482 = vmatpush1.bf16.xpose.msra.mxu0 0
    %483 = vmatprep.subr.bf16.mxu0 0
    %484 = vmatpush1.bf16.xpose.msra.mxu0 %v467
    %485 = vmatprep.subr.bf16.mxu0 0
    %486 = vmatpush2.bf16.xpose.msra.mxu0 0
    %487 = vmatprep.subr.bf16.mxu0 0
    %488 = vmatpush2.bf16.xpose.msra.mxu0 0
    %489 = vmatprep.subr.bf16.mxu0 0
    %490 = vmatpush2.bf16.xpose.msra.mxu0 0
    %491 = vmatprep.subr.bf16.mxu0 0
    %492 = vmatpush2.bf16.xpose.msra.mxu0 0
    %493 = vmatprep.subr.bf16.mxu0 0
    %494 = vmatpush2.bf16.xpose.msra.mxu0 0
    %495 = vmatprep.subr.bf16.mxu0 0
    %496 = vmatpush2.bf16.xpose.msra.mxu0 0
    %497 = vmatprep.subr.bf16.mxu0 0
    %498 = vmatpush2.bf16.xpose.msra.mxu0 0
    %499 = vmatprep.subr.bf16.mxu0 0
    %500 = vmatpush2.bf16.xpose.msra.mxu0 0
    %501 = vmatprep.mubr.bf16.mxu0 0
    %502 = vmatmul.mubr.bf16.gmra.mxu0 %v464
    %v503 = vpop.f32.mrf.mxu0
    %v504 = vadd.f32 0.0, %v503
    %v505 = vpop.f32.mrf.mxu0
    %v506 = vpop.f32.mrf.mxu0
    %v507 = vpop.f32.mrf.mxu0
    %508 = vdwg.mxu0
    %v509 = vsel %vm324, %v366, -inf
    %510 = vmax.xlane.f32.xlu0 %v509
    %v511 = vpop.xlane.xlu0 %510
    %v512 = vsel %vm324, %v412, -inf
    %513 = vmax.xlane.f32.xlu0 %v512
    %v514 = vpop.xlane.xlu0 %513
    %v515 = vsel %vm324, %v458, -inf
    %516 = vmax.xlane.f32.xlu0 %v515
    %v517 = vpop.xlane.xlu0 %516
    %v518 = vsel %vm324, %v504, -inf
    %519 = vmax.xlane.f32.xlu0 %v518
    %v520 = vpop.xlane.xlu0 %519
    %v521 = vsub.f32 %v366, %v511
    %v522 = vsub.f32 %v412, %v514
    %v523 = vsub.f32 %v458, %v517
    %v524 = vsub.f32 %v504, %v520
    %v525 = vmul.f32 %v521, 1.442695
    %v526 = vpow.pop %v525
    %v527 = vmul.f32 %v522, 1.442695
    %v528 = vpow.pop %v527
    %v529 = vmul.f32 %v523, 1.442695
    %v530 = vpow.pop %v529
    %v531 = vmul.f32 %v524, 1.442695
    %v532 = vpow.pop %v531
    %v533 = vsel %vm324, %v526, 0.0
    %534 = vadd.xlane.f32.xlu0 %v533
    %v535 = vpop.xlane.xlu0 %534
    %v536 = vsel %vm324, %v528, 0.0
    %537 = vadd.xlane.f32.xlu0 %v536
    %v538 = vpop.xlane.xlu0 %537
    %v539 = vsel %vm324, %v530, 0.0
    %540 = vadd.xlane.f32.xlu0 %v539
    %v541 = vpop.xlane.xlu0 %540
    %v542 = vsel %vm324, %v532, 0.0
    %543 = vadd.xlane.f32.xlu0 %v542
    %v544 = vpop.xlane.xlu0 %543
    %v545 = vrcp.pop %v535
    %v546 = vrcp.pop %v538
    %v547 = vrcp.pop %v541
    %v548 = vrcp.pop %v544
    %v549 = vmul.f32 %v526, %v545
    %v550 = vmul.f32 %v528, %v546
    %v551 = vmul.f32 %v530, %v547
    %v552 = vmul.f32 %v532, %v548
    %v553 = vpack.c.bf16 %v549, %v549
    %v554 = vpack.c.bf16 %v550, %v550
    %v555 = vpack.c.bf16 %v551, %v551
    %v556 = vpack.c.bf16 %v552, %v552
    %558 = vrot.lane.b32.xlu0 %v320, 96
    %v559 = vpop.permute.xlu0 %558
    %v561 = vsel %vm324, %v553, 0
    %vm563 = vcmask 1043456
    %v565 = vsel %vm563, %v559, 0
    %567 = vmatprep.subr.bf16.mxu0 0
    %568 = vmatpush1.bf16.msra.mxu0 0
    %569 = vmatprep.subr.bf16.mxu0 0
    %570 = vmatpush1.bf16.msra.mxu0 0
    %571 = vmatprep.subr.bf16.mxu0 0
    %572 = vmatpush1.bf16.msra.mxu0 0
    %573 = vmatprep.subr.bf16.mxu0 0
    %574 = vmatpush1.bf16.msra.mxu0 0
    %575 = vmatprep.subr.bf16.mxu0 0
    %576 = vmatpush1.bf16.msra.mxu0 0
    %577 = vmatprep.subr.bf16.mxu0 0
    %578 = vmatpush1.bf16.msra.mxu0 0
    %579 = vmatprep.subr.bf16.mxu0 0
    %580 = vmatpush1.bf16.msra.mxu0 0
    %581 = vmatprep.subr.bf16.mxu0 0
    %582 = vmatpush1.bf16.msra.mxu0 %v565
    %583 = vmatprep.subr.bf16.mxu0 0
    %584 = vmatpush2.bf16.msra.mxu0 0
    %585 = vmatprep.subr.bf16.mxu0 0
    %586 = vmatpush2.bf16.msra.mxu0 0
    %587 = vmatprep.subr.bf16.mxu0 0
    %588 = vmatpush2.bf16.msra.mxu0 0
    %589 = vmatprep.subr.bf16.mxu0 0
    %590 = vmatpush2.bf16.msra.mxu0 0
    %591 = vmatprep.subr.bf16.mxu0 0
    %592 = vmatpush2.bf16.msra.mxu0 0
    %593 = vmatprep.subr.bf16.mxu0 0
    %594 = vmatpush2.bf16.msra.mxu0 0
    %595 = vmatprep.subr.bf16.mxu0 0
    %596 = vmatpush2.bf16.msra.mxu0 0
    %597 = vmatprep.subr.bf16.mxu0 0
    %598 = vmatpush2.bf16.msra.mxu0 0
    %599 = vmatprep.mubr.bf16.mxu0 0
    %600 = vmatmul.mubr.bf16.gmra.mxu0 %v561
    %v601 = vpop.f32.mrf.mxu0
    %v602 = vadd.f32 0.0, %v601
    %v603 = vpop.f32.mrf.mxu0
    %v604 = vpop.f32.mrf.mxu0
    %v605 = vpop.f32.mrf.mxu0
    %606 = vdwg.mxu0
    %608 = vrot.lane.b32.xlu0 %v321, 96
    %v609 = vpop.permute.xlu0 %608
    %v611 = vsel %vm324, %v554, 0
    %v614 = vsel %vm563, %v609, 0
    %616 = vmatprep.subr.bf16.mxu0 0
    %617 = vmatpush1.bf16.msra.mxu0 0
    %618 = vmatprep.subr.bf16.mxu0 0
    %619 = vmatpush1.bf16.msra.mxu0 0
    %620 = vmatprep.subr.bf16.mxu0 0
    %621 = vmatpush1.bf16.msra.mxu0 0
    %622 = vmatprep.subr.bf16.mxu0 0
    %623 = vmatpush1.bf16.msra.mxu0 0
    %624 = vmatprep.subr.bf16.mxu0 0
    %625 = vmatpush1.bf16.msra.mxu0 0
    %626 = vmatprep.subr.bf16.mxu0 0
    %627 = vmatpush1.bf16.msra.mxu0 0
    %628 = vmatprep.subr.bf16.mxu0 0
    %629 = vmatpush1.bf16.msra.mxu0 0
    %630 = vmatprep.subr.bf16.mxu0 0
    %631 = vmatpush1.bf16.msra.mxu0 %v614
    %632 = vmatprep.subr.bf16.mxu0 0
    %633 = vmatpush2.bf16.msra.mxu0 0
    %634 = vmatprep.subr.bf16.mxu0 0
    %635 = vmatpush2.bf16.msra.mxu0 0
    %636 = vmatprep.subr.bf16.mxu0 0
    %637 = vmatpush2.bf16.msra.mxu0 0
    %638 = vmatprep.subr.bf16.mxu0 0
    %639 = vmatpush2.bf16.msra.mxu0 0
    %640 = vmatprep.subr.bf16.mxu0 0
    %641 = vmatpush2.bf16.msra.mxu0 0
    %642 = vmatprep.subr.bf16.mxu0 0
    %643 = vmatpush2.bf16.msra.mxu0 0
    %644 = vmatprep.subr.bf16.mxu0 0
    %645 = vmatpush2.bf16.msra.mxu0 0
    %646 = vmatprep.subr.bf16.mxu0 0
    %647 = vmatpush2.bf16.msra.mxu0 0
    %648 = vmatprep.mubr.bf16.mxu0 0
    %649 = vmatmul.mubr.bf16.gmra.mxu0 %v611
    %v650 = vpop.f32.mrf.mxu0
    %v651 = vadd.f32 0.0, %v650
    %v652 = vpop.f32.mrf.mxu0
    %v653 = vpop.f32.mrf.mxu0
    %v654 = vpop.f32.mrf.mxu0
    %655 = vdwg.mxu0
    %657 = vrot.lane.b32.xlu0 %v322, 96
    %v658 = vpop.permute.xlu0 %657
    %v660 = vsel %vm324, %v555, 0
    %v663 = vsel %vm563, %v658, 0
    %665 = vmatprep.subr.bf16.mxu0 0
    %666 = vmatpush1.bf16.msra.mxu0 0
    %667 = vmatprep.subr.bf16.mxu0 0
    %668 = vmatpush1.bf16.msra.mxu0 0
    %669 = vmatprep.subr.bf16.mxu0 0
    %670 = vmatpush1.bf16.msra.mxu0 0
    %671 = vmatprep.subr.bf16.mxu0 0
    %672 = vmatpush1.bf16.msra.mxu0 0
    %673 = vmatprep.subr.bf16.mxu0 0
    %674 = vmatpush1.bf16.msra.mxu0 0
    %675 = vmatprep.subr.bf16.mxu0 0
    %676 = vmatpush1.bf16.msra.mxu0 0
    %677 = vmatprep.subr.bf16.mxu0 0
    %678 = vmatpush1.bf16.msra.mxu0 0
    %679 = vmatprep.subr.bf16.mxu0 0
    %680 = vmatpush1.bf16.msra.mxu0 %v663
    %681 = vmatprep.subr.bf16.mxu0 0
    %682 = vmatpush2.bf16.msra.mxu0 0
    %683 = vmatprep.subr.bf16.mxu0 0
    %684 = vmatpush2.bf16.msra.mxu0 0
    %685 = vmatprep.subr.bf16.mxu0 0
    %686 = vmatpush2.bf16.msra.mxu0 0
    %687 = vmatprep.subr.bf16.mxu0 0
    %688 = vmatpush2.bf16.msra.mxu0 0
    %689 = vmatprep.subr.bf16.mxu0 0
    %690 = vmatpush2.bf16.msra.mxu0 0
    %691 = vmatprep.subr.bf16.mxu0 0
    %692 = vmatpush2.bf16.msra.mxu0 0
    %693 = vmatprep.subr.bf16.mxu0 0
    %694 = vmatpush2.bf16.msra.mxu0 0
    %695 = vmatprep.subr.bf16.mxu0 0
    %696 = vmatpush2.bf16.msra.mxu0 0
    %697 = vmatprep.mubr.bf16.mxu0 0
    %698 = vmatmul.mubr.bf16.gmra.mxu0 %v660
    %v699 = vpop.f32.mrf.mxu0
    %v700 = vadd.f32 0.0, %v699
    %v701 = vpop.f32.mrf.mxu0
    %v702 = vpop.f32.mrf.mxu0
    %v703 = vpop.f32.mrf.mxu0
    %704 = vdwg.mxu0
    %706 = vrot.lane.b32.xlu0 %v323, 96
    %v707 = vpop.permute.xlu0 %706
    %v709 = vsel %vm324, %v556, 0
    %v712 = vsel %vm563, %v707, 0
    %714 = vmatprep.subr.bf16.mxu0 0
    %715 = vmatpush1.bf16.msra.mxu0 0
    %716 = vmatprep.subr.bf16.mxu0 0
    %717 = vmatpush1.bf16.msra.mxu0 0
    %718 = vmatprep.subr.bf16.mxu0 0
    %719 = vmatpush1.bf16.msra.mxu0 0
    %720 = vmatprep.subr.bf16.mxu0 0
    %721 = vmatpush1.bf16.msra.mxu0 0
    %722 = vmatprep.subr.bf16.mxu0 0
    %723 = vmatpush1.bf16.msra.mxu0 0
    %724 = vmatprep.subr.bf16.mxu0 0
    %725 = vmatpush1.bf16.msra.mxu0 0
    %726 = vmatprep.subr.bf16.mxu0 0
    %727 = vmatpush1.bf16.msra.mxu0 0
    %728 = vmatprep.subr.bf16.mxu0 0
    %729 = vmatpush1.bf16.msra.mxu0 %v712
    %730 = vmatprep.subr.bf16.mxu0 0
    %731 = vmatpush2.bf16.msra.mxu0 0
    %732 = vmatprep.subr.bf16.mxu0 0
    %733 = vmatpush2.bf16.msra.mxu0 0
    %734 = vmatprep.subr.bf16.mxu0 0
    %735 = vmatpush2.bf16.msra.mxu0 0
    %736 = vmatprep.subr.bf16.mxu0 0
    %737 = vmatpush2.bf16.msra.mxu0 0
    %738 = vmatprep.subr.bf16.mxu0 0
    %739 = vmatpush2.bf16.msra.mxu0 0
    %740 = vmatprep.subr.bf16.mxu0 0
    %741 = vmatpush2.bf16.msra.mxu0 0
    %742 = vmatprep.subr.bf16.mxu0 0
    %743 = vmatpush2.bf16.msra.mxu0 0
    %744 = vmatprep.subr.bf16.mxu0 0
    %745 = vmatpush2.bf16.msra.mxu0 0
    %746 = vmatprep.mubr.bf16.mxu0 0
    %747 = vmatmul.mubr.bf16.gmra.mxu0 %v709
    %v748 = vpop.f32.mrf.mxu0
    %v749 = vadd.f32 0.0, %v748
    %v750 = vpop.f32.mrf.mxu0
    %v751 = vpop.f32.mrf.mxu0
    %v752 = vpop.f32.mrf.mxu0
    %753 = vdwg.mxu0
    %v754 = vpack.c.bf16 %v651, %v602
    %v755 = vpack.c.bf16 %v749, %v700
    %v756 = vld [vmem:[#allocation8] sm:$0xf]
    %v758 = vsel %vm324, %v754, 0
    %v761 = vsel %vm324, %v755, 0
    %v764 = vsel %vm563, %v756, 0
    %766 = vmatprep.subr.bf16.mxu0 0
    %767 = vmatpush1.bf16.msra.mxu0 0
    %768 = vmatprep.subr.bf16.mxu0 0
    %769 = vmatpush1.bf16.msra.mxu0 0
    %770 = vmatprep.subr.bf16.mxu0 0
    %771 = vmatpush1.bf16.msra.mxu0 0
    %772 = vmatprep.subr.bf16.mxu0 0
    %773 = vmatpush1.bf16.msra.mxu0 0
    %774 = vmatprep.subr.bf16.mxu0 0
    %775 = vmatpush1.bf16.msra.mxu0 0
    %776 = vmatprep.subr.bf16.mxu0 0
    %777 = vmatpush1.bf16.msra.mxu0 0
    %778 = vmatprep.subr.bf16.mxu0 0
    %779 = vmatpush1.bf16.msra.mxu0 0
    %780 = vmatprep.subr.bf16.mxu0 0
    %781 = vmatpush1.bf16.msra.mxu0 %v764
    %782 = vmatprep.subr.bf16.mxu0 0
    %783 = vmatpush2.bf16.msra.mxu0 0
    %784 = vmatprep.subr.bf16.mxu0 0
    %785 = vmatpush2.bf16.msra.mxu0 0
    %786 = vmatprep.subr.bf16.mxu0 0
    %787 = vmatpush2.bf16.msra.mxu0 0
    %788 = vmatprep.subr.bf16.mxu0 0
    %789 = vmatpush2.bf16.msra.mxu0 0
    %790 = vmatprep.subr.bf16.mxu0 0
    %791 = vmatpush2.bf16.msra.mxu0 0
    %792 = vmatprep.subr.bf16.mxu0 0
    %793 = vmatpush2.bf16.msra.mxu0 0
    %794 = vmatprep.subr.bf16.mxu0 0
    %795 = vmatpush2.bf16.msra.mxu0 0
    %796 = vmatprep.subr.bf16.mxu0 0
    %797 = vmatpush2.bf16.msra.mxu0 0
    %798 = vmatprep.mubr.bf16.mxu0 0
    %799 = vmatmul.mubr.bf16.gmra.mxu0 %v758
    %v800 = vpop.f32.mrf.mxu0
    %v801 = vadd.f32 0.0, %v800
    %v802 = vpop.f32.mrf.mxu0
    %v803 = vpop.f32.mrf.mxu0
    %v804 = vadd.f32 0.0, %v803
    %v805 = vpop.f32.mrf.mxu0
    %806 = vmatprep.mubr.bf16.mxu0 0
    %807 = vmatmul.mubr.bf16.gmra.mxu0 %v761
    %v808 = vpop.f32.mrf.mxu0
    %v809 = vadd.f32 0.0, %v808
    %v810 = vpop.f32.mrf.mxu0
    %v811 = vpop.f32.mrf.mxu0
    %v812 = vadd.f32 0.0, %v811
    %v813 = vpop.f32.mrf.mxu0
    %814 = vdwg.mxu0
    %v815 = vadd.f32 %v161, %v801
    %v816 = vadd.f32 %v162, %v804
    %v817 = vadd.f32 %v163, %v809
    %v818 = vadd.f32 %v164, %v812
    %820 = vrot.lane.b32.xlu0 %v316, 120
    %v821 = vpop.permute.xlu0 %820
    %822 = vrot.lane.b32.xlu0 %v320, 120
    %v823 = vpop.permute.xlu0 %822
    %v825 = vsel %vm324, %v821, 0
    %v828 = vsel %vm324, %v823, 0
    %830 = vmatprep.subr.bf16.mxu0 0
    %831 = vmatpush1.bf16.xpose.msra.mxu0 0
    %832 = vmatprep.subr.bf16.mxu0 0
    %833 = vmatpush1.bf16.xpose.msra.mxu0 0
    %834 = vmatprep.subr.bf16.mxu0 0
    %835 = vmatpush1.bf16.xpose.msra.mxu0 0
    %836 = vmatprep.subr.bf16.mxu0 0
    %837 = vmatpush1.bf16.xpose.msra.mxu0 0
    %838 = vmatprep.subr.bf16.mxu0 0
    %839 = vmatpush1.bf16.xpose.msra.mxu0 0
    %840 = vmatprep.subr.bf16.mxu0 0
    %841 = vmatpush1.bf16.xpose.msra.mxu0 0
    %842 = vmatprep.subr.bf16.mxu0 0
    %843 = vmatpush1.bf16.xpose.msra.mxu0 0
    %844 = vmatprep.subr.bf16.mxu0 0
    %845 = vmatpush1.bf16.xpose.msra.mxu0 %v828
    %846 = vmatprep.subr.bf16.mxu0 0
    %847 = vmatpush2.bf16.xpose.msra.mxu0 0
    %848 = vmatprep.subr.bf16.mxu0 0
    %849 = vmatpush2.bf16.xpose.msra.mxu0 0
    %850 = vmatprep.subr.bf16.mxu0 0
    %851 = vmatpush2.bf16.xpose.msra.mxu0 0
    %852 = vmatprep.subr.bf16.mxu0 0
    %853 = vmatpush2.bf16.xpose.msra.mxu0 0
    %854 = vmatprep.subr.bf16.mxu0 0
    %855 = vmatpush2.bf16.xpose.msra.mxu0 0
    %856 = vmatprep.subr.bf16.mxu0 0
    %857 = vmatpush2.bf16.xpose.msra.mxu0 0
    %858 = vmatprep.subr.bf16.mxu0 0
    %859 = vmatpush2.bf16.xpose.msra.mxu0 0
    %860 = vmatprep.subr.bf16.mxu0 0
    %861 = vmatpush2.bf16.xpose.msra.mxu0 0
    %862 = vmatprep.mubr.bf16.mxu0 0
    %863 = vmatmul.mubr.bf16.gmra.mxu0 %v825
    %v864 = vpop.f32.mrf.mxu0
    %v865 = vadd.f32 0.0, %v864
    %v866 = vpop.f32.mrf.mxu0
    %v867 = vpop.f32.mrf.mxu0
    %v868 = vpop.f32.mrf.mxu0
    %869 = vdwg.mxu0
    %871 = vrot.lane.b32.xlu0 %v317, 120
    %v872 = vpop.permute.xlu0 %871
    %873 = vrot.lane.b32.xlu0 %v321, 120
    %v874 = vpop.permute.xlu0 %873
    %v876 = vsel %vm324, %v872, 0
    %v879 = vsel %vm324, %v874, 0
    %881 = vmatprep.subr.bf16.mxu0 0
    %882 = vmatpush1.bf16.xpose.msra.mxu0 0
    %883 = vmatprep.subr.bf16.mxu0 0
    %884 = vmatpush1.bf16.xpose.msra.mxu0 0
    %885 = vmatprep.subr.bf16.mxu0 0
    %886 = vmatpush1.bf16.xpose.msra.mxu0 0
    %887 = vmatprep.subr.bf16.mxu0 0
    %888 = vmatpush1.bf16.xpose.msra.mxu0 0
    %889 = vmatprep.subr.bf16.mxu0 0
    %890 = vmatpush1.bf16.xpose.msra.mxu0 0
    %891 = vmatprep.subr.bf16.mxu0 0
    %892 = vmatpush1.bf16.xpose.msra.mxu0 0
    %893 = vmatprep.subr.bf16.mxu0 0
    %894 = vmatpush1.bf16.xpose.msra.mxu0 0
    %895 = vmatprep.subr.bf16.mxu0 0
    %896 = vmatpush1.bf16.xpose.msra.mxu0 %v879
    %897 = vmatprep.subr.bf16.mxu0 0
    %898 = vmatpush2.bf16.xpose.msra.mxu0 0
    %899 = vmatprep.subr.bf16.mxu0 0
    %900 = vmatpush2.bf16.xpose.msra.mxu0 0
    %901 = vmatprep.subr.bf16.mxu0 0
    %902 = vmatpush2.bf16.xpose.msra.mxu0 0
    %903 = vmatprep.subr.bf16.mxu0 0
    %904 = vmatpush2.bf16.xpose.msra.mxu0 0
    %905 = vmatprep.subr.bf16.mxu0 0
    %906 = vmatpush2.bf16.xpose.msra.mxu0 0
    %907 = vmatprep.subr.bf16.mxu0 0
    %908 = vmatpush2.bf16.xpose.msra.mxu0 0
    %909 = vmatprep.subr.bf16.mxu0 0
    %910 = vmatpush2.bf16.xpose.msra.mxu0 0
    %911 = vmatprep.subr.bf16.mxu0 0
    %912 = vmatpush2.bf16.xpose.msra.mxu0 0
    %913 = vmatprep.mubr.bf16.mxu0 0
    %914 = vmatmul.mubr.bf16.gmra.mxu0 %v876
    %v915 = vpop.f32.mrf.mxu0
    %v916 = vadd.f32 0.0, %v915
    %v917 = vpop.f32.mrf.mxu0
    %v918 = vpop.f32.mrf.mxu0
    %v919 = vpop.f32.mrf.mxu0
    %920 = vdwg.mxu0
    %922 = vrot.lane.b32.xlu0 %v318, 120
    %v923 = vpop.permute.xlu0 %922
    %924 = vrot.lane.b32.xlu0 %v322, 120
    %v925 = vpop.permute.xlu0 %924
    %v927 = vsel %vm324, %v923, 0
    %v930 = vsel %vm324, %v925, 0
    %932 = vmatprep.subr.bf16.mxu0 0
    %933 = vmatpush1.bf16.xpose.msra.mxu0 0
    %934 = vmatprep.subr.bf16.mxu0 0
    %935 = vmatpush1.bf16.xpose.msra.mxu0 0
    %936 = vmatprep.subr.bf16.mxu0 0
    %937 = vmatpush1.bf16.xpose.msra.mxu0 0
    %938 = vmatprep.subr.bf16.mxu0 0
    %939 = vmatpush1.bf16.xpose.msra.mxu0 0
    %940 = vmatprep.subr.bf16.mxu0 0
    %941 = vmatpush1.bf16.xpose.msra.mxu0 0
    %942 = vmatprep.subr.bf16.mxu0 0
    %943 = vmatpush1.bf16.xpose.msra.mxu0 0
    %944 = vmatprep.subr.bf16.mxu0 0
    %945 = vmatpush1.bf16.xpose.msra.mxu0 0
    %946 = vmatprep.subr.bf16.mxu0 0
    %947 = vmatpush1.bf16.xpose.msra.mxu0 %v930
    %948 = vmatprep.subr.bf16.mxu0 0
    %949 = vmatpush2.bf16.xpose.msra.mxu0 0
    %950 = vmatprep.subr.bf16.mxu0 0
    %951 = vmatpush2.bf16.xpose.msra.mxu0 0
    %952 = vmatprep.subr.bf16.mxu0 0
    %953 = vmatpush2.bf16.xpose.msra.mxu0 0
    %954 = vmatprep.subr.bf16.mxu0 0
    %955 = vmatpush2.bf16.xpose.msra.mxu0 0
    %956 = vmatprep.subr.bf16.mxu0 0
    %957 = vmatpush2.bf16.xpose.msra.mxu0 0
    %958 = vmatprep.subr.bf16.mxu0 0
    %959 = vmatpush2.bf16.xpose.msra.mxu0 0
    %960 = vmatprep.subr.bf16.mxu0 0
    %961 = vmatpush2.bf16.xpose.msra.mxu0 0
    %962 = vmatprep.subr.bf16.mxu0 0
    %963 = vmatpush2.bf16.xpose.msra.mxu0 0
    %964 = vmatprep.mubr.bf16.mxu0 0
    %965 = vmatmul.mubr.bf16.gmra.mxu0 %v927
    %v966 = vpop.f32.mrf.mxu0
    %v967 = vadd.f32 0.0, %v966
    %v968 = vpop.f32.mrf.mxu0
    %v969 = vpop.f32.mrf.mxu0
    %v970 = vpop.f32.mrf.mxu0
    %971 = vdwg.mxu0
    %973 = vrot.lane.b32.xlu0 %v319, 120
    %v974 = vpop.permute.xlu0 %973
    %975 = vrot.lane.b32.xlu0 %v323, 120
    %v976 = vpop.permute.xlu0 %975
    %v978 = vsel %vm324, %v974, 0
    %v981 = vsel %vm324, %v976, 0
    %983 = vmatprep.subr.bf16.mxu0 0
    %984 = vmatpush1.bf16.xpose.msra.mxu0 0
    %985 = vmatprep.subr.bf16.mxu0 0
    %986 = vmatpush1.bf16.xpose.msra.mxu0 0
    %987 = vmatprep.subr.bf16.mxu0 0
    %988 = vmatpush1.bf16.xpose.msra.mxu0 0
    %989 = vmatprep.subr.bf16.mxu0 0
    %990 = vmatpush1.bf16.xpose.msra.mxu0 0
    %991 = vmatprep.subr.bf16.mxu0 0
    %992 = vmatpush1.bf16.xpose.msra.mxu0 0
    %993 = vmatprep.subr.bf16.mxu0 0
    %994 = vmatpush1.bf16.xpose.msra.mxu0 0
    %995 = vmatprep.subr.bf16.mxu0 0
    %996 = vmatpush1.bf16.xpose.msra.mxu0 0
    %997 = vmatprep.subr.bf16.mxu0 0
    %998 = vmatpush1.bf16.xpose.msra.mxu0 %v981
    %999 = vmatprep.subr.bf16.mxu0 0
    %1000 = vmatpush2.bf16.xpose.msra.mxu0 0
    %1001 = vmatprep.subr.bf16.mxu0 0
    %1002 = vmatpush2.bf16.xpose.msra.mxu0 0
    %1003 = vmatprep.subr.bf16.mxu0 0
    %1004 = vmatpush2.bf16.xpose.msra.mxu0 0
    %1005 = vmatprep.subr.bf16.mxu0 0
    %1006 = vmatpush2.bf16.xpose.msra.mxu0 0
    %1007 = vmatprep.subr.bf16.mxu0 0
    %1008 = vmatpush2.bf16.xpose.msra.mxu0 0
    %1009 = vmatprep.subr.bf16.mxu0 0
    %1010 = vmatpush2.bf16.xpose.msra.mxu0 0
    %1011 = vmatprep.subr.bf16.mxu0 0
    %1012 = vmatpush2.bf16.xpose.msra.mxu0 0
    %1013 = vmatprep.subr.bf16.mxu0 0
    %1014 = vmatpush2.bf16.xpose.msra.mxu0 0
    %1015 = vmatprep.mubr.bf16.mxu0 0
    %1016 = vmatmul.mubr.bf16.gmra.mxu0 %v978
    %v1017 = vpop.f32.mrf.mxu0
    %v1018 = vadd.f32 0.0, %v1017
    %v1019 = vpop.f32.mrf.mxu0
    %v1020 = vpop.f32.mrf.mxu0
    %v1021 = vpop.f32.mrf.mxu0
    %1022 = vdwg.mxu0
    %v1023 = vsel %vm324, %v865, -inf
    %1024 = vmax.xlane.f32.xlu0 %v1023
    %v1025 = vpop.xlane.xlu0 %1024
    %v1026 = vsel %vm324, %v916, -inf
    %1027 = vmax.xlane.f32.xlu0 %v1026
    %v1028 = vpop.xlane.xlu0 %1027
    %v1029 = vsel %vm324, %v967, -inf
    %1030 = vmax.xlane.f32.xlu0 %v1029
    %v1031 = vpop.xlane.xlu0 %1030
    %v1032 = vsel %vm324, %v1018, -inf
    %1033 = vmax.xlane.f32.xlu0 %v1032
    %v1034 = vpop.xlane.xlu0 %1033
    %v1035 = vsub.f32 %v865, %v1025
    %v1036 = vsub.f32 %v916, %v1028
    %v1037 = vsub.f32 %v967, %v1031
    %v1038 = vsub.f32 %v1018, %v1034
    %v1039 = vmul.f32 %v1035, 1.442695
    %v1040 = vpow.pop %v1039
    %v1041 = vmul.f32 %v1036, 1.442695
    %v1042 = vpow.pop %v1041
    %v1043 = vmul.f32 %v1037, 1.442695
    %v1044 = vpow.pop %v1043
    %v1045 = vmul.f32 %v1038, 1.442695
    %v1046 = vpow.pop %v1045
    %v1047 = vsel %vm324, %v1040, 0.0
    %1048 = vadd.xlane.f32.xlu0 %v1047
    %v1049 = vpop.xlane.xlu0 %1048
    %v1050 = vsel %vm324, %v1042, 0.0
    %1051 = vadd.xlane.f32.xlu0 %v1050
    %v1052 = vpop.xlane.xlu0 %1051
    %v1053 = vsel %vm324, %v1044, 0.0
    %1054 = vadd.xlane.f32.xlu0 %v1053
    %v1055 = vpop.xlane.xlu0 %1054
    %v1056 = vsel %vm324, %v1046, 0.0
    %1057 = vadd.xlane.f32.xlu0 %v1056
    %v1058 = vpop.xlane.xlu0 %1057
    %v1059 = vrcp.pop %v1049
    %v1060 = vrcp.pop %v1052
    %v1061 = vrcp.pop %v1055
    %v1062 = vrcp.pop %v1058
    %v1063 = vmul.f32 %v1040, %v1059
    %v1064 = vmul.f32 %v1042, %v1060
    %v1065 = vmul.f32 %v1044, %v1061
    %v1066 = vmul.f32 %v1046, %v1062
    %v1067 = vpack.c.bf16 %v1063, %v1063
    %v1068 = vpack.c.bf16 %v1064, %v1064
    %v1069 = vpack.c.bf16 %v1065, %v1065
    %v1070 = vpack.c.bf16 %v1066, %v1066
    %1071 = vrot.lane.b32.xlu0 %v320, 88
    %v1072 = vpop.permute.xlu0 %1071
    %v1074 = vsel %vm324, %v1067, 0
    %v1077 = vsel %vm563, %v1072, 0
    %1079 = vmatprep.subr.bf16.mxu0 0
    %1080 = vmatpush1.bf16.msra.mxu0 0
    %1081 = vmatprep.subr.bf16.mxu0 0
    %1082 = vmatpush1.bf16.msra.mxu0 0
    %1083 = vmatprep.subr.bf16.mxu0 0
    %1084 = vmatpush1.bf16.msra.mxu0 0
    %1085 = vmatprep.subr.bf16.mxu0 0
    %1086 = vmatpush1.bf16.msra.mxu0 0
    %1087 = vmatprep.subr.bf16.mxu0 0
    %1088 = vmatpush1.bf16.msra.mxu0 0
    %1089 = vmatprep.subr.bf16.mxu0 0
    %1090 = vmatpush1.bf16.msra.mxu0 0
    %1091 = vmatprep.subr.bf16.mxu0 0
    %1092 = vmatpush1.bf16.msra.mxu0 0
    %1093 = vmatprep.subr.bf16.mxu0 0
    %1094 = vmatpush1.bf16.msra.mxu0 %v1077
    %1095 = vmatprep.subr.bf16.mxu0 0
    %1096 = vmatpush2.bf16.msra.mxu0 0
    %1097 = vmatprep.subr.bf16.mxu0 0
    %1098 = vmatpush2.bf16.msra.mxu0 0
    %1099 = vmatprep.subr.bf16.mxu0 0
    %1100 = vmatpush2.bf16.msra.mxu0 0
    %1101 = vmatprep.subr.bf16.mxu0 0
    %1102 = vmatpush2.bf16.msra.mxu0 0
    %1103 = vmatprep.subr.bf16.mxu0 0
    %1104 = vmatpush2.bf16.msra.mxu0 0
    %1105 = vmatprep.subr.bf16.mxu0 0
    %1106 = vmatpush2.bf16.msra.mxu0 0
    %1107 = vmatprep.subr.bf16.mxu0 0
    %1108 = vmatpush2.bf16.msra.mxu0 0
    %1109 = vmatprep.subr.bf16.mxu0 0
    %1110 = vmatpush2.bf16.msra.mxu0 0
    %1111 = vmatprep.mubr.bf16.mxu0 0
    %1112 = vmatmul.mubr.bf16.gmra.mxu0 %v1074
    %v1113 = vpop.f32.mrf.mxu0
    %v1114 = vadd.f32 0.0, %v1113
    %v1115 = vpop.f32.mrf.mxu0
    %v1116 = vpop.f32.mrf.mxu0
    %v1117 = vpop.f32.mrf.mxu0
    %1118 = vdwg.mxu0
    %1119 = vrot.lane.b32.xlu0 %v321, 88
    %v1120 = vpop.permute.xlu0 %1119
    %v1122 = vsel %vm324, %v1068, 0
    %v1125 = vsel %vm563, %v1120, 0
    %1127 = vmatprep.subr.bf16.mxu0 0
    %1128 = vmatpush1.bf16.msra.mxu0 0
    %1129 = vmatprep.subr.bf16.mxu0 0
    %1130 = vmatpush1.bf16.msra.mxu0 0
    %1131 = vmatprep.subr.bf16.mxu0 0
    %1132 = vmatpush1.bf16.msra.mxu0 0
    %1133 = vmatprep.subr.bf16.mxu0 0
    %1134 = vmatpush1.bf16.msra.mxu0 0
    %1135 = vmatprep.subr.bf16.mxu0 0
    %1136 = vmatpush1.bf16.msra.mxu0 0
    %1137 = vmatprep.subr.bf16.mxu0 0
    %1138 = vmatpush1.bf16.msra.mxu0 0
    %1139 = vmatprep.subr.bf16.mxu0 0
    %1140 = vmatpush1.bf16.msra.mxu0 0
    %1141 = vmatprep.subr.bf16.mxu0 0
    %1142 = vmatpush1.bf16.msra.mxu0 %v1125
    %1143 = vmatprep.subr.bf16.mxu0 0
    %1144 = vmatpush2.bf16.msra.mxu0 0
    %1145 = vmatprep.subr.bf16.mxu0 0
    %1146 = vmatpush2.bf16.msra.mxu0 0
    %1147 = vmatprep.subr.bf16.mxu0 0
    %1148 = vmatpush2.bf16.msra.mxu0 0
    %1149 = vmatprep.subr.bf16.mxu0 0
    %1150 = vmatpush2.bf16.msra.mxu0 0
    %1151 = vmatprep.subr.bf16.mxu0 0
    %1152 = vmatpush2.bf16.msra.mxu0 0
    %1153 = vmatprep.subr.bf16.mxu0 0
    %1154 = vmatpush2.bf16.msra.mxu0 0
    %1155 = vmatprep.subr.bf16.mxu0 0
    %1156 = vmatpush2.bf16.msra.mxu0 0
    %1157 = vmatprep.subr.bf16.mxu0 0
    %1158 = vmatpush2.bf16.msra.mxu0 0
    %1159 = vmatprep.mubr.bf16.mxu0 0
    %1160 = vmatmul.mubr.bf16.gmra.mxu0 %v1122
    %v1161 = vpop.f32.mrf.mxu0
    %v1162 = vadd.f32 0.0, %v1161
    %v1163 = vpop.f32.mrf.mxu0
    %v1164 = vpop.f32.mrf.mxu0
    %v1165 = vpop.f32.mrf.mxu0
    %1166 = vdwg.mxu0
    %1167 = vrot.lane.b32.xlu0 %v322, 88
    %v1168 = vpop.permute.xlu0 %1167
    %v1170 = vsel %vm324, %v1069, 0
    %v1173 = vsel %vm563, %v1168, 0
    %1175 = vmatprep.subr.bf16.mxu0 0
    %1176 = vmatpush1.bf16.msra.mxu0 0
    %1177 = vmatprep.subr.bf16.mxu0 0
    %1178 = vmatpush1.bf16.msra.mxu0 0
    %1179 = vmatprep.subr.bf16.mxu0 0
    %1180 = vmatpush1.bf16.msra.mxu0 0
    %1181 = vmatprep.subr.bf16.mxu0 0
    %1182 = vmatpush1.bf16.msra.mxu0 0
    %1183 = vmatprep.subr.bf16.mxu0 0
    %1184 = vmatpush1.bf16.msra.mxu0 0
    %1185 = vmatprep.subr.bf16.mxu0 0
    %1186 = vmatpush1.bf16.msra.mxu0 0
    %1187 = vmatprep.subr.bf16.mxu0 0
    %1188 = vmatpush1.bf16.msra.mxu0 0
    %1189 = vmatprep.subr.bf16.mxu0 0
    %1190 = vmatpush1.bf16.msra.mxu0 %v1173
    %1191 = vmatprep.subr.bf16.mxu0 0
    %1192 = vmatpush2.bf16.msra.mxu0 0
    %1193 = vmatprep.subr.bf16.mxu0 0
    %1194 = vmatpush2.bf16.msra.mxu0 0
    %1195 = vmatprep.subr.bf16.mxu0 0
    %1196 = vmatpush2.bf16.msra.mxu0 0
    %1197 = vmatprep.subr.bf16.mxu0 0
    %1198 = vmatpush2.bf16.msra.mxu0 0
    %1199 = vmatprep.subr.bf16.mxu0 0
    %1200 = vmatpush2.bf16.msra.mxu0 0
    %1201 = vmatprep.subr.bf16.mxu0 0
    %1202 = vmatpush2.bf16.msra.mxu0 0
    %1203 = vmatprep.subr.bf16.mxu0 0
    %1204 = vmatpush2.bf16.msra.mxu0 0
    %1205 = vmatprep.subr.bf16.mxu0 0
    %1206 = vmatpush2.bf16.msra.mxu0 0
    %1207 = vmatprep.mubr.bf16.mxu0 0
    %1208 = vmatmul.mubr.bf16.gmra.mxu0 %v1170
    %v1209 = vpop.f32.mrf.mxu0
    %v1210 = vadd.f32 0.0, %v1209
    %v1211 = vpop.f32.mrf.mxu0
    %v1212 = vpop.f32.mrf.mxu0
    %v1213 = vpop.f32.mrf.mxu0
    %1214 = vdwg.mxu0
    %1215 = vrot.lane.b32.xlu0 %v323, 88
    %v1216 = vpop.permute.xlu0 %1215
    %v1218 = vsel %vm324, %v1070, 0
    %v1221 = vsel %vm563, %v1216, 0
    %1223 = vmatprep.subr.bf16.mxu0 0
    %1224 = vmatpush1.bf16.msra.mxu0 0
    %1225 = vmatprep.subr.bf16.mxu0 0
    %1226 = vmatpush1.bf16.msra.mxu0 0
    %1227 = vmatprep.subr.bf16.mxu0 0
    %1228 = vmatpush1.bf16.msra.mxu0 0
    %1229 = vmatprep.subr.bf16.mxu0 0
    %1230 = vmatpush1.bf16.msra.mxu0 0
    %1231 = vmatprep.subr.bf16.mxu0 0
    %1232 = vmatpush1.bf16.msra.mxu0 0
    %1233 = vmatprep.subr.bf16.mxu0 0
    %1234 = vmatpush1.bf16.msra.mxu0 0
    %1235 = vmatprep.subr.bf16.mxu0 0
    %1236 = vmatpush1.bf16.msra.mxu0 0
    %1237 = vmatprep.subr.bf16.mxu0 0
    %1238 = vmatpush1.bf16.msra.mxu0 %v1221
    %1239 = vmatprep.subr.bf16.mxu0 0
    %1240 = vmatpush2.bf16.msra.mxu0 0
    %1241 = vmatprep.subr.bf16.mxu0 0
    %1242 = vmatpush2.bf16.msra.mxu0 0
    %1243 = vmatprep.subr.bf16.mxu0 0
    %1244 = vmatpush2.bf16.msra.mxu0 0
    %1245 = vmatprep.subr.bf16.mxu0 0
    %1246 = vmatpush2.bf16.msra.mxu0 0
    %1247 = vmatprep.subr.bf16.mxu0 0
    %1248 = vmatpush2.bf16.msra.mxu0 0
    %1249 = vmatprep.subr.bf16.mxu0 0
    %1250 = vmatpush2.bf16.msra.mxu0 0
    %1251 = vmatprep.subr.bf16.mxu0 0
    %1252 = vmatpush2.bf16.msra.mxu0 0
    %1253 = vmatprep.subr.bf16.mxu0 0
    %1254 = vmatpush2.bf16.msra.mxu0 0
    %1255 = vmatprep.mubr.bf16.mxu0 0
    %1256 = vmatmul.mubr.bf16.gmra.mxu0 %v1218
    %v1257 = vpop.f32.mrf.mxu0
    %v1258 = vadd.f32 0.0, %v1257
    %v1259 = vpop.f32.mrf.mxu0
    %v1260 = vpop.f32.mrf.mxu0
    %v1261 = vpop.f32.mrf.mxu0
    %1262 = vdwg.mxu0
    %v1263 = vpack.c.bf16 %v1162, %v1114
    %v1264 = vpack.c.bf16 %v1258, %v1210
    %s1265 = scalar_lea.vmem [#allocation8], 4
    %v1266 = vld [vmem:[%s1265] sm:$0xf]
    %v1268 = vsel %vm324, %v1263, 0
    %v1271 = vsel %vm324, %v1264, 0
    %v1274 = vsel %vm563, %v1266, 0
    %1276 = vmatprep.subr.bf16.mxu0 0
    %1277 = vmatpush1.bf16.msra.mxu0 0
    %1278 = vmatprep.subr.bf16.mxu0 0
    %1279 = vmatpush1.bf16.msra.mxu0 0
    %1280 = vmatprep.subr.bf16.mxu0 0
    %1281 = vmatpush1.bf16.msra.mxu0 0
    %1282 = vmatprep.subr.bf16.mxu0 0
    %1283 = vmatpush1.bf16.msra.mxu0 0
    %1284 = vmatprep.subr.bf16.mxu0 0
    %1285 = vmatpush1.bf16.msra.mxu0 0
    %1286 = vmatprep.subr.bf16.mxu0 0
    %1287 = vmatpush1.bf16.msra.mxu0 0
    %1288 = vmatprep.subr.bf16.mxu0 0
    %1289 = vmatpush1.bf16.msra.mxu0 0
    %1290 = vmatprep.subr.bf16.mxu0 0
    %1291 = vmatpush1.bf16.msra.mxu0 %v1274
    %1292 = vmatprep.subr.bf16.mxu0 0
    %1293 = vmatpush2.bf16.msra.mxu0 0
    %1294 = vmatprep.subr.bf16.mxu0 0
    %1295 = vmatpush2.bf16.msra.mxu0 0
    %1296 = vmatprep.subr.bf16.mxu0 0
    %1297 = vmatpush2.bf16.msra.mxu0 0
    %1298 = vmatprep.subr.bf16.mxu0 0
    %1299 = vmatpush2.bf16.msra.mxu0 0
    %1300 = vmatprep.subr.bf16.mxu0 0
    %1301 = vmatpush2.bf16.msra.mxu0 0
    %1302 = vmatprep.subr.bf16.mxu0 0
    %1303 = vmatpush2.bf16.msra.mxu0 0
    %1304 = vmatprep.subr.bf16.mxu0 0
    %1305 = vmatpush2.bf16.msra.mxu0 0
    %1306 = vmatprep.subr.bf16.mxu0 0
    %1307 = vmatpush2.bf16.msra.mxu0 0
    %1308 = vmatprep.mubr.bf16.mxu0 0
    %1309 = vmatmul.mubr.bf16.gmra.mxu0 %v1268
    %v1310 = vpop.f32.mrf.mxu0
    %v1311 = vadd.f32 0.0, %v1310
    %v1312 = vpop.f32.mrf.mxu0
    %v1313 = vpop.f32.mrf.mxu0
    %v1314 = vadd.f32 0.0, %v1313
    %v1315 = vpop.f32.mrf.mxu0
    %1316 = vmatprep.mubr.bf16.mxu0 0
    %1317 = vmatmul.mubr.bf16.gmra.mxu0 %v1271
    %v1318 = vpop.f32.mrf.mxu0
    %v1319 = vadd.f32 0.0, %v1318
    %v1320 = vpop.f32.mrf.mxu0
    %v1321 = vpop.f32.mrf.mxu0
    %v1322 = vadd.f32 0.0, %v1321
    %v1323 = vpop.f32.mrf.mxu0
    %1324 = vdwg.mxu0
    %v1325 = vadd.f32 %v815, %v1311
    %v1326 = vadd.f32 %v816, %v1314
    %v1327 = vadd.f32 %v817, %v1319
    %v1328 = vadd.f32 %v818, %v1322
    %1329 = vrot.lane.b32.xlu0 %v316, 112
    %v1330 = vpop.permute.xlu0 %1329
    %1331 = vrot.lane.b32.xlu0 %v320, 112
    %v1332 = vpop.permute.xlu0 %1331
    %v1334 = vsel %vm324, %v1330, 0
    %v1337 = vsel %vm324, %v1332, 0
    %1339 = vmatprep.subr.bf16.mxu0 0
    %1340 = vmatpush1.bf16.xpose.msra.mxu0 0
    %1341 = vmatprep.subr.bf16.mxu0 0
    %1342 = vmatpush1.bf16.xpose.msra.mxu0 0
    %1343 = vmatprep.subr.bf16.mxu0 0
    %1344 = vmatpush1.bf16.xpose.msra.mxu0 0
    %1345 = vmatprep.subr.bf16.mxu0 0
    %1346 = vmatpush1.bf16.xpose.msra.mxu0 0
    %1347 = vmatprep.subr.bf16.mxu0 0
    %1348 = vmatpush1.bf16.xpose.msra.mxu0 0
    %1349 = vmatprep.subr.bf16.mxu0 0
    %1350 = vmatpush1.bf16.xpose.msra.mxu0 0
    %1351 = vmatprep.subr.bf16.mxu0 0
    %1352 = vmatpush1.bf16.xpose.msra.mxu0 0
    %1353 = vmatprep.subr.bf16.mxu0 0
    %1354 = vmatpush1.bf16.xpose.msra.mxu0 %v1337
    %1355 = vmatprep.subr.bf16.mxu0 0
    %1356 = vmatpush2.bf16.xpose.msra.mxu0 0
    %1357 = vmatprep.subr.bf16.mxu0 0
    %1358 = vmatpush2.bf16.xpose.msra.mxu0 0
    %1359 = vmatprep.subr.bf16.mxu0 0
    %1360 = vmatpush2.bf16.xpose.msra.mxu0 0
    %1361 = vmatprep.subr.bf16.mxu0 0
    %1362 = vmatpush2.bf16.xpose.msra.mxu0 0
    %1363 = vmatprep.subr.bf16.mxu0 0
    %1364 = vmatpush2.bf16.xpose.msra.mxu0 0
    %1365 = vmatprep.subr.bf16.mxu0 0
    %1366 = vmatpush2.bf16.xpose.msra.mxu0 0
    %1367 = vmatprep.subr.bf16.mxu0 0
    %1368 = vmatpush2.bf16.xpose.msra.mxu0 0
    %1369 = vmatprep.subr.bf16.mxu0 0
    %1370 = vmatpush2.bf16.xpose.msra.mxu0 0
    %1371 = vmatprep.mubr.bf16.mxu0 0
    %1372 = vmatmul.mubr.bf16.gmra.mxu0 %v1334
    %v1373 = vpop.f32.mrf.mxu0
    %v1374 = vadd.f32 0.0, %v1373
    %v1375 = vpop.f32.mrf.mxu0
    %v1376 = vpop.f32.mrf.mxu0
    %v1377 = vpop.f32.mrf.mxu0
    %1378 = vdwg.mxu0
    %1379 = vrot.lane.b32.xlu0 %v317, 112
    %v1380 = vpop.permute.xlu0 %1379
    %1381 = vrot.lane.b32.xlu0 %v321, 112
    %v1382 = vpop.permute.xlu0 %1381
    %v1384 = vsel %vm324, %v1380, 0
    %v1387 = vsel %vm324, %v1382, 0
    %1389 = vmatprep.subr.bf16.mxu0 0
    %1390 = vmatpush1.bf16.xpose.msra.mxu0 0
    %1391 = vmatprep.subr.bf16.mxu0 0
    %1392 = vmatpush1.bf16.xpose.msra.mxu0 0
    %1393 = vmatprep.subr.bf16.mxu0 0
    %1394 = vmatpush1.bf16.xpose.msra.mxu0 0
    %1395 = vmatprep.subr.bf16.mxu0 0
    %1396 = vmatpush1.bf16.xpose.msra.mxu0 0
    %1397 = vmatprep.subr.bf16.mxu0 0
    %1398 = vmatpush1.bf16.xpose.msra.mxu0 0
    %1399 = vmatprep.subr.bf16.mxu0 0
    %1400 = vmatpush1.bf16.xpose.msra.mxu0 0
    %1401 = vmatprep.subr.bf16.mxu0 0
    %1402 = vmatpush1.bf16.xpose.msra.mxu0 0
    %1403 = vmatprep.subr.bf16.mxu0 0
    %1404 = vmatpush1.bf16.xpose.msra.mxu0 %v1387
    %1405 = vmatprep.subr.bf16.mxu0 0
    %1406 = vmatpush2.bf16.xpose.msra.mxu0 0
    %1407 = vmatprep.subr.bf16.mxu0 0
    %1408 = vmatpush2.bf16.xpose.msra.mxu0 0
    %1409 = vmatprep.subr.bf16.mxu0 0
    %1410 = vmatpush2.bf16.xpose.msra.mxu0 0
    %1411 = vmatprep.subr.bf16.mxu0 0
    %1412 = vmatpush2.bf16.xpose.msra.mxu0 0
    %1413 = vmatprep.subr.bf16.mxu0 0
    %1414 = vmatpush2.bf16.xpose.msra.mxu0 0
    %1415 = vmatprep.subr.bf16.mxu0 0
    %1416 = vmatpush2.bf16.xpose.msra.mxu0 0
    %1417 = vmatprep.subr.bf16.mxu0 0
    %1418 = vmatpush2.bf16.xpose.msra.mxu0 0
    %1419 = vmatprep.subr.bf16.mxu0 0
    %1420 = vmatpush2.bf16.xpose.msra.mxu0 0
    %1421 = vmatprep.mubr.bf16.mxu0 0
    %1422 = vmatmul.mubr.bf16.gmra.mxu0 %v1384
    %v1423 = vpop.f32.mrf.mxu0
    %v1424 = vadd.f32 0.0, %v1423
    %v1425 = vpop.f32.mrf.mxu0
    %v1426 = vpop.f32.mrf.mxu0
    %v1427 = vpop.f32.mrf.mxu0
    %1428 = vdwg.mxu0
    %1429 = vrot.lane.b32.xlu0 %v318, 112
    %v1430 = vpop.permute.xlu0 %1429
    %1431 = vrot.lane.b32.xlu0 %v322, 112
    %v1432 = vpop.permute.xlu0 %1431
    %v1434 = vsel %vm324, %v1430, 0
    %v1437 = vsel %vm324, %v1432, 0
    %1439 = vmatprep.subr.bf16.mxu0 0
    %1440 = vmatpush1.bf16.xpose.msra.mxu0 0
    %1441 = vmatprep.subr.bf16.mxu0 0
    %1442 = vmatpush1.bf16.xpose.msra.mxu0 0
    %1443 = vmatprep.subr.bf16.mxu0 0
    %1444 = vmatpush1.bf16.xpose.msra.mxu0 0
    %1445 = vmatprep.subr.bf16.mxu0 0
    %1446 = vmatpush1.bf16.xpose.msra.mxu0 0
    %1447 = vmatprep.subr.bf16.mxu0 0
    %1448 = vmatpush1.bf16.xpose.msra.mxu0 0
    %1449 = vmatprep.subr.bf16.mxu0 0
    %1450 = vmatpush1.bf16.xpose.msra.mxu0 0
    %1451 = vmatprep.subr.bf16.mxu0 0
    %1452 = vmatpush1.bf16.xpose.msra.mxu0 0
    %1453 = vmatprep.subr.bf16.mxu0 0
    %1454 = vmatpush1.bf16.xpose.msra.mxu0 %v1437
    %1455 = vmatprep.subr.bf16.mxu0 0
    %1456 = vmatpush2.bf16.xpose.msra.mxu0 0
    %1457 = vmatprep.subr.bf16.mxu0 0
    %1458 = vmatpush2.bf16.xpose.msra.mxu0 0
    %1459 = vmatprep.subr.bf16.mxu0 0
    %1460 = vmatpush2.bf16.xpose.msra.mxu0 0
    %1461 = vmatprep.subr.bf16.mxu0 0
    %1462 = vmatpush2.bf16.xpose.msra.mxu0 0
    %1463 = vmatprep.subr.bf16.mxu0 0
    %1464 = vmatpush2.bf16.xpose.msra.mxu0 0
    %1465 = vmatprep.subr.bf16.mxu0 0
    %1466 = vmatpush2.bf16.xpose.msra.mxu0 0
    %1467 = vmatprep.subr.bf16.mxu0 0
    %1468 = vmatpush2.bf16.xpose.msra.mxu0 0
    %1469 = vmatprep.subr.bf16.mxu0 0
    %1470 = vmatpush2.bf16.xpose.msra.mxu0 0
    %1471 = vmatprep.mubr.bf16.mxu0 0
    %1472 = vmatmul.mubr.bf16.gmra.mxu0 %v1434
    %v1473 = vpop.f32.mrf.mxu0
    %v1474 = vadd.f32 0.0, %v1473
    %v1475 = vpop.f32.mrf.mxu0
    %v1476 = vpop.f32.mrf.mxu0
    %v1477 = vpop.f32.mrf.mxu0
    %1478 = vdwg.mxu0
    %1479 = vrot.lane.b32.xlu0 %v319, 112
    %v1480 = vpop.permute.xlu0 %1479
    %1481 = vrot.lane.b32.xlu0 %v323, 112
    %v1482 = vpop.permute.xlu0 %1481
    %v1484 = vsel %vm324, %v1480, 0
    %v1487 = vsel %vm324, %v1482, 0
    %1489 = vmatprep.subr.bf16.mxu0 0
    %1490 = vmatpush1.bf16.xpose.msra.mxu0 0
    %1491 = vmatprep.subr.bf16.mxu0 0
    %1492 = vmatpush1.bf16.xpose.msra.mxu0 0
    %1493 = vmatprep.subr.bf16.mxu0 0
    %1494 = vmatpush1.bf16.xpose.msra.mxu0 0
    %1495 = vmatprep.subr.bf16.mxu0 0
    %1496 = vmatpush1.bf16.xpose.msra.mxu0 0
    %1497 = vmatprep.subr.bf16.mxu0 0
    %1498 = vmatpush1.bf16.xpose.msra.mxu0 0
    %1499 = vmatprep.subr.bf16.mxu0 0
    %1500 = vmatpush1.bf16.xpose.msra.mxu0 0
    %1501 = vmatprep.subr.bf16.mxu0 0
    %1502 = vmatpush1.bf16.xpose.msra.mxu0 0
    %1503 = vmatprep.subr.bf16.mxu0 0
    %1504 = vmatpush1.bf16.xpose.msra.mxu0 %v1487
    %1505 = vmatprep.subr.bf16.mxu0 0
    %1506 = vmatpush2.bf16.xpose.msra.mxu0 0
    %1507 = vmatprep.subr.bf16.mxu0 0
    %1508 = vmatpush2.bf16.xpose.msra.mxu0 0
    %1509 = vmatprep.subr.bf16.mxu0 0
    %1510 = vmatpush2.bf16.xpose.msra.mxu0 0
    %1511 = vmatprep.subr.bf16.mxu0 0
    %1512 = vmatpush2.bf16.xpose.msra.mxu0 0
    %1513 = vmatprep.subr.bf16.mxu0 0
    %1514 = vmatpush2.bf16.xpose.msra.mxu0 0
    %1515 = vmatprep.subr.bf16.mxu0 0
    %1516 = vmatpush2.bf16.xpose.msra.mxu0 0
    %1517 = vmatprep.subr.bf16.mxu0 0
    %1518 = vmatpush2.bf16.xpose.msra.mxu0 0
    %1519 = vmatprep.subr.bf16.mxu0 0
    %1520 = vmatpush2.bf16.xpose.msra.mxu0 0
    %1521 = vmatprep.mubr.bf16.mxu0 0
    %1522 = vmatmul.mubr.bf16.gmra.mxu0 %v1484
    %v1523 = vpop.f32.mrf.mxu0
    %v1524 = vadd.f32 0.0, %v1523
    %v1525 = vpop.f32.mrf.mxu0
    %v1526 = vpop.f32.mrf.mxu0
    %v1527 = vpop.f32.mrf.mxu0
    %1528 = vdwg.mxu0
    %v1529 = vsel %vm324, %v1374, -inf
    %1530 = vmax.xlane.f32.xlu0 %v1529
    %v1531 = vpop.xlane.xlu0 %1530
    %v1532 = vsel %vm324, %v1424, -inf
    %1533 = vmax.xlane.f32.xlu0 %v1532
    %v1534 = vpop.xlane.xlu0 %1533
    %v1535 = vsel %vm324, %v1474, -inf
    %1536 = vmax.xlane.f32.xlu0 %v1535
    %v1537 = vpop.xlane.xlu0 %1536
    %v1538 = vsel %vm324, %v1524, -inf
    %1539 = vmax.xlane.f32.xlu0 %v1538
    %v1540 = vpop.xlane.xlu0 %1539
    %v1541 = vsub.f32 %v1374, %v1531
    %v1542 = vsub.f32 %v1424, %v1534
    %v1543 = vsub.f32 %v1474, %v1537
    %v1544 = vsub.f32 %v1524, %v1540
    %v1545 = vmul.f32 %v1541, 1.442695
    %v1546 = vpow.pop %v1545
    %v1547 = vmul.f32 %v1542, 1.442695
    %v1548 = vpow.pop %v1547
    %v1549 = vmul.f32 %v1543, 1.442695
    %v1550 = vpow.pop %v1549
    %v1551 = vmul.f32 %v1544, 1.442695
    %v1552 = vpow.pop %v1551
    %v1553 = vsel %vm324, %v1546, 0.0
    %1554 = vadd.xlane.f32.xlu0 %v1553
    %v1555 = vpop.xlane.xlu0 %1554
    %v1556 = vsel %vm324, %v1548, 0.0
    %1557 = vadd.xlane.f32.xlu0 %v1556
    %v1558 = vpop.xlane.xlu0 %1557
    %v1559 = vsel %vm324, %v1550, 0.0
    %1560 = vadd.xlane.f32.xlu0 %v1559
    %v1561 = vpop.xlane.xlu0 %1560
    %v1562 = vsel %vm324, %v1552, 0.0
    %1563 = vadd.xlane.f32.xlu0 %v1562
    %v1564 = vpop.xlane.xlu0 %1563
    %v1565 = vrcp.pop %v1555
    %v1566 = vrcp.pop %v1558
    %v1567 = vrcp.pop %v1561
    %v1568 = vrcp.pop %v1564
    %v1569 = vmul.f32 %v1546, %v1565
    %v1570 = vmul.f32 %v1548, %v1566
    %v1571 = vmul.f32 %v1550, %v1567
    %v1572 = vmul.f32 %v1552, %v1568
    %v1573 = vpack.c.bf16 %v1569, %v1569
    %v1574 = vpack.c.bf16 %v1570, %v1570
    %v1575 = vpack.c.bf16 %v1571, %v1571
    %v1576 = vpack.c.bf16 %v1572, %v1572
    %1577 = vrot.lane.b32.xlu0 %v320, 80
    %v1578 = vpop.permute.xlu0 %1577
    %v1580 = vsel %vm324, %v1573, 0
    %v1583 = vsel %vm563, %v1578, 0
    %1585 = vmatprep.subr.bf16.mxu0 0
    %1586 = vmatpush1.bf16.msra.mxu0 0
    %1587 = vmatprep.subr.bf16.mxu0 0
    %1588 = vmatpush1.bf16.msra.mxu0 0
    %1589 = vmatprep.subr.bf16.mxu0 0
    %1590 = vmatpush1.bf16.msra.mxu0 0
    %1591 = vmatprep.subr.bf16.mxu0 0
    %1592 = vmatpush1.bf16.msra.mxu0 0
    %1593 = vmatprep.subr.bf16.mxu0 0
    %1594 = vmatpush1.bf16.msra.mxu0 0
    %1595 = vmatprep.subr.bf16.mxu0 0
    %1596 = vmatpush1.bf16.msra.mxu0 0
    %1597 = vmatprep.subr.bf16.mxu0 0
    %1598 = vmatpush1.bf16.msra.mxu0 0
    %1599 = vmatprep.subr.bf16.mxu0 0
    %1600 = vmatpush1.bf16.msra.mxu0 %v1583
    %1601 = vmatprep.subr.bf16.mxu0 0
    %1602 = vmatpush2.bf16.msra.mxu0 0
    %1603 = vmatprep.subr.bf16.mxu0 0
    %1604 = vmatpush2.bf16.msra.mxu0 0
    %1605 = vmatprep.subr.bf16.mxu0 0
    %1606 = vmatpush2.bf16.msra.mxu0 0
    %1607 = vmatprep.subr.bf16.mxu0 0
    %1608 = vmatpush2.bf16.msra.mxu0 0
    %1609 = vmatprep.subr.bf16.mxu0 0
    %1610 = vmatpush2.bf16.msra.mxu0 0
    %1611 = vmatprep.subr.bf16.mxu0 0
    %1612 = vmatpush2.bf16.msra.mxu0 0
    %1613 = vmatprep.subr.bf16.mxu0 0
    %1614 = vmatpush2.bf16.msra.mxu0 0
    %1615 = vmatprep.subr.bf16.mxu0 0
    %1616 = vmatpush2.bf16.msra.mxu0 0
    %1617 = vmatprep.mubr.bf16.mxu0 0
    %1618 = vmatmul.mubr.bf16.gmra.mxu0 %v1580
    %v1619 = vpop.f32.mrf.mxu0
    %v1620 = vadd.f32 0.0, %v1619
    %v1621 = vpop.f32.mrf.mxu0
    %v1622 = vpop.f32.mrf.mxu0
    %v1623 = vpop.f32.mrf.mxu0
    %1624 = vdwg.mxu0
    %1625 = vrot.lane.b32.xlu0 %v321, 80
    %v1626 = vpop.permute.xlu0 %1625
    %v1628 = vsel %vm324, %v1574, 0
    %v1631 = vsel %vm563, %v1626, 0
    %1633 = vmatprep.subr.bf16.mxu0 0
    %1634 = vmatpush1.bf16.msra.mxu0 0
    %1635 = vmatprep.subr.bf16.mxu0 0
    %1636 = vmatpush1.bf16.msra.mxu0 0
    %1637 = vmatprep.subr.bf16.mxu0 0
    %1638 = vmatpush1.bf16.msra.mxu0 0
    %1639 = vmatprep.subr.bf16.mxu0 0
    %1640 = vmatpush1.bf16.msra.mxu0 0
    %1641 = vmatprep.subr.bf16.mxu0 0
    %1642 = vmatpush1.bf16.msra.mxu0 0
    %1643 = vmatprep.subr.bf16.mxu0 0
    %1644 = vmatpush1.bf16.msra.mxu0 0
    %1645 = vmatprep.subr.bf16.mxu0 0
    %1646 = vmatpush1.bf16.msra.mxu0 0
    %1647 = vmatprep.subr.bf16.mxu0 0
    %1648 = vmatpush1.bf16.msra.mxu0 %v1631
    %1649 = vmatprep.subr.bf16.mxu0 0
    %1650 = vmatpush2.bf16.msra.mxu0 0
    %1651 = vmatprep.subr.bf16.mxu0 0
    %1652 = vmatpush2.bf16.msra.mxu0 0
    %1653 = vmatprep.subr.bf16.mxu0 0
    %1654 = vmatpush2.bf16.msra.mxu0 0
    %1655 = vmatprep.subr.bf16.mxu0 0
    %1656 = vmatpush2.bf16.msra.mxu0 0
    %1657 = vmatprep.subr.bf16.mxu0 0
    %1658 = vmatpush2.bf16.msra.mxu0 0
    %1659 = vmatprep.subr.bf16.mxu0 0
    %1660 = vmatpush2.bf16.msra.mxu0 0
    %1661 = vmatprep.subr.bf16.mxu0 0
    %1662 = vmatpush2.bf16.msra.mxu0 0
    %1663 = vmatprep.subr.bf16.mxu0 0
    %1664 = vmatpush2.bf16.msra.mxu0 0
    %1665 = vmatprep.mubr.bf16.mxu0 0
    %1666 = vmatmul.mubr.bf16.gmra.mxu0 %v1628
    %v1667 = vpop.f32.mrf.mxu0
    %v1668 = vadd.f32 0.0, %v1667
    %v1669 = vpop.f32.mrf.mxu0
    %v1670 = vpop.f32.mrf.mxu0
    %v1671 = vpop.f32.mrf.mxu0
    %1672 = vdwg.mxu0
    %1673 = vrot.lane.b32.xlu0 %v322, 80
    %v1674 = vpop.permute.xlu0 %1673
    %v1676 = vsel %vm324, %v1575, 0
    %v1679 = vsel %vm563, %v1674, 0
    %1681 = vmatprep.subr.bf16.mxu0 0
    %1682 = vmatpush1.bf16.msra.mxu0 0
    %1683 = vmatprep.subr.bf16.mxu0 0
    %1684 = vmatpush1.bf16.msra.mxu0 0
    %1685 = vmatprep.subr.bf16.mxu0 0
    %1686 = vmatpush1.bf16.msra.mxu0 0
    %1687 = vmatprep.subr.bf16.mxu0 0
    %1688 = vmatpush1.bf16.msra.mxu0 0
    %1689 = vmatprep.subr.bf16.mxu0 0
    %1690 = vmatpush1.bf16.msra.mxu0 0
    %1691 = vmatprep.subr.bf16.mxu0 0
    %1692 = vmatpush1.bf16.msra.mxu0 0
    %1693 = vmatprep.subr.bf16.mxu0 0
    %1694 = vmatpush1.bf16.msra.mxu0 0
    %1695 = vmatprep.subr.bf16.mxu0 0
    %1696 = vmatpush1.bf16.msra.mxu0 %v1679
    %1697 = vmatprep.subr.bf16.mxu0 0
    %1698 = vmatpush2.bf16.msra.mxu0 0
    %1699 = vmatprep.subr.bf16.mxu0 0
    %1700 = vmatpush2.bf16.msra.mxu0 0
    %1701 = vmatprep.subr.bf16.mxu0 0
    %1702 = vmatpush2.bf16.msra.mxu0 0
    %1703 = vmatprep.subr.bf16.mxu0 0
    %1704 = vmatpush2.bf16.msra.mxu0 0
    %1705 = vmatprep.subr.bf16.mxu0 0
    %1706 = vmatpush2.bf16.msra.mxu0 0
    %1707 = vmatprep.subr.bf16.mxu0 0
    %1708 = vmatpush2.bf16.msra.mxu0 0
    %1709 = vmatprep.subr.bf16.mxu0 0
    %1710 = vmatpush2.bf16.msra.mxu0 0
    %1711 = vmatprep.subr.bf16.mxu0 0
    %1712 = vmatpush2.bf16.msra.mxu0 0
    %1713 = vmatprep.mubr.bf16.mxu0 0
    %1714 = vmatmul.mubr.bf16.gmra.mxu0 %v1676
    %v1715 = vpop.f32.mrf.mxu0
    %v1716 = vadd.f32 0.0, %v1715
    %v1717 = vpop.f32.mrf.mxu0
    %v1718 = vpop.f32.mrf.mxu0
    %v1719 = vpop.f32.mrf.mxu0
    %1720 = vdwg.mxu0
    %1721 = vrot.lane.b32.xlu0 %v323, 80
    %v1722 = vpop.permute.xlu0 %1721
    %v1724 = vsel %vm324, %v1576, 0
    %v1727 = vsel %vm563, %v1722, 0
    %1729 = vmatprep.subr.bf16.mxu0 0
    %1730 = vmatpush1.bf16.msra.mxu0 0
    %1731 = vmatprep.subr.bf16.mxu0 0
    %1732 = vmatpush1.bf16.msra.mxu0 0
    %1733 = vmatprep.subr.bf16.mxu0 0
    %1734 = vmatpush1.bf16.msra.mxu0 0
    %1735 = vmatprep.subr.bf16.mxu0 0
    %1736 = vmatpush1.bf16.msra.mxu0 0
    %1737 = vmatprep.subr.bf16.mxu0 0
    %1738 = vmatpush1.bf16.msra.mxu0 0
    %1739 = vmatprep.subr.bf16.mxu0 0
    %1740 = vmatpush1.bf16.msra.mxu0 0
    %1741 = vmatprep.subr.bf16.mxu0 0
    %1742 = vmatpush1.bf16.msra.mxu0 0
    %1743 = vmatprep.subr.bf16.mxu0 0
    %1744 = vmatpush1.bf16.msra.mxu0 %v1727
    %1745 = vmatprep.subr.bf16.mxu0 0
    %1746 = vmatpush2.bf16.msra.mxu0 0
    %1747 = vmatprep.subr.bf16.mxu0 0
    %1748 = vmatpush2.bf16.msra.mxu0 0
    %1749 = vmatprep.subr.bf16.mxu0 0
    %1750 = vmatpush2.bf16.msra.mxu0 0
    %1751 = vmatprep.subr.bf16.mxu0 0
    %1752 = vmatpush2.bf16.msra.mxu0 0
    %1753 = vmatprep.subr.bf16.mxu0 0
    %1754 = vmatpush2.bf16.msra.mxu0 0
    %1755 = vmatprep.subr.bf16.mxu0 0
    %1756 = vmatpush2.bf16.msra.mxu0 0
    %1757 = vmatprep.subr.bf16.mxu0 0
    %1758 = vmatpush2.bf16.msra.mxu0 0
    %1759 = vmatprep.subr.bf16.mxu0 0
    %1760 = vmatpush2.bf16.msra.mxu0 0
    %1761 = vmatprep.mubr.bf16.mxu0 0
    %1762 = vmatmul.mubr.bf16.gmra.mxu0 %v1724
    %v1763 = vpop.f32.mrf.mxu0
    %v1764 = vadd.f32 0.0, %v1763
    %v1765 = vpop.f32.mrf.mxu0
    %v1766 = vpop.f32.mrf.mxu0
    %v1767 = vpop.f32.mrf.mxu0
    %1768 = vdwg.mxu0
    %v1769 = vpack.c.bf16 %v1668, %v1620
    %v1770 = vpack.c.bf16 %v1764, %v1716
    %s1771 = scalar_lea.vmem [#allocation8], 8
    %v1772 = vld [vmem:[%s1771] sm:$0xf]
    %v1774 = vsel %vm324, %v1769, 0
    %v1777 = vsel %vm324, %v1770, 0
    %v1780 = vsel %vm563, %v1772, 0
    %1782 = vmatprep.subr.bf16.mxu0 0
    %1783 = vmatpush1.bf16.msra.mxu0 0
    %1784 = vmatprep.subr.bf16.mxu0 0
    %1785 = vmatpush1.bf16.msra.mxu0 0
    %1786 = vmatprep.subr.bf16.mxu0 0
    %1787 = vmatpush1.bf16.msra.mxu0 0
    %1788 = vmatprep.subr.bf16.mxu0 0
    %1789 = vmatpush1.bf16.msra.mxu0 0
    %1790 = vmatprep.subr.bf16.mxu0 0
    %1791 = vmatpush1.bf16.msra.mxu0 0
    %1792 = vmatprep.subr.bf16.mxu0 0
    %1793 = vmatpush1.bf16.msra.mxu0 0
    %1794 = vmatprep.subr.bf16.mxu0 0
    %1795 = vmatpush1.bf16.msra.mxu0 0
    %1796 = vmatprep.subr.bf16.mxu0 0
    %1797 = vmatpush1.bf16.msra.mxu0 %v1780
    %1798 = vmatprep.subr.bf16.mxu0 0
    %1799 = vmatpush2.bf16.msra.mxu0 0
    %1800 = vmatprep.subr.bf16.mxu0 0
    %1801 = vmatpush2.bf16.msra.mxu0 0
    %1802 = vmatprep.subr.bf16.mxu0 0
    %1803 = vmatpush2.bf16.msra.mxu0 0
    %1804 = vmatprep.subr.bf16.mxu0 0
    %1805 = vmatpush2.bf16.msra.mxu0 0
    %1806 = vmatprep.subr.bf16.mxu0 0
    %1807 = vmatpush2.bf16.msra.mxu0 0
    %1808 = vmatprep.subr.bf16.mxu0 0
    %1809 = vmatpush2.bf16.msra.mxu0 0
    %1810 = vmatprep.subr.bf16.mxu0 0
    %1811 = vmatpush2.bf16.msra.mxu0 0
    %1812 = vmatprep.subr.bf16.mxu0 0
    %1813 = vmatpush2.bf16.msra.mxu0 0
    %1814 = vmatprep.mubr.bf16.mxu0 0
    %1815 = vmatmul.mubr.bf16.gmra.mxu0 %v1774
    %v1816 = vpop.f32.mrf.mxu0
    %v1817 = vadd.f32 0.0, %v1816
    %v1818 = vpop.f32.mrf.mxu0
    %v1819 = vpop.f32.mrf.mxu0
    %v1820 = vadd.f32 0.0, %v1819
    %v1821 = vpop.f32.mrf.mxu0
    %1822 = vmatprep.mubr.bf16.mxu0 0
    %1823 = vmatmul.mubr.bf16.gmra.mxu0 %v1777
    %v1824 = vpop.f32.mrf.mxu0
    %v1825 = vadd.f32 0.0, %v1824
    %v1826 = vpop.f32.mrf.mxu0
    %v1827 = vpop.f32.mrf.mxu0
    %v1828 = vadd.f32 0.0, %v1827
    %v1829 = vpop.f32.mrf.mxu0
    %1830 = vdwg.mxu0
    %v1831 = vadd.f32 %v1325, %v1817
    %v1832 = vadd.f32 %v1326, %v1820
    %v1833 = vadd.f32 %v1327, %v1825
    %v1834 = vadd.f32 %v1328, %v1828
    %1835 = vrot.lane.b32.xlu0 %v316, 104
    %v1836 = vpop.permute.xlu0 %1835
    %1837 = vrot.lane.b32.xlu0 %v320, 104
    %v1838 = vpop.permute.xlu0 %1837
    %v1840 = vsel %vm324, %v1836, 0
    %v1843 = vsel %vm324, %v1838, 0
    %1845 = vmatprep.subr.bf16.mxu0 0
    %1846 = vmatpush1.bf16.xpose.msra.mxu0 0
    %1847 = vmatprep.subr.bf16.mxu0 0
    %1848 = vmatpush1.bf16.xpose.msra.mxu0 0
    %1849 = vmatprep.subr.bf16.mxu0 0
    %1850 = vmatpush1.bf16.xpose.msra.mxu0 0
    %1851 = vmatprep.subr.bf16.mxu0 0
    %1852 = vmatpush1.bf16.xpose.msra.mxu0 0
    %1853 = vmatprep.subr.bf16.mxu0 0
    %1854 = vmatpush1.bf16.xpose.msra.mxu0 0
    %1855 = vmatprep.subr.bf16.mxu0 0
    %1856 = vmatpush1.bf16.xpose.msra.mxu0 0
    %1857 = vmatprep.subr.bf16.mxu0 0
    %1858 = vmatpush1.bf16.xpose.msra.mxu0 0
    %1859 = vmatprep.subr.bf16.mxu0 0
    %1860 = vmatpush1.bf16.xpose.msra.mxu0 %v1843
    %1861 = vmatprep.subr.bf16.mxu0 0
    %1862 = vmatpush2.bf16.xpose.msra.mxu0 0
    %1863 = vmatprep.subr.bf16.mxu0 0
    %1864 = vmatpush2.bf16.xpose.msra.mxu0 0
    %1865 = vmatprep.subr.bf16.mxu0 0
    %1866 = vmatpush2.bf16.xpose.msra.mxu0 0
    %1867 = vmatprep.subr.bf16.mxu0 0
    %1868 = vmatpush2.bf16.xpose.msra.mxu0 0
    %1869 = vmatprep.subr.bf16.mxu0 0
    %1870 = vmatpush2.bf16.xpose.msra.mxu0 0
    %1871 = vmatprep.subr.bf16.mxu0 0
    %1872 = vmatpush2.bf16.xpose.msra.mxu0 0
    %1873 = vmatprep.subr.bf16.mxu0 0
    %1874 = vmatpush2.bf16.xpose.msra.mxu0 0
    %1875 = vmatprep.subr.bf16.mxu0 0
    %1876 = vmatpush2.bf16.xpose.msra.mxu0 0
    %1877 = vmatprep.mubr.bf16.mxu0 0
    %1878 = vmatmul.mubr.bf16.gmra.mxu0 %v1840
    %v1879 = vpop.f32.mrf.mxu0
    %v1880 = vadd.f32 0.0, %v1879
    %v1881 = vpop.f32.mrf.mxu0
    %v1882 = vpop.f32.mrf.mxu0
    %v1883 = vpop.f32.mrf.mxu0
    %1884 = vdwg.mxu0
    %1885 = vrot.lane.b32.xlu0 %v317, 104
    %v1886 = vpop.permute.xlu0 %1885
    %1887 = vrot.lane.b32.xlu0 %v321, 104
    %v1888 = vpop.permute.xlu0 %1887
    %v1890 = vsel %vm324, %v1886, 0
    %v1893 = vsel %vm324, %v1888, 0
    %1895 = vmatprep.subr.bf16.mxu0 0
    %1896 = vmatpush1.bf16.xpose.msra.mxu0 0
    %1897 = vmatprep.subr.bf16.mxu0 0
    %1898 = vmatpush1.bf16.xpose.msra.mxu0 0
    %1899 = vmatprep.subr.bf16.mxu0 0
    %1900 = vmatpush1.bf16.xpose.msra.mxu0 0
    %1901 = vmatprep.subr.bf16.mxu0 0
    %1902 = vmatpush1.bf16.xpose.msra.mxu0 0
    %1903 = vmatprep.subr.bf16.mxu0 0
    %1904 = vmatpush1.bf16.xpose.msra.mxu0 0
    %1905 = vmatprep.subr.bf16.mxu0 0
    %1906 = vmatpush1.bf16.xpose.msra.mxu0 0
    %1907 = vmatprep.subr.bf16.mxu0 0
    %1908 = vmatpush1.bf16.xpose.msra.mxu0 0
    %1909 = vmatprep.subr.bf16.mxu0 0
    %1910 = vmatpush1.bf16.xpose.msra.mxu0 %v1893
    %1911 = vmatprep.subr.bf16.mxu0 0
    %1912 = vmatpush2.bf16.xpose.msra.mxu0 0
    %1913 = vmatprep.subr.bf16.mxu0 0
    %1914 = vmatpush2.bf16.xpose.msra.mxu0 0
    %1915 = vmatprep.subr.bf16.mxu0 0
    %1916 = vmatpush2.bf16.xpose.msra.mxu0 0
    %1917 = vmatprep.subr.bf16.mxu0 0
    %1918 = vmatpush2.bf16.xpose.msra.mxu0 0
    %1919 = vmatprep.subr.bf16.mxu0 0
    %1920 = vmatpush2.bf16.xpose.msra.mxu0 0
    %1921 = vmatprep.subr.bf16.mxu0 0
    %1922 = vmatpush2.bf16.xpose.msra.mxu0 0
    %1923 = vmatprep.subr.bf16.mxu0 0
    %1924 = vmatpush2.bf16.xpose.msra.mxu0 0
    %1925 = vmatprep.subr.bf16.mxu0 0
    %1926 = vmatpush2.bf16.xpose.msra.mxu0 0
    %1927 = vmatprep.mubr.bf16.mxu0 0
    %1928 = vmatmul.mubr.bf16.gmra.mxu0 %v1890
    %v1929 = vpop.f32.mrf.mxu0
    %v1930 = vadd.f32 0.0, %v1929
    %v1931 = vpop.f32.mrf.mxu0
    %v1932 = vpop.f32.mrf.mxu0
    %v1933 = vpop.f32.mrf.mxu0
    %1934 = vdwg.mxu0
    %1935 = vrot.lane.b32.xlu0 %v318, 104
    %v1936 = vpop.permute.xlu0 %1935
    %1937 = vrot.lane.b32.xlu0 %v322, 104
    %v1938 = vpop.permute.xlu0 %1937
    %v1940 = vsel %vm324, %v1936, 0
    %v1943 = vsel %vm324, %v1938, 0
    %1945 = vmatprep.subr.bf16.mxu0 0
    %1946 = vmatpush1.bf16.xpose.msra.mxu0 0
    %1947 = vmatprep.subr.bf16.mxu0 0
    %1948 = vmatpush1.bf16.xpose.msra.mxu0 0
    %1949 = vmatprep.subr.bf16.mxu0 0
    %1950 = vmatpush1.bf16.xpose.msra.mxu0 0
    %1951 = vmatprep.subr.bf16.mxu0 0
    %1952 = vmatpush1.bf16.xpose.msra.mxu0 0
    %1953 = vmatprep.subr.bf16.mxu0 0
    %1954 = vmatpush1.bf16.xpose.msra.mxu0 0
    %1955 = vmatprep.subr.bf16.mxu0 0
    %1956 = vmatpush1.bf16.xpose.msra.mxu0 0
    %1957 = vmatprep.subr.bf16.mxu0 0
    %1958 = vmatpush1.bf16.xpose.msra.mxu0 0
    %1959 = vmatprep.subr.bf16.mxu0 0
    %1960 = vmatpush1.bf16.xpose.msra.mxu0 %v1943
    %1961 = vmatprep.subr.bf16.mxu0 0
    %1962 = vmatpush2.bf16.xpose.msra.mxu0 0
    %1963 = vmatprep.subr.bf16.mxu0 0
    %1964 = vmatpush2.bf16.xpose.msra.mxu0 0
    %1965 = vmatprep.subr.bf16.mxu0 0
    %1966 = vmatpush2.bf16.xpose.msra.mxu0 0
    %1967 = vmatprep.subr.bf16.mxu0 0
    %1968 = vmatpush2.bf16.xpose.msra.mxu0 0
    %1969 = vmatprep.subr.bf16.mxu0 0
    %1970 = vmatpush2.bf16.xpose.msra.mxu0 0
    %1971 = vmatprep.subr.bf16.mxu0 0
    %1972 = vmatpush2.bf16.xpose.msra.mxu0 0
    %1973 = vmatprep.subr.bf16.mxu0 0
    %1974 = vmatpush2.bf16.xpose.msra.mxu0 0
    %1975 = vmatprep.subr.bf16.mxu0 0
    %1976 = vmatpush2.bf16.xpose.msra.mxu0 0
    %1977 = vmatprep.mubr.bf16.mxu0 0
    %1978 = vmatmul.mubr.bf16.gmra.mxu0 %v1940
    %v1979 = vpop.f32.mrf.mxu0
    %v1980 = vadd.f32 0.0, %v1979
    %v1981 = vpop.f32.mrf.mxu0
    %v1982 = vpop.f32.mrf.mxu0
    %v1983 = vpop.f32.mrf.mxu0
    %1984 = vdwg.mxu0
    %1985 = vrot.lane.b32.xlu0 %v319, 104
    %v1986 = vpop.permute.xlu0 %1985
    %1987 = vrot.lane.b32.xlu0 %v323, 104
    %v1988 = vpop.permute.xlu0 %1987
    %v1990 = vsel %vm324, %v1986, 0
    %v1993 = vsel %vm324, %v1988, 0
    %1995 = vmatprep.subr.bf16.mxu0 0
    %1996 = vmatpush1.bf16.xpose.msra.mxu0 0
    %1997 = vmatprep.subr.bf16.mxu0 0
    %1998 = vmatpush1.bf16.xpose.msra.mxu0 0
    %1999 = vmatprep.subr.bf16.mxu0 0
    %2000 = vmatpush1.bf16.xpose.msra.mxu0 0
    %2001 = vmatprep.subr.bf16.mxu0 0
    %2002 = vmatpush1.bf16.xpose.msra.mxu0 0
    %2003 = vmatprep.subr.bf16.mxu0 0
    %2004 = vmatpush1.bf16.xpose.msra.mxu0 0
    %2005 = vmatprep.subr.bf16.mxu0 0
    %2006 = vmatpush1.bf16.xpose.msra.mxu0 0
    %2007 = vmatprep.subr.bf16.mxu0 0
    %2008 = vmatpush1.bf16.xpose.msra.mxu0 0
    %2009 = vmatprep.subr.bf16.mxu0 0
    %2010 = vmatpush1.bf16.xpose.msra.mxu0 %v1993
    %2011 = vmatprep.subr.bf16.mxu0 0
    %2012 = vmatpush2.bf16.xpose.msra.mxu0 0
    %2013 = vmatprep.subr.bf16.mxu0 0
    %2014 = vmatpush2.bf16.xpose.msra.mxu0 0
    %2015 = vmatprep.subr.bf16.mxu0 0
    %2016 = vmatpush2.bf16.xpose.msra.mxu0 0
    %2017 = vmatprep.subr.bf16.mxu0 0
    %2018 = vmatpush2.bf16.xpose.msra.mxu0 0
    %2019 = vmatprep.subr.bf16.mxu0 0
    %2020 = vmatpush2.bf16.xpose.msra.mxu0 0
    %2021 = vmatprep.subr.bf16.mxu0 0
    %2022 = vmatpush2.bf16.xpose.msra.mxu0 0
    %2023 = vmatprep.subr.bf16.mxu0 0
    %2024 = vmatpush2.bf16.xpose.msra.mxu0 0
    %2025 = vmatprep.subr.bf16.mxu0 0
    %2026 = vmatpush2.bf16.xpose.msra.mxu0 0
    %2027 = vmatprep.mubr.bf16.mxu0 0
    %2028 = vmatmul.mubr.bf16.gmra.mxu0 %v1990
    %v2029 = vpop.f32.mrf.mxu0
    %v2030 = vadd.f32 0.0, %v2029
    %v2031 = vpop.f32.mrf.mxu0
    %v2032 = vpop.f32.mrf.mxu0
    %v2033 = vpop.f32.mrf.mxu0
    %2034 = vdwg.mxu0
    %v2035 = vsel %vm324, %v1880, -inf
    %2036 = vmax.xlane.f32.xlu0 %v2035
    %v2037 = vpop.xlane.xlu0 %2036
    %v2038 = vsel %vm324, %v1930, -inf
    %2039 = vmax.xlane.f32.xlu0 %v2038
    %v2040 = vpop.xlane.xlu0 %2039
    %v2041 = vsel %vm324, %v1980, -inf
    %2042 = vmax.xlane.f32.xlu0 %v2041
    %v2043 = vpop.xlane.xlu0 %2042
    %v2044 = vsel %vm324, %v2030, -inf
    %2045 = vmax.xlane.f32.xlu0 %v2044
    %v2046 = vpop.xlane.xlu0 %2045
    %v2047 = vsub.f32 %v1880, %v2037
    %v2048 = vsub.f32 %v1930, %v2040
    %v2049 = vsub.f32 %v1980, %v2043
    %v2050 = vsub.f32 %v2030, %v2046
    %v2051 = vmul.f32 %v2047, 1.442695
    %v2052 = vpow.pop %v2051
    %v2053 = vmul.f32 %v2048, 1.442695
    %v2054 = vpow.pop %v2053
    %v2055 = vmul.f32 %v2049, 1.442695
    %v2056 = vpow.pop %v2055
    %v2057 = vmul.f32 %v2050, 1.442695
    %v2058 = vpow.pop %v2057
    %v2059 = vsel %vm324, %v2052, 0.0
    %2060 = vadd.xlane.f32.xlu0 %v2059
    %v2061 = vpop.xlane.xlu0 %2060
    %v2062 = vsel %vm324, %v2054, 0.0
    %2063 = vadd.xlane.f32.xlu0 %v2062
    %v2064 = vpop.xlane.xlu0 %2063
    %v2065 = vsel %vm324, %v2056, 0.0
    %2066 = vadd.xlane.f32.xlu0 %v2065
    %v2067 = vpop.xlane.xlu0 %2066
    %v2068 = vsel %vm324, %v2058, 0.0
    %2069 = vadd.xlane.f32.xlu0 %v2068
    %v2070 = vpop.xlane.xlu0 %2069
    %v2071 = vrcp.pop %v2061
    %v2072 = vrcp.pop %v2064
    %v2073 = vrcp.pop %v2067
    %v2074 = vrcp.pop %v2070
    %v2075 = vmul.f32 %v2052, %v2071
    %v2076 = vmul.f32 %v2054, %v2072
    %v2077 = vmul.f32 %v2056, %v2073
    %v2078 = vmul.f32 %v2058, %v2074
    %v2079 = vpack.c.bf16 %v2075, %v2075
    %v2080 = vpack.c.bf16 %v2076, %v2076
    %v2081 = vpack.c.bf16 %v2077, %v2077
    %v2082 = vpack.c.bf16 %v2078, %v2078
    %2083 = vrot.lane.b32.xlu0 %v320, 72
    %v2084 = vpop.permute.xlu0 %2083
    %v2086 = vsel %vm324, %v2079, 0
    %v2089 = vsel %vm563, %v2084, 0
    %2091 = vmatprep.subr.bf16.mxu0 0
    %2092 = vmatpush1.bf16.msra.mxu0 0
    %2093 = vmatprep.subr.bf16.mxu0 0
    %2094 = vmatpush1.bf16.msra.mxu0 0
    %2095 = vmatprep.subr.bf16.mxu0 0
    %2096 = vmatpush1.bf16.msra.mxu0 0
    %2097 = vmatprep.subr.bf16.mxu0 0
    %2098 = vmatpush1.bf16.msra.mxu0 0
    %2099 = vmatprep.subr.bf16.mxu0 0
    %2100 = vmatpush1.bf16.msra.mxu0 0
    %2101 = vmatprep.subr.bf16.mxu0 0
    %2102 = vmatpush1.bf16.msra.mxu0 0
    %2103 = vmatprep.subr.bf16.mxu0 0
    %2104 = vmatpush1.bf16.msra.mxu0 0
    %2105 = vmatprep.subr.bf16.mxu0 0
    %2106 = vmatpush1.bf16.msra.mxu0 %v2089
    %2107 = vmatprep.subr.bf16.mxu0 0
    %2108 = vmatpush2.bf16.msra.mxu0 0
    %2109 = vmatprep.subr.bf16.mxu0 0
    %2110 = vmatpush2.bf16.msra.mxu0 0
    %2111 = vmatprep.subr.bf16.mxu0 0
    %2112 = vmatpush2.bf16.msra.mxu0 0
    %2113 = vmatprep.subr.bf16.mxu0 0
    %2114 = vmatpush2.bf16.msra.mxu0 0
    %2115 = vmatprep.subr.bf16.mxu0 0
    %2116 = vmatpush2.bf16.msra.mxu0 0
    %2117 = vmatprep.subr.bf16.mxu0 0
    %2118 = vmatpush2.bf16.msra.mxu0 0
    %2119 = vmatprep.subr.bf16.mxu0 0
    %2120 = vmatpush2.bf16.msra.mxu0 0
    %2121 = vmatprep.subr.bf16.mxu0 0
    %2122 = vmatpush2.bf16.msra.mxu0 0
    %2123 = vmatprep.mubr.bf16.mxu0 0
    %2124 = vmatmul.mubr.bf16.gmra.mxu0 %v2086
    %v2125 = vpop.f32.mrf.mxu0
    %v2126 = vadd.f32 0.0, %v2125
    %v2127 = vpop.f32.mrf.mxu0
    %v2128 = vpop.f32.mrf.mxu0
    %v2129 = vpop.f32.mrf.mxu0
    %2130 = vdwg.mxu0
    %2131 = vrot.lane.b32.xlu0 %v321, 72
    %v2132 = vpop.permute.xlu0 %2131
    %v2134 = vsel %vm324, %v2080, 0
    %v2137 = vsel %vm563, %v2132, 0
    %2139 = vmatprep.subr.bf16.mxu0 0
    %2140 = vmatpush1.bf16.msra.mxu0 0
    %2141 = vmatprep.subr.bf16.mxu0 0
    %2142 = vmatpush1.bf16.msra.mxu0 0
    %2143 = vmatprep.subr.bf16.mxu0 0
    %2144 = vmatpush1.bf16.msra.mxu0 0
    %2145 = vmatprep.subr.bf16.mxu0 0
    %2146 = vmatpush1.bf16.msra.mxu0 0
    %2147 = vmatprep.subr.bf16.mxu0 0
    %2148 = vmatpush1.bf16.msra.mxu0 0
    %2149 = vmatprep.subr.bf16.mxu0 0
    %2150 = vmatpush1.bf16.msra.mxu0 0
    %2151 = vmatprep.subr.bf16.mxu0 0
    %2152 = vmatpush1.bf16.msra.mxu0 0
    %2153 = vmatprep.subr.bf16.mxu0 0
    %2154 = vmatpush1.bf16.msra.mxu0 %v2137
    %2155 = vmatprep.subr.bf16.mxu0 0
    %2156 = vmatpush2.bf16.msra.mxu0 0
    %2157 = vmatprep.subr.bf16.mxu0 0
    %2158 = vmatpush2.bf16.msra.mxu0 0
    %2159 = vmatprep.subr.bf16.mxu0 0
    %2160 = vmatpush2.bf16.msra.mxu0 0
    %2161 = vmatprep.subr.bf16.mxu0 0
    %2162 = vmatpush2.bf16.msra.mxu0 0
    %2163 = vmatprep.subr.bf16.mxu0 0
    %2164 = vmatpush2.bf16.msra.mxu0 0
    %2165 = vmatprep.subr.bf16.mxu0 0
    %2166 = vmatpush2.bf16.msra.mxu0 0
    %2167 = vmatprep.subr.bf16.mxu0 0
    %2168 = vmatpush2.bf16.msra.mxu0 0
    %2169 = vmatprep.subr.bf16.mxu0 0
    %2170 = vmatpush2.bf16.msra.mxu0 0
    %2171 = vmatprep.mubr.bf16.mxu0 0
    %2172 = vmatmul.mubr.bf16.gmra.mxu0 %v2134
    %v2173 = vpop.f32.mrf.mxu0
    %v2174 = vadd.f32 0.0, %v2173
    %v2175 = vpop.f32.mrf.mxu0
    %v2176 = vpop.f32.mrf.mxu0
    %v2177 = vpop.f32.mrf.mxu0
    %2178 = vdwg.mxu0
    %2179 = vrot.lane.b32.xlu0 %v322, 72
    %v2180 = vpop.permute.xlu0 %2179
    %v2182 = vsel %vm324, %v2081, 0
    %v2185 = vsel %vm563, %v2180, 0
    %2187 = vmatprep.subr.bf16.mxu0 0
    %2188 = vmatpush1.bf16.msra.mxu0 0
    %2189 = vmatprep.subr.bf16.mxu0 0
    %2190 = vmatpush1.bf16.msra.mxu0 0
    %2191 = vmatprep.subr.bf16.mxu0 0
    %2192 = vmatpush1.bf16.msra.mxu0 0
    %2193 = vmatprep.subr.bf16.mxu0 0
    %2194 = vmatpush1.bf16.msra.mxu0 0
    %2195 = vmatprep.subr.bf16.mxu0 0
    %2196 = vmatpush1.bf16.msra.mxu0 0
    %2197 = vmatprep.subr.bf16.mxu0 0
    %2198 = vmatpush1.bf16.msra.mxu0 0
    %2199 = vmatprep.subr.bf16.mxu0 0
    %2200 = vmatpush1.bf16.msra.mxu0 0
    %2201 = vmatprep.subr.bf16.mxu0 0
    %2202 = vmatpush1.bf16.msra.mxu0 %v2185
    %2203 = vmatprep.subr.bf16.mxu0 0
    %2204 = vmatpush2.bf16.msra.mxu0 0
    %2205 = vmatprep.subr.bf16.mxu0 0
    %2206 = vmatpush2.bf16.msra.mxu0 0
    %2207 = vmatprep.subr.bf16.mxu0 0
    %2208 = vmatpush2.bf16.msra.mxu0 0
    %2209 = vmatprep.subr.bf16.mxu0 0
    %2210 = vmatpush2.bf16.msra.mxu0 0
    %2211 = vmatprep.subr.bf16.mxu0 0
    %2212 = vmatpush2.bf16.msra.mxu0 0
    %2213 = vmatprep.subr.bf16.mxu0 0
    %2214 = vmatpush2.bf16.msra.mxu0 0
    %2215 = vmatprep.subr.bf16.mxu0 0
    %2216 = vmatpush2.bf16.msra.mxu0 0
    %2217 = vmatprep.subr.bf16.mxu0 0
    %2218 = vmatpush2.bf16.msra.mxu0 0
    %2219 = vmatprep.mubr.bf16.mxu0 0
    %2220 = vmatmul.mubr.bf16.gmra.mxu0 %v2182
    %v2221 = vpop.f32.mrf.mxu0
    %v2222 = vadd.f32 0.0, %v2221
    %v2223 = vpop.f32.mrf.mxu0
    %v2224 = vpop.f32.mrf.mxu0
    %v2225 = vpop.f32.mrf.mxu0
    %2226 = vdwg.mxu0
    %2227 = vrot.lane.b32.xlu0 %v323, 72
    %v2228 = vpop.permute.xlu0 %2227
    %v2230 = vsel %vm324, %v2082, 0
    %v2233 = vsel %vm563, %v2228, 0
    %2235 = vmatprep.subr.bf16.mxu0 0
    %2236 = vmatpush1.bf16.msra.mxu0 0
    %2237 = vmatprep.subr.bf16.mxu0 0
    %2238 = vmatpush1.bf16.msra.mxu0 0
    %2239 = vmatprep.subr.bf16.mxu0 0
    %2240 = vmatpush1.bf16.msra.mxu0 0
    %2241 = vmatprep.subr.bf16.mxu0 0
    %2242 = vmatpush1.bf16.msra.mxu0 0
    %2243 = vmatprep.subr.bf16.mxu0 0
    %2244 = vmatpush1.bf16.msra.mxu0 0
    %2245 = vmatprep.subr.bf16.mxu0 0
    %2246 = vmatpush1.bf16.msra.mxu0 0
    %2247 = vmatprep.subr.bf16.mxu0 0
    %2248 = vmatpush1.bf16.msra.mxu0 0
    %2249 = vmatprep.subr.bf16.mxu0 0
    %2250 = vmatpush1.bf16.msra.mxu0 %v2233
    %2251 = vmatprep.subr.bf16.mxu0 0
    %2252 = vmatpush2.bf16.msra.mxu0 0
    %2253 = vmatprep.subr.bf16.mxu0 0
    %2254 = vmatpush2.bf16.msra.mxu0 0
    %2255 = vmatprep.subr.bf16.mxu0 0
    %2256 = vmatpush2.bf16.msra.mxu0 0
    %2257 = vmatprep.subr.bf16.mxu0 0
    %2258 = vmatpush2.bf16.msra.mxu0 0
    %2259 = vmatprep.subr.bf16.mxu0 0
    %2260 = vmatpush2.bf16.msra.mxu0 0
    %2261 = vmatprep.subr.bf16.mxu0 0
    %2262 = vmatpush2.bf16.msra.mxu0 0
    %2263 = vmatprep.subr.bf16.mxu0 0
    %2264 = vmatpush2.bf16.msra.mxu0 0
    %2265 = vmatprep.subr.bf16.mxu0 0
    %2266 = vmatpush2.bf16.msra.mxu0 0
    %2267 = vmatprep.mubr.bf16.mxu0 0
    %2268 = vmatmul.mubr.bf16.gmra.mxu0 %v2230
    %v2269 = vpop.f32.mrf.mxu0
    %v2270 = vadd.f32 0.0, %v2269
    %v2271 = vpop.f32.mrf.mxu0
    %v2272 = vpop.f32.mrf.mxu0
    %v2273 = vpop.f32.mrf.mxu0
    %2274 = vdwg.mxu0
    %v2275 = vpack.c.bf16 %v2174, %v2126
    %v2276 = vpack.c.bf16 %v2270, %v2222
    %s2277 = scalar_lea.vmem [#allocation8], 12
    %v2278 = vld [vmem:[%s2277] sm:$0xf]
    %v2280 = vsel %vm324, %v2275, 0
    %v2283 = vsel %vm324, %v2276, 0
    %v2286 = vsel %vm563, %v2278, 0
    %2288 = vmatprep.subr.bf16.mxu0 0
    %2289 = vmatpush1.bf16.msra.mxu0 0
    %2290 = vmatprep.subr.bf16.mxu0 0
    %2291 = vmatpush1.bf16.msra.mxu0 0
    %2292 = vmatprep.subr.bf16.mxu0 0
    %2293 = vmatpush1.bf16.msra.mxu0 0
    %2294 = vmatprep.subr.bf16.mxu0 0
    %2295 = vmatpush1.bf16.msra.mxu0 0
    %2296 = vmatprep.subr.bf16.mxu0 0
    %2297 = vmatpush1.bf16.msra.mxu0 0
    %2298 = vmatprep.subr.bf16.mxu0 0
    %2299 = vmatpush1.bf16.msra.mxu0 0
    %2300 = vmatprep.subr.bf16.mxu0 0
    %2301 = vmatpush1.bf16.msra.mxu0 0
    %2302 = vmatprep.subr.bf16.mxu0 0
    %2303 = vmatpush1.bf16.msra.mxu0 %v2286
    %2304 = vmatprep.subr.bf16.mxu0 0
    %2305 = vmatpush2.bf16.msra.mxu0 0
    %2306 = vmatprep.subr.bf16.mxu0 0
    %2307 = vmatpush2.bf16.msra.mxu0 0
    %2308 = vmatprep.subr.bf16.mxu0 0
    %2309 = vmatpush2.bf16.msra.mxu0 0
    %2310 = vmatprep.subr.bf16.mxu0 0
    %2311 = vmatpush2.bf16.msra.mxu0 0
    %2312 = vmatprep.subr.bf16.mxu0 0
    %2313 = vmatpush2.bf16.msra.mxu0 0
    %2314 = vmatprep.subr.bf16.mxu0 0
    %2315 = vmatpush2.bf16.msra.mxu0 0
    %2316 = vmatprep.subr.bf16.mxu0 0
    %2317 = vmatpush2.bf16.msra.mxu0 0
    %2318 = vmatprep.subr.bf16.mxu0 0
    %2319 = vmatpush2.bf16.msra.mxu0 0
    %2320 = vmatprep.mubr.bf16.mxu0 0
    %2321 = vmatmul.mubr.bf16.gmra.mxu0 %v2280
    %v2322 = vpop.f32.mrf.mxu0
    %v2323 = vadd.f32 0.0, %v2322
    %v2324 = vpop.f32.mrf.mxu0
    %v2325 = vpop.f32.mrf.mxu0
    %v2326 = vadd.f32 0.0, %v2325
    %v2327 = vpop.f32.mrf.mxu0
    %2328 = vmatprep.mubr.bf16.mxu0 0
    %2329 = vmatmul.mubr.bf16.gmra.mxu0 %v2283
    %v2330 = vpop.f32.mrf.mxu0
    %v2331 = vadd.f32 0.0, %v2330
    %v2332 = vpop.f32.mrf.mxu0
    %v2333 = vpop.f32.mrf.mxu0
    %v2334 = vadd.f32 0.0, %v2333
    %v2335 = vpop.f32.mrf.mxu0
    %2336 = vdwg.mxu0
    %v2337 = vadd.f32 %v1831, %v2323
    %v2338 = vadd.f32 %v1832, %v2326
    %v2339 = vadd.f32 %v1833, %v2331
    %v2340 = vadd.f32 %v1834, %v2334
    %v2341 = vld [vmem:[#allocation11] sm:$0x1]
    %v2342 = vld [vmem:[#allocation13] sm:$0x1]
    %v2343 = vsel %vm187, %v2337, 0.0
    %2344 = vadd.xlane.f32.xlu0 %v2343
    %v2345 = vpop.xlane.xlu0 %2344
    %v2346 = vsel %vm187, %v2338, 0.0
    %2347 = vadd.xlane.f32.xlu0 %v2346
    %v2348 = vpop.xlane.xlu0 %2347
    %v2349 = vsel %vm187, %v2339, 0.0
    %2350 = vadd.xlane.f32.xlu0 %v2349
    %v2351 = vpop.xlane.xlu0 %2350
    %v2352 = vsel %vm187, %v2340, 0.0
    %2353 = vadd.xlane.f32.xlu0 %v2352
    %v2354 = vpop.xlane.xlu0 %2353
    %v2355 = vrcp.pop 32.0
    %v2356 = vmul.f32 %v2345, %v2355
    %v2357 = vmul.f32 %v2348, %v2355
    %v2358 = vmul.f32 %v2351, %v2355
    %v2359 = vmul.f32 %v2354, %v2355
    %v2360 = vsub.f32 %v2337, %v2356
    %v2361 = vsub.f32 %v2338, %v2357
    %v2362 = vsub.f32 %v2339, %v2358
    %v2363 = vsub.f32 %v2340, %v2359
    %v2364 = vmul.f32 %v2360, %v2360
    %v2365 = vmul.f32 %v2361, %v2361
    %v2366 = vmul.f32 %v2362, %v2362
    %v2367 = vmul.f32 %v2363, %v2363
    %v2368 = vsel %vm187, %v2364, 0.0
    %2369 = vadd.xlane.f32.xlu0 %v2368
    %v2370 = vpop.xlane.xlu0 %2369
    %v2371 = vsel %vm187, %v2365, 0.0
    %2372 = vadd.xlane.f32.xlu0 %v2371
    %v2373 = vpop.xlane.xlu0 %2372
    %v2374 = vsel %vm187, %v2366, 0.0
    %2375 = vadd.xlane.f32.xlu0 %v2374
    %v2376 = vpop.xlane.xlu0 %2375
    %v2377 = vsel %vm187, %v2367, 0.0
    %2378 = vadd.xlane.f32.xlu0 %v2377
    %v2379 = vpop.xlane.xlu0 %2378
    %v2380 = vmul.f32 %v2370, %v2355
    %v2381 = vmul.f32 %v2373, %v2355
    %v2382 = vmul.f32 %v2376, %v2355
    %v2383 = vmul.f32 %v2379, %v2355
    %v2384 = vadd.f32 %v2380, 1e-06
    %v2385 = vadd.f32 %v2381, 1e-06
    %v2386 = vadd.f32 %v2382, 1e-06
    %v2387 = vadd.f32 %v2383, 1e-06
    %v2388 = vrsqrt.pop %v2384
    %v2389 = vrsqrt.pop %v2385
    %v2390 = vrsqrt.pop %v2386
    %v2391 = vrsqrt.pop %v2387
    %v2392 = vmul.f32 %v2360, %v2388
    %v2393 = vmul.f32 %v2361, %v2389
    %v2394 = vmul.f32 %v2362, %v2390
    %v2395 = vmul.f32 %v2363, %v2391
    %v2397 = vlaneseq
    %v2398 = vshrl.u32 %v2397, 7
    %v2399 = vsub.s32 0, %v2398
    %v2400 = vrot.slane %v2341, %v2399
    %v2402 = vmul.f32 %v2392, %v2400
    %v2403 = vmul.f32 %v2393, %v2400
    %v2404 = vmul.f32 %v2394, %v2400
    %v2405 = vmul.f32 %v2395, %v2400
    %v2407 = vlaneseq
    %v2408 = vshrl.u32 %v2407, 7
    %v2409 = vsub.s32 0, %v2408
    %v2410 = vrot.slane %v2342, %v2409
    %v2412 = vadd.f32 %v2402, %v2410
    %v2413 = vadd.f32 %v2403, %v2410
    %v2414 = vadd.f32 %v2404, %v2410
    %v2415 = vadd.f32 %v2405, %v2410
    %v2416 = vpack.c.bf16 %v2413, %v2412
    %v2417 = vpack.c.bf16 %v2415, %v2414
    %v2418 = vld [vmem:[#allocation5] sm:$0xf]
    %v2419 = vld [vmem:[#allocation5 + $0x4] sm:$0xf]
    %v2420 = vld [vmem:[#allocation5 + $0x8] sm:$0xf]
    %v2421 = vld [vmem:[#allocation5 + $0xc] sm:$0xf]
    %v2426 = vunpack.c.l.b16 %v2418
    %v2427 = vunpack.c.l.b16 %v2419
    %v2428 = vunpack.c.l.b16 %v2420
    %v2429 = vunpack.c.l.b16 %v2421
    %v2430 = vpack.c.b16 %v2427, %v2426
    %v2431 = vpack.c.b16 %v2429, %v2428
    %v2435 = vsel %vm187, %v2416, 0
    %v2438 = vsel %vm187, %v2417, 0
    %2440 = vmatprep.subr.bf16.mxu0 0
    %2441 = vmatpush1.bf16.msra.mxu0 0
    %2442 = vmatprep.subr.bf16.mxu0 0
    %2443 = vmatpush1.bf16.msra.mxu0 0
    %2444 = vmatprep.subr.bf16.mxu0 0
    %2445 = vmatpush1.bf16.msra.mxu0 0
    %2446 = vmatprep.subr.bf16.mxu0 0
    %2447 = vmatpush1.bf16.msra.mxu0 0
    %2448 = vmatprep.subr.bf16.mxu0 0
    %2449 = vmatpush1.bf16.msra.mxu0 0
    %2450 = vmatprep.subr.bf16.mxu0 0
    %2451 = vmatpush1.bf16.msra.mxu0 0
    %2452 = vmatprep.subr.bf16.mxu0 0
    %2453 = vmatpush1.bf16.msra.mxu0 %v2431
    %2454 = vmatprep.subr.bf16.mxu0 0
    %2455 = vmatpush1.bf16.msra.mxu0 %v2430
    %2456 = vmatprep.subr.bf16.mxu0 0
    %2457 = vmatpush2.bf16.msra.mxu0 0
    %2458 = vmatprep.subr.bf16.mxu0 0
    %2459 = vmatpush2.bf16.msra.mxu0 0
    %2460 = vmatprep.subr.bf16.mxu0 0
    %2461 = vmatpush2.bf16.msra.mxu0 0
    %2462 = vmatprep.subr.bf16.mxu0 0
    %2463 = vmatpush2.bf16.msra.mxu0 0
    %2464 = vmatprep.subr.bf16.mxu0 0
    %2465 = vmatpush2.bf16.msra.mxu0 0
    %2466 = vmatprep.subr.bf16.mxu0 0
    %2467 = vmatpush2.bf16.msra.mxu0 0
    %2468 = vmatprep.subr.bf16.mxu0 0
    %2469 = vmatpush2.bf16.msra.mxu0 0
    %2470 = vmatprep.subr.bf16.mxu0 0
    %2471 = vmatpush2.bf16.msra.mxu0 0
    %2472 = vmatprep.mubr.bf16.mxu0 0
    %2473 = vmatmul.mubr.bf16.gmra.mxu0 %v2435
    %v2474 = vpop.f32.mrf.mxu0
    %v2475 = vadd.f32 0.0, %v2474
    %v2476 = vpop.f32.mrf.mxu0
    %v2477 = vpop.f32.mrf.mxu0
    %v2478 = vadd.f32 0.0, %v2477
    %v2479 = vpop.f32.mrf.mxu0
    %2480 = vmatprep.mubr.bf16.mxu0 0
    %2481 = vmatmul.mubr.bf16.gmra.mxu0 %v2438
    %v2482 = vpop.f32.mrf.mxu0
    %v2483 = vadd.f32 0.0, %v2482
    %v2484 = vpop.f32.mrf.mxu0
    %v2485 = vpop.f32.mrf.mxu0
    %v2486 = vadd.f32 0.0, %v2485
    %v2487 = vpop.f32.mrf.mxu0
    %2488 = vdwg.mxu0
    %v2489 = vpack.c.bf16 %v2475, %v2475
    %v2490 = vpack.c.bf16 %v2478, %v2478
    %v2491 = vpack.c.bf16 %v2483, %v2483
    %v2492 = vpack.c.bf16 %v2486, %v2486
    %2493 = vrot.lane.b32.xlu0 %v320, 64
    %v2494 = vpop.permute.xlu0 %2493
    %v2496 = vsel %vm324, %v2489, 0
    %v2499 = vsel %vm324, %v2494, 0
    %2501 = vmatprep.subr.bf16.mxu0 0
    %2502 = vmatpush1.bf16.xpose.msra.mxu0 0
    %2503 = vmatprep.subr.bf16.mxu0 0
    %2504 = vmatpush1.bf16.xpose.msra.mxu0 0
    %2505 = vmatprep.subr.bf16.mxu0 0
    %2506 = vmatpush1.bf16.xpose.msra.mxu0 0
    %2507 = vmatprep.subr.bf16.mxu0 0
    %2508 = vmatpush1.bf16.xpose.msra.mxu0 0
    %2509 = vmatprep.subr.bf16.mxu0 0
    %2510 = vmatpush1.bf16.xpose.msra.mxu0 0
    %2511 = vmatprep.subr.bf16.mxu0 0
    %2512 = vmatpush1.bf16.xpose.msra.mxu0 0
    %2513 = vmatprep.subr.bf16.mxu0 0
    %2514 = vmatpush1.bf16.xpose.msra.mxu0 0
    %2515 = vmatprep.subr.bf16.mxu0 0
    %2516 = vmatpush1.bf16.xpose.msra.mxu0 %v2499
    %2517 = vmatprep.subr.bf16.mxu0 0
    %2518 = vmatpush2.bf16.xpose.msra.mxu0 0
    %2519 = vmatprep.subr.bf16.mxu0 0
    %2520 = vmatpush2.bf16.xpose.msra.mxu0 0
    %2521 = vmatprep.subr.bf16.mxu0 0
    %2522 = vmatpush2.bf16.xpose.msra.mxu0 0
    %2523 = vmatprep.subr.bf16.mxu0 0
    %2524 = vmatpush2.bf16.xpose.msra.mxu0 0
    %2525 = vmatprep.subr.bf16.mxu0 0
    %2526 = vmatpush2.bf16.xpose.msra.mxu0 0
    %2527 = vmatprep.subr.bf16.mxu0 0
    %2528 = vmatpush2.bf16.xpose.msra.mxu0 0
    %2529 = vmatprep.subr.bf16.mxu0 0
    %2530 = vmatpush2.bf16.xpose.msra.mxu0 0
    %2531 = vmatprep.subr.bf16.mxu0 0
    %2532 = vmatpush2.bf16.xpose.msra.mxu0 0
    %2533 = vmatprep.mubr.bf16.mxu0 0
    %2534 = vmatmul.mubr.bf16.gmra.mxu0 %v2496
    %v2535 = vpop.f32.mrf.mxu0
    %v2536 = vadd.f32 0.0, %v2535
    %v2537 = vpop.f32.mrf.mxu0
    %v2538 = vpop.f32.mrf.mxu0
    %v2539 = vpop.f32.mrf.mxu0
    %2540 = vdwg.mxu0
    %2541 = vrot.lane.b32.xlu0 %v321, 64
    %v2542 = vpop.permute.xlu0 %2541
    %v2544 = vsel %vm324, %v2490, 0
    %v2547 = vsel %vm324, %v2542, 0
    %2549 = vmatprep.subr.bf16.mxu0 0
    %2550 = vmatpush1.bf16.xpose.msra.mxu0 0
    %2551 = vmatprep.subr.bf16.mxu0 0
    %2552 = vmatpush1.bf16.xpose.msra.mxu0 0
    %2553 = vmatprep.subr.bf16.mxu0 0
    %2554 = vmatpush1.bf16.xpose.msra.mxu0 0
    %2555 = vmatprep.subr.bf16.mxu0 0
    %2556 = vmatpush1.bf16.xpose.msra.mxu0 0
    %2557 = vmatprep.subr.bf16.mxu0 0
    %2558 = vmatpush1.bf16.xpose.msra.mxu0 0
    %2559 = vmatprep.subr.bf16.mxu0 0
    %2560 = vmatpush1.bf16.xpose.msra.mxu0 0
    %2561 = vmatprep.subr.bf16.mxu0 0
    %2562 = vmatpush1.bf16.xpose.msra.mxu0 0
    %2563 = vmatprep.subr.bf16.mxu0 0
    %2564 = vmatpush1.bf16.xpose.msra.mxu0 %v2547
    %2565 = vmatprep.subr.bf16.mxu0 0
    %2566 = vmatpush2.bf16.xpose.msra.mxu0 0
    %2567 = vmatprep.subr.bf16.mxu0 0
    %2568 = vmatpush2.bf16.xpose.msra.mxu0 0
    %2569 = vmatprep.subr.bf16.mxu0 0
    %2570 = vmatpush2.bf16.xpose.msra.mxu0 0
    %2571 = vmatprep.subr.bf16.mxu0 0
    %2572 = vmatpush2.bf16.xpose.msra.mxu0 0
    %2573 = vmatprep.subr.bf16.mxu0 0
    %2574 = vmatpush2.bf16.xpose.msra.mxu0 0
    %2575 = vmatprep.subr.bf16.mxu0 0
    %2576 = vmatpush2.bf16.xpose.msra.mxu0 0
    %2577 = vmatprep.subr.bf16.mxu0 0
    %2578 = vmatpush2.bf16.xpose.msra.mxu0 0
    %2579 = vmatprep.subr.bf16.mxu0 0
    %2580 = vmatpush2.bf16.xpose.msra.mxu0 0
    %2581 = vmatprep.mubr.bf16.mxu0 0
    %2582 = vmatmul.mubr.bf16.gmra.mxu0 %v2544
    %v2583 = vpop.f32.mrf.mxu0
    %v2584 = vadd.f32 0.0, %v2583
    %v2585 = vpop.f32.mrf.mxu0
    %v2586 = vpop.f32.mrf.mxu0
    %v2587 = vpop.f32.mrf.mxu0
    %2588 = vdwg.mxu0
    %2589 = vrot.lane.b32.xlu0 %v322, 64
    %v2590 = vpop.permute.xlu0 %2589
    %v2592 = vsel %vm324, %v2491, 0
    %v2595 = vsel %vm324, %v2590, 0
    %2597 = vmatprep.subr.bf16.mxu0 0
    %2598 = vmatpush1.bf16.xpose.msra.mxu0 0
    %2599 = vmatprep.subr.bf16.mxu0 0
    %2600 = vmatpush1.bf16.xpose.msra.mxu0 0
    %2601 = vmatprep.subr.bf16.mxu0 0
    %2602 = vmatpush1.bf16.xpose.msra.mxu0 0
    %2603 = vmatprep.subr.bf16.mxu0 0
    %2604 = vmatpush1.bf16.xpose.msra.mxu0 0
    %2605 = vmatprep.subr.bf16.mxu0 0
    %2606 = vmatpush1.bf16.xpose.msra.mxu0 0
    %2607 = vmatprep.subr.bf16.mxu0 0
    %2608 = vmatpush1.bf16.xpose.msra.mxu0 0
    %2609 = vmatprep.subr.bf16.mxu0 0
    %2610 = vmatpush1.bf16.xpose.msra.mxu0 0
    %2611 = vmatprep.subr.bf16.mxu0 0
    %2612 = vmatpush1.bf16.xpose.msra.mxu0 %v2595
    %2613 = vmatprep.subr.bf16.mxu0 0
    %2614 = vmatpush2.bf16.xpose.msra.mxu0 0
    %2615 = vmatprep.subr.bf16.mxu0 0
    %2616 = vmatpush2.bf16.xpose.msra.mxu0 0
    %2617 = vmatprep.subr.bf16.mxu0 0
    %2618 = vmatpush2.bf16.xpose.msra.mxu0 0
    %2619 = vmatprep.subr.bf16.mxu0 0
    %2620 = vmatpush2.bf16.xpose.msra.mxu0 0
    %2621 = vmatprep.subr.bf16.mxu0 0
    %2622 = vmatpush2.bf16.xpose.msra.mxu0 0
    %2623 = vmatprep.subr.bf16.mxu0 0
    %2624 = vmatpush2.bf16.xpose.msra.mxu0 0
    %2625 = vmatprep.subr.bf16.mxu0 0
    %2626 = vmatpush2.bf16.xpose.msra.mxu0 0
    %2627 = vmatprep.subr.bf16.mxu0 0
    %2628 = vmatpush2.bf16.xpose.msra.mxu0 0
    %2629 = vmatprep.mubr.bf16.mxu0 0
    %2630 = vmatmul.mubr.bf16.gmra.mxu0 %v2592
    %v2631 = vpop.f32.mrf.mxu0
    %v2632 = vadd.f32 0.0, %v2631
    %v2633 = vpop.f32.mrf.mxu0
    %v2634 = vpop.f32.mrf.mxu0
    %v2635 = vpop.f32.mrf.mxu0
    %2636 = vdwg.mxu0
    %2637 = vrot.lane.b32.xlu0 %v323, 64
    %v2638 = vpop.permute.xlu0 %2637
    %v2640 = vsel %vm324, %v2492, 0
    %v2643 = vsel %vm324, %v2638, 0
    %2645 = vmatprep.subr.bf16.mxu0 0
    %2646 = vmatpush1.bf16.xpose.msra.mxu0 0
    %2647 = vmatprep.subr.bf16.mxu0 0
    %2648 = vmatpush1.bf16.xpose.msra.mxu0 0
    %2649 = vmatprep.subr.bf16.mxu0 0
    %2650 = vmatpush1.bf16.xpose.msra.mxu0 0
    %2651 = vmatprep.subr.bf16.mxu0 0
    %2652 = vmatpush1.bf16.xpose.msra.mxu0 0
    %2653 = vmatprep.subr.bf16.mxu0 0
    %2654 = vmatpush1.bf16.xpose.msra.mxu0 0
    %2655 = vmatprep.subr.bf16.mxu0 0
    %2656 = vmatpush1.bf16.xpose.msra.mxu0 0
    %2657 = vmatprep.subr.bf16.mxu0 0
    %2658 = vmatpush1.bf16.xpose.msra.mxu0 0
    %2659 = vmatprep.subr.bf16.mxu0 0
    %2660 = vmatpush1.bf16.xpose.msra.mxu0 %v2643
    %2661 = vmatprep.subr.bf16.mxu0 0
    %2662 = vmatpush2.bf16.xpose.msra.mxu0 0
    %2663 = vmatprep.subr.bf16.mxu0 0
    %2664 = vmatpush2.bf16.xpose.msra.mxu0 0
    %2665 = vmatprep.subr.bf16.mxu0 0
    %2666 = vmatpush2.bf16.xpose.msra.mxu0 0
    %2667 = vmatprep.subr.bf16.mxu0 0
    %2668 = vmatpush2.bf16.xpose.msra.mxu0 0
    %2669 = vmatprep.subr.bf16.mxu0 0
    %2670 = vmatpush2.bf16.xpose.msra.mxu0 0
    %2671 = vmatprep.subr.bf16.mxu0 0
    %2672 = vmatpush2.bf16.xpose.msra.mxu0 0
    %2673 = vmatprep.subr.bf16.mxu0 0
    %2674 = vmatpush2.bf16.xpose.msra.mxu0 0
    %2675 = vmatprep.subr.bf16.mxu0 0
    %2676 = vmatpush2.bf16.xpose.msra.mxu0 0
    %2677 = vmatprep.mubr.bf16.mxu0 0
    %2678 = vmatmul.mubr.bf16.gmra.mxu0 %v2640
    %v2679 = vpop.f32.mrf.mxu0
    %v2680 = vadd.f32 0.0, %v2679
    %v2681 = vpop.f32.mrf.mxu0
    %v2682 = vpop.f32.mrf.mxu0
    %v2683 = vpop.f32.mrf.mxu0
    %2684 = vdwg.mxu0
    %v2685 = vsel %vm324, %v2536, -inf
    %2686 = vmax.xlane.f32.xlu0 %v2685
    %v2687 = vpop.xlane.xlu0 %2686
    %v2688 = vsel %vm324, %v2584, -inf
    %2689 = vmax.xlane.f32.xlu0 %v2688
    %v2690 = vpop.xlane.xlu0 %2689
    %v2691 = vsel %vm324, %v2632, -inf
    %2692 = vmax.xlane.f32.xlu0 %v2691
    %v2693 = vpop.xlane.xlu0 %2692
    %v2694 = vsel %vm324, %v2680, -inf
    %2695 = vmax.xlane.f32.xlu0 %v2694
    %v2696 = vpop.xlane.xlu0 %2695
    %v2697 = vsub.f32 %v2536, %v2687
    %v2698 = vsub.f32 %v2584, %v2690
    %v2699 = vsub.f32 %v2632, %v2693
    %v2700 = vsub.f32 %v2680, %v2696
    %v2701 = vmul.f32 %v2697, 1.442695
    %v2702 = vpow.pop %v2701
    %v2703 = vmul.f32 %v2698, 1.442695
    %v2704 = vpow.pop %v2703
    %v2705 = vmul.f32 %v2699, 1.442695
    %v2706 = vpow.pop %v2705
    %v2707 = vmul.f32 %v2700, 1.442695
    %v2708 = vpow.pop %v2707
    %v2709 = vsel %vm324, %v2702, 0.0
    %2710 = vadd.xlane.f32.xlu0 %v2709
    %v2711 = vpop.xlane.xlu0 %2710
    %v2712 = vsel %vm324, %v2704, 0.0
    %2713 = vadd.xlane.f32.xlu0 %v2712
    %v2714 = vpop.xlane.xlu0 %2713
    %v2715 = vsel %vm324, %v2706, 0.0
    %2716 = vadd.xlane.f32.xlu0 %v2715
    %v2717 = vpop.xlane.xlu0 %2716
    %v2718 = vsel %vm324, %v2708, 0.0
    %2719 = vadd.xlane.f32.xlu0 %v2718
    %v2720 = vpop.xlane.xlu0 %2719
    %v2721 = vrcp.pop %v2711
    %v2722 = vrcp.pop %v2714
    %v2723 = vrcp.pop %v2717
    %v2724 = vrcp.pop %v2720
    %v2725 = vmul.f32 %v2702, %v2721
    %v2726 = vmul.f32 %v2704, %v2722
    %v2727 = vmul.f32 %v2706, %v2723
    %v2728 = vmul.f32 %v2708, %v2724
    %v2729 = vpack.c.bf16 %v2725, %v2725
    %v2730 = vpack.c.bf16 %v2726, %v2726
    %v2731 = vpack.c.bf16 %v2727, %v2727
    %v2732 = vpack.c.bf16 %v2728, %v2728
    %2733 = vrot.lane.b32.xlu0 %v320, 32
    %v2734 = vpop.permute.xlu0 %2733
    %v2736 = vsel %vm324, %v2729, 0
    %v2739 = vsel %vm563, %v2734, 0
    %2741 = vmatprep.subr.bf16.mxu0 0
    %2742 = vmatpush1.bf16.msra.mxu0 0
    %2743 = vmatprep.subr.bf16.mxu0 0
    %2744 = vmatpush1.bf16.msra.mxu0 0
    %2745 = vmatprep.subr.bf16.mxu0 0
    %2746 = vmatpush1.bf16.msra.mxu0 0
    %2747 = vmatprep.subr.bf16.mxu0 0
    %2748 = vmatpush1.bf16.msra.mxu0 0
    %2749 = vmatprep.subr.bf16.mxu0 0
    %2750 = vmatpush1.bf16.msra.mxu0 0
    %2751 = vmatprep.subr.bf16.mxu0 0
    %2752 = vmatpush1.bf16.msra.mxu0 0
    %2753 = vmatprep.subr.bf16.mxu0 0
    %2754 = vmatpush1.bf16.msra.mxu0 0
    %2755 = vmatprep.subr.bf16.mxu0 0
    %2756 = vmatpush1.bf16.msra.mxu0 %v2739
    %2757 = vmatprep.subr.bf16.mxu0 0
    %2758 = vmatpush2.bf16.msra.mxu0 0
    %2759 = vmatprep.subr.bf16.mxu0 0
    %2760 = vmatpush2.bf16.msra.mxu0 0
    %2761 = vmatprep.subr.bf16.mxu0 0
    %2762 = vmatpush2.bf16.msra.mxu0 0
    %2763 = vmatprep.subr.bf16.mxu0 0
    %2764 = vmatpush2.bf16.msra.mxu0 0
    %2765 = vmatprep.subr.bf16.mxu0 0
    %2766 = vmatpush2.bf16.msra.mxu0 0
    %2767 = vmatprep.subr.bf16.mxu0 0
    %2768 = vmatpush2.bf16.msra.mxu0 0
    %2769 = vmatprep.subr.bf16.mxu0 0
    %2770 = vmatpush2.bf16.msra.mxu0 0
    %2771 = vmatprep.subr.bf16.mxu0 0
    %2772 = vmatpush2.bf16.msra.mxu0 0
    %2773 = vmatprep.mubr.bf16.mxu0 0
    %2774 = vmatmul.mubr.bf16.gmra.mxu0 %v2736
    %v2775 = vpop.f32.mrf.mxu0
    %v2776 = vadd.f32 0.0, %v2775
    %v2777 = vpop.f32.mrf.mxu0
    %v2778 = vpop.f32.mrf.mxu0
    %v2779 = vpop.f32.mrf.mxu0
    %2780 = vdwg.mxu0
    %2781 = vrot.lane.b32.xlu0 %v321, 32
    %v2782 = vpop.permute.xlu0 %2781
    %v2784 = vsel %vm324, %v2730, 0
    %v2787 = vsel %vm563, %v2782, 0
    %2789 = vmatprep.subr.bf16.mxu0 0
    %2790 = vmatpush1.bf16.msra.mxu0 0
    %2791 = vmatprep.subr.bf16.mxu0 0
    %2792 = vmatpush1.bf16.msra.mxu0 0
    %2793 = vmatprep.subr.bf16.mxu0 0
    %2794 = vmatpush1.bf16.msra.mxu0 0
    %2795 = vmatprep.subr.bf16.mxu0 0
    %2796 = vmatpush1.bf16.msra.mxu0 0
    %2797 = vmatprep.subr.bf16.mxu0 0
    %2798 = vmatpush1.bf16.msra.mxu0 0
    %2799 = vmatprep.subr.bf16.mxu0 0
    %2800 = vmatpush1.bf16.msra.mxu0 0
    %2801 = vmatprep.subr.bf16.mxu0 0
    %2802 = vmatpush1.bf16.msra.mxu0 0
    %2803 = vmatprep.subr.bf16.mxu0 0
    %2804 = vmatpush1.bf16.msra.mxu0 %v2787
    %2805 = vmatprep.subr.bf16.mxu0 0
    %2806 = vmatpush2.bf16.msra.mxu0 0
    %2807 = vmatprep.subr.bf16.mxu0 0
    %2808 = vmatpush2.bf16.msra.mxu0 0
    %2809 = vmatprep.subr.bf16.mxu0 0
    %2810 = vmatpush2.bf16.msra.mxu0 0
    %2811 = vmatprep.subr.bf16.mxu0 0
    %2812 = vmatpush2.bf16.msra.mxu0 0
    %2813 = vmatprep.subr.bf16.mxu0 0
    %2814 = vmatpush2.bf16.msra.mxu0 0
    %2815 = vmatprep.subr.bf16.mxu0 0
    %2816 = vmatpush2.bf16.msra.mxu0 0
    %2817 = vmatprep.subr.bf16.mxu0 0
    %2818 = vmatpush2.bf16.msra.mxu0 0
    %2819 = vmatprep.subr.bf16.mxu0 0
    %2820 = vmatpush2.bf16.msra.mxu0 0
    %2821 = vmatprep.mubr.bf16.mxu0 0
    %2822 = vmatmul.mubr.bf16.gmra.mxu0 %v2784
    %v2823 = vpop.f32.mrf.mxu0
    %v2824 = vadd.f32 0.0, %v2823
    %v2825 = vpop.f32.mrf.mxu0
    %v2826 = vpop.f32.mrf.mxu0
    %v2827 = vpop.f32.mrf.mxu0
    %2828 = vdwg.mxu0
    %2829 = vrot.lane.b32.xlu0 %v322, 32
    %v2830 = vpop.permute.xlu0 %2829
    %v2832 = vsel %vm324, %v2731, 0
    %v2835 = vsel %vm563, %v2830, 0
    %2837 = vmatprep.subr.bf16.mxu0 0
    %2838 = vmatpush1.bf16.msra.mxu0 0
    %2839 = vmatprep.subr.bf16.mxu0 0
    %2840 = vmatpush1.bf16.msra.mxu0 0
    %2841 = vmatprep.subr.bf16.mxu0 0
    %2842 = vmatpush1.bf16.msra.mxu0 0
    %2843 = vmatprep.subr.bf16.mxu0 0
    %2844 = vmatpush1.bf16.msra.mxu0 0
    %2845 = vmatprep.subr.bf16.mxu0 0
    %2846 = vmatpush1.bf16.msra.mxu0 0
    %2847 = vmatprep.subr.bf16.mxu0 0
    %2848 = vmatpush1.bf16.msra.mxu0 0
    %2849 = vmatprep.subr.bf16.mxu0 0
    %2850 = vmatpush1.bf16.msra.mxu0 0
    %2851 = vmatprep.subr.bf16.mxu0 0
    %2852 = vmatpush1.bf16.msra.mxu0 %v2835
    %2853 = vmatprep.subr.bf16.mxu0 0
    %2854 = vmatpush2.bf16.msra.mxu0 0
    %2855 = vmatprep.subr.bf16.mxu0 0
    %2856 = vmatpush2.bf16.msra.mxu0 0
    %2857 = vmatprep.subr.bf16.mxu0 0
    %2858 = vmatpush2.bf16.msra.mxu0 0
    %2859 = vmatprep.subr.bf16.mxu0 0
    %2860 = vmatpush2.bf16.msra.mxu0 0
    %2861 = vmatprep.subr.bf16.mxu0 0
    %2862 = vmatpush2.bf16.msra.mxu0 0
    %2863 = vmatprep.subr.bf16.mxu0 0
    %2864 = vmatpush2.bf16.msra.mxu0 0
    %2865 = vmatprep.subr.bf16.mxu0 0
    %2866 = vmatpush2.bf16.msra.mxu0 0
    %2867 = vmatprep.subr.bf16.mxu0 0
    %2868 = vmatpush2.bf16.msra.mxu0 0
    %2869 = vmatprep.mubr.bf16.mxu0 0
    %2870 = vmatmul.mubr.bf16.gmra.mxu0 %v2832
    %v2871 = vpop.f32.mrf.mxu0
    %v2872 = vadd.f32 0.0, %v2871
    %v2873 = vpop.f32.mrf.mxu0
    %v2874 = vpop.f32.mrf.mxu0
    %v2875 = vpop.f32.mrf.mxu0
    %2876 = vdwg.mxu0
    %2877 = vrot.lane.b32.xlu0 %v323, 32
    %v2878 = vpop.permute.xlu0 %2877
    %v2880 = vsel %vm324, %v2732, 0
    %v2883 = vsel %vm563, %v2878, 0
    %2885 = vmatprep.subr.bf16.mxu0 0
    %2886 = vmatpush1.bf16.msra.mxu0 0
    %2887 = vmatprep.subr.bf16.mxu0 0
    %2888 = vmatpush1.bf16.msra.mxu0 0
    %2889 = vmatprep.subr.bf16.mxu0 0
    %2890 = vmatpush1.bf16.msra.mxu0 0
    %2891 = vmatprep.subr.bf16.mxu0 0
    %2892 = vmatpush1.bf16.msra.mxu0 0
    %2893 = vmatprep.subr.bf16.mxu0 0
    %2894 = vmatpush1.bf16.msra.mxu0 0
    %2895 = vmatprep.subr.bf16.mxu0 0
    %2896 = vmatpush1.bf16.msra.mxu0 0
    %2897 = vmatprep.subr.bf16.mxu0 0
    %2898 = vmatpush1.bf16.msra.mxu0 0
    %2899 = vmatprep.subr.bf16.mxu0 0
    %2900 = vmatpush1.bf16.msra.mxu0 %v2883
    %2901 = vmatprep.subr.bf16.mxu0 0
    %2902 = vmatpush2.bf16.msra.mxu0 0
    %2903 = vmatprep.subr.bf16.mxu0 0
    %2904 = vmatpush2.bf16.msra.mxu0 0
    %2905 = vmatprep.subr.bf16.mxu0 0
    %2906 = vmatpush2.bf16.msra.mxu0 0
    %2907 = vmatprep.subr.bf16.mxu0 0
    %2908 = vmatpush2.bf16.msra.mxu0 0
    %2909 = vmatprep.subr.bf16.mxu0 0
    %2910 = vmatpush2.bf16.msra.mxu0 0
    %2911 = vmatprep.subr.bf16.mxu0 0
    %2912 = vmatpush2.bf16.msra.mxu0 0
    %2913 = vmatprep.subr.bf16.mxu0 0
    %2914 = vmatpush2.bf16.msra.mxu0 0
    %2915 = vmatprep.subr.bf16.mxu0 0
    %2916 = vmatpush2.bf16.msra.mxu0 0
    %2917 = vmatprep.mubr.bf16.mxu0 0
    %2918 = vmatmul.mubr.bf16.gmra.mxu0 %v2880
    %v2919 = vpop.f32.mrf.mxu0
    %v2920 = vadd.f32 0.0, %v2919
    %v2921 = vpop.f32.mrf.mxu0
    %v2922 = vpop.f32.mrf.mxu0
    %v2923 = vpop.f32.mrf.mxu0
    %2924 = vdwg.mxu0
    %v2925 = vpack.c.bf16 %v2824, %v2776
    %v2926 = vpack.c.bf16 %v2920, %v2872
    %v2927 = vld [vmem:[#allocation10] sm:$0xf]
    %v2929 = vsel %vm324, %v2925, 0
    %v2932 = vsel %vm324, %v2926, 0
    %v2935 = vsel %vm563, %v2927, 0
    %2937 = vmatprep.subr.bf16.mxu0 0
    %2938 = vmatpush1.bf16.msra.mxu0 0
    %2939 = vmatprep.subr.bf16.mxu0 0
    %2940 = vmatpush1.bf16.msra.mxu0 0
    %2941 = vmatprep.subr.bf16.mxu0 0
    %2942 = vmatpush1.bf16.msra.mxu0 0
    %2943 = vmatprep.subr.bf16.mxu0 0
    %2944 = vmatpush1.bf16.msra.mxu0 0
    %2945 = vmatprep.subr.bf16.mxu0 0
    %2946 = vmatpush1.bf16.msra.mxu0 0
    %2947 = vmatprep.subr.bf16.mxu0 0
    %2948 = vmatpush1.bf16.msra.mxu0 0
    %2949 = vmatprep.subr.bf16.mxu0 0
    %2950 = vmatpush1.bf16.msra.mxu0 0
    %2951 = vmatprep.subr.bf16.mxu0 0
    %2952 = vmatpush1.bf16.msra.mxu0 %v2935
    %2953 = vmatprep.subr.bf16.mxu0 0
    %2954 = vmatpush2.bf16.msra.mxu0 0
    %2955 = vmatprep.subr.bf16.mxu0 0
    %2956 = vmatpush2.bf16.msra.mxu0 0
    %2957 = vmatprep.subr.bf16.mxu0 0
    %2958 = vmatpush2.bf16.msra.mxu0 0
    %2959 = vmatprep.subr.bf16.mxu0 0
    %2960 = vmatpush2.bf16.msra.mxu0 0
    %2961 = vmatprep.subr.bf16.mxu0 0
    %2962 = vmatpush2.bf16.msra.mxu0 0
    %2963 = vmatprep.subr.bf16.mxu0 0
    %2964 = vmatpush2.bf16.msra.mxu0 0
    %2965 = vmatprep.subr.bf16.mxu0 0
    %2966 = vmatpush2.bf16.msra.mxu0 0
    %2967 = vmatprep.subr.bf16.mxu0 0
    %2968 = vmatpush2.bf16.msra.mxu0 0
    %2969 = vmatprep.mubr.bf16.mxu0 0
    %2970 = vmatmul.mubr.bf16.gmra.mxu0 %v2929
    %v2971 = vpop.f32.mrf.mxu0
    %v2972 = vadd.f32 0.0, %v2971
    %v2973 = vpop.f32.mrf.mxu0
    %v2974 = vpop.f32.mrf.mxu0
    %v2975 = vadd.f32 0.0, %v2974
    %v2976 = vpop.f32.mrf.mxu0
    %2977 = vmatprep.mubr.bf16.mxu0 0
    %2978 = vmatmul.mubr.bf16.gmra.mxu0 %v2932
    %v2979 = vpop.f32.mrf.mxu0
    %v2980 = vadd.f32 0.0, %v2979
    %v2981 = vpop.f32.mrf.mxu0
    %v2982 = vpop.f32.mrf.mxu0
    %v2983 = vadd.f32 0.0, %v2982
    %v2984 = vpop.f32.mrf.mxu0
    %2985 = vdwg.mxu0
    %v2986 = vadd.f32 %v2412, %v2972
    %v2987 = vadd.f32 %v2413, %v2975
    %v2988 = vadd.f32 %v2414, %v2980
    %v2989 = vadd.f32 %v2415, %v2983
    %2991 = vrot.lane.b32.xlu0 %v2489, 120
    %v2992 = vpop.permute.xlu0 %2991
    %2993 = vrot.lane.b32.xlu0 %v320, 56
    %v2994 = vpop.permute.xlu0 %2993
    %v2996 = vsel %vm324, %v2992, 0
    %v2999 = vsel %vm324, %v2994, 0
    %3001 = vmatprep.subr.bf16.mxu0 0
    %3002 = vmatpush1.bf16.xpose.msra.mxu0 0
    %3003 = vmatprep.subr.bf16.mxu0 0
    %3004 = vmatpush1.bf16.xpose.msra.mxu0 0
    %3005 = vmatprep.subr.bf16.mxu0 0
    %3006 = vmatpush1.bf16.xpose.msra.mxu0 0
    %3007 = vmatprep.subr.bf16.mxu0 0
    %3008 = vmatpush1.bf16.xpose.msra.mxu0 0
    %3009 = vmatprep.subr.bf16.mxu0 0
    %3010 = vmatpush1.bf16.xpose.msra.mxu0 0
    %3011 = vmatprep.subr.bf16.mxu0 0
    %3012 = vmatpush1.bf16.xpose.msra.mxu0 0
    %3013 = vmatprep.subr.bf16.mxu0 0
    %3014 = vmatpush1.bf16.xpose.msra.mxu0 0
    %3015 = vmatprep.subr.bf16.mxu0 0
    %3016 = vmatpush1.bf16.xpose.msra.mxu0 %v2999
    %3017 = vmatprep.subr.bf16.mxu0 0
    %3018 = vmatpush2.bf16.xpose.msra.mxu0 0
    %3019 = vmatprep.subr.bf16.mxu0 0
    %3020 = vmatpush2.bf16.xpose.msra.mxu0 0
    %3021 = vmatprep.subr.bf16.mxu0 0
    %3022 = vmatpush2.bf16.xpose.msra.mxu0 0
    %3023 = vmatprep.subr.bf16.mxu0 0
    %3024 = vmatpush2.bf16.xpose.msra.mxu0 0
    %3025 = vmatprep.subr.bf16.mxu0 0
    %3026 = vmatpush2.bf16.xpose.msra.mxu0 0
    %3027 = vmatprep.subr.bf16.mxu0 0
    %3028 = vmatpush2.bf16.xpose.msra.mxu0 0
    %3029 = vmatprep.subr.bf16.mxu0 0
    %3030 = vmatpush2.bf16.xpose.msra.mxu0 0
    %3031 = vmatprep.subr.bf16.mxu0 0
    %3032 = vmatpush2.bf16.xpose.msra.mxu0 0
    %3033 = vmatprep.mubr.bf16.mxu0 0
    %3034 = vmatmul.mubr.bf16.gmra.mxu0 %v2996
    %v3035 = vpop.f32.mrf.mxu0
    %v3036 = vadd.f32 0.0, %v3035
    %v3037 = vpop.f32.mrf.mxu0
    %v3038 = vpop.f32.mrf.mxu0
    %v3039 = vpop.f32.mrf.mxu0
    %3040 = vdwg.mxu0
    %3042 = vrot.lane.b32.xlu0 %v2490, 120
    %v3043 = vpop.permute.xlu0 %3042
    %3044 = vrot.lane.b32.xlu0 %v321, 56
    %v3045 = vpop.permute.xlu0 %3044
    %v3047 = vsel %vm324, %v3043, 0
    %v3050 = vsel %vm324, %v3045, 0
    %3052 = vmatprep.subr.bf16.mxu0 0
    %3053 = vmatpush1.bf16.xpose.msra.mxu0 0
    %3054 = vmatprep.subr.bf16.mxu0 0
    %3055 = vmatpush1.bf16.xpose.msra.mxu0 0
    %3056 = vmatprep.subr.bf16.mxu0 0
    %3057 = vmatpush1.bf16.xpose.msra.mxu0 0
    %3058 = vmatprep.subr.bf16.mxu0 0
    %3059 = vmatpush1.bf16.xpose.msra.mxu0 0
    %3060 = vmatprep.subr.bf16.mxu0 0
    %3061 = vmatpush1.bf16.xpose.msra.mxu0 0
    %3062 = vmatprep.subr.bf16.mxu0 0
    %3063 = vmatpush1.bf16.xpose.msra.mxu0 0
    %3064 = vmatprep.subr.bf16.mxu0 0
    %3065 = vmatpush1.bf16.xpose.msra.mxu0 0
    %3066 = vmatprep.subr.bf16.mxu0 0
    %3067 = vmatpush1.bf16.xpose.msra.mxu0 %v3050
    %3068 = vmatprep.subr.bf16.mxu0 0
    %3069 = vmatpush2.bf16.xpose.msra.mxu0 0
    %3070 = vmatprep.subr.bf16.mxu0 0
    %3071 = vmatpush2.bf16.xpose.msra.mxu0 0
    %3072 = vmatprep.subr.bf16.mxu0 0
    %3073 = vmatpush2.bf16.xpose.msra.mxu0 0
    %3074 = vmatprep.subr.bf16.mxu0 0
    %3075 = vmatpush2.bf16.xpose.msra.mxu0 0
    %3076 = vmatprep.subr.bf16.mxu0 0
    %3077 = vmatpush2.bf16.xpose.msra.mxu0 0
    %3078 = vmatprep.subr.bf16.mxu0 0
    %3079 = vmatpush2.bf16.xpose.msra.mxu0 0
    %3080 = vmatprep.subr.bf16.mxu0 0
    %3081 = vmatpush2.bf16.xpose.msra.mxu0 0
    %3082 = vmatprep.subr.bf16.mxu0 0
    %3083 = vmatpush2.bf16.xpose.msra.mxu0 0
    %3084 = vmatprep.mubr.bf16.mxu0 0
    %3085 = vmatmul.mubr.bf16.gmra.mxu0 %v3047
    %v3086 = vpop.f32.mrf.mxu0
    %v3087 = vadd.f32 0.0, %v3086
    %v3088 = vpop.f32.mrf.mxu0
    %v3089 = vpop.f32.mrf.mxu0
    %v3090 = vpop.f32.mrf.mxu0
    %3091 = vdwg.mxu0
    %3093 = vrot.lane.b32.xlu0 %v2491, 120
    %v3094 = vpop.permute.xlu0 %3093
    %3095 = vrot.lane.b32.xlu0 %v322, 56
    %v3096 = vpop.permute.xlu0 %3095
    %v3098 = vsel %vm324, %v3094, 0
    %v3101 = vsel %vm324, %v3096, 0
    %3103 = vmatprep.subr.bf16.mxu0 0
    %3104 = vmatpush1.bf16.xpose.msra.mxu0 0
    %3105 = vmatprep.subr.bf16.mxu0 0
    %3106 = vmatpush1.bf16.xpose.msra.mxu0 0
    %3107 = vmatprep.subr.bf16.mxu0 0
    %3108 = vmatpush1.bf16.xpose.msra.mxu0 0
    %3109 = vmatprep.subr.bf16.mxu0 0
    %3110 = vmatpush1.bf16.xpose.msra.mxu0 0
    %3111 = vmatprep.subr.bf16.mxu0 0
    %3112 = vmatpush1.bf16.xpose.msra.mxu0 0
    %3113 = vmatprep.subr.bf16.mxu0 0
    %3114 = vmatpush1.bf16.xpose.msra.mxu0 0
    %3115 = vmatprep.subr.bf16.mxu0 0
    %3116 = vmatpush1.bf16.xpose.msra.mxu0 0
    %3117 = vmatprep.subr.bf16.mxu0 0
    %3118 = vmatpush1.bf16.xpose.msra.mxu0 %v3101
    %3119 = vmatprep.subr.bf16.mxu0 0
    %3120 = vmatpush2.bf16.xpose.msra.mxu0 0
    %3121 = vmatprep.subr.bf16.mxu0 0
    %3122 = vmatpush2.bf16.xpose.msra.mxu0 0
    %3123 = vmatprep.subr.bf16.mxu0 0
    %3124 = vmatpush2.bf16.xpose.msra.mxu0 0
    %3125 = vmatprep.subr.bf16.mxu0 0
    %3126 = vmatpush2.bf16.xpose.msra.mxu0 0
    %3127 = vmatprep.subr.bf16.mxu0 0
    %3128 = vmatpush2.bf16.xpose.msra.mxu0 0
    %3129 = vmatprep.subr.bf16.mxu0 0
    %3130 = vmatpush2.bf16.xpose.msra.mxu0 0
    %3131 = vmatprep.subr.bf16.mxu0 0
    %3132 = vmatpush2.bf16.xpose.msra.mxu0 0
    %3133 = vmatprep.subr.bf16.mxu0 0
    %3134 = vmatpush2.bf16.xpose.msra.mxu0 0
    %3135 = vmatprep.mubr.bf16.mxu0 0
    %3136 = vmatmul.mubr.bf16.gmra.mxu0 %v3098
    %v3137 = vpop.f32.mrf.mxu0
    %v3138 = vadd.f32 0.0, %v3137
    %v3139 = vpop.f32.mrf.mxu0
    %v3140 = vpop.f32.mrf.mxu0
    %v3141 = vpop.f32.mrf.mxu0
    %3142 = vdwg.mxu0
    %3144 = vrot.lane.b32.xlu0 %v2492, 120
    %v3145 = vpop.permute.xlu0 %3144
    %3146 = vrot.lane.b32.xlu0 %v323, 56
    %v3147 = vpop.permute.xlu0 %3146
    %v3149 = vsel %vm324, %v3145, 0
    %v3152 = vsel %vm324, %v3147, 0
    %3154 = vmatprep.subr.bf16.mxu0 0
    %3155 = vmatpush1.bf16.xpose.msra.mxu0 0
    %3156 = vmatprep.subr.bf16.mxu0 0
    %3157 = vmatpush1.bf16.xpose.msra.mxu0 0
    %3158 = vmatprep.subr.bf16.mxu0 0
    %3159 = vmatpush1.bf16.xpose.msra.mxu0 0
    %3160 = vmatprep.subr.bf16.mxu0 0
    %3161 = vmatpush1.bf16.xpose.msra.mxu0 0
    %3162 = vmatprep.subr.bf16.mxu0 0
    %3163 = vmatpush1.bf16.xpose.msra.mxu0 0
    %3164 = vmatprep.subr.bf16.mxu0 0
    %3165 = vmatpush1.bf16.xpose.msra.mxu0 0
    %3166 = vmatprep.subr.bf16.mxu0 0
    %3167 = vmatpush1.bf16.xpose.msra.mxu0 0
    %3168 = vmatprep.subr.bf16.mxu0 0
    %3169 = vmatpush1.bf16.xpose.msra.mxu0 %v3152
    %3170 = vmatprep.subr.bf16.mxu0 0
    %3171 = vmatpush2.bf16.xpose.msra.mxu0 0
    %3172 = vmatprep.subr.bf16.mxu0 0
    %3173 = vmatpush2.bf16.xpose.msra.mxu0 0
    %3174 = vmatprep.subr.bf16.mxu0 0
    %3175 = vmatpush2.bf16.xpose.msra.mxu0 0
    %3176 = vmatprep.subr.bf16.mxu0 0
    %3177 = vmatpush2.bf16.xpose.msra.mxu0 0
    %3178 = vmatprep.subr.bf16.mxu0 0
    %3179 = vmatpush2.bf16.xpose.msra.mxu0 0
    %3180 = vmatprep.subr.bf16.mxu0 0
    %3181 = vmatpush2.bf16.xpose.msra.mxu0 0
    %3182 = vmatprep.subr.bf16.mxu0 0
    %3183 = vmatpush2.bf16.xpose.msra.mxu0 0
    %3184 = vmatprep.subr.bf16.mxu0 0
    %3185 = vmatpush2.bf16.xpose.msra.mxu0 0
    %3186 = vmatprep.mubr.bf16.mxu0 0
    %3187 = vmatmul.mubr.bf16.gmra.mxu0 %v3149
    %v3188 = vpop.f32.mrf.mxu0
    %v3189 = vadd.f32 0.0, %v3188
    %v3190 = vpop.f32.mrf.mxu0
    %v3191 = vpop.f32.mrf.mxu0
    %v3192 = vpop.f32.mrf.mxu0
    %3193 = vdwg.mxu0
    %v3194 = vsel %vm324, %v3036, -inf
    %3195 = vmax.xlane.f32.xlu0 %v3194
    %v3196 = vpop.xlane.xlu0 %3195
    %v3197 = vsel %vm324, %v3087, -inf
    %3198 = vmax.xlane.f32.xlu0 %v3197
    %v3199 = vpop.xlane.xlu0 %3198
    %v3200 = vsel %vm324, %v3138, -inf
    %3201 = vmax.xlane.f32.xlu0 %v3200
    %v3202 = vpop.xlane.xlu0 %3201
    %v3203 = vsel %vm324, %v3189, -inf
    %3204 = vmax.xlane.f32.xlu0 %v3203
    %v3205 = vpop.xlane.xlu0 %3204
    %v3206 = vsub.f32 %v3036, %v3196
    %v3207 = vsub.f32 %v3087, %v3199
    %v3208 = vsub.f32 %v3138, %v3202
    %v3209 = vsub.f32 %v3189, %v3205
    %v3210 = vmul.f32 %v3206, 1.442695
    %v3211 = vpow.pop %v3210
    %v3212 = vmul.f32 %v3207, 1.442695
    %v3213 = vpow.pop %v3212
    %v3214 = vmul.f32 %v3208, 1.442695
    %v3215 = vpow.pop %v3214
    %v3216 = vmul.f32 %v3209, 1.442695
    %v3217 = vpow.pop %v3216
    %v3218 = vsel %vm324, %v3211, 0.0
    %3219 = vadd.xlane.f32.xlu0 %v3218
    %v3220 = vpop.xlane.xlu0 %3219
    %v3221 = vsel %vm324, %v3213, 0.0
    %3222 = vadd.xlane.f32.xlu0 %v3221
    %v3223 = vpop.xlane.xlu0 %3222
    %v3224 = vsel %vm324, %v3215, 0.0
    %3225 = vadd.xlane.f32.xlu0 %v3224
    %v3226 = vpop.xlane.xlu0 %3225
    %v3227 = vsel %vm324, %v3217, 0.0
    %3228 = vadd.xlane.f32.xlu0 %v3227
    %v3229 = vpop.xlane.xlu0 %3228
    %v3230 = vrcp.pop %v3220
    %v3231 = vrcp.pop %v3223
    %v3232 = vrcp.pop %v3226
    %v3233 = vrcp.pop %v3229
    %v3234 = vmul.f32 %v3211, %v3230
    %v3235 = vmul.f32 %v3213, %v3231
    %v3236 = vmul.f32 %v3215, %v3232
    %v3237 = vmul.f32 %v3217, %v3233
    %v3238 = vpack.c.bf16 %v3234, %v3234
    %v3239 = vpack.c.bf16 %v3235, %v3235
    %v3240 = vpack.c.bf16 %v3236, %v3236
    %v3241 = vpack.c.bf16 %v3237, %v3237
    %3242 = vrot.lane.b32.xlu0 %v320, 24
    %v3243 = vpop.permute.xlu0 %3242
    %v3245 = vsel %vm324, %v3238, 0
    %v3248 = vsel %vm563, %v3243, 0
    %3250 = vmatprep.subr.bf16.mxu0 0
    %3251 = vmatpush1.bf16.msra.mxu0 0
    %3252 = vmatprep.subr.bf16.mxu0 0
    %3253 = vmatpush1.bf16.msra.mxu0 0
    %3254 = vmatprep.subr.bf16.mxu0 0
    %3255 = vmatpush1.bf16.msra.mxu0 0
    %3256 = vmatprep.subr.bf16.mxu0 0
    %3257 = vmatpush1.bf16.msra.mxu0 0
    %3258 = vmatprep.subr.bf16.mxu0 0
    %3259 = vmatpush1.bf16.msra.mxu0 0
    %3260 = vmatprep.subr.bf16.mxu0 0
    %3261 = vmatpush1.bf16.msra.mxu0 0
    %3262 = vmatprep.subr.bf16.mxu0 0
    %3263 = vmatpush1.bf16.msra.mxu0 0
    %3264 = vmatprep.subr.bf16.mxu0 0
    %3265 = vmatpush1.bf16.msra.mxu0 %v3248
    %3266 = vmatprep.subr.bf16.mxu0 0
    %3267 = vmatpush2.bf16.msra.mxu0 0
    %3268 = vmatprep.subr.bf16.mxu0 0
    %3269 = vmatpush2.bf16.msra.mxu0 0
    %3270 = vmatprep.subr.bf16.mxu0 0
    %3271 = vmatpush2.bf16.msra.mxu0 0
    %3272 = vmatprep.subr.bf16.mxu0 0
    %3273 = vmatpush2.bf16.msra.mxu0 0
    %3274 = vmatprep.subr.bf16.mxu0 0
    %3275 = vmatpush2.bf16.msra.mxu0 0
    %3276 = vmatprep.subr.bf16.mxu0 0
    %3277 = vmatpush2.bf16.msra.mxu0 0
    %3278 = vmatprep.subr.bf16.mxu0 0
    %3279 = vmatpush2.bf16.msra.mxu0 0
    %3280 = vmatprep.subr.bf16.mxu0 0
    %3281 = vmatpush2.bf16.msra.mxu0 0
    %3282 = vmatprep.mubr.bf16.mxu0 0
    %3283 = vmatmul.mubr.bf16.gmra.mxu0 %v3245
    %v3284 = vpop.f32.mrf.mxu0
    %v3285 = vadd.f32 0.0, %v3284
    %v3286 = vpop.f32.mrf.mxu0
    %v3287 = vpop.f32.mrf.mxu0
    %v3288 = vpop.f32.mrf.mxu0
    %3289 = vdwg.mxu0
    %3290 = vrot.lane.b32.xlu0 %v321, 24
    %v3291 = vpop.permute.xlu0 %3290
    %v3293 = vsel %vm324, %v3239, 0
    %v3296 = vsel %vm563, %v3291, 0
    %3298 = vmatprep.subr.bf16.mxu0 0
    %3299 = vmatpush1.bf16.msra.mxu0 0
    %3300 = vmatprep.subr.bf16.mxu0 0
    %3301 = vmatpush1.bf16.msra.mxu0 0
    %3302 = vmatprep.subr.bf16.mxu0 0
    %3303 = vmatpush1.bf16.msra.mxu0 0
    %3304 = vmatprep.subr.bf16.mxu0 0
    %3305 = vmatpush1.bf16.msra.mxu0 0
    %3306 = vmatprep.subr.bf16.mxu0 0
    %3307 = vmatpush1.bf16.msra.mxu0 0
    %3308 = vmatprep.subr.bf16.mxu0 0
    %3309 = vmatpush1.bf16.msra.mxu0 0
    %3310 = vmatprep.subr.bf16.mxu0 0
    %3311 = vmatpush1.bf16.msra.mxu0 0
    %3312 = vmatprep.subr.bf16.mxu0 0
    %3313 = vmatpush1.bf16.msra.mxu0 %v3296
    %3314 = vmatprep.subr.bf16.mxu0 0
    %3315 = vmatpush2.bf16.msra.mxu0 0
    %3316 = vmatprep.subr.bf16.mxu0 0
    %3317 = vmatpush2.bf16.msra.mxu0 0
    %3318 = vmatprep.subr.bf16.mxu0 0
    %3319 = vmatpush2.bf16.msra.mxu0 0
    %3320 = vmatprep.subr.bf16.mxu0 0
    %3321 = vmatpush2.bf16.msra.mxu0 0
    %3322 = vmatprep.subr.bf16.mxu0 0
    %3323 = vmatpush2.bf16.msra.mxu0 0
    %3324 = vmatprep.subr.bf16.mxu0 0
    %3325 = vmatpush2.bf16.msra.mxu0 0
    %3326 = vmatprep.subr.bf16.mxu0 0
    %3327 = vmatpush2.bf16.msra.mxu0 0
    %3328 = vmatprep.subr.bf16.mxu0 0
    %3329 = vmatpush2.bf16.msra.mxu0 0
    %3330 = vmatprep.mubr.bf16.mxu0 0
    %3331 = vmatmul.mubr.bf16.gmra.mxu0 %v3293
    %v3332 = vpop.f32.mrf.mxu0
    %v3333 = vadd.f32 0.0, %v3332
    %v3334 = vpop.f32.mrf.mxu0
    %v3335 = vpop.f32.mrf.mxu0
    %v3336 = vpop.f32.mrf.mxu0
    %3337 = vdwg.mxu0
    %3338 = vrot.lane.b32.xlu0 %v322, 24
    %v3339 = vpop.permute.xlu0 %3338
    %v3341 = vsel %vm324, %v3240, 0
    %v3344 = vsel %vm563, %v3339, 0
    %3346 = vmatprep.subr.bf16.mxu0 0
    %3347 = vmatpush1.bf16.msra.mxu0 0
    %3348 = vmatprep.subr.bf16.mxu0 0
    %3349 = vmatpush1.bf16.msra.mxu0 0
    %3350 = vmatprep.subr.bf16.mxu0 0
    %3351 = vmatpush1.bf16.msra.mxu0 0
    %3352 = vmatprep.subr.bf16.mxu0 0
    %3353 = vmatpush1.bf16.msra.mxu0 0
    %3354 = vmatprep.subr.bf16.mxu0 0
    %3355 = vmatpush1.bf16.msra.mxu0 0
    %3356 = vmatprep.subr.bf16.mxu0 0
    %3357 = vmatpush1.bf16.msra.mxu0 0
    %3358 = vmatprep.subr.bf16.mxu0 0
    %3359 = vmatpush1.bf16.msra.mxu0 0
    %3360 = vmatprep.subr.bf16.mxu0 0
    %3361 = vmatpush1.bf16.msra.mxu0 %v3344
    %3362 = vmatprep.subr.bf16.mxu0 0
    %3363 = vmatpush2.bf16.msra.mxu0 0
    %3364 = vmatprep.subr.bf16.mxu0 0
    %3365 = vmatpush2.bf16.msra.mxu0 0
    %3366 = vmatprep.subr.bf16.mxu0 0
    %3367 = vmatpush2.bf16.msra.mxu0 0
    %3368 = vmatprep.subr.bf16.mxu0 0
    %3369 = vmatpush2.bf16.msra.mxu0 0
    %3370 = vmatprep.subr.bf16.mxu0 0
    %3371 = vmatpush2.bf16.msra.mxu0 0
    %3372 = vmatprep.subr.bf16.mxu0 0
    %3373 = vmatpush2.bf16.msra.mxu0 0
    %3374 = vmatprep.subr.bf16.mxu0 0
    %3375 = vmatpush2.bf16.msra.mxu0 0
    %3376 = vmatprep.subr.bf16.mxu0 0
    %3377 = vmatpush2.bf16.msra.mxu0 0
    %3378 = vmatprep.mubr.bf16.mxu0 0
    %3379 = vmatmul.mubr.bf16.gmra.mxu0 %v3341
    %v3380 = vpop.f32.mrf.mxu0
    %v3381 = vadd.f32 0.0, %v3380
    %v3382 = vpop.f32.mrf.mxu0
    %v3383 = vpop.f32.mrf.mxu0
    %v3384 = vpop.f32.mrf.mxu0
    %3385 = vdwg.mxu0
    %3386 = vrot.lane.b32.xlu0 %v323, 24
    %v3387 = vpop.permute.xlu0 %3386
    %v3389 = vsel %vm324, %v3241, 0
    %v3392 = vsel %vm563, %v3387, 0
    %3394 = vmatprep.subr.bf16.mxu0 0
    %3395 = vmatpush1.bf16.msra.mxu0 0
    %3396 = vmatprep.subr.bf16.mxu0 0
    %3397 = vmatpush1.bf16.msra.mxu0 0
    %3398 = vmatprep.subr.bf16.mxu0 0
    %3399 = vmatpush1.bf16.msra.mxu0 0
    %3400 = vmatprep.subr.bf16.mxu0 0
    %3401 = vmatpush1.bf16.msra.mxu0 0
    %3402 = vmatprep.subr.bf16.mxu0 0
    %3403 = vmatpush1.bf16.msra.mxu0 0
    %3404 = vmatprep.subr.bf16.mxu0 0
    %3405 = vmatpush1.bf16.msra.mxu0 0
    %3406 = vmatprep.subr.bf16.mxu0 0
    %3407 = vmatpush1.bf16.msra.mxu0 0
    %3408 = vmatprep.subr.bf16.mxu0 0
    %3409 = vmatpush1.bf16.msra.mxu0 %v3392
    %3410 = vmatprep.subr.bf16.mxu0 0
    %3411 = vmatpush2.bf16.msra.mxu0 0
    %3412 = vmatprep.subr.bf16.mxu0 0
    %3413 = vmatpush2.bf16.msra.mxu0 0
    %3414 = vmatprep.subr.bf16.mxu0 0
    %3415 = vmatpush2.bf16.msra.mxu0 0
    %3416 = vmatprep.subr.bf16.mxu0 0
    %3417 = vmatpush2.bf16.msra.mxu0 0
    %3418 = vmatprep.subr.bf16.mxu0 0
    %3419 = vmatpush2.bf16.msra.mxu0 0
    %3420 = vmatprep.subr.bf16.mxu0 0
    %3421 = vmatpush2.bf16.msra.mxu0 0
    %3422 = vmatprep.subr.bf16.mxu0 0
    %3423 = vmatpush2.bf16.msra.mxu0 0
    %3424 = vmatprep.subr.bf16.mxu0 0
    %3425 = vmatpush2.bf16.msra.mxu0 0
    %3426 = vmatprep.mubr.bf16.mxu0 0
    %3427 = vmatmul.mubr.bf16.gmra.mxu0 %v3389
    %v3428 = vpop.f32.mrf.mxu0
    %v3429 = vadd.f32 0.0, %v3428
    %v3430 = vpop.f32.mrf.mxu0
    %v3431 = vpop.f32.mrf.mxu0
    %v3432 = vpop.f32.mrf.mxu0
    %3433 = vdwg.mxu0
    %v3434 = vpack.c.bf16 %v3333, %v3285
    %v3435 = vpack.c.bf16 %v3429, %v3381
    %s3436 = scalar_lea.vmem [#allocation10], 4
    %v3437 = vld [vmem:[%s3436] sm:$0xf]
    %v3439 = vsel %vm324, %v3434, 0
    %v3442 = vsel %vm324, %v3435, 0
    %v3445 = vsel %vm563, %v3437, 0
    %3447 = vmatprep.subr.bf16.mxu0 0
    %3448 = vmatpush1.bf16.msra.mxu0 0
    %3449 = vmatprep.subr.bf16.mxu0 0
    %3450 = vmatpush1.bf16.msra.mxu0 0
    %3451 = vmatprep.subr.bf16.mxu0 0
    %3452 = vmatpush1.bf16.msra.mxu0 0
    %3453 = vmatprep.subr.bf16.mxu0 0
    %3454 = vmatpush1.bf16.msra.mxu0 0
    %3455 = vmatprep.subr.bf16.mxu0 0
    %3456 = vmatpush1.bf16.msra.mxu0 0
    %3457 = vmatprep.subr.bf16.mxu0 0
    %3458 = vmatpush1.bf16.msra.mxu0 0
    %3459 = vmatprep.subr.bf16.mxu0 0
    %3460 = vmatpush1.bf16.msra.mxu0 0
    %3461 = vmatprep.subr.bf16.mxu0 0
    %3462 = vmatpush1.bf16.msra.mxu0 %v3445
    %3463 = vmatprep.subr.bf16.mxu0 0
    %3464 = vmatpush2.bf16.msra.mxu0 0
    %3465 = vmatprep.subr.bf16.mxu0 0
    %3466 = vmatpush2.bf16.msra.mxu0 0
    %3467 = vmatprep.subr.bf16.mxu0 0
    %3468 = vmatpush2.bf16.msra.mxu0 0
    %3469 = vmatprep.subr.bf16.mxu0 0
    %3470 = vmatpush2.bf16.msra.mxu0 0
    %3471 = vmatprep.subr.bf16.mxu0 0
    %3472 = vmatpush2.bf16.msra.mxu0 0
    %3473 = vmatprep.subr.bf16.mxu0 0
    %3474 = vmatpush2.bf16.msra.mxu0 0
    %3475 = vmatprep.subr.bf16.mxu0 0
    %3476 = vmatpush2.bf16.msra.mxu0 0
    %3477 = vmatprep.subr.bf16.mxu0 0
    %3478 = vmatpush2.bf16.msra.mxu0 0
    %3479 = vmatprep.mubr.bf16.mxu0 0
    %3480 = vmatmul.mubr.bf16.gmra.mxu0 %v3439
    %v3481 = vpop.f32.mrf.mxu0
    %v3482 = vadd.f32 0.0, %v3481
    %v3483 = vpop.f32.mrf.mxu0
    %v3484 = vpop.f32.mrf.mxu0
    %v3485 = vadd.f32 0.0, %v3484
    %v3486 = vpop.f32.mrf.mxu0
    %3487 = vmatprep.mubr.bf16.mxu0 0
    %3488 = vmatmul.mubr.bf16.gmra.mxu0 %v3442
    %v3489 = vpop.f32.mrf.mxu0
    %v3490 = vadd.f32 0.0, %v3489
    %v3491 = vpop.f32.mrf.mxu0
    %v3492 = vpop.f32.mrf.mxu0
    %v3493 = vadd.f32 0.0, %v3492
    %v3494 = vpop.f32.mrf.mxu0
    %3495 = vdwg.mxu0
    %v3496 = vadd.f32 %v2986, %v3482
    %v3497 = vadd.f32 %v2987, %v3485
    %v3498 = vadd.f32 %v2988, %v3490
    %v3499 = vadd.f32 %v2989, %v3493
    %3500 = vrot.lane.b32.xlu0 %v2489, 112
    %v3501 = vpop.permute.xlu0 %3500
    %3502 = vrot.lane.b32.xlu0 %v320, 48
    %v3503 = vpop.permute.xlu0 %3502
    %v3505 = vsel %vm324, %v3501, 0
    %v3508 = vsel %vm324, %v3503, 0
    %3510 = vmatprep.subr.bf16.mxu0 0
    %3511 = vmatpush1.bf16.xpose.msra.mxu0 0
    %3512 = vmatprep.subr.bf16.mxu0 0
    %3513 = vmatpush1.bf16.xpose.msra.mxu0 0
    %3514 = vmatprep.subr.bf16.mxu0 0
    %3515 = vmatpush1.bf16.xpose.msra.mxu0 0
    %3516 = vmatprep.subr.bf16.mxu0 0
    %3517 = vmatpush1.bf16.xpose.msra.mxu0 0
    %3518 = vmatprep.subr.bf16.mxu0 0
    %3519 = vmatpush1.bf16.xpose.msra.mxu0 0
    %3520 = vmatprep.subr.bf16.mxu0 0
    %3521 = vmatpush1.bf16.xpose.msra.mxu0 0
    %3522 = vmatprep.subr.bf16.mxu0 0
    %3523 = vmatpush1.bf16.xpose.msra.mxu0 0
    %3524 = vmatprep.subr.bf16.mxu0 0
    %3525 = vmatpush1.bf16.xpose.msra.mxu0 %v3508
    %3526 = vmatprep.subr.bf16.mxu0 0
    %3527 = vmatpush2.bf16.xpose.msra.mxu0 0
    %3528 = vmatprep.subr.bf16.mxu0 0
    %3529 = vmatpush2.bf16.xpose.msra.mxu0 0
    %3530 = vmatprep.subr.bf16.mxu0 0
    %3531 = vmatpush2.bf16.xpose.msra.mxu0 0
    %3532 = vmatprep.subr.bf16.mxu0 0
    %3533 = vmatpush2.bf16.xpose.msra.mxu0 0
    %3534 = vmatprep.subr.bf16.mxu0 0
    %3535 = vmatpush2.bf16.xpose.msra.mxu0 0
    %3536 = vmatprep.subr.bf16.mxu0 0
    %3537 = vmatpush2.bf16.xpose.msra.mxu0 0
    %3538 = vmatprep.subr.bf16.mxu0 0
    %3539 = vmatpush2.bf16.xpose.msra.mxu0 0
    %3540 = vmatprep.subr.bf16.mxu0 0
    %3541 = vmatpush2.bf16.xpose.msra.mxu0 0
    %3542 = vmatprep.mubr.bf16.mxu0 0
    %3543 = vmatmul.mubr.bf16.gmra.mxu0 %v3505
    %v3544 = vpop.f32.mrf.mxu0
    %v3545 = vadd.f32 0.0, %v3544
    %v3546 = vpop.f32.mrf.mxu0
    %v3547 = vpop.f32.mrf.mxu0
    %v3548 = vpop.f32.mrf.mxu0
    %3549 = vdwg.mxu0
    %3550 = vrot.lane.b32.xlu0 %v2490, 112
    %v3551 = vpop.permute.xlu0 %3550
    %3552 = vrot.lane.b32.xlu0 %v321, 48
    %v3553 = vpop.permute.xlu0 %3552
    %v3555 = vsel %vm324, %v3551, 0
    %v3558 = vsel %vm324, %v3553, 0
    %3560 = vmatprep.subr.bf16.mxu0 0
    %3561 = vmatpush1.bf16.xpose.msra.mxu0 0
    %3562 = vmatprep.subr.bf16.mxu0 0
    %3563 = vmatpush1.bf16.xpose.msra.mxu0 0
    %3564 = vmatprep.subr.bf16.mxu0 0
    %3565 = vmatpush1.bf16.xpose.msra.mxu0 0
    %3566 = vmatprep.subr.bf16.mxu0 0
    %3567 = vmatpush1.bf16.xpose.msra.mxu0 0
    %3568 = vmatprep.subr.bf16.mxu0 0
    %3569 = vmatpush1.bf16.xpose.msra.mxu0 0
    %3570 = vmatprep.subr.bf16.mxu0 0
    %3571 = vmatpush1.bf16.xpose.msra.mxu0 0
    %3572 = vmatprep.subr.bf16.mxu0 0
    %3573 = vmatpush1.bf16.xpose.msra.mxu0 0
    %3574 = vmatprep.subr.bf16.mxu0 0
    %3575 = vmatpush1.bf16.xpose.msra.mxu0 %v3558
    %3576 = vmatprep.subr.bf16.mxu0 0
    %3577 = vmatpush2.bf16.xpose.msra.mxu0 0
    %3578 = vmatprep.subr.bf16.mxu0 0
    %3579 = vmatpush2.bf16.xpose.msra.mxu0 0
    %3580 = vmatprep.subr.bf16.mxu0 0
    %3581 = vmatpush2.bf16.xpose.msra.mxu0 0
    %3582 = vmatprep.subr.bf16.mxu0 0
    %3583 = vmatpush2.bf16.xpose.msra.mxu0 0
    %3584 = vmatprep.subr.bf16.mxu0 0
    %3585 = vmatpush2.bf16.xpose.msra.mxu0 0
    %3586 = vmatprep.subr.bf16.mxu0 0
    %3587 = vmatpush2.bf16.xpose.msra.mxu0 0
    %3588 = vmatprep.subr.bf16.mxu0 0
    %3589 = vmatpush2.bf16.xpose.msra.mxu0 0
    %3590 = vmatprep.subr.bf16.mxu0 0
    %3591 = vmatpush2.bf16.xpose.msra.mxu0 0
    %3592 = vmatprep.mubr.bf16.mxu0 0
    %3593 = vmatmul.mubr.bf16.gmra.mxu0 %v3555
    %v3594 = vpop.f32.mrf.mxu0
    %v3595 = vadd.f32 0.0, %v3594
    %v3596 = vpop.f32.mrf.mxu0
    %v3597 = vpop.f32.mrf.mxu0
    %v3598 = vpop.f32.mrf.mxu0
    %3599 = vdwg.mxu0
    %3600 = vrot.lane.b32.xlu0 %v2491, 112
    %v3601 = vpop.permute.xlu0 %3600
    %3602 = vrot.lane.b32.xlu0 %v322, 48
    %v3603 = vpop.permute.xlu0 %3602
    %v3605 = vsel %vm324, %v3601, 0
    %v3608 = vsel %vm324, %v3603, 0
    %3610 = vmatprep.subr.bf16.mxu0 0
    %3611 = vmatpush1.bf16.xpose.msra.mxu0 0
    %3612 = vmatprep.subr.bf16.mxu0 0
    %3613 = vmatpush1.bf16.xpose.msra.mxu0 0
    %3614 = vmatprep.subr.bf16.mxu0 0
    %3615 = vmatpush1.bf16.xpose.msra.mxu0 0
    %3616 = vmatprep.subr.bf16.mxu0 0
    %3617 = vmatpush1.bf16.xpose.msra.mxu0 0
    %3618 = vmatprep.subr.bf16.mxu0 0
    %3619 = vmatpush1.bf16.xpose.msra.mxu0 0
    %3620 = vmatprep.subr.bf16.mxu0 0
    %3621 = vmatpush1.bf16.xpose.msra.mxu0 0
    %3622 = vmatprep.subr.bf16.mxu0 0
    %3623 = vmatpush1.bf16.xpose.msra.mxu0 0
    %3624 = vmatprep.subr.bf16.mxu0 0
    %3625 = vmatpush1.bf16.xpose.msra.mxu0 %v3608
    %3626 = vmatprep.subr.bf16.mxu0 0
    %3627 = vmatpush2.bf16.xpose.msra.mxu0 0
    %3628 = vmatprep.subr.bf16.mxu0 0
    %3629 = vmatpush2.bf16.xpose.msra.mxu0 0
    %3630 = vmatprep.subr.bf16.mxu0 0
    %3631 = vmatpush2.bf16.xpose.msra.mxu0 0
    %3632 = vmatprep.subr.bf16.mxu0 0
    %3633 = vmatpush2.bf16.xpose.msra.mxu0 0
    %3634 = vmatprep.subr.bf16.mxu0 0
    %3635 = vmatpush2.bf16.xpose.msra.mxu0 0
    %3636 = vmatprep.subr.bf16.mxu0 0
    %3637 = vmatpush2.bf16.xpose.msra.mxu0 0
    %3638 = vmatprep.subr.bf16.mxu0 0
    %3639 = vmatpush2.bf16.xpose.msra.mxu0 0
    %3640 = vmatprep.subr.bf16.mxu0 0
    %3641 = vmatpush2.bf16.xpose.msra.mxu0 0
    %3642 = vmatprep.mubr.bf16.mxu0 0
    %3643 = vmatmul.mubr.bf16.gmra.mxu0 %v3605
    %v3644 = vpop.f32.mrf.mxu0
    %v3645 = vadd.f32 0.0, %v3644
    %v3646 = vpop.f32.mrf.mxu0
    %v3647 = vpop.f32.mrf.mxu0
    %v3648 = vpop.f32.mrf.mxu0
    %3649 = vdwg.mxu0
    %3650 = vrot.lane.b32.xlu0 %v2492, 112
    %v3651 = vpop.permute.xlu0 %3650
    %3652 = vrot.lane.b32.xlu0 %v323, 48
    %v3653 = vpop.permute.xlu0 %3652
    %v3655 = vsel %vm324, %v3651, 0
    %v3658 = vsel %vm324, %v3653, 0
    %3660 = vmatprep.subr.bf16.mxu0 0
    %3661 = vmatpush1.bf16.xpose.msra.mxu0 0
    %3662 = vmatprep.subr.bf16.mxu0 0
    %3663 = vmatpush1.bf16.xpose.msra.mxu0 0
    %3664 = vmatprep.subr.bf16.mxu0 0
    %3665 = vmatpush1.bf16.xpose.msra.mxu0 0
    %3666 = vmatprep.subr.bf16.mxu0 0
    %3667 = vmatpush1.bf16.xpose.msra.mxu0 0
    %3668 = vmatprep.subr.bf16.mxu0 0
    %3669 = vmatpush1.bf16.xpose.msra.mxu0 0
    %3670 = vmatprep.subr.bf16.mxu0 0
    %3671 = vmatpush1.bf16.xpose.msra.mxu0 0
    %3672 = vmatprep.subr.bf16.mxu0 0
    %3673 = vmatpush1.bf16.xpose.msra.mxu0 0
    %3674 = vmatprep.subr.bf16.mxu0 0
    %3675 = vmatpush1.bf16.xpose.msra.mxu0 %v3658
    %3676 = vmatprep.subr.bf16.mxu0 0
    %3677 = vmatpush2.bf16.xpose.msra.mxu0 0
    %3678 = vmatprep.subr.bf16.mxu0 0
    %3679 = vmatpush2.bf16.xpose.msra.mxu0 0
    %3680 = vmatprep.subr.bf16.mxu0 0
    %3681 = vmatpush2.bf16.xpose.msra.mxu0 0
    %3682 = vmatprep.subr.bf16.mxu0 0
    %3683 = vmatpush2.bf16.xpose.msra.mxu0 0
    %3684 = vmatprep.subr.bf16.mxu0 0
    %3685 = vmatpush2.bf16.xpose.msra.mxu0 0
    %3686 = vmatprep.subr.bf16.mxu0 0
    %3687 = vmatpush2.bf16.xpose.msra.mxu0 0
    %3688 = vmatprep.subr.bf16.mxu0 0
    %3689 = vmatpush2.bf16.xpose.msra.mxu0 0
    %3690 = vmatprep.subr.bf16.mxu0 0
    %3691 = vmatpush2.bf16.xpose.msra.mxu0 0
    %3692 = vmatprep.mubr.bf16.mxu0 0
    %3693 = vmatmul.mubr.bf16.gmra.mxu0 %v3655
    %v3694 = vpop.f32.mrf.mxu0
    %v3695 = vadd.f32 0.0, %v3694
    %v3696 = vpop.f32.mrf.mxu0
    %v3697 = vpop.f32.mrf.mxu0
    %v3698 = vpop.f32.mrf.mxu0
    %3699 = vdwg.mxu0
    %v3700 = vsel %vm324, %v3545, -inf
    %3701 = vmax.xlane.f32.xlu0 %v3700
    %v3702 = vpop.xlane.xlu0 %3701
    %v3703 = vsel %vm324, %v3595, -inf
    %3704 = vmax.xlane.f32.xlu0 %v3703
    %v3705 = vpop.xlane.xlu0 %3704
    %v3706 = vsel %vm324, %v3645, -inf
    %3707 = vmax.xlane.f32.xlu0 %v3706
    %v3708 = vpop.xlane.xlu0 %3707
    %v3709 = vsel %vm324, %v3695, -inf
    %3710 = vmax.xlane.f32.xlu0 %v3709
    %v3711 = vpop.xlane.xlu0 %3710
    %v3712 = vsub.f32 %v3545, %v3702
    %v3713 = vsub.f32 %v3595, %v3705
    %v3714 = vsub.f32 %v3645, %v3708
    %v3715 = vsub.f32 %v3695, %v3711
    %v3716 = vmul.f32 %v3712, 1.442695
    %v3717 = vpow.pop %v3716
    %v3718 = vmul.f32 %v3713, 1.442695
    %v3719 = vpow.pop %v3718
    %v3720 = vmul.f32 %v3714, 1.442695
    %v3721 = vpow.pop %v3720
    %v3722 = vmul.f32 %v3715, 1.442695
    %v3723 = vpow.pop %v3722
    %v3724 = vsel %vm324, %v3717, 0.0
    %3725 = vadd.xlane.f32.xlu0 %v3724
    %v3726 = vpop.xlane.xlu0 %3725
    %v3727 = vsel %vm324, %v3719, 0.0
    %3728 = vadd.xlane.f32.xlu0 %v3727
    %v3729 = vpop.xlane.xlu0 %3728
    %v3730 = vsel %vm324, %v3721, 0.0
    %3731 = vadd.xlane.f32.xlu0 %v3730
    %v3732 = vpop.xlane.xlu0 %3731
    %v3733 = vsel %vm324, %v3723, 0.0
    %3734 = vadd.xlane.f32.xlu0 %v3733
    %v3735 = vpop.xlane.xlu0 %3734
    %v3736 = vrcp.pop %v3726
    %v3737 = vrcp.pop %v3729
    %v3738 = vrcp.pop %v3732
    %v3739 = vrcp.pop %v3735
    %v3740 = vmul.f32 %v3717, %v3736
    %v3741 = vmul.f32 %v3719, %v3737
    %v3742 = vmul.f32 %v3721, %v3738
    %v3743 = vmul.f32 %v3723, %v3739
    %v3744 = vpack.c.bf16 %v3740, %v3740
    %v3745 = vpack.c.bf16 %v3741, %v3741
    %v3746 = vpack.c.bf16 %v3742, %v3742
    %v3747 = vpack.c.bf16 %v3743, %v3743
    %3748 = vrot.lane.b32.xlu0 %v320, 16
    %v3749 = vpop.permute.xlu0 %3748
    %v3751 = vsel %vm324, %v3744, 0
    %v3754 = vsel %vm563, %v3749, 0
    %3756 = vmatprep.subr.bf16.mxu0 0
    %3757 = vmatpush1.bf16.msra.mxu0 0
    %3758 = vmatprep.subr.bf16.mxu0 0
    %3759 = vmatpush1.bf16.msra.mxu0 0
    %3760 = vmatprep.subr.bf16.mxu0 0
    %3761 = vmatpush1.bf16.msra.mxu0 0
    %3762 = vmatprep.subr.bf16.mxu0 0
    %3763 = vmatpush1.bf16.msra.mxu0 0
    %3764 = vmatprep.subr.bf16.mxu0 0
    %3765 = vmatpush1.bf16.msra.mxu0 0
    %3766 = vmatprep.subr.bf16.mxu0 0
    %3767 = vmatpush1.bf16.msra.mxu0 0
    %3768 = vmatprep.subr.bf16.mxu0 0
    %3769 = vmatpush1.bf16.msra.mxu0 0
    %3770 = vmatprep.subr.bf16.mxu0 0
    %3771 = vmatpush1.bf16.msra.mxu0 %v3754
    %3772 = vmatprep.subr.bf16.mxu0 0
    %3773 = vmatpush2.bf16.msra.mxu0 0
    %3774 = vmatprep.subr.bf16.mxu0 0
    %3775 = vmatpush2.bf16.msra.mxu0 0
    %3776 = vmatprep.subr.bf16.mxu0 0
    %3777 = vmatpush2.bf16.msra.mxu0 0
    %3778 = vmatprep.subr.bf16.mxu0 0
    %3779 = vmatpush2.bf16.msra.mxu0 0
    %3780 = vmatprep.subr.bf16.mxu0 0
    %3781 = vmatpush2.bf16.msra.mxu0 0
    %3782 = vmatprep.subr.bf16.mxu0 0
    %3783 = vmatpush2.bf16.msra.mxu0 0
    %3784 = vmatprep.subr.bf16.mxu0 0
    %3785 = vmatpush2.bf16.msra.mxu0 0
    %3786 = vmatprep.subr.bf16.mxu0 0
    %3787 = vmatpush2.bf16.msra.mxu0 0
    %3788 = vmatprep.mubr.bf16.mxu0 0
    %3789 = vmatmul.mubr.bf16.gmra.mxu0 %v3751
    %v3790 = vpop.f32.mrf.mxu0
    %v3791 = vadd.f32 0.0, %v3790
    %v3792 = vpop.f32.mrf.mxu0
    %v3793 = vpop.f32.mrf.mxu0
    %v3794 = vpop.f32.mrf.mxu0
    %3795 = vdwg.mxu0
    %3796 = vrot.lane.b32.xlu0 %v321, 16
    %v3797 = vpop.permute.xlu0 %3796
    %v3799 = vsel %vm324, %v3745, 0
    %v3802 = vsel %vm563, %v3797, 0
    %3804 = vmatprep.subr.bf16.mxu0 0
    %3805 = vmatpush1.bf16.msra.mxu0 0
    %3806 = vmatprep.subr.bf16.mxu0 0
    %3807 = vmatpush1.bf16.msra.mxu0 0
    %3808 = vmatprep.subr.bf16.mxu0 0
    %3809 = vmatpush1.bf16.msra.mxu0 0
    %3810 = vmatprep.subr.bf16.mxu0 0
    %3811 = vmatpush1.bf16.msra.mxu0 0
    %3812 = vmatprep.subr.bf16.mxu0 0
    %3813 = vmatpush1.bf16.msra.mxu0 0
    %3814 = vmatprep.subr.bf16.mxu0 0
    %3815 = vmatpush1.bf16.msra.mxu0 0
    %3816 = vmatprep.subr.bf16.mxu0 0
    %3817 = vmatpush1.bf16.msra.mxu0 0
    %3818 = vmatprep.subr.bf16.mxu0 0
    %3819 = vmatpush1.bf16.msra.mxu0 %v3802
    %3820 = vmatprep.subr.bf16.mxu0 0
    %3821 = vmatpush2.bf16.msra.mxu0 0
    %3822 = vmatprep.subr.bf16.mxu0 0
    %3823 = vmatpush2.bf16.msra.mxu0 0
    %3824 = vmatprep.subr.bf16.mxu0 0
    %3825 = vmatpush2.bf16.msra.mxu0 0
    %3826 = vmatprep.subr.bf16.mxu0 0
    %3827 = vmatpush2.bf16.msra.mxu0 0
    %3828 = vmatprep.subr.bf16.mxu0 0
    %3829 = vmatpush2.bf16.msra.mxu0 0
    %3830 = vmatprep.subr.bf16.mxu0 0
    %3831 = vmatpush2.bf16.msra.mxu0 0
    %3832 = vmatprep.subr.bf16.mxu0 0
    %3833 = vmatpush2.bf16.msra.mxu0 0
    %3834 = vmatprep.subr.bf16.mxu0 0
    %3835 = vmatpush2.bf16.msra.mxu0 0
    %3836 = vmatprep.mubr.bf16.mxu0 0
    %3837 = vmatmul.mubr.bf16.gmra.mxu0 %v3799
    %v3838 = vpop.f32.mrf.mxu0
    %v3839 = vadd.f32 0.0, %v3838
    %v3840 = vpop.f32.mrf.mxu0
    %v3841 = vpop.f32.mrf.mxu0
    %v3842 = vpop.f32.mrf.mxu0
    %3843 = vdwg.mxu0
    %3844 = vrot.lane.b32.xlu0 %v322, 16
    %v3845 = vpop.permute.xlu0 %3844
    %v3847 = vsel %vm324, %v3746, 0
    %v3850 = vsel %vm563, %v3845, 0
    %3852 = vmatprep.subr.bf16.mxu0 0
    %3853 = vmatpush1.bf16.msra.mxu0 0
    %3854 = vmatprep.subr.bf16.mxu0 0
    %3855 = vmatpush1.bf16.msra.mxu0 0
    %3856 = vmatprep.subr.bf16.mxu0 0
    %3857 = vmatpush1.bf16.msra.mxu0 0
    %3858 = vmatprep.subr.bf16.mxu0 0
    %3859 = vmatpush1.bf16.msra.mxu0 0
    %3860 = vmatprep.subr.bf16.mxu0 0
    %3861 = vmatpush1.bf16.msra.mxu0 0
    %3862 = vmatprep.subr.bf16.mxu0 0
    %3863 = vmatpush1.bf16.msra.mxu0 0
    %3864 = vmatprep.subr.bf16.mxu0 0
    %3865 = vmatpush1.bf16.msra.mxu0 0
    %3866 = vmatprep.subr.bf16.mxu0 0
    %3867 = vmatpush1.bf16.msra.mxu0 %v3850
    %3868 = vmatprep.subr.bf16.mxu0 0
    %3869 = vmatpush2.bf16.msra.mxu0 0
    %3870 = vmatprep.subr.bf16.mxu0 0
    %3871 = vmatpush2.bf16.msra.mxu0 0
    %3872 = vmatprep.subr.bf16.mxu0 0
    %3873 = vmatpush2.bf16.msra.mxu0 0
    %3874 = vmatprep.subr.bf16.mxu0 0
    %3875 = vmatpush2.bf16.msra.mxu0 0
    %3876 = vmatprep.subr.bf16.mxu0 0
    %3877 = vmatpush2.bf16.msra.mxu0 0
    %3878 = vmatprep.subr.bf16.mxu0 0
    %3879 = vmatpush2.bf16.msra.mxu0 0
    %3880 = vmatprep.subr.bf16.mxu0 0
    %3881 = vmatpush2.bf16.msra.mxu0 0
    %3882 = vmatprep.subr.bf16.mxu0 0
    %3883 = vmatpush2.bf16.msra.mxu0 0
    %3884 = vmatprep.mubr.bf16.mxu0 0
    %3885 = vmatmul.mubr.bf16.gmra.mxu0 %v3847
    %v3886 = vpop.f32.mrf.mxu0
    %v3887 = vadd.f32 0.0, %v3886
    %v3888 = vpop.f32.mrf.mxu0
    %v3889 = vpop.f32.mrf.mxu0
    %v3890 = vpop.f32.mrf.mxu0
    %3891 = vdwg.mxu0
    %3892 = vrot.lane.b32.xlu0 %v323, 16
    %v3893 = vpop.permute.xlu0 %3892
    %v3895 = vsel %vm324, %v3747, 0
    %v3898 = vsel %vm563, %v3893, 0
    %3900 = vmatprep.subr.bf16.mxu0 0
    %3901 = vmatpush1.bf16.msra.mxu0 0
    %3902 = vmatprep.subr.bf16.mxu0 0
    %3903 = vmatpush1.bf16.msra.mxu0 0
    %3904 = vmatprep.subr.bf16.mxu0 0
    %3905 = vmatpush1.bf16.msra.mxu0 0
    %3906 = vmatprep.subr.bf16.mxu0 0
    %3907 = vmatpush1.bf16.msra.mxu0 0
    %3908 = vmatprep.subr.bf16.mxu0 0
    %3909 = vmatpush1.bf16.msra.mxu0 0
    %3910 = vmatprep.subr.bf16.mxu0 0
    %3911 = vmatpush1.bf16.msra.mxu0 0
    %3912 = vmatprep.subr.bf16.mxu0 0
    %3913 = vmatpush1.bf16.msra.mxu0 0
    %3914 = vmatprep.subr.bf16.mxu0 0
    %3915 = vmatpush1.bf16.msra.mxu0 %v3898
    %3916 = vmatprep.subr.bf16.mxu0 0
    %3917 = vmatpush2.bf16.msra.mxu0 0
    %3918 = vmatprep.subr.bf16.mxu0 0
    %3919 = vmatpush2.bf16.msra.mxu0 0
    %3920 = vmatprep.subr.bf16.mxu0 0
    %3921 = vmatpush2.bf16.msra.mxu0 0
    %3922 = vmatprep.subr.bf16.mxu0 0
    %3923 = vmatpush2.bf16.msra.mxu0 0
    %3924 = vmatprep.subr.bf16.mxu0 0
    %3925 = vmatpush2.bf16.msra.mxu0 0
    %3926 = vmatprep.subr.bf16.mxu0 0
    %3927 = vmatpush2.bf16.msra.mxu0 0
    %3928 = vmatprep.subr.bf16.mxu0 0
    %3929 = vmatpush2.bf16.msra.mxu0 0
    %3930 = vmatprep.subr.bf16.mxu0 0
    %3931 = vmatpush2.bf16.msra.mxu0 0
    %3932 = vmatprep.mubr.bf16.mxu0 0
    %3933 = vmatmul.mubr.bf16.gmra.mxu0 %v3895
    %v3934 = vpop.f32.mrf.mxu0
    %v3935 = vadd.f32 0.0, %v3934
    %v3936 = vpop.f32.mrf.mxu0
    %v3937 = vpop.f32.mrf.mxu0
    %v3938 = vpop.f32.mrf.mxu0
    %3939 = vdwg.mxu0
    %v3940 = vpack.c.bf16 %v3839, %v3791
    %v3941 = vpack.c.bf16 %v3935, %v3887
    %s3942 = scalar_lea.vmem [#allocation10], 8
    %v3943 = vld [vmem:[%s3942] sm:$0xf]
    %v3945 = vsel %vm324, %v3940, 0
    %v3948 = vsel %vm324, %v3941, 0
    %v3951 = vsel %vm563, %v3943, 0
    %3953 = vmatprep.subr.bf16.mxu0 0
    %3954 = vmatpush1.bf16.msra.mxu0 0
    %3955 = vmatprep.subr.bf16.mxu0 0
    %3956 = vmatpush1.bf16.msra.mxu0 0
    %3957 = vmatprep.subr.bf16.mxu0 0
    %3958 = vmatpush1.bf16.msra.mxu0 0
    %3959 = vmatprep.subr.bf16.mxu0 0
    %3960 = vmatpush1.bf16.msra.mxu0 0
    %3961 = vmatprep.subr.bf16.mxu0 0
    %3962 = vmatpush1.bf16.msra.mxu0 0
    %3963 = vmatprep.subr.bf16.mxu0 0
    %3964 = vmatpush1.bf16.msra.mxu0 0
    %3965 = vmatprep.subr.bf16.mxu0 0
    %3966 = vmatpush1.bf16.msra.mxu0 0
    %3967 = vmatprep.subr.bf16.mxu0 0
    %3968 = vmatpush1.bf16.msra.mxu0 %v3951
    %3969 = vmatprep.subr.bf16.mxu0 0
    %3970 = vmatpush2.bf16.msra.mxu0 0
    %3971 = vmatprep.subr.bf16.mxu0 0
    %3972 = vmatpush2.bf16.msra.mxu0 0
    %3973 = vmatprep.subr.bf16.mxu0 0
    %3974 = vmatpush2.bf16.msra.mxu0 0
    %3975 = vmatprep.subr.bf16.mxu0 0
    %3976 = vmatpush2.bf16.msra.mxu0 0
    %3977 = vmatprep.subr.bf16.mxu0 0
    %3978 = vmatpush2.bf16.msra.mxu0 0
    %3979 = vmatprep.subr.bf16.mxu0 0
    %3980 = vmatpush2.bf16.msra.mxu0 0
    %3981 = vmatprep.subr.bf16.mxu0 0
    %3982 = vmatpush2.bf16.msra.mxu0 0
    %3983 = vmatprep.subr.bf16.mxu0 0
    %3984 = vmatpush2.bf16.msra.mxu0 0
    %3985 = vmatprep.mubr.bf16.mxu0 0
    %3986 = vmatmul.mubr.bf16.gmra.mxu0 %v3945
    %v3987 = vpop.f32.mrf.mxu0
    %v3988 = vadd.f32 0.0, %v3987
    %v3989 = vpop.f32.mrf.mxu0
    %v3990 = vpop.f32.mrf.mxu0
    %v3991 = vadd.f32 0.0, %v3990
    %v3992 = vpop.f32.mrf.mxu0
    %3993 = vmatprep.mubr.bf16.mxu0 0
    %3994 = vmatmul.mubr.bf16.gmra.mxu0 %v3948
    %v3995 = vpop.f32.mrf.mxu0
    %v3996 = vadd.f32 0.0, %v3995
    %v3997 = vpop.f32.mrf.mxu0
    %v3998 = vpop.f32.mrf.mxu0
    %v3999 = vadd.f32 0.0, %v3998
    %v4000 = vpop.f32.mrf.mxu0
    %4001 = vdwg.mxu0
    %v4002 = vadd.f32 %v3496, %v3988
    %v4003 = vadd.f32 %v3497, %v3991
    %v4004 = vadd.f32 %v3498, %v3996
    %v4005 = vadd.f32 %v3499, %v3999
    %4006 = vrot.lane.b32.xlu0 %v2489, 104
    %v4007 = vpop.permute.xlu0 %4006
    %4008 = vrot.lane.b32.xlu0 %v320, 40
    %v4009 = vpop.permute.xlu0 %4008
    %v4011 = vsel %vm324, %v4007, 0
    %v4014 = vsel %vm324, %v4009, 0
    %4016 = vmatprep.subr.bf16.mxu0 0
    %4017 = vmatpush1.bf16.xpose.msra.mxu0 0
    %4018 = vmatprep.subr.bf16.mxu0 0
    %4019 = vmatpush1.bf16.xpose.msra.mxu0 0
    %4020 = vmatprep.subr.bf16.mxu0 0
    %4021 = vmatpush1.bf16.xpose.msra.mxu0 0
    %4022 = vmatprep.subr.bf16.mxu0 0
    %4023 = vmatpush1.bf16.xpose.msra.mxu0 0
    %4024 = vmatprep.subr.bf16.mxu0 0
    %4025 = vmatpush1.bf16.xpose.msra.mxu0 0
    %4026 = vmatprep.subr.bf16.mxu0 0
    %4027 = vmatpush1.bf16.xpose.msra.mxu0 0
    %4028 = vmatprep.subr.bf16.mxu0 0
    %4029 = vmatpush1.bf16.xpose.msra.mxu0 0
    %4030 = vmatprep.subr.bf16.mxu0 0
    %4031 = vmatpush1.bf16.xpose.msra.mxu0 %v4014
    %4032 = vmatprep.subr.bf16.mxu0 0
    %4033 = vmatpush2.bf16.xpose.msra.mxu0 0
    %4034 = vmatprep.subr.bf16.mxu0 0
    %4035 = vmatpush2.bf16.xpose.msra.mxu0 0
    %4036 = vmatprep.subr.bf16.mxu0 0
    %4037 = vmatpush2.bf16.xpose.msra.mxu0 0
    %4038 = vmatprep.subr.bf16.mxu0 0
    %4039 = vmatpush2.bf16.xpose.msra.mxu0 0
    %4040 = vmatprep.subr.bf16.mxu0 0
    %4041 = vmatpush2.bf16.xpose.msra.mxu0 0
    %4042 = vmatprep.subr.bf16.mxu0 0
    %4043 = vmatpush2.bf16.xpose.msra.mxu0 0
    %4044 = vmatprep.subr.bf16.mxu0 0
    %4045 = vmatpush2.bf16.xpose.msra.mxu0 0
    %4046 = vmatprep.subr.bf16.mxu0 0
    %4047 = vmatpush2.bf16.xpose.msra.mxu0 0
    %4048 = vmatprep.mubr.bf16.mxu0 0
    %4049 = vmatmul.mubr.bf16.gmra.mxu0 %v4011
    %v4050 = vpop.f32.mrf.mxu0
    %v4051 = vadd.f32 0.0, %v4050
    %v4052 = vpop.f32.mrf.mxu0
    %v4053 = vpop.f32.mrf.mxu0
    %v4054 = vpop.f32.mrf.mxu0
    %4055 = vdwg.mxu0
    %4056 = vrot.lane.b32.xlu0 %v2490, 104
    %v4057 = vpop.permute.xlu0 %4056
    %4058 = vrot.lane.b32.xlu0 %v321, 40
    %v4059 = vpop.permute.xlu0 %4058
    %v4061 = vsel %vm324, %v4057, 0
    %v4064 = vsel %vm324, %v4059, 0
    %4066 = vmatprep.subr.bf16.mxu0 0
    %4067 = vmatpush1.bf16.xpose.msra.mxu0 0
    %4068 = vmatprep.subr.bf16.mxu0 0
    %4069 = vmatpush1.bf16.xpose.msra.mxu0 0
    %4070 = vmatprep.subr.bf16.mxu0 0
    %4071 = vmatpush1.bf16.xpose.msra.mxu0 0
    %4072 = vmatprep.subr.bf16.mxu0 0
    %4073 = vmatpush1.bf16.xpose.msra.mxu0 0
    %4074 = vmatprep.subr.bf16.mxu0 0
    %4075 = vmatpush1.bf16.xpose.msra.mxu0 0
    %4076 = vmatprep.subr.bf16.mxu0 0
    %4077 = vmatpush1.bf16.xpose.msra.mxu0 0
    %4078 = vmatprep.subr.bf16.mxu0 0
    %4079 = vmatpush1.bf16.xpose.msra.mxu0 0
    %4080 = vmatprep.subr.bf16.mxu0 0
    %4081 = vmatpush1.bf16.xpose.msra.mxu0 %v4064
    %4082 = vmatprep.subr.bf16.mxu0 0
    %4083 = vmatpush2.bf16.xpose.msra.mxu0 0
    %4084 = vmatprep.subr.bf16.mxu0 0
    %4085 = vmatpush2.bf16.xpose.msra.mxu0 0
    %4086 = vmatprep.subr.bf16.mxu0 0
    %4087 = vmatpush2.bf16.xpose.msra.mxu0 0
    %4088 = vmatprep.subr.bf16.mxu0 0
    %4089 = vmatpush2.bf16.xpose.msra.mxu0 0
    %4090 = vmatprep.subr.bf16.mxu0 0
    %4091 = vmatpush2.bf16.xpose.msra.mxu0 0
    %4092 = vmatprep.subr.bf16.mxu0 0
    %4093 = vmatpush2.bf16.xpose.msra.mxu0 0
    %4094 = vmatprep.subr.bf16.mxu0 0
    %4095 = vmatpush2.bf16.xpose.msra.mxu0 0
    %4096 = vmatprep.subr.bf16.mxu0 0
    %4097 = vmatpush2.bf16.xpose.msra.mxu0 0
    %4098 = vmatprep.mubr.bf16.mxu0 0
    %4099 = vmatmul.mubr.bf16.gmra.mxu0 %v4061
    %v4100 = vpop.f32.mrf.mxu0
    %v4101 = vadd.f32 0.0, %v4100
    %v4102 = vpop.f32.mrf.mxu0
    %v4103 = vpop.f32.mrf.mxu0
    %v4104 = vpop.f32.mrf.mxu0
    %4105 = vdwg.mxu0
    %4106 = vrot.lane.b32.xlu0 %v2491, 104
    %v4107 = vpop.permute.xlu0 %4106
    %4108 = vrot.lane.b32.xlu0 %v322, 40
    %v4109 = vpop.permute.xlu0 %4108
    %v4111 = vsel %vm324, %v4107, 0
    %v4114 = vsel %vm324, %v4109, 0
    %4116 = vmatprep.subr.bf16.mxu0 0
    %4117 = vmatpush1.bf16.xpose.msra.mxu0 0
    %4118 = vmatprep.subr.bf16.mxu0 0
    %4119 = vmatpush1.bf16.xpose.msra.mxu0 0
    %4120 = vmatprep.subr.bf16.mxu0 0
    %4121 = vmatpush1.bf16.xpose.msra.mxu0 0
    %4122 = vmatprep.subr.bf16.mxu0 0
    %4123 = vmatpush1.bf16.xpose.msra.mxu0 0
    %4124 = vmatprep.subr.bf16.mxu0 0
    %4125 = vmatpush1.bf16.xpose.msra.mxu0 0
    %4126 = vmatprep.subr.bf16.mxu0 0
    %4127 = vmatpush1.bf16.xpose.msra.mxu0 0
    %4128 = vmatprep.subr.bf16.mxu0 0
    %4129 = vmatpush1.bf16.xpose.msra.mxu0 0
    %4130 = vmatprep.subr.bf16.mxu0 0
    %4131 = vmatpush1.bf16.xpose.msra.mxu0 %v4114
    %4132 = vmatprep.subr.bf16.mxu0 0
    %4133 = vmatpush2.bf16.xpose.msra.mxu0 0
    %4134 = vmatprep.subr.bf16.mxu0 0
    %4135 = vmatpush2.bf16.xpose.msra.mxu0 0
    %4136 = vmatprep.subr.bf16.mxu0 0
    %4137 = vmatpush2.bf16.xpose.msra.mxu0 0
    %4138 = vmatprep.subr.bf16.mxu0 0
    %4139 = vmatpush2.bf16.xpose.msra.mxu0 0
    %4140 = vmatprep.subr.bf16.mxu0 0
    %4141 = vmatpush2.bf16.xpose.msra.mxu0 0
    %4142 = vmatprep.subr.bf16.mxu0 0
    %4143 = vmatpush2.bf16.xpose.msra.mxu0 0
    %4144 = vmatprep.subr.bf16.mxu0 0
    %4145 = vmatpush2.bf16.xpose.msra.mxu0 0
    %4146 = vmatprep.subr.bf16.mxu0 0
    %4147 = vmatpush2.bf16.xpose.msra.mxu0 0
    %4148 = vmatprep.mubr.bf16.mxu0 0
    %4149 = vmatmul.mubr.bf16.gmra.mxu0 %v4111
    %v4150 = vpop.f32.mrf.mxu0
    %v4151 = vadd.f32 0.0, %v4150
    %v4152 = vpop.f32.mrf.mxu0
    %v4153 = vpop.f32.mrf.mxu0
    %v4154 = vpop.f32.mrf.mxu0
    %4155 = vdwg.mxu0
    %4156 = vrot.lane.b32.xlu0 %v2492, 104
    %v4157 = vpop.permute.xlu0 %4156
    %4158 = vrot.lane.b32.xlu0 %v323, 40
    %v4159 = vpop.permute.xlu0 %4158
    %v4161 = vsel %vm324, %v4157, 0
    %v4164 = vsel %vm324, %v4159, 0
    %4166 = vmatprep.subr.bf16.mxu0 0
    %4167 = vmatpush1.bf16.xpose.msra.mxu0 0
    %4168 = vmatprep.subr.bf16.mxu0 0
    %4169 = vmatpush1.bf16.xpose.msra.mxu0 0
    %4170 = vmatprep.subr.bf16.mxu0 0
    %4171 = vmatpush1.bf16.xpose.msra.mxu0 0
    %4172 = vmatprep.subr.bf16.mxu0 0
    %4173 = vmatpush1.bf16.xpose.msra.mxu0 0
    %4174 = vmatprep.subr.bf16.mxu0 0
    %4175 = vmatpush1.bf16.xpose.msra.mxu0 0
    %4176 = vmatprep.subr.bf16.mxu0 0
    %4177 = vmatpush1.bf16.xpose.msra.mxu0 0
    %4178 = vmatprep.subr.bf16.mxu0 0
    %4179 = vmatpush1.bf16.xpose.msra.mxu0 0
    %4180 = vmatprep.subr.bf16.mxu0 0
    %4181 = vmatpush1.bf16.xpose.msra.mxu0 %v4164
    %4182 = vmatprep.subr.bf16.mxu0 0
    %4183 = vmatpush2.bf16.xpose.msra.mxu0 0
    %4184 = vmatprep.subr.bf16.mxu0 0
    %4185 = vmatpush2.bf16.xpose.msra.mxu0 0
    %4186 = vmatprep.subr.bf16.mxu0 0
    %4187 = vmatpush2.bf16.xpose.msra.mxu0 0
    %4188 = vmatprep.subr.bf16.mxu0 0
    %4189 = vmatpush2.bf16.xpose.msra.mxu0 0
    %4190 = vmatprep.subr.bf16.mxu0 0
    %4191 = vmatpush2.bf16.xpose.msra.mxu0 0
    %4192 = vmatprep.subr.bf16.mxu0 0
    %4193 = vmatpush2.bf16.xpose.msra.mxu0 0
    %4194 = vmatprep.subr.bf16.mxu0 0
    %4195 = vmatpush2.bf16.xpose.msra.mxu0 0
    %4196 = vmatprep.subr.bf16.mxu0 0
    %4197 = vmatpush2.bf16.xpose.msra.mxu0 0
    %4198 = vmatprep.mubr.bf16.mxu0 0
    %4199 = vmatmul.mubr.bf16.gmra.mxu0 %v4161
    %v4200 = vpop.f32.mrf.mxu0
    %v4201 = vadd.f32 0.0, %v4200
    %v4202 = vpop.f32.mrf.mxu0
    %v4203 = vpop.f32.mrf.mxu0
    %v4204 = vpop.f32.mrf.mxu0
    %4205 = vdwg.mxu0
    %v4206 = vsel %vm324, %v4051, -inf
    %4207 = vmax.xlane.f32.xlu0 %v4206
    %v4208 = vpop.xlane.xlu0 %4207
    %v4209 = vsel %vm324, %v4101, -inf
    %4210 = vmax.xlane.f32.xlu0 %v4209
    %v4211 = vpop.xlane.xlu0 %4210
    %v4212 = vsel %vm324, %v4151, -inf
    %4213 = vmax.xlane.f32.xlu0 %v4212
    %v4214 = vpop.xlane.xlu0 %4213
    %v4215 = vsel %vm324, %v4201, -inf
    %4216 = vmax.xlane.f32.xlu0 %v4215
    %v4217 = vpop.xlane.xlu0 %4216
    %v4218 = vsub.f32 %v4051, %v4208
    %v4219 = vsub.f32 %v4101, %v4211
    %v4220 = vsub.f32 %v4151, %v4214
    %v4221 = vsub.f32 %v4201, %v4217
    %v4222 = vmul.f32 %v4218, 1.442695
    %v4223 = vpow.pop %v4222
    %v4224 = vmul.f32 %v4219, 1.442695
    %v4225 = vpow.pop %v4224
    %v4226 = vmul.f32 %v4220, 1.442695
    %v4227 = vpow.pop %v4226
    %v4228 = vmul.f32 %v4221, 1.442695
    %v4229 = vpow.pop %v4228
    %v4230 = vsel %vm324, %v4223, 0.0
    %4231 = vadd.xlane.f32.xlu0 %v4230
    %v4232 = vpop.xlane.xlu0 %4231
    %v4233 = vsel %vm324, %v4225, 0.0
    %4234 = vadd.xlane.f32.xlu0 %v4233
    %v4235 = vpop.xlane.xlu0 %4234
    %v4236 = vsel %vm324, %v4227, 0.0
    %4237 = vadd.xlane.f32.xlu0 %v4236
    %v4238 = vpop.xlane.xlu0 %4237
    %v4239 = vsel %vm324, %v4229, 0.0
    %4240 = vadd.xlane.f32.xlu0 %v4239
    %v4241 = vpop.xlane.xlu0 %4240
    %v4242 = vrcp.pop %v4232
    %v4243 = vrcp.pop %v4235
    %v4244 = vrcp.pop %v4238
    %v4245 = vrcp.pop %v4241
    %v4246 = vmul.f32 %v4223, %v4242
    %v4247 = vmul.f32 %v4225, %v4243
    %v4248 = vmul.f32 %v4227, %v4244
    %v4249 = vmul.f32 %v4229, %v4245
    %v4250 = vpack.c.bf16 %v4246, %v4246
    %v4251 = vpack.c.bf16 %v4247, %v4247
    %v4252 = vpack.c.bf16 %v4248, %v4248
    %v4253 = vpack.c.bf16 %v4249, %v4249
    %4254 = vrot.lane.b32.xlu0 %v320, 8
    %v4255 = vpop.permute.xlu0 %4254
    %v4257 = vsel %vm324, %v4250, 0
    %v4260 = vsel %vm563, %v4255, 0
    %4262 = vmatprep.subr.bf16.mxu0 0
    %4263 = vmatpush1.bf16.msra.mxu0 0
    %4264 = vmatprep.subr.bf16.mxu0 0
    %4265 = vmatpush1.bf16.msra.mxu0 0
    %4266 = vmatprep.subr.bf16.mxu0 0
    %4267 = vmatpush1.bf16.msra.mxu0 0
    %4268 = vmatprep.subr.bf16.mxu0 0
    %4269 = vmatpush1.bf16.msra.mxu0 0
    %4270 = vmatprep.subr.bf16.mxu0 0
    %4271 = vmatpush1.bf16.msra.mxu0 0
    %4272 = vmatprep.subr.bf16.mxu0 0
    %4273 = vmatpush1.bf16.msra.mxu0 0
    %4274 = vmatprep.subr.bf16.mxu0 0
    %4275 = vmatpush1.bf16.msra.mxu0 0
    %4276 = vmatprep.subr.bf16.mxu0 0
    %4277 = vmatpush1.bf16.msra.mxu0 %v4260
    %4278 = vmatprep.subr.bf16.mxu0 0
    %4279 = vmatpush2.bf16.msra.mxu0 0
    %4280 = vmatprep.subr.bf16.mxu0 0
    %4281 = vmatpush2.bf16.msra.mxu0 0
    %4282 = vmatprep.subr.bf16.mxu0 0
    %4283 = vmatpush2.bf16.msra.mxu0 0
    %4284 = vmatprep.subr.bf16.mxu0 0
    %4285 = vmatpush2.bf16.msra.mxu0 0
    %4286 = vmatprep.subr.bf16.mxu0 0
    %4287 = vmatpush2.bf16.msra.mxu0 0
    %4288 = vmatprep.subr.bf16.mxu0 0
    %4289 = vmatpush2.bf16.msra.mxu0 0
    %4290 = vmatprep.subr.bf16.mxu0 0
    %4291 = vmatpush2.bf16.msra.mxu0 0
    %4292 = vmatprep.subr.bf16.mxu0 0
    %4293 = vmatpush2.bf16.msra.mxu0 0
    %4294 = vmatprep.mubr.bf16.mxu0 0
    %4295 = vmatmul.mubr.bf16.gmra.mxu0 %v4257
    %v4296 = vpop.f32.mrf.mxu0
    %v4297 = vadd.f32 0.0, %v4296
    %v4298 = vpop.f32.mrf.mxu0
    %v4299 = vpop.f32.mrf.mxu0
    %v4300 = vpop.f32.mrf.mxu0
    %4301 = vdwg.mxu0
    %4302 = vrot.lane.b32.xlu0 %v321, 8
    %v4303 = vpop.permute.xlu0 %4302
    %v4305 = vsel %vm324, %v4251, 0
    %v4308 = vsel %vm563, %v4303, 0
    %4310 = vmatprep.subr.bf16.mxu0 0
    %4311 = vmatpush1.bf16.msra.mxu0 0
    %4312 = vmatprep.subr.bf16.mxu0 0
    %4313 = vmatpush1.bf16.msra.mxu0 0
    %4314 = vmatprep.subr.bf16.mxu0 0
    %4315 = vmatpush1.bf16.msra.mxu0 0
    %4316 = vmatprep.subr.bf16.mxu0 0
    %4317 = vmatpush1.bf16.msra.mxu0 0
    %4318 = vmatprep.subr.bf16.mxu0 0
    %4319 = vmatpush1.bf16.msra.mxu0 0
    %4320 = vmatprep.subr.bf16.mxu0 0
    %4321 = vmatpush1.bf16.msra.mxu0 0
    %4322 = vmatprep.subr.bf16.mxu0 0
    %4323 = vmatpush1.bf16.msra.mxu0 0
    %4324 = vmatprep.subr.bf16.mxu0 0
    %4325 = vmatpush1.bf16.msra.mxu0 %v4308
    %4326 = vmatprep.subr.bf16.mxu0 0
    %4327 = vmatpush2.bf16.msra.mxu0 0
    %4328 = vmatprep.subr.bf16.mxu0 0
    %4329 = vmatpush2.bf16.msra.mxu0 0
    %4330 = vmatprep.subr.bf16.mxu0 0
    %4331 = vmatpush2.bf16.msra.mxu0 0
    %4332 = vmatprep.subr.bf16.mxu0 0
    %4333 = vmatpush2.bf16.msra.mxu0 0
    %4334 = vmatprep.subr.bf16.mxu0 0
    %4335 = vmatpush2.bf16.msra.mxu0 0
    %4336 = vmatprep.subr.bf16.mxu0 0
    %4337 = vmatpush2.bf16.msra.mxu0 0
    %4338 = vmatprep.subr.bf16.mxu0 0
    %4339 = vmatpush2.bf16.msra.mxu0 0
    %4340 = vmatprep.subr.bf16.mxu0 0
    %4341 = vmatpush2.bf16.msra.mxu0 0
    %4342 = vmatprep.mubr.bf16.mxu0 0
    %4343 = vmatmul.mubr.bf16.gmra.mxu0 %v4305
    %v4344 = vpop.f32.mrf.mxu0
    %v4345 = vadd.f32 0.0, %v4344
    %v4346 = vpop.f32.mrf.mxu0
    %v4347 = vpop.f32.mrf.mxu0
    %v4348 = vpop.f32.mrf.mxu0
    %4349 = vdwg.mxu0
    %4350 = vrot.lane.b32.xlu0 %v322, 8
    %v4351 = vpop.permute.xlu0 %4350
    %v4353 = vsel %vm324, %v4252, 0
    %v4356 = vsel %vm563, %v4351, 0
    %4358 = vmatprep.subr.bf16.mxu0 0
    %4359 = vmatpush1.bf16.msra.mxu0 0
    %4360 = vmatprep.subr.bf16.mxu0 0
    %4361 = vmatpush1.bf16.msra.mxu0 0
    %4362 = vmatprep.subr.bf16.mxu0 0
    %4363 = vmatpush1.bf16.msra.mxu0 0
    %4364 = vmatprep.subr.bf16.mxu0 0
    %4365 = vmatpush1.bf16.msra.mxu0 0
    %4366 = vmatprep.subr.bf16.mxu0 0
    %4367 = vmatpush1.bf16.msra.mxu0 0
    %4368 = vmatprep.subr.bf16.mxu0 0
    %4369 = vmatpush1.bf16.msra.mxu0 0
    %4370 = vmatprep.subr.bf16.mxu0 0
    %4371 = vmatpush1.bf16.msra.mxu0 0
    %4372 = vmatprep.subr.bf16.mxu0 0
    %4373 = vmatpush1.bf16.msra.mxu0 %v4356
    %4374 = vmatprep.subr.bf16.mxu0 0
    %4375 = vmatpush2.bf16.msra.mxu0 0
    %4376 = vmatprep.subr.bf16.mxu0 0
    %4377 = vmatpush2.bf16.msra.mxu0 0
    %4378 = vmatprep.subr.bf16.mxu0 0
    %4379 = vmatpush2.bf16.msra.mxu0 0
    %4380 = vmatprep.subr.bf16.mxu0 0
    %4381 = vmatpush2.bf16.msra.mxu0 0
    %4382 = vmatprep.subr.bf16.mxu0 0
    %4383 = vmatpush2.bf16.msra.mxu0 0
    %4384 = vmatprep.subr.bf16.mxu0 0
    %4385 = vmatpush2.bf16.msra.mxu0 0
    %4386 = vmatprep.subr.bf16.mxu0 0
    %4387 = vmatpush2.bf16.msra.mxu0 0
    %4388 = vmatprep.subr.bf16.mxu0 0
    %4389 = vmatpush2.bf16.msra.mxu0 0
    %4390 = vmatprep.mubr.bf16.mxu0 0
    %4391 = vmatmul.mubr.bf16.gmra.mxu0 %v4353
    %v4392 = vpop.f32.mrf.mxu0
    %v4393 = vadd.f32 0.0, %v4392
    %v4394 = vpop.f32.mrf.mxu0
    %v4395 = vpop.f32.mrf.mxu0
    %v4396 = vpop.f32.mrf.mxu0
    %4397 = vdwg.mxu0
    %4398 = vrot.lane.b32.xlu0 %v323, 8
    %v4399 = vpop.permute.xlu0 %4398
    %v4401 = vsel %vm324, %v4253, 0
    %v4404 = vsel %vm563, %v4399, 0
    %4406 = vmatprep.subr.bf16.mxu0 0
    %4407 = vmatpush1.bf16.msra.mxu0 0
    %4408 = vmatprep.subr.bf16.mxu0 0
    %4409 = vmatpush1.bf16.msra.mxu0 0
    %4410 = vmatprep.subr.bf16.mxu0 0
    %4411 = vmatpush1.bf16.msra.mxu0 0
    %4412 = vmatprep.subr.bf16.mxu0 0
    %4413 = vmatpush1.bf16.msra.mxu0 0
    %4414 = vmatprep.subr.bf16.mxu0 0
    %4415 = vmatpush1.bf16.msra.mxu0 0
    %4416 = vmatprep.subr.bf16.mxu0 0
    %4417 = vmatpush1.bf16.msra.mxu0 0
    %4418 = vmatprep.subr.bf16.mxu0 0
    %4419 = vmatpush1.bf16.msra.mxu0 0
    %4420 = vmatprep.subr.bf16.mxu0 0
    %4421 = vmatpush1.bf16.msra.mxu0 %v4404
    %4422 = vmatprep.subr.bf16.mxu0 0
    %4423 = vmatpush2.bf16.msra.mxu0 0
    %4424 = vmatprep.subr.bf16.mxu0 0
    %4425 = vmatpush2.bf16.msra.mxu0 0
    %4426 = vmatprep.subr.bf16.mxu0 0
    %4427 = vmatpush2.bf16.msra.mxu0 0
    %4428 = vmatprep.subr.bf16.mxu0 0
    %4429 = vmatpush2.bf16.msra.mxu0 0
    %4430 = vmatprep.subr.bf16.mxu0 0
    %4431 = vmatpush2.bf16.msra.mxu0 0
    %4432 = vmatprep.subr.bf16.mxu0 0
    %4433 = vmatpush2.bf16.msra.mxu0 0
    %4434 = vmatprep.subr.bf16.mxu0 0
    %4435 = vmatpush2.bf16.msra.mxu0 0
    %4436 = vmatprep.subr.bf16.mxu0 0
    %4437 = vmatpush2.bf16.msra.mxu0 0
    %4438 = vmatprep.mubr.bf16.mxu0 0
    %4439 = vmatmul.mubr.bf16.gmra.mxu0 %v4401
    %v4440 = vpop.f32.mrf.mxu0
    %v4441 = vadd.f32 0.0, %v4440
    %v4442 = vpop.f32.mrf.mxu0
    %v4443 = vpop.f32.mrf.mxu0
    %v4444 = vpop.f32.mrf.mxu0
    %4445 = vdwg.mxu0
    %v4446 = vpack.c.bf16 %v4345, %v4297
    %v4447 = vpack.c.bf16 %v4441, %v4393
    %s4448 = scalar_lea.vmem [#allocation10], 12
    %v4449 = vld [vmem:[%s4448] sm:$0xf]
    %v4451 = vsel %vm324, %v4446, 0
    %v4454 = vsel %vm324, %v4447, 0
    %v4457 = vsel %vm563, %v4449, 0
    %4459 = vmatprep.subr.bf16.mxu0 0
    %4460 = vmatpush1.bf16.msra.mxu0 0
    %4461 = vmatprep.subr.bf16.mxu0 0
    %4462 = vmatpush1.bf16.msra.mxu0 0
    %4463 = vmatprep.subr.bf16.mxu0 0
    %4464 = vmatpush1.bf16.msra.mxu0 0
    %4465 = vmatprep.subr.bf16.mxu0 0
    %4466 = vmatpush1.bf16.msra.mxu0 0
    %4467 = vmatprep.subr.bf16.mxu0 0
    %4468 = vmatpush1.bf16.msra.mxu0 0
    %4469 = vmatprep.subr.bf16.mxu0 0
    %4470 = vmatpush1.bf16.msra.mxu0 0
    %4471 = vmatprep.subr.bf16.mxu0 0
    %4472 = vmatpush1.bf16.msra.mxu0 0
    %4473 = vmatprep.subr.bf16.mxu0 0
    %4474 = vmatpush1.bf16.msra.mxu0 %v4457
    %4475 = vmatprep.subr.bf16.mxu0 0
    %4476 = vmatpush2.bf16.msra.mxu0 0
    %4477 = vmatprep.subr.bf16.mxu0 0
    %4478 = vmatpush2.bf16.msra.mxu0 0
    %4479 = vmatprep.subr.bf16.mxu0 0
    %4480 = vmatpush2.bf16.msra.mxu0 0
    %4481 = vmatprep.subr.bf16.mxu0 0
    %4482 = vmatpush2.bf16.msra.mxu0 0
    %4483 = vmatprep.subr.bf16.mxu0 0
    %4484 = vmatpush2.bf16.msra.mxu0 0
    %4485 = vmatprep.subr.bf16.mxu0 0
    %4486 = vmatpush2.bf16.msra.mxu0 0
    %4487 = vmatprep.subr.bf16.mxu0 0
    %4488 = vmatpush2.bf16.msra.mxu0 0
    %4489 = vmatprep.subr.bf16.mxu0 0
    %4490 = vmatpush2.bf16.msra.mxu0 0
    %4491 = vmatprep.mubr.bf16.mxu0 0
    %4492 = vmatmul.mubr.bf16.gmra.mxu0 %v4451
    %v4493 = vpop.f32.mrf.mxu0
    %v4494 = vadd.f32 0.0, %v4493
    %v4495 = vpop.f32.mrf.mxu0
    %v4496 = vpop.f32.mrf.mxu0
    %v4497 = vadd.f32 0.0, %v4496
    %v4498 = vpop.f32.mrf.mxu0
    %4499 = vmatprep.mubr.bf16.mxu0 0
    %4500 = vmatmul.mubr.bf16.gmra.mxu0 %v4454
    %v4501 = vpop.f32.mrf.mxu0
    %v4502 = vadd.f32 0.0, %v4501
    %v4503 = vpop.f32.mrf.mxu0
    %v4504 = vpop.f32.mrf.mxu0
    %v4505 = vadd.f32 0.0, %v4504
    %v4506 = vpop.f32.mrf.mxu0
    %4507 = vdwg.mxu0
    %v4508 = vadd.f32 %v4002, %v4494
    %v4509 = vadd.f32 %v4003, %v4497
    %v4510 = vadd.f32 %v4004, %v4502
    %v4511 = vadd.f32 %v4005, %v4505
    %v4512 = vld [vmem:[#allocation14] sm:$0x1]
    %v4513 = vld [vmem:[%s10] sm:$0x1]
    %v4514 = vsel %vm187, %v4508, 0.0
    %4515 = vadd.xlane.f32.xlu0 %v4514
    %v4516 = vpop.xlane.xlu0 %4515
    %v4517 = vsel %vm187, %v4509, 0.0
    %4518 = vadd.xlane.f32.xlu0 %v4517
    %v4519 = vpop.xlane.xlu0 %4518
    %v4520 = vsel %vm187, %v4510, 0.0
    %4521 = vadd.xlane.f32.xlu0 %v4520
    %v4522 = vpop.xlane.xlu0 %4521
    %v4523 = vsel %vm187, %v4511, 0.0
    %4524 = vadd.xlane.f32.xlu0 %v4523
    %v4525 = vpop.xlane.xlu0 %4524
    %v4526 = vmul.f32 %v4516, %v2355
    %v4527 = vmul.f32 %v4519, %v2355
    %v4528 = vmul.f32 %v4522, %v2355
    %v4529 = vmul.f32 %v4525, %v2355
    %v4530 = vsub.f32 %v4508, %v4526
    %v4531 = vsub.f32 %v4509, %v4527
    %v4532 = vsub.f32 %v4510, %v4528
    %v4533 = vsub.f32 %v4511, %v4529
    %v4534 = vmul.f32 %v4530, %v4530
    %v4535 = vmul.f32 %v4531, %v4531
    %v4536 = vmul.f32 %v4532, %v4532
    %v4537 = vmul.f32 %v4533, %v4533
    %v4538 = vsel %vm187, %v4534, 0.0
    %4539 = vadd.xlane.f32.xlu0 %v4538
    %v4540 = vpop.xlane.xlu0 %4539
    %v4541 = vsel %vm187, %v4535, 0.0
    %4542 = vadd.xlane.f32.xlu0 %v4541
    %v4543 = vpop.xlane.xlu0 %4542
    %v4544 = vsel %vm187, %v4536, 0.0
    %4545 = vadd.xlane.f32.xlu0 %v4544
    %v4546 = vpop.xlane.xlu0 %4545
    %v4547 = vsel %vm187, %v4537, 0.0
    %4548 = vadd.xlane.f32.xlu0 %v4547
    %v4549 = vpop.xlane.xlu0 %4548
    %v4550 = vmul.f32 %v4540, %v2355
    %v4551 = vmul.f32 %v4543, %v2355
    %v4552 = vmul.f32 %v4546, %v2355
    %v4553 = vmul.f32 %v4549, %v2355
    %v4554 = vadd.f32 %v4550, 1e-06
    %v4555 = vadd.f32 %v4551, 1e-06
    %v4556 = vadd.f32 %v4552, 1e-06
    %v4557 = vadd.f32 %v4553, 1e-06
    %v4558 = vrsqrt.pop %v4554
    %v4559 = vrsqrt.pop %v4555
    %v4560 = vrsqrt.pop %v4556
    %v4561 = vrsqrt.pop %v4557
    %v4562 = vmul.f32 %v4530, %v4558
    %v4563 = vmul.f32 %v4531, %v4559
    %v4564 = vmul.f32 %v4532, %v4560
    %v4565 = vmul.f32 %v4533, %v4561
    %v4567 = vlaneseq
    %v4568 = vshrl.u32 %v4567, 7
    %v4569 = vsub.s32 0, %v4568
    %v4570 = vrot.slane %v4512, %v4569
    %v4572 = vmul.f32 %v4562, %v4570
    %v4573 = vmul.f32 %v4563, %v4570
    %v4574 = vmul.f32 %v4564, %v4570
    %v4575 = vmul.f32 %v4565, %v4570
    %v4577 = vlaneseq
    %v4578 = vshrl.u32 %v4577, 7
    %v4579 = vsub.s32 0, %v4578
    %v4580 = vrot.slane %v4513, %v4579
    %v4582 = vadd.f32 %v4572, %v4580
    %v4583 = vadd.f32 %v4573, %v4580
    %v4584 = vadd.f32 %v4574, %v4580
    %v4585 = vadd.f32 %v4575, %v4580
    %v4586 = vpack.c.bf16 %v4583, %v4582
    %v4587 = vpack.c.bf16 %v4585, %v4584
    %v4588 = vld [vmem:[%s14] sm:$0x1]
    %v4590 = vlaneseq
    %v4591 = vshrl.u32 %v4590, 7
    %v4592 = vsub.s32 0, %v4591
    %v4593 = vrot.slane %v4588, %v4592
    %v4595 = vadd.f32 %v4582, %v4593
    %v4596 = vadd.f32 %v4583, %v4593
    %v4597 = vadd.f32 %v4584, %v4593
    %v4598 = vadd.f32 %v4585, %v4593
    %v4599 = vld [vmem:[%s11] sm:$0xf]
    %v4600 = vld [vmem:[%s11 + $0x4] sm:$0xf]
    %v4601 = vld [vmem:[%s11 + $0x8] sm:$0xf]
    %v4602 = vld [vmem:[%s11 + $0xc] sm:$0xf]
    %v4603 = vld [vmem:[%s12] sm:$0x1]
    %v4605 = vlaneseq
    %v4606 = vshrl.u32 %v4605, 7
    %v4607 = vsub.s32 0, %v4606
    %v4608 = vrot.slane %v4603, %v4607
    %v4614 = vunpack.c.l.b16 %v4599
    %v4615 = vunpack.c.l.b16 %v4600
    %v4616 = vunpack.c.l.b16 %v4601
    %v4617 = vunpack.c.l.b16 %v4602
    %v4618 = vpack.c.b16 %v4615, %v4614
    %v4619 = vpack.c.b16 %v4617, %v4616
    %v4623 = vsel %vm187, %v4586, 0
    %v4626 = vsel %vm187, %v4587, 0
    %4628 = vmatprep.subr.bf16.mxu0 0
    %4629 = vmatpush1.bf16.msra.mxu0 0
    %4630 = vmatprep.subr.bf16.mxu0 0
    %4631 = vmatpush1.bf16.msra.mxu0 0
    %4632 = vmatprep.subr.bf16.mxu0 0
    %4633 = vmatpush1.bf16.msra.mxu0 0
    %4634 = vmatprep.subr.bf16.mxu0 0
    %4635 = vmatpush1.bf16.msra.mxu0 0
    %4636 = vmatprep.subr.bf16.mxu0 0
    %4637 = vmatpush1.bf16.msra.mxu0 0
    %4638 = vmatprep.subr.bf16.mxu0 0
    %4639 = vmatpush1.bf16.msra.mxu0 0
    %4640 = vmatprep.subr.bf16.mxu0 0
    %4641 = vmatpush1.bf16.msra.mxu0 %v4619
    %4642 = vmatprep.subr.bf16.mxu0 0
    %4643 = vmatpush1.bf16.msra.mxu0 %v4618
    %4644 = vmatprep.subr.bf16.mxu0 0
    %4645 = vmatpush2.bf16.msra.mxu0 0
    %4646 = vmatprep.subr.bf16.mxu0 0
    %4647 = vmatpush2.bf16.msra.mxu0 0
    %4648 = vmatprep.subr.bf16.mxu0 0
    %4649 = vmatpush2.bf16.msra.mxu0 0
    %4650 = vmatprep.subr.bf16.mxu0 0
    %4651 = vmatpush2.bf16.msra.mxu0 0
    %4652 = vmatprep.subr.bf16.mxu0 0
    %4653 = vmatpush2.bf16.msra.mxu0 0
    %4654 = vmatprep.subr.bf16.mxu0 0
    %4655 = vmatpush2.bf16.msra.mxu0 0
    %4656 = vmatprep.subr.bf16.mxu0 0
    %4657 = vmatpush2.bf16.msra.mxu0 0
    %4658 = vmatprep.subr.bf16.mxu0 0
    %4659 = vmatpush2.bf16.msra.mxu0 0
    %4660 = vmatprep.mubr.bf16.mxu0 0
    %4661 = vmatmul.mubr.bf16.gmra.mxu0 %v4623
    %v4662 = vpop.f32.mrf.mxu0
    %v4663 = vadd.f32 %v4608, %v4662
    %v4664 = vpop.f32.mrf.mxu0
    %v4665 = vpop.f32.mrf.mxu0
    %v4666 = vadd.f32 %v4608, %v4665
    %v4667 = vpop.f32.mrf.mxu0
    %4668 = vmatprep.mubr.bf16.mxu0 0
    %4669 = vmatmul.mubr.bf16.gmra.mxu0 %v4626
    %v4670 = vpop.f32.mrf.mxu0
    %v4671 = vadd.f32 %v4608, %v4670
    %v4672 = vpop.f32.mrf.mxu0
    %v4673 = vpop.f32.mrf.mxu0
    %v4674 = vadd.f32 %v4608, %v4673
    %v4675 = vpop.f32.mrf.mxu0
    %4676 = vdwg.mxu0
    %v4677 = vmax.f32 %v4663, 0.0
    %v4678 = vmax.f32 %v4666, 0.0
    %v4679 = vmax.f32 %v4671, 0.0
    %v4680 = vmax.f32 %v4674, 0.0
    %v4681 = vpack.c.bf16 %v4678, %v4677
    %v4682 = vpack.c.bf16 %v4680, %v4679
    %v4683 = vld [vmem:[%s13] sm:$0xf]
    %v4684 = vld [vmem:[%s13 + $0x4] sm:$0xf]
    %v4685 = vld [vmem:[%s13 + $0x8] sm:$0xf]
    %v4686 = vld [vmem:[%s13 + $0xc] sm:$0xf]
    %v4687 = vld [vmem:[%s13 + $0x10] sm:$0xf]
    %v4688 = vld [vmem:[%s13 + $0x14] sm:$0xf]
    %v4689 = vld [vmem:[%s13 + $0x18] sm:$0xf]
    %v4690 = vld [vmem:[%s13 + $0x1c] sm:$0xf]
    %v4699 = vunpack.c.l.b16 %v4683
    %v4700 = vunpack.c.l.b16 %v4684
    %v4701 = vunpack.c.l.b16 %v4685
    %v4702 = vunpack.c.l.b16 %v4686
    %v4703 = vunpack.c.l.b16 %v4687
    %v4704 = vunpack.c.l.b16 %v4688
    %v4705 = vunpack.c.l.b16 %v4689
    %v4706 = vunpack.c.l.b16 %v4690
    %v4707 = vpack.c.b16 %v4700, %v4699
    %v4708 = vpack.c.b16 %v4702, %v4701
    %v4709 = vpack.c.b16 %v4704, %v4703
    %v4710 = vpack.c.b16 %v4706, %v4705
    %vm4715 = vcmask 523264
    %v4717 = vsel %vm4715, %v4681, 0
    %v4720 = vsel %vm4715, %v4682, 0
    %4722 = vmatprep.subr.bf16.mxu0 0
    %4723 = vmatpush1.bf16.msra.mxu0 0
    %4724 = vmatprep.subr.bf16.mxu0 0
    %4725 = vmatpush1.bf16.msra.mxu0 0
    %4726 = vmatprep.subr.bf16.mxu0 0
    %4727 = vmatpush1.bf16.msra.mxu0 0
    %4728 = vmatprep.subr.bf16.mxu0 0
    %4729 = vmatpush1.bf16.msra.mxu0 0
    %4730 = vmatprep.subr.bf16.mxu0 0
    %4731 = vmatpush1.bf16.msra.mxu0 %v4710
    %4732 = vmatprep.subr.bf16.mxu0 0
    %4733 = vmatpush1.bf16.msra.mxu0 %v4709
    %4734 = vmatprep.subr.bf16.mxu0 0
    %4735 = vmatpush1.bf16.msra.mxu0 %v4708
    %4736 = vmatprep.subr.bf16.mxu0 0
    %4737 = vmatpush1.bf16.msra.mxu0 %v4707
    %4738 = vmatprep.subr.bf16.mxu0 0
    %4739 = vmatpush2.bf16.msra.mxu0 0
    %4740 = vmatprep.subr.bf16.mxu0 0
    %4741 = vmatpush2.bf16.msra.mxu0 0
    %4742 = vmatprep.subr.bf16.mxu0 0
    %4743 = vmatpush2.bf16.msra.mxu0 0
    %4744 = vmatprep.subr.bf16.mxu0 0
    %4745 = vmatpush2.bf16.msra.mxu0 0
    %4746 = vmatprep.subr.bf16.mxu0 0
    %4747 = vmatpush2.bf16.msra.mxu0 0
    %4748 = vmatprep.subr.bf16.mxu0 0
    %4749 = vmatpush2.bf16.msra.mxu0 0
    %4750 = vmatprep.subr.bf16.mxu0 0
    %4751 = vmatpush2.bf16.msra.mxu0 0
    %4752 = vmatprep.subr.bf16.mxu0 0
    %4753 = vmatpush2.bf16.msra.mxu0 0
    %4754 = vmatprep.mubr.bf16.mxu0 0
    %4755 = vmatmul.mubr.bf16.gmra.mxu0 %v4717
    %v4756 = vpop.f32.mrf.mxu0
    %v4757 = vadd.f32 0.0, %v4756
    %v4758 = vpop.f32.mrf.mxu0
    %v4759 = vpop.f32.mrf.mxu0
    %v4760 = vadd.f32 0.0, %v4759
    %v4761 = vpop.f32.mrf.mxu0
    %4762 = vmatprep.mubr.bf16.mxu0 0
    %4763 = vmatmul.mubr.bf16.gmra.mxu0 %v4720
    %v4764 = vpop.f32.mrf.mxu0
    %v4765 = vadd.f32 0.0, %v4764
    %v4766 = vpop.f32.mrf.mxu0
    %v4767 = vpop.f32.mrf.mxu0
    %v4768 = vadd.f32 0.0, %v4767
    %v4769 = vpop.f32.mrf.mxu0
    %4770 = vdwg.mxu0
    %v4771 = vadd.f32 %v4595, %v4757
    %v4772 = vadd.f32 %v4596, %v4760
    %v4773 = vadd.f32 %v4597, %v4765
    %v4774 = vadd.f32 %v4598, %v4768
    %v4775 = vld [vmem:[%s15] sm:$0x1]
    %v4776 = vld [vmem:[%s16] sm:$0x1]
    %v4777 = vsel %vm187, %v4771, 0.0
    %4778 = vadd.xlane.f32.xlu0 %v4777
    %v4779 = vpop.xlane.xlu0 %4778
    %v4780 = vsel %vm187, %v4772, 0.0
    %4781 = vadd.xlane.f32.xlu0 %v4780
    %v4782 = vpop.xlane.xlu0 %4781
    %v4783 = vsel %vm187, %v4773, 0.0
    %4784 = vadd.xlane.f32.xlu0 %v4783
    %v4785 = vpop.xlane.xlu0 %4784
    %v4786 = vsel %vm187, %v4774, 0.0
    %4787 = vadd.xlane.f32.xlu0 %v4786
    %v4788 = vpop.xlane.xlu0 %4787
    %v4789 = vmul.f32 %v4779, %v2355
    %v4790 = vmul.f32 %v4782, %v2355
    %v4791 = vmul.f32 %v4785, %v2355
    %v4792 = vmul.f32 %v4788, %v2355
    %v4793 = vsub.f32 %v4771, %v4789
    %v4794 = vsub.f32 %v4772, %v4790
    %v4795 = vsub.f32 %v4773, %v4791
    %v4796 = vsub.f32 %v4774, %v4792
    %v4797 = vmul.f32 %v4793, %v4793
    %v4798 = vmul.f32 %v4794, %v4794
    %v4799 = vmul.f32 %v4795, %v4795
    %v4800 = vmul.f32 %v4796, %v4796
    %v4801 = vsel %vm187, %v4797, 0.0
    %4802 = vadd.xlane.f32.xlu0 %v4801
    %v4803 = vpop.xlane.xlu0 %4802
    %v4804 = vsel %vm187, %v4798, 0.0
    %4805 = vadd.xlane.f32.xlu0 %v4804
    %v4806 = vpop.xlane.xlu0 %4805
    %v4807 = vsel %vm187, %v4799, 0.0
    %4808 = vadd.xlane.f32.xlu0 %v4807
    %v4809 = vpop.xlane.xlu0 %4808
    %v4810 = vsel %vm187, %v4800, 0.0
    %4811 = vadd.xlane.f32.xlu0 %v4810
    %v4812 = vpop.xlane.xlu0 %4811
    %v4813 = vmul.f32 %v4803, %v2355
    %v4814 = vmul.f32 %v4806, %v2355
    %v4815 = vmul.f32 %v4809, %v2355
    %v4816 = vmul.f32 %v4812, %v2355
    %v4817 = vadd.f32 %v4813, 1e-06
    %v4818 = vadd.f32 %v4814, 1e-06
    %v4819 = vadd.f32 %v4815, 1e-06
    %v4820 = vadd.f32 %v4816, 1e-06
    %v4821 = vrsqrt.pop %v4817
    %v4822 = vrsqrt.pop %v4818
    %v4823 = vrsqrt.pop %v4819
    %v4824 = vrsqrt.pop %v4820
    %v4825 = vmul.f32 %v4793, %v4821
    %v4826 = vmul.f32 %v4794, %v4822
    %v4827 = vmul.f32 %v4795, %v4823
    %v4828 = vmul.f32 %v4796, %v4824
    %v4830 = vlaneseq
    %v4831 = vshrl.u32 %v4830, 7
    %v4832 = vsub.s32 0, %v4831
    %v4833 = vrot.slane %v4775, %v4832
    %v4835 = vmul.f32 %v4825, %v4833
    %v4836 = vmul.f32 %v4826, %v4833
    %v4837 = vmul.f32 %v4827, %v4833
    %v4838 = vmul.f32 %v4828, %v4833
    %v4840 = vlaneseq
    %v4841 = vshrl.u32 %v4840, 7
    %v4842 = vsub.s32 0, %v4841
    %v4843 = vrot.slane %v4776, %v4842
    %v4845 = vadd.f32 %v4835, %v4843
    %v4846 = vadd.f32 %v4836, %v4843
    %v4847 = vadd.f32 %v4837, %v4843
    %v4848 = vadd.f32 %v4838, %v4843
    %4849 = vst.msk [vmem:[#allocation16] sm:$0xff] %vm187, %v4845
    %4850 = vst.msk [vmem:[#allocation16 + $0x8] sm:$0xff] %vm187, %v4846
    %4851 = vst.msk [vmem:[#allocation16 + $0x10] sm:$0xff] %vm187, %v4847
    %4852 = vst.msk [vmem:[#allocation16 + $0x18] sm:$0xff] %vm187, %v4848
    // Predicated region
    $region102: #{tpu_custom_call.1} parent=1 // pred_check
      _
    $region103: #{tpu_custom_call.1} parent=1 // pred_check_branch
      %4854 = sbr.rel (0) target = $region105
    $region104: #{tpu_custom_call.1} parent=1 // pred_region
      %s4856 = ssub.s32 512, 512
      %4857 = vsyncadd [#allocation4], %s4856
      %s4858 = sshll.u32 [#allocation16], 4
      %s4859 = int_to_ptr.vmem [resolvable:$true] %s4858
      %4864 = dma.vmem_to_hbm [thread:$0]  %s4859, 512, %s17, [#allocation4], 128, 128, 8
    $region105: #{tpu_custom_call.1} parent=1 // pred_fallthru
      _
    // Predicated region
    $region106: #{tpu_custom_call.1} parent=1 // pred_check
      _
    $region107: #{tpu_custom_call.1} parent=1 // pred_check_branch
      %4866 = sbr.rel (0) target = $region109
    $region108: #{tpu_custom_call.1} parent=1 // pred_region
      %4867 = dma.done [#allocation4], 512
    $region109: #{tpu_custom_call.1} parent=1 // pred_fallthru
      _
    %4868 = vsyncpa [#allocation3], 1
    %4869 = vsyncpa [#allocation6], 1
    %4870 = vsyncpa [#allocation9], 1
    %4871 = vsyncpa [#allocation12], 1
    %4872 = vsyncpa [#allocation15], 1
    %4873 = vsyncpa [#allocation4], 1

</llo_original>
